<compile_context>
chip_gen: v5e
topology: v5e:2x2
jax: 0.10.0
libtpu: 0.0.40
codegen_flags: <defaults>
</compile_context>

<pallas_src>
import jax
import jax.numpy as jnp
from jax.experimental import pallas as pl
from jax.experimental.pallas import tpu as pltpu

# ---- configs (small, consistent with the module's __init__) ----
MAX_PLAYER = 4
VALUATION_RANGE = 8
MAX_ENTRY = 5
EMB_SIZE = 128
HIDDEN = 1024
INPUT_SIZE = MAX_PLAYER * VALUATION_RANGE + 2 * EMB_SIZE          # 288
INPUT_PAD = 384                                                   # 3 * 128, lane-aligned K
OUTPUT_SIZE = MAX_PLAYER * VALUATION_RANGE * VALUATION_RANGE      # 256
BN_EPS = 1e-5
VMEM_LIMIT_BYTES = 48 * 1024 * 1024   # fits v7x's 64 MiB physical VMEM with headroom


def _bn_relu(h):
    # training-mode BatchNorm1d(affine=False): batch mean / biased batch var, then ReLU
    mean = jnp.mean(h, axis=0, keepdims=True)
    var = jnp.mean((h - mean) ** 2, axis=0, keepdims=True)
    return jnp.maximum((h - mean) * jax.lax.rsqrt(var + BN_EPS), 0.0)


def _dot_f32(h, w_ref):
    # Weights live in HBM/VMEM as bf16 (halves the dominant weight DMA); upcast to f32 at
    # the MXU feed so f32 activations are not truncated.  f32 accumulation.
    return jnp.dot(h, w_ref[...].astype(jnp.float32), preferred_element_type=jnp.float32)


def _seg_roll(x, sub, s):
    """Group-cyclic roll by +s within width-8 lane groups.

    out[:, l] = x[:, 8*(l//8) + ((l%8 - s) % 8)]
    pltpu.roll follows jnp.roll semantics: roll(x, shift)[l] = x[(l - shift) % n], so the
    in-group source is at lane l-s when l%8 >= s, else it wraps to lane l + 8 - s.  Both
    masks are static (one iota), and whole-array wraparound never leaks across groups.
    """
    n = x.shape[-1]
    near = pltpu.roll(x, shift=s, axis=1)                        # x[:, l - s]
    far = pltpu.roll(x, shift=n - VALUATION_RANGE + s, axis=1)   # x[:, l + 8 - s]
    return jnp.where(sub >= s, near, far)


def mlp_solver_kernel(x_ref, w1, w2, w3, w4, w5, b5, out_ref):
    h = x_ref[...]                                   # (B, 384) f32, zero-padded input
    h = _bn_relu(_dot_f32(h, w1))                    # b1..b4 cancel under training-mode BN
    h = _bn_relu(_dot_f32(h, w2))
    h = _bn_relu(_dot_f32(h, w3))
    h = _bn_relu(_dot_f32(h, w4))
    y = _dot_f32(h, w5) + b5[...]                    # (B, 256) f32 logits

    # ---- grouped softmax over width-8 lane groups, in the lane-dense (B, 256) layout ----
    lane = jax.lax.broadcasted_iota(jnp.int32, y.shape, 1)
    sub = lane & (VALUATION_RANGE - 1)               # static lane-in-group index (lane % 8)

    # per-group max: 3-step segmented reduction tree (exact)
    m = y
    for s in (1, 2, 4):
        m = jnp.maximum(m, _seg_roll(m, sub, s))
    e = jnp.exp(y - m)

    # per-group sum: same segmented tree with +, each group element counted exactly once
    d = e
    for s in (1, 2, 4):
        d = d + _seg_roll(d, sub, s)
    out_ref[...] = e / d                             # lane-dense (B, 256) store


def init_params(key):
    ks = jax.random.split(key, 12)
    p = {}
    # embedding tables (same init spirit as nn.Embedding: N(0,1)), deterministic
    p["mech_emb"] = jax.random.normal(ks[0], (4, EMB_SIZE), jnp.float32)
    p["ent_emb"] = jax.random.normal(ks[1], (MAX_ENTRY + 1, EMB_SIZE), jnp.float32)
    dims = [INPUT_SIZE, HIDDEN, HIDDEN, HIDDEN, HIDDEN, OUTPUT_SIZE]
    for i in range(5):
        fan_in = dims[i]
        scale = 1.0 / jnp.sqrt(jnp.float32(fan_in))
        w = scale * jax.random.normal(ks[2 + 2 * i], (dims[i], dims[i + 1]), jnp.float32)
        if i == 0:
            # zero-pad K: 288 -> 384 so the first matmul has a lane-aligned contraction dim
            w = jnp.pad(w, ((0, INPUT_PAD - INPUT_SIZE), (0, 0)))
        p[f"w{i + 1}"] = w.astype(jnp.bfloat16)       # bf16 weights in HBM, f32 accumulation
    # b1..b4 are mathematically dead under training-mode affine=False BatchNorm
    scale5 = 1.0 / jnp.sqrt(jnp.float32(HIDDEN))
    p["b5"] = scale5 * jax.random.normal(ks[11], (1, OUTPUT_SIZE), jnp.float32)
    return p


def _build_inputs(mechanism, entry, value_dists, params):
    # glue: embedding gathers + flatten + concat (cheap, data-dependent indexing -> XLA)
    mech_emb = params["mech_emb"][mechanism]                         # (..., 128)
    ent_emb = params["ent_emb"][entry]                               # (..., 128)
    vd = value_dists.reshape(value_dists.shape[:-2] + (-1,))         # (..., P*V)
    x = jnp.concatenate([mech_emb, ent_emb, vd], axis=-1).astype(jnp.float32)  # (..., 288)
    pad = [(0, 0)] * (x.ndim - 1) + [(0, INPUT_PAD - INPUT_SIZE)]
    return jnp.pad(x, pad)                                           # (..., 384)


def mlp_solver_forward(mechanism, entry, value_dists, params):
    """One module forward (full-batch BN), gridless: right for one-off small batches."""
    x = _build_inputs(mechanism, entry, value_dists, params)         # (B, 384)
    B = x.shape[0]
    vmem = pl.BlockSpec(memory_space=pltpu.MemorySpace.VMEM)
    args = (x, params["w1"], params["w2"], params["w3"], params["w4"],
            params["w5"], params["b5"])
    out2d = pl.pallas_call(
        mlp_solver_kernel,
        out_shape=jax.ShapeDtypeStruct((B, OUTPUT_SIZE), jnp.float32),  # lane-dense (B, 256)
        in_specs=[vmem] * len(args),
        out_specs=vmem,
        compiler_params=pltpu.CompilerParams(vmem_limit_bytes=VMEM_LIMIT_BYTES),
    )(*args)
    # free metadata reshape in the wrapper (matches y.view(B, P, V, V).softmax(-1))
    return out2d.reshape(B, MAX_PLAYER, VALUATION_RANGE, VALUATION_RANGE)


def mlp_solver_forward_many(mechanism, entry, value_dists, params):
    """G independent forward calls in one pallas_call (inputs have a leading G axis).

    Weights stay VMEM-resident across the grid (constant-index BlockSpecs), amortizing the
    ~7.25 MiB weight DMA over G calls.  Each grid step computes its own BatchNorm stats,
    identical to G separate module forwards.  The grid axis is "parallel" (v7x megacore).
    """
    x = _build_inputs(mechanism, entry, value_dists, params)         # (G, B, 384)
    G, B, _ = x.shape
    w_specs = [
        pl.BlockSpec((INPUT_PAD, HIDDEN), lambda g: (0, 0)),
        pl.BlockSpec((HIDDEN, HIDDEN), lambda g: (0, 0)),
        pl.BlockSpec((HIDDEN, HIDDEN), lambda g: (0, 0)),
        pl.BlockSpec((HIDDEN, HIDDEN), lambda g: (0, 0)),
        pl.BlockSpec((HIDDEN, OUTPUT_SIZE), lambda g: (0, 0)),
        pl.BlockSpec((1, OUTPUT_SIZE), lambda g: (0, 0)),
    ]
    out3d = pl.pallas_call(
        mlp_solver_kernel,
        out_shape=jax.ShapeDtypeStruct((G, B, OUTPUT_SIZE), jnp.float32),
        grid=(G,),
        in_specs=[pl.BlockSpec((None, B, INPUT_PAD), lambda g: (g, 0, 0))] + w_specs,
        out_specs=pl.BlockSpec((None, B, OUTPUT_SIZE), lambda g: (g, 0, 0)),
        compiler_params=pltpu.CompilerParams(
            dimension_semantics=("parallel",),
            vmem_limit_bytes=VMEM_LIMIT_BYTES),
    )(x, params["w1"], params["w2"], params["w3"], params["w4"], params["w5"], params["b5"])
    return out3d.reshape(G, B, MAX_PLAYER, VALUATION_RANGE, VALUATION_RANGE)


def mlp_solver_reference(mechanism, entry, value_dists, params):
    """Pure-JAX reference (same math, XLA instead of Mosaic) for one forward call."""
    x = _build_inputs(mechanism, entry, value_dists, params)
    f32 = lambda k: params[k].astype(jnp.float32)
    h = _bn_relu(x @ f32("w1"))
    h = _bn_relu(h @ f32("w2"))
    h = _bn_relu(h @ f32("w3"))
    h = _bn_relu(h @ f32("w4"))
    y = h @ f32("w5") + params["b5"]
    y = y.reshape(y.shape[0], MAX_PLAYER, VALUATION_RANGE, VALUATION_RANGE)
    return jax.nn.softmax(y, axis=-1)


if __name__ == "__main__":
    key = jax.random.PRNGKey(0)
    k_params, k_mech, k_ent, k_vd = jax.random.split(key, 4)

    params = init_params(k_params)

    G, B = 4, 8   # 4 independent B=8 calls
    mechanism = jax.random.randint(k_mech, (G, B), 0, 4, dtype=jnp.int32)
    entry = jax.random.randint(k_ent, (G, B), 0, MAX_ENTRY + 1, dtype=jnp.int32)
    vd_raw = jax.random.uniform(k_vd, (G, B, MAX_PLAYER, VALUATION_RANGE), jnp.float32)
    value_dists = vd_raw / jnp.sum(vd_raw, axis=-1, keepdims=True)

    # single-call path (one module forward)
    y_single = jax.block_until_ready(
        mlp_solver_forward(mechanism[0], entry[0], value_dists[0], params))

    # batched path: G independent calls, weights VMEM-resident across grid steps
    y_many = jax.block_until_ready(
        mlp_solver_forward_many(mechanism, entry, value_dists, params))

    assert y_single.shape == (B, MAX_PLAYER, VALUATION_RANGE, VALUATION_RANGE)
    assert y_many.shape == (G, B, MAX_PLAYER, VALUATION_RANGE, VALUATION_RANGE)
    assert bool(jnp.all(jnp.isfinite(y_single))) and bool(jnp.all(jnp.isfinite(y_many)))
    assert bool(jnp.all(y_single >= 0.0)) and bool(jnp.all(y_many >= 0.0))
    # softmax rows sum to 1 (also validates the segmented roll reduction structure)
    assert bool(jnp.allclose(jnp.sum(y_single, axis=-1), 1.0, atol=1e-5))
    assert bool(jnp.allclose(jnp.sum(y_many, axis=-1), 1.0, atol=1e-5))
    # batched chunk 0 matches the single-call path (same kernel math, same weights)
    assert bool(jnp.allclose(y_many[0], y_single, atol=1e-5))
    # pure-JAX reference (loose tolerance: bf16-stored weights + default XLA matmul precision)
    y_ref = jax.vmap(lambda m, e, v: mlp_solver_reference(m, e, v, params))(
        mechanism, entry, value_dists)
    assert bool(jnp.allclose(y_many, y_ref, atol=3e-2))

    print("KERNEL_OK")
</pallas_src>

<mosaic_0001>
module attributes {stable_mosaic.version = 11 : i64} {
  func.func @mlp_solver_kernel(%arg0: memref<8x384xf32, #tpu.memory_space<vmem>>, %arg1: memref<384x1024xbf16, #tpu.memory_space<vmem>>, %arg2: memref<1024x1024xbf16, #tpu.memory_space<vmem>>, %arg3: memref<1024x1024xbf16, #tpu.memory_space<vmem>>, %arg4: memref<1024x1024xbf16, #tpu.memory_space<vmem>>, %arg5: memref<1024x256xbf16, #tpu.memory_space<vmem>>, %arg6: memref<1x256xf32, #tpu.memory_space<vmem>>, %arg7: memref<8x256xf32, #tpu.memory_space<vmem>>) attributes {dimension_semantics = [], scalar_prefetch = 0 : i64, scratch_operands = 0 : i64, tpu.core_type = #tpu.core_type<tc>} {
    %c0 = arith.constant 0 : index
    %c0_0 = arith.constant 0 : index
    %0 = vector.load %arg0[%c0, %c0_0] : memref<8x384xf32, #tpu.memory_space<vmem>>, vector<8x384xf32>
    %c0_1 = arith.constant 0 : index
    %c0_2 = arith.constant 0 : index
    %1 = vector.load %arg1[%c0_1, %c0_2] : memref<384x1024xbf16, #tpu.memory_space<vmem>>, vector<384x1024xbf16>
    %2 = arith.extf %1 : vector<384x1024xbf16> to vector<384x1024xf32>
    %cst = arith.constant dense<0.000000e+00> : vector<8x1024xf32>
    %3 = tpu.matmul %0, %2, %cst {dimension_numbers = #tpu.dot_dimension_numbers<[1], [0], [0], [1], [0, 0, 1, 1], [], []>} : vector<8x384xf32>, vector<384x1024xf32>, vector<8x1024xf32> -> vector<8x1024xf32>
    %cst_3 = arith.constant dense<0.000000e+00> : vector<1024xf32>
    %4 = vector.multi_reduction <add>, %3, %cst_3 [0] : vector<8x1024xf32> to vector<1024xf32>
    %5 = vector.shape_cast %4 : vector<1024xf32> to vector<1x1024xf32>
    %cst_4 = arith.constant 8.000000e+00 : f32
    %6 = vector.broadcast %cst_4 : f32 to vector<1x1024xf32>
    %7 = arith.divf %5, %6 : vector<1x1024xf32>
    %8 = vector.broadcast %7 : vector<1x1024xf32> to vector<8x1024xf32>
    %9 = arith.subf %3, %8 : vector<8x1024xf32>
    %10 = arith.mulf %9, %9 : vector<8x1024xf32>
    %cst_5 = arith.constant dense<0.000000e+00> : vector<1024xf32>
    %11 = vector.multi_reduction <add>, %10, %cst_5 [0] : vector<8x1024xf32> to vector<1024xf32>
    %12 = vector.shape_cast %11 : vector<1024xf32> to vector<1x1024xf32>
    %cst_6 = arith.constant 8.000000e+00 : f32
    %13 = vector.broadcast %cst_6 : f32 to vector<1x1024xf32>
    %14 = arith.divf %12, %13 : vector<1x1024xf32>
    %15 = vector.broadcast %7 : vector<1x1024xf32> to vector<8x1024xf32>
    %16 = arith.subf %3, %15 : vector<8x1024xf32>
    %cst_7 = arith.constant 9.99999974E-6 : f32
    %17 = vector.broadcast %cst_7 : f32 to vector<1x1024xf32>
    %18 = arith.addf %14, %17 : vector<1x1024xf32>
    %19 = math.rsqrt %18 : vector<1x1024xf32>
    %20 = vector.broadcast %19 : vector<1x1024xf32> to vector<8x1024xf32>
    %21 = arith.mulf %16, %20 : vector<8x1024xf32>
    %cst_8 = arith.constant 0.000000e+00 : f32
    %22 = vector.broadcast %cst_8 : f32 to vector<8x1024xf32>
    %23 = arith.maximumf %21, %22 : vector<8x1024xf32>
    %c0_9 = arith.constant 0 : index
    %c0_10 = arith.constant 0 : index
    %24 = vector.load %arg2[%c0_9, %c0_10] : memref<1024x1024xbf16, #tpu.memory_space<vmem>>, vector<1024x1024xbf16>
    %25 = arith.extf %24 : vector<1024x1024xbf16> to vector<1024x1024xf32>
    %cst_11 = arith.constant dense<0.000000e+00> : vector<8x1024xf32>
    %26 = tpu.matmul %23, %25, %cst_11 {dimension_numbers = #tpu.dot_dimension_numbers<[1], [0], [0], [1], [0, 0, 1, 1], [], []>} : vector<8x1024xf32>, vector<1024x1024xf32>, vector<8x1024xf32> -> vector<8x1024xf32>
    %cst_12 = arith.constant dense<0.000000e+00> : vector<1024xf32>
    %27 = vector.multi_reduction <add>, %26, %cst_12 [0] : vector<8x1024xf32> to vector<1024xf32>
    %28 = vector.shape_cast %27 : vector<1024xf32> to vector<1x1024xf32>
    %cst_13 = arith.constant 8.000000e+00 : f32
    %29 = vector.broadcast %cst_13 : f32 to vector<1x1024xf32>
    %30 = arith.divf %28, %29 : vector<1x1024xf32>
    %31 = vector.broadcast %30 : vector<1x1024xf32> to vector<8x1024xf32>
    %32 = arith.subf %26, %31 : vector<8x1024xf32>
    %33 = arith.mulf %32, %32 : vector<8x1024xf32>
    %cst_14 = arith.constant dense<0.000000e+00> : vector<1024xf32>
    %34 = vector.multi_reduction <add>, %33, %cst_14 [0] : vector<8x1024xf32> to vector<1024xf32>
    %35 = vector.shape_cast %34 : vector<1024xf32> to vector<1x1024xf32>
    %cst_15 = arith.constant 8.000000e+00 : f32
    %36 = vector.broadcast %cst_15 : f32 to vector<1x1024xf32>
    %37 = arith.divf %35, %36 : vector<1x1024xf32>
    %38 = vector.broadcast %30 : vector<1x1024xf32> to vector<8x1024xf32>
    %39 = arith.subf %26, %38 : vector<8x1024xf32>
    %cst_16 = arith.constant 9.99999974E-6 : f32
    %40 = vector.broadcast %cst_16 : f32 to vector<1x1024xf32>
    %41 = arith.addf %37, %40 : vector<1x1024xf32>
    %42 = math.rsqrt %41 : vector<1x1024xf32>
    %43 = vector.broadcast %42 : vector<1x1024xf32> to vector<8x1024xf32>
    %44 = arith.mulf %39, %43 : vector<8x1024xf32>
    %cst_17 = arith.constant 0.000000e+00 : f32
    %45 = vector.broadcast %cst_17 : f32 to vector<8x1024xf32>
    %46 = arith.maximumf %44, %45 : vector<8x1024xf32>
    %c0_18 = arith.constant 0 : index
    %c0_19 = arith.constant 0 : index
    %47 = vector.load %arg3[%c0_18, %c0_19] : memref<1024x1024xbf16, #tpu.memory_space<vmem>>, vector<1024x1024xbf16>
    %48 = arith.extf %47 : vector<1024x1024xbf16> to vector<1024x1024xf32>
    %cst_20 = arith.constant dense<0.000000e+00> : vector<8x1024xf32>
    %49 = tpu.matmul %46, %48, %cst_20 {dimension_numbers = #tpu.dot_dimension_numbers<[1], [0], [0], [1], [0, 0, 1, 1], [], []>} : vector<8x1024xf32>, vector<1024x1024xf32>, vector<8x1024xf32> -> vector<8x1024xf32>
    %cst_21 = arith.constant dense<0.000000e+00> : vector<1024xf32>
    %50 = vector.multi_reduction <add>, %49, %cst_21 [0] : vector<8x1024xf32> to vector<1024xf32>
    %51 = vector.shape_cast %50 : vector<1024xf32> to vector<1x1024xf32>
    %cst_22 = arith.constant 8.000000e+00 : f32
    %52 = vector.broadcast %cst_22 : f32 to vector<1x1024xf32>
    %53 = arith.divf %51, %52 : vector<1x1024xf32>
    %54 = vector.broadcast %53 : vector<1x1024xf32> to vector<8x1024xf32>
    %55 = arith.subf %49, %54 : vector<8x1024xf32>
    %56 = arith.mulf %55, %55 : vector<8x1024xf32>
    %cst_23 = arith.constant dense<0.000000e+00> : vector<1024xf32>
    %57 = vector.multi_reduction <add>, %56, %cst_23 [0] : vector<8x1024xf32> to vector<1024xf32>
    %58 = vector.shape_cast %57 : vector<1024xf32> to vector<1x1024xf32>
    %cst_24 = arith.constant 8.000000e+00 : f32
    %59 = vector.broadcast %cst_24 : f32 to vector<1x1024xf32>
    %60 = arith.divf %58, %59 : vector<1x1024xf32>
    %61 = vector.broadcast %53 : vector<1x1024xf32> to vector<8x1024xf32>
    %62 = arith.subf %49, %61 : vector<8x1024xf32>
    %cst_25 = arith.constant 9.99999974E-6 : f32
    %63 = vector.broadcast %cst_25 : f32 to vector<1x1024xf32>
    %64 = arith.addf %60, %63 : vector<1x1024xf32>
    %65 = math.rsqrt %64 : vector<1x1024xf32>
    %66 = vector.broadcast %65 : vector<1x1024xf32> to vector<8x1024xf32>
    %67 = arith.mulf %62, %66 : vector<8x1024xf32>
    %cst_26 = arith.constant 0.000000e+00 : f32
    %68 = vector.broadcast %cst_26 : f32 to vector<8x1024xf32>
    %69 = arith.maximumf %67, %68 : vector<8x1024xf32>
    %c0_27 = arith.constant 0 : index
    %c0_28 = arith.constant 0 : index
    %70 = vector.load %arg4[%c0_27, %c0_28] : memref<1024x1024xbf16, #tpu.memory_space<vmem>>, vector<1024x1024xbf16>
    %71 = arith.extf %70 : vector<1024x1024xbf16> to vector<1024x1024xf32>
    %cst_29 = arith.constant dense<0.000000e+00> : vector<8x1024xf32>
    %72 = tpu.matmul %69, %71, %cst_29 {dimension_numbers = #tpu.dot_dimension_numbers<[1], [0], [0], [1], [0, 0, 1, 1], [], []>} : vector<8x1024xf32>, vector<1024x1024xf32>, vector<8x1024xf32> -> vector<8x1024xf32>
    %cst_30 = arith.constant dense<0.000000e+00> : vector<1024xf32>
    %73 = vector.multi_reduction <add>, %72, %cst_30 [0] : vector<8x1024xf32> to vector<1024xf32>
    %74 = vector.shape_cast %73 : vector<1024xf32> to vector<1x1024xf32>
    %cst_31 = arith.constant 8.000000e+00 : f32
    %75 = vector.broadcast %cst_31 : f32 to vector<1x1024xf32>
    %76 = arith.divf %74, %75 : vector<1x1024xf32>
    %77 = vector.broadcast %76 : vector<1x1024xf32> to vector<8x1024xf32>
    %78 = arith.subf %72, %77 : vector<8x1024xf32>
    %79 = arith.mulf %78, %78 : vector<8x1024xf32>
    %cst_32 = arith.constant dense<0.000000e+00> : vector<1024xf32>
    %80 = vector.multi_reduction <add>, %79, %cst_32 [0] : vector<8x1024xf32> to vector<1024xf32>
    %81 = vector.shape_cast %80 : vector<1024xf32> to vector<1x1024xf32>
    %cst_33 = arith.constant 8.000000e+00 : f32
    %82 = vector.broadcast %cst_33 : f32 to vector<1x1024xf32>
    %83 = arith.divf %81, %82 : vector<1x1024xf32>
    %84 = vector.broadcast %76 : vector<1x1024xf32> to vector<8x1024xf32>
    %85 = arith.subf %72, %84 : vector<8x1024xf32>
    %cst_34 = arith.constant 9.99999974E-6 : f32
    %86 = vector.broadcast %cst_34 : f32 to vector<1x1024xf32>
    %87 = arith.addf %83, %86 : vector<1x1024xf32>
    %88 = math.rsqrt %87 : vector<1x1024xf32>
    %89 = vector.broadcast %88 : vector<1x1024xf32> to vector<8x1024xf32>
    %90 = arith.mulf %85, %89 : vector<8x1024xf32>
    %cst_35 = arith.constant 0.000000e+00 : f32
    %91 = vector.broadcast %cst_35 : f32 to vector<8x1024xf32>
    %92 = arith.maximumf %90, %91 : vector<8x1024xf32>
    %c0_36 = arith.constant 0 : index
    %c0_37 = arith.constant 0 : index
    %93 = vector.load %arg5[%c0_36, %c0_37] : memref<1024x256xbf16, #tpu.memory_space<vmem>>, vector<1024x256xbf16>
    %94 = arith.extf %93 : vector<1024x256xbf16> to vector<1024x256xf32>
    %cst_38 = arith.constant dense<0.000000e+00> : vector<8x256xf32>
    %95 = tpu.matmul %92, %94, %cst_38 {dimension_numbers = #tpu.dot_dimension_numbers<[1], [0], [0], [1], [0, 0, 1, 1], [], []>} : vector<8x1024xf32>, vector<1024x256xf32>, vector<8x256xf32> -> vector<8x256xf32>
    %c0_39 = arith.constant 0 : index
    %c0_40 = arith.constant 0 : index
    %96 = vector.load %arg6[%c0_39, %c0_40] : memref<1x256xf32, #tpu.memory_space<vmem>>, vector<1x256xf32>
    %97 = vector.broadcast %96 : vector<1x256xf32> to vector<8x256xf32>
    %98 = arith.addf %95, %97 : vector<8x256xf32>
    %99 = tpu.iota {dimensions = array<i32: 1>} : vector<8x256xi32>
    %c7_i32 = arith.constant 7 : i32
    %100 = vector.broadcast %c7_i32 : i32 to vector<8x256xi32>
    %101 = arith.andi %99, %100 : vector<8x256xi32>
    %c1_i32 = arith.constant 1 : i32
    %102 = tpu.dynamic_rotate %98 by %c1_i32 dim 1 : vector<8x256xf32>, i32 -> vector<8x256xf32>
    %c249_i32 = arith.constant 249 : i32
    %103 = tpu.dynamic_rotate %98 by %c249_i32 dim 1 : vector<8x256xf32>, i32 -> vector<8x256xf32>
    %c1_i32_41 = arith.constant 1 : i32
    %104 = vector.broadcast %c1_i32_41 : i32 to vector<8x256xi32>
    %105 = arith.cmpi sge, %101, %104 : vector<8x256xi32>
    %106 = arith.select %105, %102, %103 : vector<8x256xi1>, vector<8x256xf32>
    %107 = arith.maximumf %98, %106 : vector<8x256xf32>
    %c2_i32 = arith.constant 2 : i32
    %108 = tpu.dynamic_rotate %107 by %c2_i32 dim 1 : vector<8x256xf32>, i32 -> vector<8x256xf32>
    %c250_i32 = arith.constant 250 : i32
    %109 = tpu.dynamic_rotate %107 by %c250_i32 dim 1 : vector<8x256xf32>, i32 -> vector<8x256xf32>
    %c2_i32_42 = arith.constant 2 : i32
    %110 = vector.broadcast %c2_i32_42 : i32 to vector<8x256xi32>
    %111 = arith.cmpi sge, %101, %110 : vector<8x256xi32>
    %112 = arith.select %111, %108, %109 : vector<8x256xi1>, vector<8x256xf32>
    %113 = arith.maximumf %107, %112 : vector<8x256xf32>
    %c4_i32 = arith.constant 4 : i32
    %114 = tpu.dynamic_rotate %113 by %c4_i32 dim 1 : vector<8x256xf32>, i32 -> vector<8x256xf32>
    %c252_i32 = arith.constant 252 : i32
    %115 = tpu.dynamic_rotate %113 by %c252_i32 dim 1 : vector<8x256xf32>, i32 -> vector<8x256xf32>
    %c4_i32_43 = arith.constant 4 : i32
    %116 = vector.broadcast %c4_i32_43 : i32 to vector<8x256xi32>
    %117 = arith.cmpi sge, %101, %116 : vector<8x256xi32>
    %118 = arith.select %117, %114, %115 : vector<8x256xi1>, vector<8x256xf32>
    %119 = arith.maximumf %113, %118 : vector<8x256xf32>
    %120 = arith.subf %98, %119 : vector<8x256xf32>
    %121 = math.exp %120 : vector<8x256xf32>
    %c1_i32_44 = arith.constant 1 : i32
    %122 = tpu.dynamic_rotate %121 by %c1_i32_44 dim 1 : vector<8x256xf32>, i32 -> vector<8x256xf32>
    %c249_i32_45 = arith.constant 249 : i32
    %123 = tpu.dynamic_rotate %121 by %c249_i32_45 dim 1 : vector<8x256xf32>, i32 -> vector<8x256xf32>
    %c1_i32_46 = arith.constant 1 : i32
    %124 = vector.broadcast %c1_i32_46 : i32 to vector<8x256xi32>
    %125 = arith.cmpi sge, %101, %124 : vector<8x256xi32>
    %126 = arith.select %125, %122, %123 : vector<8x256xi1>, vector<8x256xf32>
    %127 = arith.addf %121, %126 : vector<8x256xf32>
    %c2_i32_47 = arith.constant 2 : i32
    %128 = tpu.dynamic_rotate %127 by %c2_i32_47 dim 1 : vector<8x256xf32>, i32 -> vector<8x256xf32>
    %c250_i32_48 = arith.constant 250 : i32
    %129 = tpu.dynamic_rotate %127 by %c250_i32_48 dim 1 : vector<8x256xf32>, i32 -> vector<8x256xf32>
    %c2_i32_49 = arith.constant 2 : i32
    %130 = vector.broadcast %c2_i32_49 : i32 to vector<8x256xi32>
    %131 = arith.cmpi sge, %101, %130 : vector<8x256xi32>
    %132 = arith.select %131, %128, %129 : vector<8x256xi1>, vector<8x256xf32>
    %133 = arith.addf %127, %132 : vector<8x256xf32>
    %c4_i32_50 = arith.constant 4 : i32
    %134 = tpu.dynamic_rotate %133 by %c4_i32_50 dim 1 : vector<8x256xf32>, i32 -> vector<8x256xf32>
    %c252_i32_51 = arith.constant 252 : i32
    %135 = tpu.dynamic_rotate %133 by %c252_i32_51 dim 1 : vector<8x256xf32>, i32 -> vector<8x256xf32>
    %c4_i32_52 = arith.constant 4 : i32
    %136 = vector.broadcast %c4_i32_52 : i32 to vector<8x256xi32>
    %137 = arith.cmpi sge, %101, %136 : vector<8x256xi32>
    %138 = arith.select %137, %134, %135 : vector<8x256xi1>, vector<8x256xf32>
    %139 = arith.addf %133, %138 : vector<8x256xf32>
    %140 = arith.divf %121, %139 : vector<8x256xf32>
    %c0_53 = arith.constant 0 : index
    %c0_54 = arith.constant 0 : index
    %141 = vector.load %arg7[%c0_53, %c0_54] : memref<8x256xf32, #tpu.memory_space<vmem>>, vector<8x256xf32>
    tpu.vector_store %arg7[%c0_53, %c0_54], %140 {strides = array<i32>} : memref<8x256xf32, #tpu.memory_space<vmem>>, vector<8x256xf32>,
    return
  }
}

</mosaic_0001>

<llo_original>
// kernel: tpu_custom_call.1
$region0: #{tpu_custom_call.1}
  #allocation0 [shape = 'u32[]', space=smem, size = 0x4, offset = 0x4, fixed_abs, tag = 'smem constant byte address 0x4 - core index']
  #allocation1 [shape = 'u32[72,128]{1,0:T(1,128)}', space=vmem, size = 0x9000, scoped, tag = 'internal scratch']
  %s0 = inlined_call_operand.hbm [shape: f32[8,384], index: 0, kind: input, shape index: {}]
  %s1 = inlined_call_operand.hbm [shape: bf16[384,1024], index: 1, kind: input, shape index: {}]
  %s2 = inlined_call_operand.hbm [shape: bf16[1024,1024], index: 2, kind: input, shape index: {}]
  %s3 = inlined_call_operand.hbm [shape: bf16[1024,1024], index: 3, kind: input, shape index: {}]
  %s4 = inlined_call_operand.hbm [shape: bf16[1024,1024], index: 4, kind: input, shape index: {}]
  %s5 = inlined_call_operand.hbm [shape: bf16[1024,256], index: 5, kind: input, shape index: {}]
  %s6 = inlined_call_operand.hbm [shape: f32[1,256], index: 6, kind: input, shape index: {}]
  %s7 = inlined_call_operand.hbm [shape: f32[8,256], index: 7, kind: output, shape index: {}]
  %s8 = sld [smem:[#allocation0]]
  $region66: #{tpu_custom_call.1} parent=0
    _
  %s10 = ssub.s32 1, %s8
  %s11 = scalar_select 0, %s10, %s8
  $region1: #{tpu_custom_call.1} parent=0
    #allocation2 [shape = 'u8[12288]{0}', space=vmem, size = 0x3000, scoped, tag = 'input window, operand 0, single buffered']
    #allocation3 [shape = 's32[1]{0}', space=sflag, size = 0x4, scoped, tag = 'scoped memory for tpu_custom_call.1']
    #allocation4 [shape = 's32[1]{0}', space=sflag, size = 0x4, scoped, tag = 'scoped memory for tpu_custom_call.1']
    #allocation5 [shape = 'u8[786432]{0}', space=vmem, size = 0xc0000, scoped, tag = 'input window, operand 1, single buffered']
    #allocation6 [shape = 's32[1]{0}', space=sflag, size = 0x4, scoped, tag = 'scoped memory for tpu_custom_call.1']
    #allocation7 [shape = 'u8[2097152]{0}', space=vmem, size = 0x200000, scoped, tag = 'input window, operand 2, single buffered']
    #allocation8 [shape = 'u8[2097152]{0}', space=vmem, size = 0x200000, scoped, tag = 'input window, operand 3, single buffered']
    #allocation9 [shape = 's32[1]{0}', space=sflag, size = 0x4, scoped, tag = 'scoped memory for tpu_custom_call.1']
    #allocation10 [shape = 'u8[2097152]{0}', space=vmem, size = 0x200000, scoped, tag = 'input window, operand 4, single buffered']
    #allocation11 [shape = 'u8[524288]{0}', space=vmem, size = 0x80000, scoped, tag = 'input window, operand 5, single buffered']
    #allocation12 [shape = 's32[1]{0}', space=sflag, size = 0x4, scoped, tag = 'scoped memory for tpu_custom_call.1']
    #allocation13 [shape = 'u8[1024]{0}', space=vmem, size = 0x400, scoped, tag = 'input window, operand 6, single buffered']
    #allocation14 [shape = 'u8[8192]{0}', space=vmem, size = 0x2000, scoped, tag = 'output window, operand 0, single buffered']
    %12 = vsyncpa [#allocation3], 0
    %13 = vsyncpa [#allocation6], 0
    %14 = vsyncpa [#allocation9], 0
    %15 = vsyncpa [#allocation12], 0
    %16 = vsyncpa [#allocation4], 0
    // Predicated region
    $region2: #{tpu_custom_call.1} parent=1 // pred_check
      _
    $region3: #{tpu_custom_call.1} parent=1 // pred_check_branch
      %18 = sbr.rel (0) target = $region5
    $region4: #{tpu_custom_call.1} parent=1 // pred_region
      %20 = vsyncadd [#allocation3], 0
      %s22 = sshll.u32 %s0, 4
      %s23 = int_to_ptr.hbm [resolvable:$true] %s22
      %s24 = sshll.u32 [#allocation2], 4
      %s25 = int_to_ptr.vmem [resolvable:$true] %s24
      %27 = dma.hbm_to_vmem [thread:$0]  %s23, 384, %s25, [#allocation3]
    $region5: #{tpu_custom_call.1} parent=1 // pred_fallthru
      _
    // Predicated region
    $region6: #{tpu_custom_call.1} parent=1 // pred_check
      _
    $region7: #{tpu_custom_call.1} parent=1 // pred_check_branch
      %29 = sbr.rel (0) target = $region9
    $region8: #{tpu_custom_call.1} parent=1 // pred_region
      %31 = vsyncadd [#allocation6], 0
      %s32 = sshll.u32 %s1, 4
      %s33 = int_to_ptr.hbm [resolvable:$true] %s32
      %s34 = sshll.u32 [#allocation5], 4
      %s35 = int_to_ptr.vmem [resolvable:$true] %s34
      %40 = dma.hbm_to_vmem [thread:$0]  %s33, 24576, %s35, [#allocation6], 512, 512, 32
    $region9: #{tpu_custom_call.1} parent=1 // pred_fallthru
      _
    // Predicated region
    $region10: #{tpu_custom_call.1} parent=1 // pred_check
      _
    $region11: #{tpu_custom_call.1} parent=1 // pred_check_branch
      %42 = sbr.rel (0) target = $region13
    $region12: #{tpu_custom_call.1} parent=1 // pred_region
      %44 = vsyncadd [#allocation6], 0
      %s45 = sshll.u32 %s2, 4
      %s46 = int_to_ptr.hbm [resolvable:$true] %s45
      %s47 = sshll.u32 [#allocation7], 4
      %s48 = int_to_ptr.vmem [resolvable:$true] %s47
      %53 = dma.hbm_to_vmem [thread:$0]  %s46, 65536, %s48, [#allocation6], 512, 512, 32
    $region13: #{tpu_custom_call.1} parent=1 // pred_fallthru
      _
    // Predicated region
    $region14: #{tpu_custom_call.1} parent=1 // pred_check
      _
    $region15: #{tpu_custom_call.1} parent=1 // pred_check_branch
      %55 = sbr.rel (0) target = $region17
    $region16: #{tpu_custom_call.1} parent=1 // pred_region
      %57 = vsyncadd [#allocation9], 0
      %s58 = sshll.u32 %s3, 4
      %s59 = int_to_ptr.hbm [resolvable:$true] %s58
      %s60 = sshll.u32 [#allocation8], 4
      %s61 = int_to_ptr.vmem [resolvable:$true] %s60
      %66 = dma.hbm_to_vmem [thread:$0]  %s59, 65536, %s61, [#allocation9], 512, 512, 32
    $region17: #{tpu_custom_call.1} parent=1 // pred_fallthru
      _
    // Predicated region
    $region18: #{tpu_custom_call.1} parent=1 // pred_check
      _
    $region19: #{tpu_custom_call.1} parent=1 // pred_check_branch
      %68 = sbr.rel (0) target = $region21
    $region20: #{tpu_custom_call.1} parent=1 // pred_region
      %70 = vsyncadd [#allocation9], 0
      %s71 = sshll.u32 %s4, 4
      %s72 = int_to_ptr.hbm [resolvable:$true] %s71
      %s73 = sshll.u32 [#allocation10], 4
      %s74 = int_to_ptr.vmem [resolvable:$true] %s73
      %79 = dma.hbm_to_vmem [thread:$0]  %s72, 65536, %s74, [#allocation9], 512, 512, 32
    $region21: #{tpu_custom_call.1} parent=1 // pred_fallthru
      _
    // Predicated region
    $region22: #{tpu_custom_call.1} parent=1 // pred_check
      _
    $region23: #{tpu_custom_call.1} parent=1 // pred_check_branch
      %81 = sbr.rel (0) target = $region25
    $region24: #{tpu_custom_call.1} parent=1 // pred_region
      %83 = vsyncadd [#allocation12], 0
      %s84 = sshll.u32 %s5, 4
      %s85 = int_to_ptr.hbm [resolvable:$true] %s84
      %s86 = sshll.u32 [#allocation11], 4
      %s87 = int_to_ptr.vmem [resolvable:$true] %s86
      %92 = dma.hbm_to_vmem [thread:$0]  %s85, 16384, %s87, [#allocation12], 128, 128, 8
    $region25: #{tpu_custom_call.1} parent=1 // pred_fallthru
      _
    // Predicated region
    $region26: #{tpu_custom_call.1} parent=1 // pred_check
      _
    $region27: #{tpu_custom_call.1} parent=1 // pred_check_branch
      %94 = sbr.rel (0) target = $region29
    $region28: #{tpu_custom_call.1} parent=1 // pred_region
      %96 = vsyncadd [#allocation12], 0
      %s98 = sshll.u32 %s6, 4
      %s99 = int_to_ptr.hbm [resolvable:$true] %s98
      %s100 = sshll.u32 [#allocation13], 4
      %s101 = int_to_ptr.vmem [resolvable:$true] %s100
      %103 = dma.hbm_to_vmem [thread:$0]  %s99, 32, %s101, [#allocation12]
    $region29: #{tpu_custom_call.1} parent=1 // pred_fallthru
      _
    // Predicated region
    $region30: #{tpu_custom_call.1} parent=1 // pred_check
      _
    $region31: #{tpu_custom_call.1} parent=1 // pred_check_branch
      %105 = sbr.rel (0) target = $region33
    $region32: #{tpu_custom_call.1} parent=1 // pred_region
      %107 = dma.done [#allocation3], 384
    $region33: #{tpu_custom_call.1} parent=1 // pred_fallthru
      _
    // Predicated region
    $region34: #{tpu_custom_call.1} parent=1 // pred_check
      _
    $region35: #{tpu_custom_call.1} parent=1 // pred_check_branch
      %109 = sbr.rel (0) target = $region37
    $region36: #{tpu_custom_call.1} parent=1 // pred_region
      %111 = dma.done [#allocation6], 24576
    $region37: #{tpu_custom_call.1} parent=1 // pred_fallthru
      _
    // Predicated region
    $region38: #{tpu_custom_call.1} parent=1 // pred_check
      _
    $region39: #{tpu_custom_call.1} parent=1 // pred_check_branch
      %113 = sbr.rel (0) target = $region41
    $region40: #{tpu_custom_call.1} parent=1 // pred_region
      %115 = dma.done [#allocation6], 65536
    $region41: #{tpu_custom_call.1} parent=1 // pred_fallthru
      _
    // Predicated region
    $region42: #{tpu_custom_call.1} parent=1 // pred_check
      _
    $region43: #{tpu_custom_call.1} parent=1 // pred_check_branch
      %117 = sbr.rel (0) target = $region45
    $region44: #{tpu_custom_call.1} parent=1 // pred_region
      %119 = dma.done [#allocation9], 65536
    $region45: #{tpu_custom_call.1} parent=1 // pred_fallthru
      _
    // Predicated region
    $region46: #{tpu_custom_call.1} parent=1 // pred_check
      _
    $region47: #{tpu_custom_call.1} parent=1 // pred_check_branch
      %121 = sbr.rel (0) target = $region49
    $region48: #{tpu_custom_call.1} parent=1 // pred_region
      %123 = dma.done [#allocation9], 65536
    $region49: #{tpu_custom_call.1} parent=1 // pred_fallthru
      _
    // Predicated region
    $region50: #{tpu_custom_call.1} parent=1 // pred_check
      _
    $region51: #{tpu_custom_call.1} parent=1 // pred_check_branch
      %125 = sbr.rel (0) target = $region53
    $region52: #{tpu_custom_call.1} parent=1 // pred_region
      %127 = dma.done [#allocation12], 16384
    $region53: #{tpu_custom_call.1} parent=1 // pred_fallthru
      _
    // Predicated region
    $region54: #{tpu_custom_call.1} parent=1 // pred_check
      _
    $region55: #{tpu_custom_call.1} parent=1 // pred_check_branch
      %129 = sbr.rel (0) target = $region57
    $region56: #{tpu_custom_call.1} parent=1 // pred_region
      %131 = dma.done [#allocation12], 32
    $region57: #{tpu_custom_call.1} parent=1 // pred_fallthru
      _
    %v132 = vld [vmem:[#allocation2] sm:$0xff]
    %v133 = vld [vmem:[#allocation2 + $0x8] sm:$0xff]
    %v134 = vld [vmem:[#allocation2 + $0x10] sm:$0xff]
    %v135 = vld [vmem:[#allocation5] sm:$0xff]
    %v136 = vld [vmem:[#allocation5 + $0x8] sm:$0xff]
    %v137 = vld [vmem:[#allocation5 + $0x10] sm:$0xff]
    %v138 = vld [vmem:[#allocation5 + $0x18] sm:$0xff]
    %v139 = vld [vmem:[#allocation5 + $0x20] sm:$0xff]
    %v140 = vld [vmem:[#allocation5 + $0x28] sm:$0xff]
    %v141 = vld [vmem:[#allocation5 + $0x30] sm:$0xff]
    %v142 = vld [vmem:[#allocation5 + $0x38] sm:$0xff]
    %v143 = vld [vmem:[#allocation5 + $0x40] sm:$0xff]
    %v144 = vld [vmem:[#allocation5 + $0x48] sm:$0xff]
    %v145 = vld [vmem:[#allocation5 + $0x50] sm:$0xff]
    %v146 = vld [vmem:[#allocation5 + $0x58] sm:$0xff]
    %v147 = vld [vmem:[#allocation5 + $0x60] sm:$0xff]
    %v148 = vld [vmem:[#allocation5 + $0x68] sm:$0xff]
    %v149 = vld [vmem:[#allocation5 + $0x70] sm:$0xff]
    %v150 = vld [vmem:[#allocation5 + $0x78] sm:$0xff]
    %v151 = vld [vmem:[#allocation5 + $0x80] sm:$0xff]
    %v152 = vld [vmem:[#allocation5 + $0x88] sm:$0xff]
    %v153 = vld [vmem:[#allocation5 + $0x90] sm:$0xff]
    %v154 = vld [vmem:[#allocation5 + $0x98] sm:$0xff]
    %v155 = vld [vmem:[#allocation5 + $0xa0] sm:$0xff]
    %v156 = vld [vmem:[#allocation5 + $0xa8] sm:$0xff]
    %v157 = vld [vmem:[#allocation5 + $0xb0] sm:$0xff]
    %v158 = vld [vmem:[#allocation5 + $0xb8] sm:$0xff]
    %v159 = vld [vmem:[#allocation5 + $0xc0] sm:$0xff]
    %v160 = vld [vmem:[#allocation5 + $0xc8] sm:$0xff]
    %v161 = vld [vmem:[#allocation5 + $0xd0] sm:$0xff]
    %v162 = vld [vmem:[#allocation5 + $0xd8] sm:$0xff]
    %v163 = vld [vmem:[#allocation5 + $0xe0] sm:$0xff]
    %v164 = vld [vmem:[#allocation5 + $0xe8] sm:$0xff]
    %v165 = vld [vmem:[#allocation5 + $0xf0] sm:$0xff]
    %v166 = vld [vmem:[#allocation5 + $0xf8] sm:$0xff]
    %v167 = vld [vmem:[#allocation5 + $0x100] sm:$0xff]
    %v168 = vld [vmem:[#allocation5 + $0x108] sm:$0xff]
    %v169 = vld [vmem:[#allocation5 + $0x110] sm:$0xff]
    %v170 = vld [vmem:[#allocation5 + $0x118] sm:$0xff]
    %v171 = vld [vmem:[#allocation5 + $0x120] sm:$0xff]
    %v172 = vld [vmem:[#allocation5 + $0x128] sm:$0xff]
    %v173 = vld [vmem:[#allocation5 + $0x130] sm:$0xff]
    %v174 = vld [vmem:[#allocation5 + $0x138] sm:$0xff]
    %v175 = vld [vmem:[#allocation5 + $0x140] sm:$0xff]
    %v176 = vld [vmem:[#allocation5 + $0x148] sm:$0xff]
    %v177 = vld [vmem:[#allocation5 + $0x150] sm:$0xff]
    %v178 = vld [vmem:[#allocation5 + $0x158] sm:$0xff]
    %v179 = vld [vmem:[#allocation5 + $0x160] sm:$0xff]
    %v180 = vld [vmem:[#allocation5 + $0x168] sm:$0xff]
    %v181 = vld [vmem:[#allocation5 + $0x170] sm:$0xff]
    %v182 = vld [vmem:[#allocation5 + $0x178] sm:$0xff]
    %v183 = vld [vmem:[#allocation5 + $0x180] sm:$0xff]
    %v184 = vld [vmem:[#allocation5 + $0x188] sm:$0xff]
    %v185 = vld [vmem:[#allocation5 + $0x190] sm:$0xff]
    %v186 = vld [vmem:[#allocation5 + $0x198] sm:$0xff]
    %v187 = vld [vmem:[#allocation5 + $0x1a0] sm:$0xff]
    %v188 = vld [vmem:[#allocation5 + $0x1a8] sm:$0xff]
    %v189 = vld [vmem:[#allocation5 + $0x1b0] sm:$0xff]
    %v190 = vld [vmem:[#allocation5 + $0x1b8] sm:$0xff]
    %v191 = vld [vmem:[#allocation5 + $0x1c0] sm:$0xff]
    %v192 = vld [vmem:[#allocation5 + $0x1c8] sm:$0xff]
    %v193 = vld [vmem:[#allocation5 + $0x1d0] sm:$0xff]
    %v194 = vld [vmem:[#allocation5 + $0x1d8] sm:$0xff]
    %v195 = vld [vmem:[#allocation5 + $0x1e0] sm:$0xff]
    %v196 = vld [vmem:[#allocation5 + $0x1e8] sm:$0xff]
    %v197 = vld [vmem:[#allocation5 + $0x1f0] sm:$0xff]
    %v198 = vld [vmem:[#allocation5 + $0x1f8] sm:$0xff]
    %v199 = vld [vmem:[#allocation5 + $0x200] sm:$0xff]
    %v200 = vld [vmem:[#allocation5 + $0x208] sm:$0xff]
    %v201 = vld [vmem:[#allocation5 + $0x210] sm:$0xff]
    %v202 = vld [vmem:[#allocation5 + $0x218] sm:$0xff]
    %v203 = vld [vmem:[#allocation5 + $0x220] sm:$0xff]
    %v204 = vld [vmem:[#allocation5 + $0x228] sm:$0xff]
    %v205 = vld [vmem:[#allocation5 + $0x230] sm:$0xff]
    %v206 = vld [vmem:[#allocation5 + $0x238] sm:$0xff]
    %v207 = vld [vmem:[#allocation5 + $0x240] sm:$0xff]
    %v208 = vld [vmem:[#allocation5 + $0x248] sm:$0xff]
    %v209 = vld [vmem:[#allocation5 + $0x250] sm:$0xff]
    %v210 = vld [vmem:[#allocation5 + $0x258] sm:$0xff]
    %v211 = vld [vmem:[#allocation5 + $0x260] sm:$0xff]
    %v212 = vld [vmem:[#allocation5 + $0x268] sm:$0xff]
    %v213 = vld [vmem:[#allocation5 + $0x270] sm:$0xff]
    %v214 = vld [vmem:[#allocation5 + $0x278] sm:$0xff]
    %v215 = vld [vmem:[#allocation5 + $0x280] sm:$0xff]
    %v216 = vld [vmem:[#allocation5 + $0x288] sm:$0xff]
    %v217 = vld [vmem:[#allocation5 + $0x290] sm:$0xff]
    %v218 = vld [vmem:[#allocation5 + $0x298] sm:$0xff]
    %v219 = vld [vmem:[#allocation5 + $0x2a0] sm:$0xff]
    %v220 = vld [vmem:[#allocation5 + $0x2a8] sm:$0xff]
    %v221 = vld [vmem:[#allocation5 + $0x2b0] sm:$0xff]
    %v222 = vld [vmem:[#allocation5 + $0x2b8] sm:$0xff]
    %v223 = vld [vmem:[#allocation5 + $0x2c0] sm:$0xff]
    %v224 = vld [vmem:[#allocation5 + $0x2c8] sm:$0xff]
    %v225 = vld [vmem:[#allocation5 + $0x2d0] sm:$0xff]
    %v226 = vld [vmem:[#allocation5 + $0x2d8] sm:$0xff]
    %v227 = vld [vmem:[#allocation5 + $0x2e0] sm:$0xff]
    %v228 = vld [vmem:[#allocation5 + $0x2e8] sm:$0xff]
    %v229 = vld [vmem:[#allocation5 + $0x2f0] sm:$0xff]
    %v230 = vld [vmem:[#allocation5 + $0x2f8] sm:$0xff]
    %v231 = vld [vmem:[#allocation5 + $0x300] sm:$0xff]
    %v232 = vld [vmem:[#allocation5 + $0x308] sm:$0xff]
    %v233 = vld [vmem:[#allocation5 + $0x310] sm:$0xff]
    %v234 = vld [vmem:[#allocation5 + $0x318] sm:$0xff]
    %v235 = vld [vmem:[#allocation5 + $0x320] sm:$0xff]
    %v236 = vld [vmem:[#allocation5 + $0x328] sm:$0xff]
    %v237 = vld [vmem:[#allocation5 + $0x330] sm:$0xff]
    %v238 = vld [vmem:[#allocation5 + $0x338] sm:$0xff]
    %v239 = vld [vmem:[#allocation5 + $0x340] sm:$0xff]
    %v240 = vld [vmem:[#allocation5 + $0x348] sm:$0xff]
    %v241 = vld [vmem:[#allocation5 + $0x350] sm:$0xff]
    %v242 = vld [vmem:[#allocation5 + $0x358] sm:$0xff]
    %v243 = vld [vmem:[#allocation5 + $0x360] sm:$0xff]
    %v244 = vld [vmem:[#allocation5 + $0x368] sm:$0xff]
    %v245 = vld [vmem:[#allocation5 + $0x370] sm:$0xff]
    %v246 = vld [vmem:[#allocation5 + $0x378] sm:$0xff]
    %v247 = vld [vmem:[#allocation5 + $0x380] sm:$0xff]
    %v248 = vld [vmem:[#allocation5 + $0x388] sm:$0xff]
    %v249 = vld [vmem:[#allocation5 + $0x390] sm:$0xff]
    %v250 = vld [vmem:[#allocation5 + $0x398] sm:$0xff]
    %v251 = vld [vmem:[#allocation5 + $0x3a0] sm:$0xff]
    %v252 = vld [vmem:[#allocation5 + $0x3a8] sm:$0xff]
    %v253 = vld [vmem:[#allocation5 + $0x3b0] sm:$0xff]
    %v254 = vld [vmem:[#allocation5 + $0x3b8] sm:$0xff]
    %v255 = vld [vmem:[#allocation5 + $0x3c0] sm:$0xff]
    %v256 = vld [vmem:[#allocation5 + $0x3c8] sm:$0xff]
    %v257 = vld [vmem:[#allocation5 + $0x3d0] sm:$0xff]
    %v258 = vld [vmem:[#allocation5 + $0x3d8] sm:$0xff]
    %v259 = vld [vmem:[#allocation5 + $0x3e0] sm:$0xff]
    %v260 = vld [vmem:[#allocation5 + $0x3e8] sm:$0xff]
    %v261 = vld [vmem:[#allocation5 + $0x3f0] sm:$0xff]
    %v262 = vld [vmem:[#allocation5 + $0x3f8] sm:$0xff]
    %v263 = vld [vmem:[#allocation5 + $0x400] sm:$0xff]
    %v264 = vld [vmem:[#allocation5 + $0x408] sm:$0xff]
    %v265 = vld [vmem:[#allocation5 + $0x410] sm:$0xff]
    %v266 = vld [vmem:[#allocation5 + $0x418] sm:$0xff]
    %v267 = vld [vmem:[#allocation5 + $0x420] sm:$0xff]
    %v268 = vld [vmem:[#allocation5 + $0x428] sm:$0xff]
    %v269 = vld [vmem:[#allocation5 + $0x430] sm:$0xff]
    %v270 = vld [vmem:[#allocation5 + $0x438] sm:$0xff]
    %v271 = vld [vmem:[#allocation5 + $0x440] sm:$0xff]
    %v272 = vld [vmem:[#allocation5 + $0x448] sm:$0xff]
    %v273 = vld [vmem:[#allocation5 + $0x450] sm:$0xff]
    %v274 = vld [vmem:[#allocation5 + $0x458] sm:$0xff]
    %v275 = vld [vmem:[#allocation5 + $0x460] sm:$0xff]
    %v276 = vld [vmem:[#allocation5 + $0x468] sm:$0xff]
    %v277 = vld [vmem:[#allocation5 + $0x470] sm:$0xff]
    %v278 = vld [vmem:[#allocation5 + $0x478] sm:$0xff]
    %v279 = vld [vmem:[#allocation5 + $0x480] sm:$0xff]
    %v280 = vld [vmem:[#allocation5 + $0x488] sm:$0xff]
    %v281 = vld [vmem:[#allocation5 + $0x490] sm:$0xff]
    %v282 = vld [vmem:[#allocation5 + $0x498] sm:$0xff]
    %v283 = vld [vmem:[#allocation5 + $0x4a0] sm:$0xff]
    %v284 = vld [vmem:[#allocation5 + $0x4a8] sm:$0xff]
    %v285 = vld [vmem:[#allocation5 + $0x4b0] sm:$0xff]
    %v286 = vld [vmem:[#allocation5 + $0x4b8] sm:$0xff]
    %v287 = vld [vmem:[#allocation5 + $0x4c0] sm:$0xff]
    %v288 = vld [vmem:[#allocation5 + $0x4c8] sm:$0xff]
    %v289 = vld [vmem:[#allocation5 + $0x4d0] sm:$0xff]
    %v290 = vld [vmem:[#allocation5 + $0x4d8] sm:$0xff]
    %v291 = vld [vmem:[#allocation5 + $0x4e0] sm:$0xff]
    %v292 = vld [vmem:[#allocation5 + $0x4e8] sm:$0xff]
    %v293 = vld [vmem:[#allocation5 + $0x4f0] sm:$0xff]
    %v294 = vld [vmem:[#allocation5 + $0x4f8] sm:$0xff]
    %v295 = vld [vmem:[#allocation5 + $0x500] sm:$0xff]
    %v296 = vld [vmem:[#allocation5 + $0x508] sm:$0xff]
    %v297 = vld [vmem:[#allocation5 + $0x510] sm:$0xff]
    %v298 = vld [vmem:[#allocation5 + $0x518] sm:$0xff]
    %v299 = vld [vmem:[#allocation5 + $0x520] sm:$0xff]
    %v300 = vld [vmem:[#allocation5 + $0x528] sm:$0xff]
    %v301 = vld [vmem:[#allocation5 + $0x530] sm:$0xff]
    %v302 = vld [vmem:[#allocation5 + $0x538] sm:$0xff]
    %v303 = vld [vmem:[#allocation5 + $0x540] sm:$0xff]
    %v304 = vld [vmem:[#allocation5 + $0x548] sm:$0xff]
    %v305 = vld [vmem:[#allocation5 + $0x550] sm:$0xff]
    %v306 = vld [vmem:[#allocation5 + $0x558] sm:$0xff]
    %v307 = vld [vmem:[#allocation5 + $0x560] sm:$0xff]
    %v308 = vld [vmem:[#allocation5 + $0x568] sm:$0xff]
    %v309 = vld [vmem:[#allocation5 + $0x570] sm:$0xff]
    %v310 = vld [vmem:[#allocation5 + $0x578] sm:$0xff]
    %v311 = vld [vmem:[#allocation5 + $0x580] sm:$0xff]
    %v312 = vld [vmem:[#allocation5 + $0x588] sm:$0xff]
    %v313 = vld [vmem:[#allocation5 + $0x590] sm:$0xff]
    %v314 = vld [vmem:[#allocation5 + $0x598] sm:$0xff]
    %v315 = vld [vmem:[#allocation5 + $0x5a0] sm:$0xff]
    %v316 = vld [vmem:[#allocation5 + $0x5a8] sm:$0xff]
    %v317 = vld [vmem:[#allocation5 + $0x5b0] sm:$0xff]
    %v318 = vld [vmem:[#allocation5 + $0x5b8] sm:$0xff]
    %v319 = vld [vmem:[#allocation5 + $0x5c0] sm:$0xff]
    %v320 = vld [vmem:[#allocation5 + $0x5c8] sm:$0xff]
    %v321 = vld [vmem:[#allocation5 + $0x5d0] sm:$0xff]
    %v322 = vld [vmem:[#allocation5 + $0x5d8] sm:$0xff]
    %v323 = vld [vmem:[#allocation5 + $0x5e0] sm:$0xff]
    %v324 = vld [vmem:[#allocation5 + $0x5e8] sm:$0xff]
    %v325 = vld [vmem:[#allocation5 + $0x5f0] sm:$0xff]
    %v326 = vld [vmem:[#allocation5 + $0x5f8] sm:$0xff]
    %v327 = vunpack.c.l.bf16 %v135
    %v328 = vunpack.c.h.bf16 %v135
    %v329 = vunpack.c.l.bf16 %v136
    %v330 = vunpack.c.h.bf16 %v136
    %v331 = vunpack.c.l.bf16 %v137
    %v332 = vunpack.c.h.bf16 %v137
    %v333 = vunpack.c.l.bf16 %v138
    %v334 = vunpack.c.h.bf16 %v138
    %v335 = vunpack.c.l.bf16 %v139
    %v336 = vunpack.c.h.bf16 %v139
    %v337 = vunpack.c.l.bf16 %v140
    %v338 = vunpack.c.h.bf16 %v140
    %v339 = vunpack.c.l.bf16 %v141
    %v340 = vunpack.c.h.bf16 %v141
    %v341 = vunpack.c.l.bf16 %v142
    %v342 = vunpack.c.h.bf16 %v142
    %v343 = vunpack.c.l.bf16 %v143
    %v344 = vunpack.c.h.bf16 %v143
    %v345 = vunpack.c.l.bf16 %v144
    %v346 = vunpack.c.h.bf16 %v144
    %v347 = vunpack.c.l.bf16 %v145
    %v348 = vunpack.c.h.bf16 %v145
    %v349 = vunpack.c.l.bf16 %v146
    %v350 = vunpack.c.h.bf16 %v146
    %v351 = vunpack.c.l.bf16 %v147
    %v352 = vunpack.c.h.bf16 %v147
    %v353 = vunpack.c.l.bf16 %v148
    %v354 = vunpack.c.h.bf16 %v148
    %v355 = vunpack.c.l.bf16 %v149
    %v356 = vunpack.c.h.bf16 %v149
    %v357 = vunpack.c.l.bf16 %v150
    %v358 = vunpack.c.h.bf16 %v150
    %v359 = vunpack.c.l.bf16 %v151
    %v360 = vunpack.c.h.bf16 %v151
    %v361 = vunpack.c.l.bf16 %v152
    %v362 = vunpack.c.h.bf16 %v152
    %v363 = vunpack.c.l.bf16 %v153
    %v364 = vunpack.c.h.bf16 %v153
    %v365 = vunpack.c.l.bf16 %v154
    %v366 = vunpack.c.h.bf16 %v154
    %v367 = vunpack.c.l.bf16 %v155
    %v368 = vunpack.c.h.bf16 %v155
    %v369 = vunpack.c.l.bf16 %v156
    %v370 = vunpack.c.h.bf16 %v156
    %v371 = vunpack.c.l.bf16 %v157
    %v372 = vunpack.c.h.bf16 %v157
    %v373 = vunpack.c.l.bf16 %v158
    %v374 = vunpack.c.h.bf16 %v158
    %v375 = vunpack.c.l.bf16 %v159
    %v376 = vunpack.c.h.bf16 %v159
    %v377 = vunpack.c.l.bf16 %v160
    %v378 = vunpack.c.h.bf16 %v160
    %v379 = vunpack.c.l.bf16 %v161
    %v380 = vunpack.c.h.bf16 %v161
    %v381 = vunpack.c.l.bf16 %v162
    %v382 = vunpack.c.h.bf16 %v162
    %v383 = vunpack.c.l.bf16 %v163
    %v384 = vunpack.c.h.bf16 %v163
    %v385 = vunpack.c.l.bf16 %v164
    %v386 = vunpack.c.h.bf16 %v164
    %v387 = vunpack.c.l.bf16 %v165
    %v388 = vunpack.c.h.bf16 %v165
    %v389 = vunpack.c.l.bf16 %v166
    %v390 = vunpack.c.h.bf16 %v166
    %v391 = vunpack.c.l.bf16 %v167
    %v392 = vunpack.c.h.bf16 %v167
    %v393 = vunpack.c.l.bf16 %v168
    %v394 = vunpack.c.h.bf16 %v168
    %v395 = vunpack.c.l.bf16 %v169
    %v396 = vunpack.c.h.bf16 %v169
    %v397 = vunpack.c.l.bf16 %v170
    %v398 = vunpack.c.h.bf16 %v170
    %v399 = vunpack.c.l.bf16 %v171
    %v400 = vunpack.c.h.bf16 %v171
    %v401 = vunpack.c.l.bf16 %v172
    %v402 = vunpack.c.h.bf16 %v172
    %v403 = vunpack.c.l.bf16 %v173
    %v404 = vunpack.c.h.bf16 %v173
    %v405 = vunpack.c.l.bf16 %v174
    %v406 = vunpack.c.h.bf16 %v174
    %v407 = vunpack.c.l.bf16 %v175
    %v408 = vunpack.c.h.bf16 %v175
    %v409 = vunpack.c.l.bf16 %v176
    %v410 = vunpack.c.h.bf16 %v176
    %v411 = vunpack.c.l.bf16 %v177
    %v412 = vunpack.c.h.bf16 %v177
    %v413 = vunpack.c.l.bf16 %v178
    %v414 = vunpack.c.h.bf16 %v178
    %v415 = vunpack.c.l.bf16 %v179
    %v416 = vunpack.c.h.bf16 %v179
    %v417 = vunpack.c.l.bf16 %v180
    %v418 = vunpack.c.h.bf16 %v180
    %v419 = vunpack.c.l.bf16 %v181
    %v420 = vunpack.c.h.bf16 %v181
    %v421 = vunpack.c.l.bf16 %v182
    %v422 = vunpack.c.h.bf16 %v182
    %v423 = vunpack.c.l.bf16 %v183
    %v424 = vunpack.c.h.bf16 %v183
    %v425 = vunpack.c.l.bf16 %v184
    %v426 = vunpack.c.h.bf16 %v184
    %v427 = vunpack.c.l.bf16 %v185
    %v428 = vunpack.c.h.bf16 %v185
    %v429 = vunpack.c.l.bf16 %v186
    %v430 = vunpack.c.h.bf16 %v186
    %v431 = vunpack.c.l.bf16 %v187
    %v432 = vunpack.c.h.bf16 %v187
    %v433 = vunpack.c.l.bf16 %v188
    %v434 = vunpack.c.h.bf16 %v188
    %v435 = vunpack.c.l.bf16 %v189
    %v436 = vunpack.c.h.bf16 %v189
    %v437 = vunpack.c.l.bf16 %v190
    %v438 = vunpack.c.h.bf16 %v190
    %v439 = vunpack.c.l.bf16 %v191
    %v440 = vunpack.c.h.bf16 %v191
    %v441 = vunpack.c.l.bf16 %v192
    %v442 = vunpack.c.h.bf16 %v192
    %v443 = vunpack.c.l.bf16 %v193
    %v444 = vunpack.c.h.bf16 %v193
    %v445 = vunpack.c.l.bf16 %v194
    %v446 = vunpack.c.h.bf16 %v194
    %v447 = vunpack.c.l.bf16 %v195
    %v448 = vunpack.c.h.bf16 %v195
    %v449 = vunpack.c.l.bf16 %v196
    %v450 = vunpack.c.h.bf16 %v196
    %v451 = vunpack.c.l.bf16 %v197
    %v452 = vunpack.c.h.bf16 %v197
    %v453 = vunpack.c.l.bf16 %v198
    %v454 = vunpack.c.h.bf16 %v198
    %v455 = vunpack.c.l.bf16 %v199
    %v456 = vunpack.c.h.bf16 %v199
    %v457 = vunpack.c.l.bf16 %v200
    %v458 = vunpack.c.h.bf16 %v200
    %v459 = vunpack.c.l.bf16 %v201
    %v460 = vunpack.c.h.bf16 %v201
    %v461 = vunpack.c.l.bf16 %v202
    %v462 = vunpack.c.h.bf16 %v202
    %v463 = vunpack.c.l.bf16 %v203
    %v464 = vunpack.c.h.bf16 %v203
    %v465 = vunpack.c.l.bf16 %v204
    %v466 = vunpack.c.h.bf16 %v204
    %v467 = vunpack.c.l.bf16 %v205
    %v468 = vunpack.c.h.bf16 %v205
    %v469 = vunpack.c.l.bf16 %v206
    %v470 = vunpack.c.h.bf16 %v206
    %v471 = vunpack.c.l.bf16 %v207
    %v472 = vunpack.c.h.bf16 %v207
    %v473 = vunpack.c.l.bf16 %v208
    %v474 = vunpack.c.h.bf16 %v208
    %v475 = vunpack.c.l.bf16 %v209
    %v476 = vunpack.c.h.bf16 %v209
    %v477 = vunpack.c.l.bf16 %v210
    %v478 = vunpack.c.h.bf16 %v210
    %v479 = vunpack.c.l.bf16 %v211
    %v480 = vunpack.c.h.bf16 %v211
    %v481 = vunpack.c.l.bf16 %v212
    %v482 = vunpack.c.h.bf16 %v212
    %v483 = vunpack.c.l.bf16 %v213
    %v484 = vunpack.c.h.bf16 %v213
    %v485 = vunpack.c.l.bf16 %v214
    %v486 = vunpack.c.h.bf16 %v214
    %v487 = vunpack.c.l.bf16 %v215
    %v488 = vunpack.c.h.bf16 %v215
    %v489 = vunpack.c.l.bf16 %v216
    %v490 = vunpack.c.h.bf16 %v216
    %v491 = vunpack.c.l.bf16 %v217
    %v492 = vunpack.c.h.bf16 %v217
    %v493 = vunpack.c.l.bf16 %v218
    %v494 = vunpack.c.h.bf16 %v218
    %v495 = vunpack.c.l.bf16 %v219
    %v496 = vunpack.c.h.bf16 %v219
    %v497 = vunpack.c.l.bf16 %v220
    %v498 = vunpack.c.h.bf16 %v220
    %v499 = vunpack.c.l.bf16 %v221
    %v500 = vunpack.c.h.bf16 %v221
    %v501 = vunpack.c.l.bf16 %v222
    %v502 = vunpack.c.h.bf16 %v222
    %v503 = vunpack.c.l.bf16 %v223
    %v504 = vunpack.c.h.bf16 %v223
    %v505 = vunpack.c.l.bf16 %v224
    %v506 = vunpack.c.h.bf16 %v224
    %v507 = vunpack.c.l.bf16 %v225
    %v508 = vunpack.c.h.bf16 %v225
    %v509 = vunpack.c.l.bf16 %v226
    %v510 = vunpack.c.h.bf16 %v226
    %v511 = vunpack.c.l.bf16 %v227
    %v512 = vunpack.c.h.bf16 %v227
    %v513 = vunpack.c.l.bf16 %v228
    %v514 = vunpack.c.h.bf16 %v228
    %v515 = vunpack.c.l.bf16 %v229
    %v516 = vunpack.c.h.bf16 %v229
    %v517 = vunpack.c.l.bf16 %v230
    %v518 = vunpack.c.h.bf16 %v230
    %v519 = vunpack.c.l.bf16 %v231
    %v520 = vunpack.c.h.bf16 %v231
    %v521 = vunpack.c.l.bf16 %v232
    %v522 = vunpack.c.h.bf16 %v232
    %v523 = vunpack.c.l.bf16 %v233
    %v524 = vunpack.c.h.bf16 %v233
    %v525 = vunpack.c.l.bf16 %v234
    %v526 = vunpack.c.h.bf16 %v234
    %v527 = vunpack.c.l.bf16 %v235
    %v528 = vunpack.c.h.bf16 %v235
    %v529 = vunpack.c.l.bf16 %v236
    %v530 = vunpack.c.h.bf16 %v236
    %v531 = vunpack.c.l.bf16 %v237
    %v532 = vunpack.c.h.bf16 %v237
    %v533 = vunpack.c.l.bf16 %v238
    %v534 = vunpack.c.h.bf16 %v238
    %v535 = vunpack.c.l.bf16 %v239
    %v536 = vunpack.c.h.bf16 %v239
    %v537 = vunpack.c.l.bf16 %v240
    %v538 = vunpack.c.h.bf16 %v240
    %v539 = vunpack.c.l.bf16 %v241
    %v540 = vunpack.c.h.bf16 %v241
    %v541 = vunpack.c.l.bf16 %v242
    %v542 = vunpack.c.h.bf16 %v242
    %v543 = vunpack.c.l.bf16 %v243
    %v544 = vunpack.c.h.bf16 %v243
    %v545 = vunpack.c.l.bf16 %v244
    %v546 = vunpack.c.h.bf16 %v244
    %v547 = vunpack.c.l.bf16 %v245
    %v548 = vunpack.c.h.bf16 %v245
    %v549 = vunpack.c.l.bf16 %v246
    %v550 = vunpack.c.h.bf16 %v246
    %v551 = vunpack.c.l.bf16 %v247
    %v552 = vunpack.c.h.bf16 %v247
    %v553 = vunpack.c.l.bf16 %v248
    %v554 = vunpack.c.h.bf16 %v248
    %v555 = vunpack.c.l.bf16 %v249
    %v556 = vunpack.c.h.bf16 %v249
    %v557 = vunpack.c.l.bf16 %v250
    %v558 = vunpack.c.h.bf16 %v250
    %v559 = vunpack.c.l.bf16 %v251
    %v560 = vunpack.c.h.bf16 %v251
    %v561 = vunpack.c.l.bf16 %v252
    %v562 = vunpack.c.h.bf16 %v252
    %v563 = vunpack.c.l.bf16 %v253
    %v564 = vunpack.c.h.bf16 %v253
    %v565 = vunpack.c.l.bf16 %v254
    %v566 = vunpack.c.h.bf16 %v254
    %v567 = vunpack.c.l.bf16 %v255
    %v568 = vunpack.c.h.bf16 %v255
    %v569 = vunpack.c.l.bf16 %v256
    %v570 = vunpack.c.h.bf16 %v256
    %v571 = vunpack.c.l.bf16 %v257
    %v572 = vunpack.c.h.bf16 %v257
    %v573 = vunpack.c.l.bf16 %v258
    %v574 = vunpack.c.h.bf16 %v258
    %v575 = vunpack.c.l.bf16 %v259
    %v576 = vunpack.c.h.bf16 %v259
    %v577 = vunpack.c.l.bf16 %v260
    %v578 = vunpack.c.h.bf16 %v260
    %v579 = vunpack.c.l.bf16 %v261
    %v580 = vunpack.c.h.bf16 %v261
    %v581 = vunpack.c.l.bf16 %v262
    %v582 = vunpack.c.h.bf16 %v262
    %v583 = vunpack.c.l.bf16 %v263
    %v584 = vunpack.c.h.bf16 %v263
    %v585 = vunpack.c.l.bf16 %v264
    %v586 = vunpack.c.h.bf16 %v264
    %v587 = vunpack.c.l.bf16 %v265
    %v588 = vunpack.c.h.bf16 %v265
    %v589 = vunpack.c.l.bf16 %v266
    %v590 = vunpack.c.h.bf16 %v266
    %v591 = vunpack.c.l.bf16 %v267
    %v592 = vunpack.c.h.bf16 %v267
    %v593 = vunpack.c.l.bf16 %v268
    %v594 = vunpack.c.h.bf16 %v268
    %v595 = vunpack.c.l.bf16 %v269
    %v596 = vunpack.c.h.bf16 %v269
    %v597 = vunpack.c.l.bf16 %v270
    %v598 = vunpack.c.h.bf16 %v270
    %v599 = vunpack.c.l.bf16 %v271
    %v600 = vunpack.c.h.bf16 %v271
    %v601 = vunpack.c.l.bf16 %v272
    %v602 = vunpack.c.h.bf16 %v272
    %v603 = vunpack.c.l.bf16 %v273
    %v604 = vunpack.c.h.bf16 %v273
    %v605 = vunpack.c.l.bf16 %v274
    %v606 = vunpack.c.h.bf16 %v274
    %v607 = vunpack.c.l.bf16 %v275
    %v608 = vunpack.c.h.bf16 %v275
    %v609 = vunpack.c.l.bf16 %v276
    %v610 = vunpack.c.h.bf16 %v276
    %v611 = vunpack.c.l.bf16 %v277
    %v612 = vunpack.c.h.bf16 %v277
    %v613 = vunpack.c.l.bf16 %v278
    %v614 = vunpack.c.h.bf16 %v278
    %v615 = vunpack.c.l.bf16 %v279
    %v616 = vunpack.c.h.bf16 %v279
    %v617 = vunpack.c.l.bf16 %v280
    %v618 = vunpack.c.h.bf16 %v280
    %v619 = vunpack.c.l.bf16 %v281
    %v620 = vunpack.c.h.bf16 %v281
    %v621 = vunpack.c.l.bf16 %v282
    %v622 = vunpack.c.h.bf16 %v282
    %v623 = vunpack.c.l.bf16 %v283
    %v624 = vunpack.c.h.bf16 %v283
    %v625 = vunpack.c.l.bf16 %v284
    %v626 = vunpack.c.h.bf16 %v284
    %v627 = vunpack.c.l.bf16 %v285
    %v628 = vunpack.c.h.bf16 %v285
    %v629 = vunpack.c.l.bf16 %v286
    %v630 = vunpack.c.h.bf16 %v286
    %v631 = vunpack.c.l.bf16 %v287
    %v632 = vunpack.c.h.bf16 %v287
    %v633 = vunpack.c.l.bf16 %v288
    %v634 = vunpack.c.h.bf16 %v288
    %v635 = vunpack.c.l.bf16 %v289
    %v636 = vunpack.c.h.bf16 %v289
    %v637 = vunpack.c.l.bf16 %v290
    %v638 = vunpack.c.h.bf16 %v290
    %v639 = vunpack.c.l.bf16 %v291
    %v640 = vunpack.c.h.bf16 %v291
    %v641 = vunpack.c.l.bf16 %v292
    %v642 = vunpack.c.h.bf16 %v292
    %v643 = vunpack.c.l.bf16 %v293
    %v644 = vunpack.c.h.bf16 %v293
    %v645 = vunpack.c.l.bf16 %v294
    %v646 = vunpack.c.h.bf16 %v294
    %v647 = vunpack.c.l.bf16 %v295
    %v648 = vunpack.c.h.bf16 %v295
    %v649 = vunpack.c.l.bf16 %v296
    %v650 = vunpack.c.h.bf16 %v296
    %v651 = vunpack.c.l.bf16 %v297
    %v652 = vunpack.c.h.bf16 %v297
    %v653 = vunpack.c.l.bf16 %v298
    %v654 = vunpack.c.h.bf16 %v298
    %v655 = vunpack.c.l.bf16 %v299
    %v656 = vunpack.c.h.bf16 %v299
    %v657 = vunpack.c.l.bf16 %v300
    %v658 = vunpack.c.h.bf16 %v300
    %v659 = vunpack.c.l.bf16 %v301
    %v660 = vunpack.c.h.bf16 %v301
    %v661 = vunpack.c.l.bf16 %v302
    %v662 = vunpack.c.h.bf16 %v302
    %v663 = vunpack.c.l.bf16 %v303
    %v664 = vunpack.c.h.bf16 %v303
    %v665 = vunpack.c.l.bf16 %v304
    %v666 = vunpack.c.h.bf16 %v304
    %v667 = vunpack.c.l.bf16 %v305
    %v668 = vunpack.c.h.bf16 %v305
    %v669 = vunpack.c.l.bf16 %v306
    %v670 = vunpack.c.h.bf16 %v306
    %v671 = vunpack.c.l.bf16 %v307
    %v672 = vunpack.c.h.bf16 %v307
    %v673 = vunpack.c.l.bf16 %v308
    %v674 = vunpack.c.h.bf16 %v308
    %v675 = vunpack.c.l.bf16 %v309
    %v676 = vunpack.c.h.bf16 %v309
    %v677 = vunpack.c.l.bf16 %v310
    %v678 = vunpack.c.h.bf16 %v310
    %v679 = vunpack.c.l.bf16 %v311
    %v680 = vunpack.c.h.bf16 %v311
    %v681 = vunpack.c.l.bf16 %v312
    %v682 = vunpack.c.h.bf16 %v312
    %v683 = vunpack.c.l.bf16 %v313
    %v684 = vunpack.c.h.bf16 %v313
    %v685 = vunpack.c.l.bf16 %v314
    %v686 = vunpack.c.h.bf16 %v314
    %v687 = vunpack.c.l.bf16 %v315
    %v688 = vunpack.c.h.bf16 %v315
    %v689 = vunpack.c.l.bf16 %v316
    %v690 = vunpack.c.h.bf16 %v316
    %v691 = vunpack.c.l.bf16 %v317
    %v692 = vunpack.c.h.bf16 %v317
    %v693 = vunpack.c.l.bf16 %v318
    %v694 = vunpack.c.h.bf16 %v318
    %v695 = vunpack.c.l.bf16 %v319
    %v696 = vunpack.c.h.bf16 %v319
    %v697 = vunpack.c.l.bf16 %v320
    %v698 = vunpack.c.h.bf16 %v320
    %v699 = vunpack.c.l.bf16 %v321
    %v700 = vunpack.c.h.bf16 %v321
    %v701 = vunpack.c.l.bf16 %v322
    %v702 = vunpack.c.h.bf16 %v322
    %v703 = vunpack.c.l.bf16 %v323
    %v704 = vunpack.c.h.bf16 %v323
    %v705 = vunpack.c.l.bf16 %v324
    %v706 = vunpack.c.h.bf16 %v324
    %v707 = vunpack.c.l.bf16 %v325
    %v708 = vunpack.c.h.bf16 %v325
    %v709 = vunpack.c.l.bf16 %v326
    %v710 = vunpack.c.h.bf16 %v326
    %711 = vmatpush.msra.mxu0 %v447
    %712 = vmatpush.msra.mxu0 %v439
    %713 = vmatpush.msra.mxu0 %v431
    %714 = vmatpush.msra.mxu0 %v423
    %715 = vmatpush.msra.mxu0 %v415
    %716 = vmatpush.msra.mxu0 %v407
    %717 = vmatpush.msra.mxu0 %v399
    %718 = vmatpush.msra.mxu0 %v391
    %719 = vmatpush.msra.mxu0 %v383
    %720 = vmatpush.msra.mxu0 %v375
    %721 = vmatpush.msra.mxu0 %v367
    %722 = vmatpush.msra.mxu0 %v359
    %723 = vmatpush.msra.mxu0 %v351
    %724 = vmatpush.msra.mxu0 %v343
    %725 = vmatpush.msra.mxu0 %v335
    %726 = vmatpush.msra.mxu0 %v327
    %727 = vmatmul.f32.gmra.mxu0 %v132
    %v728 = vpop.f32.mrf.mxu0
    %v729 = vadd.f32 0.0, %v728
    %730 = vdwg.mxu0
    %731 = vmatpush.msra.mxu0 %v575
    %732 = vmatpush.msra.mxu0 %v567
    %733 = vmatpush.msra.mxu0 %v559
    %734 = vmatpush.msra.mxu0 %v551
    %735 = vmatpush.msra.mxu0 %v543
    %736 = vmatpush.msra.mxu0 %v535
    %737 = vmatpush.msra.mxu0 %v527
    %738 = vmatpush.msra.mxu0 %v519
    %739 = vmatpush.msra.mxu0 %v511
    %740 = vmatpush.msra.mxu0 %v503
    %741 = vmatpush.msra.mxu0 %v495
    %742 = vmatpush.msra.mxu0 %v487
    %743 = vmatpush.msra.mxu0 %v479
    %744 = vmatpush.msra.mxu0 %v471
    %745 = vmatpush.msra.mxu0 %v463
    %746 = vmatpush.msra.mxu0 %v455
    %747 = vmatmul.f32.gmra.mxu0 %v133
    %v748 = vpop.f32.mrf.mxu0
    %v749 = vadd.f32 %v729, %v748
    %750 = vdwg.mxu0
    %751 = vmatpush.msra.mxu0 %v703
    %752 = vmatpush.msra.mxu0 %v695
    %753 = vmatpush.msra.mxu0 %v687
    %754 = vmatpush.msra.mxu0 %v679
    %755 = vmatpush.msra.mxu0 %v671
    %756 = vmatpush.msra.mxu0 %v663
    %757 = vmatpush.msra.mxu0 %v655
    %758 = vmatpush.msra.mxu0 %v647
    %759 = vmatpush.msra.mxu0 %v639
    %760 = vmatpush.msra.mxu0 %v631
    %761 = vmatpush.msra.mxu0 %v623
    %762 = vmatpush.msra.mxu0 %v615
    %763 = vmatpush.msra.mxu0 %v607
    %764 = vmatpush.msra.mxu0 %v599
    %765 = vmatpush.msra.mxu0 %v591
    %766 = vmatpush.msra.mxu0 %v583
    %767 = vmatmul.f32.gmra.mxu0 %v134
    %v768 = vpop.f32.mrf.mxu0
    %v769 = vadd.f32 %v749, %v768
    %770 = vdwg.mxu0
    %771 = vmatpush.msra.mxu0 %v448
    %772 = vmatpush.msra.mxu0 %v440
    %773 = vmatpush.msra.mxu0 %v432
    %774 = vmatpush.msra.mxu0 %v424
    %775 = vmatpush.msra.mxu0 %v416
    %776 = vmatpush.msra.mxu0 %v408
    %777 = vmatpush.msra.mxu0 %v400
    %778 = vmatpush.msra.mxu0 %v392
    %779 = vmatpush.msra.mxu0 %v384
    %780 = vmatpush.msra.mxu0 %v376
    %781 = vmatpush.msra.mxu0 %v368
    %782 = vmatpush.msra.mxu0 %v360
    %783 = vmatpush.msra.mxu0 %v352
    %784 = vmatpush.msra.mxu0 %v344
    %785 = vmatpush.msra.mxu0 %v336
    %786 = vmatpush.msra.mxu0 %v328
    %787 = vmatmul.f32.gmra.mxu0 %v132
    %v788 = vpop.f32.mrf.mxu0
    %v789 = vadd.f32 0.0, %v788
    %790 = vdwg.mxu0
    %791 = vmatpush.msra.mxu0 %v576
    %792 = vmatpush.msra.mxu0 %v568
    %793 = vmatpush.msra.mxu0 %v560
    %794 = vmatpush.msra.mxu0 %v552
    %795 = vmatpush.msra.mxu0 %v544
    %796 = vmatpush.msra.mxu0 %v536
    %797 = vmatpush.msra.mxu0 %v528
    %798 = vmatpush.msra.mxu0 %v520
    %799 = vmatpush.msra.mxu0 %v512
    %800 = vmatpush.msra.mxu0 %v504
    %801 = vmatpush.msra.mxu0 %v496
    %802 = vmatpush.msra.mxu0 %v488
    %803 = vmatpush.msra.mxu0 %v480
    %804 = vmatpush.msra.mxu0 %v472
    %805 = vmatpush.msra.mxu0 %v464
    %806 = vmatpush.msra.mxu0 %v456
    %807 = vmatmul.f32.gmra.mxu0 %v133
    %v808 = vpop.f32.mrf.mxu0
    %v809 = vadd.f32 %v789, %v808
    %810 = vdwg.mxu0
    %811 = vmatpush.msra.mxu0 %v704
    %812 = vmatpush.msra.mxu0 %v696
    %813 = vmatpush.msra.mxu0 %v688
    %814 = vmatpush.msra.mxu0 %v680
    %815 = vmatpush.msra.mxu0 %v672
    %816 = vmatpush.msra.mxu0 %v664
    %817 = vmatpush.msra.mxu0 %v656
    %818 = vmatpush.msra.mxu0 %v648
    %819 = vmatpush.msra.mxu0 %v640
    %820 = vmatpush.msra.mxu0 %v632
    %821 = vmatpush.msra.mxu0 %v624
    %822 = vmatpush.msra.mxu0 %v616
    %823 = vmatpush.msra.mxu0 %v608
    %824 = vmatpush.msra.mxu0 %v600
    %825 = vmatpush.msra.mxu0 %v592
    %826 = vmatpush.msra.mxu0 %v584
    %827 = vmatmul.f32.gmra.mxu0 %v134
    %v828 = vpop.f32.mrf.mxu0
    %v829 = vadd.f32 %v809, %v828
    %830 = vdwg.mxu0
    %831 = vmatpush.msra.mxu0 %v449
    %832 = vmatpush.msra.mxu0 %v441
    %833 = vmatpush.msra.mxu0 %v433
    %834 = vmatpush.msra.mxu0 %v425
    %835 = vmatpush.msra.mxu0 %v417
    %836 = vmatpush.msra.mxu0 %v409
    %837 = vmatpush.msra.mxu0 %v401
    %838 = vmatpush.msra.mxu0 %v393
    %839 = vmatpush.msra.mxu0 %v385
    %840 = vmatpush.msra.mxu0 %v377
    %841 = vmatpush.msra.mxu0 %v369
    %842 = vmatpush.msra.mxu0 %v361
    %843 = vmatpush.msra.mxu0 %v353
    %844 = vmatpush.msra.mxu0 %v345
    %845 = vmatpush.msra.mxu0 %v337
    %846 = vmatpush.msra.mxu0 %v329
    %847 = vmatmul.f32.gmra.mxu0 %v132
    %v848 = vpop.f32.mrf.mxu0
    %v849 = vadd.f32 0.0, %v848
    %850 = vdwg.mxu0
    %851 = vmatpush.msra.mxu0 %v577
    %852 = vmatpush.msra.mxu0 %v569
    %853 = vmatpush.msra.mxu0 %v561
    %854 = vmatpush.msra.mxu0 %v553
    %855 = vmatpush.msra.mxu0 %v545
    %856 = vmatpush.msra.mxu0 %v537
    %857 = vmatpush.msra.mxu0 %v529
    %858 = vmatpush.msra.mxu0 %v521
    %859 = vmatpush.msra.mxu0 %v513
    %860 = vmatpush.msra.mxu0 %v505
    %861 = vmatpush.msra.mxu0 %v497
    %862 = vmatpush.msra.mxu0 %v489
    %863 = vmatpush.msra.mxu0 %v481
    %864 = vmatpush.msra.mxu0 %v473
    %865 = vmatpush.msra.mxu0 %v465
    %866 = vmatpush.msra.mxu0 %v457
    %867 = vmatmul.f32.gmra.mxu0 %v133
    %v868 = vpop.f32.mrf.mxu0
    %v869 = vadd.f32 %v849, %v868
    %870 = vdwg.mxu0
    %871 = vmatpush.msra.mxu0 %v705
    %872 = vmatpush.msra.mxu0 %v697
    %873 = vmatpush.msra.mxu0 %v689
    %874 = vmatpush.msra.mxu0 %v681
    %875 = vmatpush.msra.mxu0 %v673
    %876 = vmatpush.msra.mxu0 %v665
    %877 = vmatpush.msra.mxu0 %v657
    %878 = vmatpush.msra.mxu0 %v649
    %879 = vmatpush.msra.mxu0 %v641
    %880 = vmatpush.msra.mxu0 %v633
    %881 = vmatpush.msra.mxu0 %v625
    %882 = vmatpush.msra.mxu0 %v617
    %883 = vmatpush.msra.mxu0 %v609
    %884 = vmatpush.msra.mxu0 %v601
    %885 = vmatpush.msra.mxu0 %v593
    %886 = vmatpush.msra.mxu0 %v585
    %887 = vmatmul.f32.gmra.mxu0 %v134
    %v888 = vpop.f32.mrf.mxu0
    %v889 = vadd.f32 %v869, %v888
    %890 = vdwg.mxu0
    %891 = vmatpush.msra.mxu0 %v450
    %892 = vmatpush.msra.mxu0 %v442
    %893 = vmatpush.msra.mxu0 %v434
    %894 = vmatpush.msra.mxu0 %v426
    %895 = vmatpush.msra.mxu0 %v418
    %896 = vmatpush.msra.mxu0 %v410
    %897 = vmatpush.msra.mxu0 %v402
    %898 = vmatpush.msra.mxu0 %v394
    %899 = vmatpush.msra.mxu0 %v386
    %900 = vmatpush.msra.mxu0 %v378
    %901 = vmatpush.msra.mxu0 %v370
    %902 = vmatpush.msra.mxu0 %v362
    %903 = vmatpush.msra.mxu0 %v354
    %904 = vmatpush.msra.mxu0 %v346
    %905 = vmatpush.msra.mxu0 %v338
    %906 = vmatpush.msra.mxu0 %v330
    %907 = vmatmul.f32.gmra.mxu0 %v132
    %v908 = vpop.f32.mrf.mxu0
    %v909 = vadd.f32 0.0, %v908
    %910 = vdwg.mxu0
    %911 = vmatpush.msra.mxu0 %v578
    %912 = vmatpush.msra.mxu0 %v570
    %913 = vmatpush.msra.mxu0 %v562
    %914 = vmatpush.msra.mxu0 %v554
    %915 = vmatpush.msra.mxu0 %v546
    %916 = vmatpush.msra.mxu0 %v538
    %917 = vmatpush.msra.mxu0 %v530
    %918 = vmatpush.msra.mxu0 %v522
    %919 = vmatpush.msra.mxu0 %v514
    %920 = vmatpush.msra.mxu0 %v506
    %921 = vmatpush.msra.mxu0 %v498
    %922 = vmatpush.msra.mxu0 %v490
    %923 = vmatpush.msra.mxu0 %v482
    %924 = vmatpush.msra.mxu0 %v474
    %925 = vmatpush.msra.mxu0 %v466
    %926 = vmatpush.msra.mxu0 %v458
    %927 = vmatmul.f32.gmra.mxu0 %v133
    %v928 = vpop.f32.mrf.mxu0
    %v929 = vadd.f32 %v909, %v928
    %930 = vdwg.mxu0
    %931 = vmatpush.msra.mxu0 %v706
    %932 = vmatpush.msra.mxu0 %v698
    %933 = vmatpush.msra.mxu0 %v690
    %934 = vmatpush.msra.mxu0 %v682
    %935 = vmatpush.msra.mxu0 %v674
    %936 = vmatpush.msra.mxu0 %v666
    %937 = vmatpush.msra.mxu0 %v658
    %938 = vmatpush.msra.mxu0 %v650
    %939 = vmatpush.msra.mxu0 %v642
    %940 = vmatpush.msra.mxu0 %v634
    %941 = vmatpush.msra.mxu0 %v626
    %942 = vmatpush.msra.mxu0 %v618
    %943 = vmatpush.msra.mxu0 %v610
    %944 = vmatpush.msra.mxu0 %v602
    %945 = vmatpush.msra.mxu0 %v594
    %946 = vmatpush.msra.mxu0 %v586
    %947 = vmatmul.f32.gmra.mxu0 %v134
    %v948 = vpop.f32.mrf.mxu0
    %v949 = vadd.f32 %v929, %v948
    %950 = vdwg.mxu0
    %951 = vmatpush.msra.mxu0 %v451
    %952 = vmatpush.msra.mxu0 %v443
    %953 = vmatpush.msra.mxu0 %v435
    %954 = vmatpush.msra.mxu0 %v427
    %955 = vmatpush.msra.mxu0 %v419
    %956 = vmatpush.msra.mxu0 %v411
    %957 = vmatpush.msra.mxu0 %v403
    %958 = vmatpush.msra.mxu0 %v395
    %959 = vmatpush.msra.mxu0 %v387
    %960 = vmatpush.msra.mxu0 %v379
    %961 = vmatpush.msra.mxu0 %v371
    %962 = vmatpush.msra.mxu0 %v363
    %963 = vmatpush.msra.mxu0 %v355
    %964 = vmatpush.msra.mxu0 %v347
    %965 = vmatpush.msra.mxu0 %v339
    %966 = vmatpush.msra.mxu0 %v331
    %967 = vmatmul.f32.gmra.mxu0 %v132
    %v968 = vpop.f32.mrf.mxu0
    %v969 = vadd.f32 0.0, %v968
    %970 = vdwg.mxu0
    %971 = vmatpush.msra.mxu0 %v579
    %972 = vmatpush.msra.mxu0 %v571
    %973 = vmatpush.msra.mxu0 %v563
    %974 = vmatpush.msra.mxu0 %v555
    %975 = vmatpush.msra.mxu0 %v547
    %976 = vmatpush.msra.mxu0 %v539
    %977 = vmatpush.msra.mxu0 %v531
    %978 = vmatpush.msra.mxu0 %v523
    %979 = vmatpush.msra.mxu0 %v515
    %980 = vmatpush.msra.mxu0 %v507
    %981 = vmatpush.msra.mxu0 %v499
    %982 = vmatpush.msra.mxu0 %v491
    %983 = vmatpush.msra.mxu0 %v483
    %984 = vmatpush.msra.mxu0 %v475
    %985 = vmatpush.msra.mxu0 %v467
    %986 = vmatpush.msra.mxu0 %v459
    %987 = vmatmul.f32.gmra.mxu0 %v133
    %v988 = vpop.f32.mrf.mxu0
    %v989 = vadd.f32 %v969, %v988
    %990 = vdwg.mxu0
    %991 = vmatpush.msra.mxu0 %v707
    %992 = vmatpush.msra.mxu0 %v699
    %993 = vmatpush.msra.mxu0 %v691
    %994 = vmatpush.msra.mxu0 %v683
    %995 = vmatpush.msra.mxu0 %v675
    %996 = vmatpush.msra.mxu0 %v667
    %997 = vmatpush.msra.mxu0 %v659
    %998 = vmatpush.msra.mxu0 %v651
    %999 = vmatpush.msra.mxu0 %v643
    %1000 = vmatpush.msra.mxu0 %v635
    %1001 = vmatpush.msra.mxu0 %v627
    %1002 = vmatpush.msra.mxu0 %v619
    %1003 = vmatpush.msra.mxu0 %v611
    %1004 = vmatpush.msra.mxu0 %v603
    %1005 = vmatpush.msra.mxu0 %v595
    %1006 = vmatpush.msra.mxu0 %v587
    %1007 = vmatmul.f32.gmra.mxu0 %v134
    %v1008 = vpop.f32.mrf.mxu0
    %v1009 = vadd.f32 %v989, %v1008
    %1010 = vdwg.mxu0
    %1011 = vmatpush.msra.mxu0 %v452
    %1012 = vmatpush.msra.mxu0 %v444
    %1013 = vmatpush.msra.mxu0 %v436
    %1014 = vmatpush.msra.mxu0 %v428
    %1015 = vmatpush.msra.mxu0 %v420
    %1016 = vmatpush.msra.mxu0 %v412
    %1017 = vmatpush.msra.mxu0 %v404
    %1018 = vmatpush.msra.mxu0 %v396
    %1019 = vmatpush.msra.mxu0 %v388
    %1020 = vmatpush.msra.mxu0 %v380
    %1021 = vmatpush.msra.mxu0 %v372
    %1022 = vmatpush.msra.mxu0 %v364
    %1023 = vmatpush.msra.mxu0 %v356
    %1024 = vmatpush.msra.mxu0 %v348
    %1025 = vmatpush.msra.mxu0 %v340
    %1026 = vmatpush.msra.mxu0 %v332
    %1027 = vmatmul.f32.gmra.mxu0 %v132
    %v1028 = vpop.f32.mrf.mxu0
    %v1029 = vadd.f32 0.0, %v1028
    %1030 = vdwg.mxu0
    %1031 = vmatpush.msra.mxu0 %v580
    %1032 = vmatpush.msra.mxu0 %v572
    %1033 = vmatpush.msra.mxu0 %v564
    %1034 = vmatpush.msra.mxu0 %v556
    %1035 = vmatpush.msra.mxu0 %v548
    %1036 = vmatpush.msra.mxu0 %v540
    %1037 = vmatpush.msra.mxu0 %v532
    %1038 = vmatpush.msra.mxu0 %v524
    %1039 = vmatpush.msra.mxu0 %v516
    %1040 = vmatpush.msra.mxu0 %v508
    %1041 = vmatpush.msra.mxu0 %v500
    %1042 = vmatpush.msra.mxu0 %v492
    %1043 = vmatpush.msra.mxu0 %v484
    %1044 = vmatpush.msra.mxu0 %v476
    %1045 = vmatpush.msra.mxu0 %v468
    %1046 = vmatpush.msra.mxu0 %v460
    %1047 = vmatmul.f32.gmra.mxu0 %v133
    %v1048 = vpop.f32.mrf.mxu0
    %v1049 = vadd.f32 %v1029, %v1048
    %1050 = vdwg.mxu0
    %1051 = vmatpush.msra.mxu0 %v708
    %1052 = vmatpush.msra.mxu0 %v700
    %1053 = vmatpush.msra.mxu0 %v692
    %1054 = vmatpush.msra.mxu0 %v684
    %1055 = vmatpush.msra.mxu0 %v676
    %1056 = vmatpush.msra.mxu0 %v668
    %1057 = vmatpush.msra.mxu0 %v660
    %1058 = vmatpush.msra.mxu0 %v652
    %1059 = vmatpush.msra.mxu0 %v644
    %1060 = vmatpush.msra.mxu0 %v636
    %1061 = vmatpush.msra.mxu0 %v628
    %1062 = vmatpush.msra.mxu0 %v620
    %1063 = vmatpush.msra.mxu0 %v612
    %1064 = vmatpush.msra.mxu0 %v604
    %1065 = vmatpush.msra.mxu0 %v596
    %1066 = vmatpush.msra.mxu0 %v588
    %1067 = vmatmul.f32.gmra.mxu0 %v134
    %v1068 = vpop.f32.mrf.mxu0
    %v1069 = vadd.f32 %v1049, %v1068
    %1070 = vdwg.mxu0
    %1071 = vmatpush.msra.mxu0 %v453
    %1072 = vmatpush.msra.mxu0 %v445
    %1073 = vmatpush.msra.mxu0 %v437
    %1074 = vmatpush.msra.mxu0 %v429
    %1075 = vmatpush.msra.mxu0 %v421
    %1076 = vmatpush.msra.mxu0 %v413
    %1077 = vmatpush.msra.mxu0 %v405
    %1078 = vmatpush.msra.mxu0 %v397
    %1079 = vmatpush.msra.mxu0 %v389
    %1080 = vmatpush.msra.mxu0 %v381
    %1081 = vmatpush.msra.mxu0 %v373
    %1082 = vmatpush.msra.mxu0 %v365
    %1083 = vmatpush.msra.mxu0 %v357
    %1084 = vmatpush.msra.mxu0 %v349
    %1085 = vmatpush.msra.mxu0 %v341
    %1086 = vmatpush.msra.mxu0 %v333
    %1087 = vmatmul.f32.gmra.mxu0 %v132
    %v1088 = vpop.f32.mrf.mxu0
    %v1089 = vadd.f32 0.0, %v1088
    %1090 = vdwg.mxu0
    %1091 = vmatpush.msra.mxu0 %v581
    %1092 = vmatpush.msra.mxu0 %v573
    %1093 = vmatpush.msra.mxu0 %v565
    %1094 = vmatpush.msra.mxu0 %v557
    %1095 = vmatpush.msra.mxu0 %v549
    %1096 = vmatpush.msra.mxu0 %v541
    %1097 = vmatpush.msra.mxu0 %v533
    %1098 = vmatpush.msra.mxu0 %v525
    %1099 = vmatpush.msra.mxu0 %v517
    %1100 = vmatpush.msra.mxu0 %v509
    %1101 = vmatpush.msra.mxu0 %v501
    %1102 = vmatpush.msra.mxu0 %v493
    %1103 = vmatpush.msra.mxu0 %v485
    %1104 = vmatpush.msra.mxu0 %v477
    %1105 = vmatpush.msra.mxu0 %v469
    %1106 = vmatpush.msra.mxu0 %v461
    %1107 = vmatmul.f32.gmra.mxu0 %v133
    %v1108 = vpop.f32.mrf.mxu0
    %v1109 = vadd.f32 %v1089, %v1108
    %1110 = vdwg.mxu0
    %1111 = vmatpush.msra.mxu0 %v709
    %1112 = vmatpush.msra.mxu0 %v701
    %1113 = vmatpush.msra.mxu0 %v693
    %1114 = vmatpush.msra.mxu0 %v685
    %1115 = vmatpush.msra.mxu0 %v677
    %1116 = vmatpush.msra.mxu0 %v669
    %1117 = vmatpush.msra.mxu0 %v661
    %1118 = vmatpush.msra.mxu0 %v653
    %1119 = vmatpush.msra.mxu0 %v645
    %1120 = vmatpush.msra.mxu0 %v637
    %1121 = vmatpush.msra.mxu0 %v629
    %1122 = vmatpush.msra.mxu0 %v621
    %1123 = vmatpush.msra.mxu0 %v613
    %1124 = vmatpush.msra.mxu0 %v605
    %1125 = vmatpush.msra.mxu0 %v597
    %1126 = vmatpush.msra.mxu0 %v589
    %1127 = vmatmul.f32.gmra.mxu0 %v134
    %v1128 = vpop.f32.mrf.mxu0
    %v1129 = vadd.f32 %v1109, %v1128
    %1130 = vdwg.mxu0
    %1131 = vmatpush.msra.mxu0 %v454
    %1132 = vmatpush.msra.mxu0 %v446
    %1133 = vmatpush.msra.mxu0 %v438
    %1134 = vmatpush.msra.mxu0 %v430
    %1135 = vmatpush.msra.mxu0 %v422
    %1136 = vmatpush.msra.mxu0 %v414
    %1137 = vmatpush.msra.mxu0 %v406
    %1138 = vmatpush.msra.mxu0 %v398
    %1139 = vmatpush.msra.mxu0 %v390
    %1140 = vmatpush.msra.mxu0 %v382
    %1141 = vmatpush.msra.mxu0 %v374
    %1142 = vmatpush.msra.mxu0 %v366
    %1143 = vmatpush.msra.mxu0 %v358
    %1144 = vmatpush.msra.mxu0 %v350
    %1145 = vmatpush.msra.mxu0 %v342
    %1146 = vmatpush.msra.mxu0 %v334
    %1147 = vmatmul.f32.gmra.mxu0 %v132
    %v1148 = vpop.f32.mrf.mxu0
    %v1149 = vadd.f32 0.0, %v1148
    %1150 = vdwg.mxu0
    %1151 = vmatpush.msra.mxu0 %v582
    %1152 = vmatpush.msra.mxu0 %v574
    %1153 = vmatpush.msra.mxu0 %v566
    %1154 = vmatpush.msra.mxu0 %v558
    %1155 = vmatpush.msra.mxu0 %v550
    %1156 = vmatpush.msra.mxu0 %v542
    %1157 = vmatpush.msra.mxu0 %v534
    %1158 = vmatpush.msra.mxu0 %v526
    %1159 = vmatpush.msra.mxu0 %v518
    %1160 = vmatpush.msra.mxu0 %v510
    %1161 = vmatpush.msra.mxu0 %v502
    %1162 = vmatpush.msra.mxu0 %v494
    %1163 = vmatpush.msra.mxu0 %v486
    %1164 = vmatpush.msra.mxu0 %v478
    %1165 = vmatpush.msra.mxu0 %v470
    %1166 = vmatpush.msra.mxu0 %v462
    %1167 = vmatmul.f32.gmra.mxu0 %v133
    %v1168 = vpop.f32.mrf.mxu0
    %v1169 = vadd.f32 %v1149, %v1168
    %1170 = vdwg.mxu0
    %1171 = vmatpush.msra.mxu0 %v710
    %1172 = vmatpush.msra.mxu0 %v702
    %1173 = vmatpush.msra.mxu0 %v694
    %1174 = vmatpush.msra.mxu0 %v686
    %1175 = vmatpush.msra.mxu0 %v678
    %1176 = vmatpush.msra.mxu0 %v670
    %1177 = vmatpush.msra.mxu0 %v662
    %1178 = vmatpush.msra.mxu0 %v654
    %1179 = vmatpush.msra.mxu0 %v646
    %1180 = vmatpush.msra.mxu0 %v638
    %1181 = vmatpush.msra.mxu0 %v630
    %1182 = vmatpush.msra.mxu0 %v622
    %1183 = vmatpush.msra.mxu0 %v614
    %1184 = vmatpush.msra.mxu0 %v606
    %1185 = vmatpush.msra.mxu0 %v598
    %1186 = vmatpush.msra.mxu0 %v590
    %1187 = vmatmul.f32.gmra.mxu0 %v134
    %v1188 = vpop.f32.mrf.mxu0
    %v1189 = vadd.f32 %v1169, %v1188
    %1190 = vdwg.mxu0
    %v1191 = vrot.slane %v769, 4
    %v1192 = vadd.f32 %v769, %v1191
    %v1193 = vrot.slane %v1192, 2
    %v1194 = vadd.f32 %v1192, %v1193
    %v1195 = vrot.slane %v1194, 1
    %v1196 = vadd.f32 %v1194, %v1195
    %v1197 = vrot.slane %v829, 4
    %v1198 = vadd.f32 %v829, %v1197
    %v1199 = vrot.slane %v1198, 2
    %v1200 = vadd.f32 %v1198, %v1199
    %v1201 = vrot.slane %v1200, 1
    %v1202 = vadd.f32 %v1200, %v1201
    %v1203 = vrot.slane %v889, 4
    %v1204 = vadd.f32 %v889, %v1203
    %v1205 = vrot.slane %v1204, 2
    %v1206 = vadd.f32 %v1204, %v1205
    %v1207 = vrot.slane %v1206, 1
    %v1208 = vadd.f32 %v1206, %v1207
    %v1209 = vrot.slane %v949, 4
    %v1210 = vadd.f32 %v949, %v1209
    %v1211 = vrot.slane %v1210, 2
    %v1212 = vadd.f32 %v1210, %v1211
    %v1213 = vrot.slane %v1212, 1
    %v1214 = vadd.f32 %v1212, %v1213
    %v1215 = vrot.slane %v1009, 4
    %v1216 = vadd.f32 %v1009, %v1215
    %v1217 = vrot.slane %v1216, 2
    %v1218 = vadd.f32 %v1216, %v1217
    %v1219 = vrot.slane %v1218, 1
    %v1220 = vadd.f32 %v1218, %v1219
    %v1221 = vrot.slane %v1069, 4
    %v1222 = vadd.f32 %v1069, %v1221
    %v1223 = vrot.slane %v1222, 2
    %v1224 = vadd.f32 %v1222, %v1223
    %v1225 = vrot.slane %v1224, 1
    %v1226 = vadd.f32 %v1224, %v1225
    %v1227 = vrot.slane %v1129, 4
    %v1228 = vadd.f32 %v1129, %v1227
    %v1229 = vrot.slane %v1228, 2
    %v1230 = vadd.f32 %v1228, %v1229
    %v1231 = vrot.slane %v1230, 1
    %v1232 = vadd.f32 %v1230, %v1231
    %v1233 = vrot.slane %v1189, 4
    %v1234 = vadd.f32 %v1189, %v1233
    %v1235 = vrot.slane %v1234, 2
    %v1236 = vadd.f32 %v1234, %v1235
    %v1237 = vrot.slane %v1236, 1
    %v1238 = vadd.f32 %v1236, %v1237
    %v1239 = vrcp.pop 8.0
    %v1240 = vmul.f32 8.0, %v1239
    %v1241 = vsub.f32 1.0, %v1240
    %v1242 = vmul.f32 %v1239, %v1241
    %v1243 = vadd.f32 %v1239, %v1242
    %vm1244 = vweird.f32 %v1239
    %v1245 = vsel %vm1244, %v1239, %v1243
    %v1246 = vmul.f32 %v1196, %v1245
    %v1247 = vmul.f32 %v1202, %v1245
    %v1248 = vmul.f32 %v1208, %v1245
    %v1249 = vmul.f32 %v1214, %v1245
    %v1250 = vmul.f32 %v1220, %v1245
    %v1251 = vmul.f32 %v1226, %v1245
    %v1252 = vmul.f32 %v1232, %v1245
    %v1253 = vmul.f32 %v1238, %v1245
    %v1254 = vsub.f32 %v769, %v1246
    %v1255 = vsub.f32 %v829, %v1247
    %v1256 = vsub.f32 %v889, %v1248
    %v1257 = vsub.f32 %v949, %v1249
    %v1258 = vsub.f32 %v1009, %v1250
    %v1259 = vsub.f32 %v1069, %v1251
    %v1260 = vsub.f32 %v1129, %v1252
    %v1261 = vsub.f32 %v1189, %v1253
    %v1262 = vmul.f32 %v1254, %v1254
    %v1263 = vmul.f32 %v1255, %v1255
    %v1264 = vmul.f32 %v1256, %v1256
    %v1265 = vmul.f32 %v1257, %v1257
    %v1266 = vmul.f32 %v1258, %v1258
    %v1267 = vmul.f32 %v1259, %v1259
    %v1268 = vmul.f32 %v1260, %v1260
    %v1269 = vmul.f32 %v1261, %v1261
    %v1270 = vrot.slane %v1262, 4
    %v1271 = vadd.f32 %v1262, %v1270
    %v1272 = vrot.slane %v1271, 2
    %v1273 = vadd.f32 %v1271, %v1272
    %v1274 = vrot.slane %v1273, 1
    %v1275 = vadd.f32 %v1273, %v1274
    %v1276 = vrot.slane %v1263, 4
    %v1277 = vadd.f32 %v1263, %v1276
    %v1278 = vrot.slane %v1277, 2
    %v1279 = vadd.f32 %v1277, %v1278
    %v1280 = vrot.slane %v1279, 1
    %v1281 = vadd.f32 %v1279, %v1280
    %v1282 = vrot.slane %v1264, 4
    %v1283 = vadd.f32 %v1264, %v1282
    %v1284 = vrot.slane %v1283, 2
    %v1285 = vadd.f32 %v1283, %v1284
    %v1286 = vrot.slane %v1285, 1
    %v1287 = vadd.f32 %v1285, %v1286
    %v1288 = vrot.slane %v1265, 4
    %v1289 = vadd.f32 %v1265, %v1288
    %v1290 = vrot.slane %v1289, 2
    %v1291 = vadd.f32 %v1289, %v1290
    %v1292 = vrot.slane %v1291, 1
    %v1293 = vadd.f32 %v1291, %v1292
    %v1294 = vrot.slane %v1266, 4
    %v1295 = vadd.f32 %v1266, %v1294
    %v1296 = vrot.slane %v1295, 2
    %v1297 = vadd.f32 %v1295, %v1296
    %v1298 = vrot.slane %v1297, 1
    %v1299 = vadd.f32 %v1297, %v1298
    %v1300 = vrot.slane %v1267, 4
    %v1301 = vadd.f32 %v1267, %v1300
    %v1302 = vrot.slane %v1301, 2
    %v1303 = vadd.f32 %v1301, %v1302
    %v1304 = vrot.slane %v1303, 1
    %v1305 = vadd.f32 %v1303, %v1304
    %v1306 = vrot.slane %v1268, 4
    %v1307 = vadd.f32 %v1268, %v1306
    %v1308 = vrot.slane %v1307, 2
    %v1309 = vadd.f32 %v1307, %v1308
    %v1310 = vrot.slane %v1309, 1
    %v1311 = vadd.f32 %v1309, %v1310
    %v1312 = vrot.slane %v1269, 4
    %v1313 = vadd.f32 %v1269, %v1312
    %v1314 = vrot.slane %v1313, 2
    %v1315 = vadd.f32 %v1313, %v1314
    %v1316 = vrot.slane %v1315, 1
    %v1317 = vadd.f32 %v1315, %v1316
    %v1318 = vmul.f32 %v1275, %v1245
    %v1319 = vmul.f32 %v1281, %v1245
    %v1320 = vmul.f32 %v1287, %v1245
    %v1321 = vmul.f32 %v1293, %v1245
    %v1322 = vmul.f32 %v1299, %v1245
    %v1323 = vmul.f32 %v1305, %v1245
    %v1324 = vmul.f32 %v1311, %v1245
    %v1325 = vmul.f32 %v1317, %v1245
    %v1326 = vadd.f32 %v1318, 1e-05
    %v1327 = vadd.f32 %v1319, 1e-05
    %v1328 = vadd.f32 %v1320, 1e-05
    %v1329 = vadd.f32 %v1321, 1e-05
    %v1330 = vadd.f32 %v1322, 1e-05
    %v1331 = vadd.f32 %v1323, 1e-05
    %v1332 = vadd.f32 %v1324, 1e-05
    %v1333 = vadd.f32 %v1325, 1e-05
    %v1334 = vrsqrt.pop %v1326
    %v1335 = vmul.f32 %v1334, %v1326
    %v1336 = vmul.f32 %v1335, %v1334
    %v1337 = vmul.f32 0.5, %v1336
    %v1338 = vsub.f32 1.5, %v1337
    %v1339 = vmul.f32 %v1334, %v1338
    %vm1340 = vweird.f32 %v1326
    %vm1341 = vweird.f32 %v1334
    %vm1342 = vmor %vm1340, %vm1341
    %v1343 = vsel %vm1342, %v1334, %v1339
    %v1344 = vrsqrt.pop %v1327
    %v1345 = vmul.f32 %v1344, %v1327
    %v1346 = vmul.f32 %v1345, %v1344
    %v1347 = vmul.f32 0.5, %v1346
    %v1348 = vsub.f32 1.5, %v1347
    %v1349 = vmul.f32 %v1344, %v1348
    %vm1350 = vweird.f32 %v1327
    %vm1351 = vweird.f32 %v1344
    %vm1352 = vmor %vm1350, %vm1351
    %v1353 = vsel %vm1352, %v1344, %v1349
    %v1354 = vrsqrt.pop %v1328
    %v1355 = vmul.f32 %v1354, %v1328
    %v1356 = vmul.f32 %v1355, %v1354
    %v1357 = vmul.f32 0.5, %v1356
    %v1358 = vsub.f32 1.5, %v1357
    %v1359 = vmul.f32 %v1354, %v1358
    %vm1360 = vweird.f32 %v1328
    %vm1361 = vweird.f32 %v1354
    %vm1362 = vmor %vm1360, %vm1361
    %v1363 = vsel %vm1362, %v1354, %v1359
    %v1364 = vrsqrt.pop %v1329
    %v1365 = vmul.f32 %v1364, %v1329
    %v1366 = vmul.f32 %v1365, %v1364
    %v1367 = vmul.f32 0.5, %v1366
    %v1368 = vsub.f32 1.5, %v1367
    %v1369 = vmul.f32 %v1364, %v1368
    %vm1370 = vweird.f32 %v1329
    %vm1371 = vweird.f32 %v1364
    %vm1372 = vmor %vm1370, %vm1371
    %v1373 = vsel %vm1372, %v1364, %v1369
    %v1374 = vrsqrt.pop %v1330
    %v1375 = vmul.f32 %v1374, %v1330
    %v1376 = vmul.f32 %v1375, %v1374
    %v1377 = vmul.f32 0.5, %v1376
    %v1378 = vsub.f32 1.5, %v1377
    %v1379 = vmul.f32 %v1374, %v1378
    %vm1380 = vweird.f32 %v1330
    %vm1381 = vweird.f32 %v1374
    %vm1382 = vmor %vm1380, %vm1381
    %v1383 = vsel %vm1382, %v1374, %v1379
    %v1384 = vrsqrt.pop %v1331
    %v1385 = vmul.f32 %v1384, %v1331
    %v1386 = vmul.f32 %v1385, %v1384
    %v1387 = vmul.f32 0.5, %v1386
    %v1388 = vsub.f32 1.5, %v1387
    %v1389 = vmul.f32 %v1384, %v1388
    %vm1390 = vweird.f32 %v1331
    %vm1391 = vweird.f32 %v1384
    %vm1392 = vmor %vm1390, %vm1391
    %v1393 = vsel %vm1392, %v1384, %v1389
    %v1394 = vrsqrt.pop %v1332
    %v1395 = vmul.f32 %v1394, %v1332
    %v1396 = vmul.f32 %v1395, %v1394
    %v1397 = vmul.f32 0.5, %v1396
    %v1398 = vsub.f32 1.5, %v1397
    %v1399 = vmul.f32 %v1394, %v1398
    %vm1400 = vweird.f32 %v1332
    %vm1401 = vweird.f32 %v1394
    %vm1402 = vmor %vm1400, %vm1401
    %v1403 = vsel %vm1402, %v1394, %v1399
    %v1404 = vrsqrt.pop %v1333
    %v1405 = vmul.f32 %v1404, %v1333
    %v1406 = vmul.f32 %v1405, %v1404
    %v1407 = vmul.f32 0.5, %v1406
    %v1408 = vsub.f32 1.5, %v1407
    %v1409 = vmul.f32 %v1404, %v1408
    %vm1410 = vweird.f32 %v1333
    %vm1411 = vweird.f32 %v1404
    %vm1412 = vmor %vm1410, %vm1411
    %v1413 = vsel %vm1412, %v1404, %v1409
    %v1414 = vmul.f32 %v1254, %v1343
    %v1415 = vmul.f32 %v1255, %v1353
    %v1416 = vmul.f32 %v1256, %v1363
    %v1417 = vmul.f32 %v1257, %v1373
    %v1418 = vmul.f32 %v1258, %v1383
    %v1419 = vmul.f32 %v1259, %v1393
    %v1420 = vmul.f32 %v1260, %v1403
    %v1421 = vmul.f32 %v1261, %v1413
    %v1422 = vmax.f32 %v1414, 0.0
    %v1423 = vmax.f32 %v1415, 0.0
    %v1424 = vmax.f32 %v1416, 0.0
    %v1425 = vmax.f32 %v1417, 0.0
    %v1426 = vmax.f32 %v1418, 0.0
    %v1427 = vmax.f32 %v1419, 0.0
    %v1428 = vmax.f32 %v1420, 0.0
    %v1429 = vmax.f32 %v1421, 0.0
    %v1430 = vld [vmem:[#allocation7] sm:$0xff]
    %v1431 = vld [vmem:[#allocation7 + $0x8] sm:$0xff]
    %v1432 = vld [vmem:[#allocation7 + $0x10] sm:$0xff]
    %v1433 = vld [vmem:[#allocation7 + $0x18] sm:$0xff]
    %v1434 = vld [vmem:[#allocation7 + $0x20] sm:$0xff]
    %v1435 = vld [vmem:[#allocation7 + $0x28] sm:$0xff]
    %v1436 = vld [vmem:[#allocation7 + $0x30] sm:$0xff]
    %v1437 = vld [vmem:[#allocation7 + $0x38] sm:$0xff]
    %v1438 = vld [vmem:[#allocation7 + $0x40] sm:$0xff]
    %v1439 = vld [vmem:[#allocation7 + $0x48] sm:$0xff]
    %v1440 = vld [vmem:[#allocation7 + $0x50] sm:$0xff]
    %v1441 = vld [vmem:[#allocation7 + $0x58] sm:$0xff]
    %v1442 = vld [vmem:[#allocation7 + $0x60] sm:$0xff]
    %v1443 = vld [vmem:[#allocation7 + $0x68] sm:$0xff]
    %v1444 = vld [vmem:[#allocation7 + $0x70] sm:$0xff]
    %v1445 = vld [vmem:[#allocation7 + $0x78] sm:$0xff]
    %v1446 = vld [vmem:[#allocation7 + $0x80] sm:$0xff]
    %v1447 = vld [vmem:[#allocation7 + $0x88] sm:$0xff]
    %v1448 = vld [vmem:[#allocation7 + $0x90] sm:$0xff]
    %v1449 = vld [vmem:[#allocation7 + $0x98] sm:$0xff]
    %v1450 = vld [vmem:[#allocation7 + $0xa0] sm:$0xff]
    %v1451 = vld [vmem:[#allocation7 + $0xa8] sm:$0xff]
    %v1452 = vld [vmem:[#allocation7 + $0xb0] sm:$0xff]
    %v1453 = vld [vmem:[#allocation7 + $0xb8] sm:$0xff]
    %v1454 = vld [vmem:[#allocation7 + $0xc0] sm:$0xff]
    %v1455 = vld [vmem:[#allocation7 + $0xc8] sm:$0xff]
    %v1456 = vld [vmem:[#allocation7 + $0xd0] sm:$0xff]
    %v1457 = vld [vmem:[#allocation7 + $0xd8] sm:$0xff]
    %v1458 = vld [vmem:[#allocation7 + $0xe0] sm:$0xff]
    %v1459 = vld [vmem:[#allocation7 + $0xe8] sm:$0xff]
    %v1460 = vld [vmem:[#allocation7 + $0xf0] sm:$0xff]
    %v1461 = vld [vmem:[#allocation7 + $0xf8] sm:$0xff]
    %v1462 = vld [vmem:[#allocation7 + $0x100] sm:$0xff]
    %v1463 = vld [vmem:[#allocation7 + $0x108] sm:$0xff]
    %v1464 = vld [vmem:[#allocation7 + $0x110] sm:$0xff]
    %v1465 = vld [vmem:[#allocation7 + $0x118] sm:$0xff]
    %v1466 = vld [vmem:[#allocation7 + $0x120] sm:$0xff]
    %v1467 = vld [vmem:[#allocation7 + $0x128] sm:$0xff]
    %v1468 = vld [vmem:[#allocation7 + $0x130] sm:$0xff]
    %v1469 = vld [vmem:[#allocation7 + $0x138] sm:$0xff]
    %v1470 = vld [vmem:[#allocation7 + $0x140] sm:$0xff]
    %v1471 = vld [vmem:[#allocation7 + $0x148] sm:$0xff]
    %v1472 = vld [vmem:[#allocation7 + $0x150] sm:$0xff]
    %v1473 = vld [vmem:[#allocation7 + $0x158] sm:$0xff]
    %v1474 = vld [vmem:[#allocation7 + $0x160] sm:$0xff]
    %v1475 = vld [vmem:[#allocation7 + $0x168] sm:$0xff]
    %v1476 = vld [vmem:[#allocation7 + $0x170] sm:$0xff]
    %v1477 = vld [vmem:[#allocation7 + $0x178] sm:$0xff]
    %v1478 = vld [vmem:[#allocation7 + $0x180] sm:$0xff]
    %v1479 = vld [vmem:[#allocation7 + $0x188] sm:$0xff]
    %v1480 = vld [vmem:[#allocation7 + $0x190] sm:$0xff]
    %v1481 = vld [vmem:[#allocation7 + $0x198] sm:$0xff]
    %v1482 = vld [vmem:[#allocation7 + $0x1a0] sm:$0xff]
    %v1483 = vld [vmem:[#allocation7 + $0x1a8] sm:$0xff]
    %v1484 = vld [vmem:[#allocation7 + $0x1b0] sm:$0xff]
    %v1485 = vld [vmem:[#allocation7 + $0x1b8] sm:$0xff]
    %v1486 = vld [vmem:[#allocation7 + $0x1c0] sm:$0xff]
    %v1487 = vld [vmem:[#allocation7 + $0x1c8] sm:$0xff]
    %v1488 = vld [vmem:[#allocation7 + $0x1d0] sm:$0xff]
    %v1489 = vld [vmem:[#allocation7 + $0x1d8] sm:$0xff]
    %v1490 = vld [vmem:[#allocation7 + $0x1e0] sm:$0xff]
    %v1491 = vld [vmem:[#allocation7 + $0x1e8] sm:$0xff]
    %v1492 = vld [vmem:[#allocation7 + $0x1f0] sm:$0xff]
    %v1493 = vld [vmem:[#allocation7 + $0x1f8] sm:$0xff]
    %v1494 = vld [vmem:[#allocation7 + $0x200] sm:$0xff]
    %v1495 = vld [vmem:[#allocation7 + $0x208] sm:$0xff]
    %v1496 = vld [vmem:[#allocation7 + $0x210] sm:$0xff]
    %v1497 = vld [vmem:[#allocation7 + $0x218] sm:$0xff]
    %v1498 = vld [vmem:[#allocation7 + $0x220] sm:$0xff]
    %v1499 = vld [vmem:[#allocation7 + $0x228] sm:$0xff]
    %v1500 = vld [vmem:[#allocation7 + $0x230] sm:$0xff]
    %v1501 = vld [vmem:[#allocation7 + $0x238] sm:$0xff]
    %v1502 = vld [vmem:[#allocation7 + $0x240] sm:$0xff]
    %v1503 = vld [vmem:[#allocation7 + $0x248] sm:$0xff]
    %v1504 = vld [vmem:[#allocation7 + $0x250] sm:$0xff]
    %v1505 = vld [vmem:[#allocation7 + $0x258] sm:$0xff]
    %v1506 = vld [vmem:[#allocation7 + $0x260] sm:$0xff]
    %v1507 = vld [vmem:[#allocation7 + $0x268] sm:$0xff]
    %v1508 = vld [vmem:[#allocation7 + $0x270] sm:$0xff]
    %v1509 = vld [vmem:[#allocation7 + $0x278] sm:$0xff]
    %v1510 = vld [vmem:[#allocation7 + $0x280] sm:$0xff]
    %v1511 = vld [vmem:[#allocation7 + $0x288] sm:$0xff]
    %v1512 = vld [vmem:[#allocation7 + $0x290] sm:$0xff]
    %v1513 = vld [vmem:[#allocation7 + $0x298] sm:$0xff]
    %v1514 = vld [vmem:[#allocation7 + $0x2a0] sm:$0xff]
    %v1515 = vld [vmem:[#allocation7 + $0x2a8] sm:$0xff]
    %v1516 = vld [vmem:[#allocation7 + $0x2b0] sm:$0xff]
    %v1517 = vld [vmem:[#allocation7 + $0x2b8] sm:$0xff]
    %v1518 = vld [vmem:[#allocation7 + $0x2c0] sm:$0xff]
    %v1519 = vld [vmem:[#allocation7 + $0x2c8] sm:$0xff]
    %v1520 = vld [vmem:[#allocation7 + $0x2d0] sm:$0xff]
    %v1521 = vld [vmem:[#allocation7 + $0x2d8] sm:$0xff]
    %v1522 = vld [vmem:[#allocation7 + $0x2e0] sm:$0xff]
    %v1523 = vld [vmem:[#allocation7 + $0x2e8] sm:$0xff]
    %v1524 = vld [vmem:[#allocation7 + $0x2f0] sm:$0xff]
    %v1525 = vld [vmem:[#allocation7 + $0x2f8] sm:$0xff]
    %v1526 = vld [vmem:[#allocation7 + $0x300] sm:$0xff]
    %v1527 = vld [vmem:[#allocation7 + $0x308] sm:$0xff]
    %v1528 = vld [vmem:[#allocation7 + $0x310] sm:$0xff]
    %v1529 = vld [vmem:[#allocation7 + $0x318] sm:$0xff]
    %v1530 = vld [vmem:[#allocation7 + $0x320] sm:$0xff]
    %v1531 = vld [vmem:[#allocation7 + $0x328] sm:$0xff]
    %v1532 = vld [vmem:[#allocation7 + $0x330] sm:$0xff]
    %v1533 = vld [vmem:[#allocation7 + $0x338] sm:$0xff]
    %v1534 = vld [vmem:[#allocation7 + $0x340] sm:$0xff]
    %v1535 = vld [vmem:[#allocation7 + $0x348] sm:$0xff]
    %v1536 = vld [vmem:[#allocation7 + $0x350] sm:$0xff]
    %v1537 = vld [vmem:[#allocation7 + $0x358] sm:$0xff]
    %v1538 = vld [vmem:[#allocation7 + $0x360] sm:$0xff]
    %v1539 = vld [vmem:[#allocation7 + $0x368] sm:$0xff]
    %v1540 = vld [vmem:[#allocation7 + $0x370] sm:$0xff]
    %v1541 = vld [vmem:[#allocation7 + $0x378] sm:$0xff]
    %v1542 = vld [vmem:[#allocation7 + $0x380] sm:$0xff]
    %v1543 = vld [vmem:[#allocation7 + $0x388] sm:$0xff]
    %v1544 = vld [vmem:[#allocation7 + $0x390] sm:$0xff]
    %v1545 = vld [vmem:[#allocation7 + $0x398] sm:$0xff]
    %v1546 = vld [vmem:[#allocation7 + $0x3a0] sm:$0xff]
    %v1547 = vld [vmem:[#allocation7 + $0x3a8] sm:$0xff]
    %v1548 = vld [vmem:[#allocation7 + $0x3b0] sm:$0xff]
    %v1549 = vld [vmem:[#allocation7 + $0x3b8] sm:$0xff]
    %v1550 = vld [vmem:[#allocation7 + $0x3c0] sm:$0xff]
    %v1551 = vld [vmem:[#allocation7 + $0x3c8] sm:$0xff]
    %v1552 = vld [vmem:[#allocation7 + $0x3d0] sm:$0xff]
    %v1553 = vld [vmem:[#allocation7 + $0x3d8] sm:$0xff]
    %v1554 = vld [vmem:[#allocation7 + $0x3e0] sm:$0xff]
    %v1555 = vld [vmem:[#allocation7 + $0x3e8] sm:$0xff]
    %v1556 = vld [vmem:[#allocation7 + $0x3f0] sm:$0xff]
    %v1557 = vld [vmem:[#allocation7 + $0x3f8] sm:$0xff]
    %v1558 = vld [vmem:[#allocation7 + $0x400] sm:$0xff]
    %v1559 = vld [vmem:[#allocation7 + $0x408] sm:$0xff]
    %v1560 = vld [vmem:[#allocation7 + $0x410] sm:$0xff]
    %v1561 = vld [vmem:[#allocation7 + $0x418] sm:$0xff]
    %v1562 = vld [vmem:[#allocation7 + $0x420] sm:$0xff]
    %v1563 = vld [vmem:[#allocation7 + $0x428] sm:$0xff]
    %v1564 = vld [vmem:[#allocation7 + $0x430] sm:$0xff]
    %v1565 = vld [vmem:[#allocation7 + $0x438] sm:$0xff]
    %v1566 = vld [vmem:[#allocation7 + $0x440] sm:$0xff]
    %v1567 = vld [vmem:[#allocation7 + $0x448] sm:$0xff]
    %v1568 = vld [vmem:[#allocation7 + $0x450] sm:$0xff]
    %v1569 = vld [vmem:[#allocation7 + $0x458] sm:$0xff]
    %v1570 = vld [vmem:[#allocation7 + $0x460] sm:$0xff]
    %v1571 = vld [vmem:[#allocation7 + $0x468] sm:$0xff]
    %v1572 = vld [vmem:[#allocation7 + $0x470] sm:$0xff]
    %v1573 = vld [vmem:[#allocation7 + $0x478] sm:$0xff]
    %v1574 = vld [vmem:[#allocation7 + $0x480] sm:$0xff]
    %v1575 = vld [vmem:[#allocation7 + $0x488] sm:$0xff]
    %v1576 = vld [vmem:[#allocation7 + $0x490] sm:$0xff]
    %v1577 = vld [vmem:[#allocation7 + $0x498] sm:$0xff]
    %v1578 = vld [vmem:[#allocation7 + $0x4a0] sm:$0xff]
    %v1579 = vld [vmem:[#allocation7 + $0x4a8] sm:$0xff]
    %v1580 = vld [vmem:[#allocation7 + $0x4b0] sm:$0xff]
    %v1581 = vld [vmem:[#allocation7 + $0x4b8] sm:$0xff]
    %v1582 = vld [vmem:[#allocation7 + $0x4c0] sm:$0xff]
    %v1583 = vld [vmem:[#allocation7 + $0x4c8] sm:$0xff]
    %v1584 = vld [vmem:[#allocation7 + $0x4d0] sm:$0xff]
    %v1585 = vld [vmem:[#allocation7 + $0x4d8] sm:$0xff]
    %v1586 = vld [vmem:[#allocation7 + $0x4e0] sm:$0xff]
    %v1587 = vld [vmem:[#allocation7 + $0x4e8] sm:$0xff]
    %v1588 = vld [vmem:[#allocation7 + $0x4f0] sm:$0xff]
    %v1589 = vld [vmem:[#allocation7 + $0x4f8] sm:$0xff]
    %v1590 = vld [vmem:[#allocation7 + $0x500] sm:$0xff]
    %v1591 = vld [vmem:[#allocation7 + $0x508] sm:$0xff]
    %v1592 = vld [vmem:[#allocation7 + $0x510] sm:$0xff]
    %v1593 = vld [vmem:[#allocation7 + $0x518] sm:$0xff]
    %v1594 = vld [vmem:[#allocation7 + $0x520] sm:$0xff]
    %v1595 = vld [vmem:[#allocation7 + $0x528] sm:$0xff]
    %v1596 = vld [vmem:[#allocation7 + $0x530] sm:$0xff]
    %v1597 = vld [vmem:[#allocation7 + $0x538] sm:$0xff]
    %v1598 = vld [vmem:[#allocation7 + $0x540] sm:$0xff]
    %v1599 = vld [vmem:[#allocation7 + $0x548] sm:$0xff]
    %v1600 = vld [vmem:[#allocation7 + $0x550] sm:$0xff]
    %v1601 = vld [vmem:[#allocation7 + $0x558] sm:$0xff]
    %v1602 = vld [vmem:[#allocation7 + $0x560] sm:$0xff]
    %v1603 = vld [vmem:[#allocation7 + $0x568] sm:$0xff]
    %v1604 = vld [vmem:[#allocation7 + $0x570] sm:$0xff]
    %v1605 = vld [vmem:[#allocation7 + $0x578] sm:$0xff]
    %v1606 = vld [vmem:[#allocation7 + $0x580] sm:$0xff]
    %v1607 = vld [vmem:[#allocation7 + $0x588] sm:$0xff]
    %v1608 = vld [vmem:[#allocation7 + $0x590] sm:$0xff]
    %v1609 = vld [vmem:[#allocation7 + $0x598] sm:$0xff]
    %v1610 = vld [vmem:[#allocation7 + $0x5a0] sm:$0xff]
    %v1611 = vld [vmem:[#allocation7 + $0x5a8] sm:$0xff]
    %v1612 = vld [vmem:[#allocation7 + $0x5b0] sm:$0xff]
    %v1613 = vld [vmem:[#allocation7 + $0x5b8] sm:$0xff]
    %v1614 = vld [vmem:[#allocation7 + $0x5c0] sm:$0xff]
    %v1615 = vld [vmem:[#allocation7 + $0x5c8] sm:$0xff]
    %v1616 = vld [vmem:[#allocation7 + $0x5d0] sm:$0xff]
    %v1617 = vld [vmem:[#allocation7 + $0x5d8] sm:$0xff]
    %v1618 = vld [vmem:[#allocation7 + $0x5e0] sm:$0xff]
    %v1619 = vld [vmem:[#allocation7 + $0x5e8] sm:$0xff]
    %v1620 = vld [vmem:[#allocation7 + $0x5f0] sm:$0xff]
    %v1621 = vld [vmem:[#allocation7 + $0x5f8] sm:$0xff]
    %v1622 = vld [vmem:[#allocation7 + $0x600] sm:$0xff]
    %v1623 = vld [vmem:[#allocation7 + $0x608] sm:$0xff]
    %v1624 = vld [vmem:[#allocation7 + $0x610] sm:$0xff]
    %v1625 = vld [vmem:[#allocation7 + $0x618] sm:$0xff]
    %v1626 = vld [vmem:[#allocation7 + $0x620] sm:$0xff]
    %v1627 = vld [vmem:[#allocation7 + $0x628] sm:$0xff]
    %v1628 = vld [vmem:[#allocation7 + $0x630] sm:$0xff]
    %v1629 = vld [vmem:[#allocation7 + $0x638] sm:$0xff]
    %v1630 = vld [vmem:[#allocation7 + $0x640] sm:$0xff]
    %v1631 = vld [vmem:[#allocation7 + $0x648] sm:$0xff]
    %v1632 = vld [vmem:[#allocation7 + $0x650] sm:$0xff]
    %v1633 = vld [vmem:[#allocation7 + $0x658] sm:$0xff]
    %v1634 = vld [vmem:[#allocation7 + $0x660] sm:$0xff]
    %v1635 = vld [vmem:[#allocation7 + $0x668] sm:$0xff]
    %v1636 = vld [vmem:[#allocation7 + $0x670] sm:$0xff]
    %v1637 = vld [vmem:[#allocation7 + $0x678] sm:$0xff]
    %v1638 = vld [vmem:[#allocation7 + $0x680] sm:$0xff]
    %v1639 = vld [vmem:[#allocation7 + $0x688] sm:$0xff]
    %v1640 = vld [vmem:[#allocation7 + $0x690] sm:$0xff]
    %v1641 = vld [vmem:[#allocation7 + $0x698] sm:$0xff]
    %v1642 = vld [vmem:[#allocation7 + $0x6a0] sm:$0xff]
    %v1643 = vld [vmem:[#allocation7 + $0x6a8] sm:$0xff]
    %v1644 = vld [vmem:[#allocation7 + $0x6b0] sm:$0xff]
    %v1645 = vld [vmem:[#allocation7 + $0x6b8] sm:$0xff]
    %v1646 = vld [vmem:[#allocation7 + $0x6c0] sm:$0xff]
    %v1647 = vld [vmem:[#allocation7 + $0x6c8] sm:$0xff]
    %v1648 = vld [vmem:[#allocation7 + $0x6d0] sm:$0xff]
    %v1649 = vld [vmem:[#allocation7 + $0x6d8] sm:$0xff]
    %v1650 = vld [vmem:[#allocation7 + $0x6e0] sm:$0xff]
    %v1651 = vld [vmem:[#allocation7 + $0x6e8] sm:$0xff]
    %v1652 = vld [vmem:[#allocation7 + $0x6f0] sm:$0xff]
    %v1653 = vld [vmem:[#allocation7 + $0x6f8] sm:$0xff]
    %v1654 = vld [vmem:[#allocation7 + $0x700] sm:$0xff]
    %v1655 = vld [vmem:[#allocation7 + $0x708] sm:$0xff]
    %v1656 = vld [vmem:[#allocation7 + $0x710] sm:$0xff]
    %v1657 = vld [vmem:[#allocation7 + $0x718] sm:$0xff]
    %v1658 = vld [vmem:[#allocation7 + $0x720] sm:$0xff]
    %v1659 = vld [vmem:[#allocation7 + $0x728] sm:$0xff]
    %v1660 = vld [vmem:[#allocation7 + $0x730] sm:$0xff]
    %v1661 = vld [vmem:[#allocation7 + $0x738] sm:$0xff]
    %v1662 = vld [vmem:[#allocation7 + $0x740] sm:$0xff]
    %v1663 = vld [vmem:[#allocation7 + $0x748] sm:$0xff]
    %v1664 = vld [vmem:[#allocation7 + $0x750] sm:$0xff]
    %v1665 = vld [vmem:[#allocation7 + $0x758] sm:$0xff]
    %v1666 = vld [vmem:[#allocation7 + $0x760] sm:$0xff]
    %v1667 = vld [vmem:[#allocation7 + $0x768] sm:$0xff]
    %v1668 = vld [vmem:[#allocation7 + $0x770] sm:$0xff]
    %v1669 = vld [vmem:[#allocation7 + $0x778] sm:$0xff]
    %v1670 = vld [vmem:[#allocation7 + $0x780] sm:$0xff]
    %v1671 = vld [vmem:[#allocation7 + $0x788] sm:$0xff]
    %v1672 = vld [vmem:[#allocation7 + $0x790] sm:$0xff]
    %v1673 = vld [vmem:[#allocation7 + $0x798] sm:$0xff]
    %v1674 = vld [vmem:[#allocation7 + $0x7a0] sm:$0xff]
    %v1675 = vld [vmem:[#allocation7 + $0x7a8] sm:$0xff]
    %v1676 = vld [vmem:[#allocation7 + $0x7b0] sm:$0xff]
    %v1677 = vld [vmem:[#allocation7 + $0x7b8] sm:$0xff]
    %v1678 = vld [vmem:[#allocation7 + $0x7c0] sm:$0xff]
    %v1679 = vld [vmem:[#allocation7 + $0x7c8] sm:$0xff]
    %v1680 = vld [vmem:[#allocation7 + $0x7d0] sm:$0xff]
    %v1681 = vld [vmem:[#allocation7 + $0x7d8] sm:$0xff]
    %v1682 = vld [vmem:[#allocation7 + $0x7e0] sm:$0xff]
    %v1683 = vld [vmem:[#allocation7 + $0x7e8] sm:$0xff]
    %v1684 = vld [vmem:[#allocation7 + $0x7f0] sm:$0xff]
    %v1685 = vld [vmem:[#allocation7 + $0x7f8] sm:$0xff]
    %v1686 = vld [vmem:[#allocation7 + $0x800] sm:$0xff]
    %v1687 = vld [vmem:[#allocation7 + $0x808] sm:$0xff]
    %v1688 = vld [vmem:[#allocation7 + $0x810] sm:$0xff]
    %v1689 = vld [vmem:[#allocation7 + $0x818] sm:$0xff]
    %v1690 = vld [vmem:[#allocation7 + $0x820] sm:$0xff]
    %v1691 = vld [vmem:[#allocation7 + $0x828] sm:$0xff]
    %v1692 = vld [vmem:[#allocation7 + $0x830] sm:$0xff]
    %v1693 = vld [vmem:[#allocation7 + $0x838] sm:$0xff]
    %v1694 = vld [vmem:[#allocation7 + $0x840] sm:$0xff]
    %v1695 = vld [vmem:[#allocation7 + $0x848] sm:$0xff]
    %v1696 = vld [vmem:[#allocation7 + $0x850] sm:$0xff]
    %v1697 = vld [vmem:[#allocation7 + $0x858] sm:$0xff]
    %v1698 = vld [vmem:[#allocation7 + $0x860] sm:$0xff]
    %v1699 = vld [vmem:[#allocation7 + $0x868] sm:$0xff]
    %v1700 = vld [vmem:[#allocation7 + $0x870] sm:$0xff]
    %v1701 = vld [vmem:[#allocation7 + $0x878] sm:$0xff]
    %v1702 = vld [vmem:[#allocation7 + $0x880] sm:$0xff]
    %v1703 = vld [vmem:[#allocation7 + $0x888] sm:$0xff]
    %v1704 = vld [vmem:[#allocation7 + $0x890] sm:$0xff]
    %v1705 = vld [vmem:[#allocation7 + $0x898] sm:$0xff]
    %v1706 = vld [vmem:[#allocation7 + $0x8a0] sm:$0xff]
    %v1707 = vld [vmem:[#allocation7 + $0x8a8] sm:$0xff]
    %v1708 = vld [vmem:[#allocation7 + $0x8b0] sm:$0xff]
    %v1709 = vld [vmem:[#allocation7 + $0x8b8] sm:$0xff]
    %v1710 = vld [vmem:[#allocation7 + $0x8c0] sm:$0xff]
    %v1711 = vld [vmem:[#allocation7 + $0x8c8] sm:$0xff]
    %v1712 = vld [vmem:[#allocation7 + $0x8d0] sm:$0xff]
    %v1713 = vld [vmem:[#allocation7 + $0x8d8] sm:$0xff]
    %v1714 = vld [vmem:[#allocation7 + $0x8e0] sm:$0xff]
    %v1715 = vld [vmem:[#allocation7 + $0x8e8] sm:$0xff]
    %v1716 = vld [vmem:[#allocation7 + $0x8f0] sm:$0xff]
    %v1717 = vld [vmem:[#allocation7 + $0x8f8] sm:$0xff]
    %v1718 = vld [vmem:[#allocation7 + $0x900] sm:$0xff]
    %v1719 = vld [vmem:[#allocation7 + $0x908] sm:$0xff]
    %v1720 = vld [vmem:[#allocation7 + $0x910] sm:$0xff]
    %v1721 = vld [vmem:[#allocation7 + $0x918] sm:$0xff]
    %v1722 = vld [vmem:[#allocation7 + $0x920] sm:$0xff]
    %v1723 = vld [vmem:[#allocation7 + $0x928] sm:$0xff]
    %v1724 = vld [vmem:[#allocation7 + $0x930] sm:$0xff]
    %v1725 = vld [vmem:[#allocation7 + $0x938] sm:$0xff]
    %v1726 = vld [vmem:[#allocation7 + $0x940] sm:$0xff]
    %v1727 = vld [vmem:[#allocation7 + $0x948] sm:$0xff]
    %v1728 = vld [vmem:[#allocation7 + $0x950] sm:$0xff]
    %v1729 = vld [vmem:[#allocation7 + $0x958] sm:$0xff]
    %v1730 = vld [vmem:[#allocation7 + $0x960] sm:$0xff]
    %v1731 = vld [vmem:[#allocation7 + $0x968] sm:$0xff]
    %v1732 = vld [vmem:[#allocation7 + $0x970] sm:$0xff]
    %v1733 = vld [vmem:[#allocation7 + $0x978] sm:$0xff]
    %v1734 = vld [vmem:[#allocation7 + $0x980] sm:$0xff]
    %v1735 = vld [vmem:[#allocation7 + $0x988] sm:$0xff]
    %v1736 = vld [vmem:[#allocation7 + $0x990] sm:$0xff]
    %v1737 = vld [vmem:[#allocation7 + $0x998] sm:$0xff]
    %v1738 = vld [vmem:[#allocation7 + $0x9a0] sm:$0xff]
    %v1739 = vld [vmem:[#allocation7 + $0x9a8] sm:$0xff]
    %v1740 = vld [vmem:[#allocation7 + $0x9b0] sm:$0xff]
    %v1741 = vld [vmem:[#allocation7 + $0x9b8] sm:$0xff]
    %v1742 = vld [vmem:[#allocation7 + $0x9c0] sm:$0xff]
    %v1743 = vld [vmem:[#allocation7 + $0x9c8] sm:$0xff]
    %v1744 = vld [vmem:[#allocation7 + $0x9d0] sm:$0xff]
    %v1745 = vld [vmem:[#allocation7 + $0x9d8] sm:$0xff]
    %v1746 = vld [vmem:[#allocation7 + $0x9e0] sm:$0xff]
    %v1747 = vld [vmem:[#allocation7 + $0x9e8] sm:$0xff]
    %v1748 = vld [vmem:[#allocation7 + $0x9f0] sm:$0xff]
    %v1749 = vld [vmem:[#allocation7 + $0x9f8] sm:$0xff]
    %v1750 = vld [vmem:[#allocation7 + $0xa00] sm:$0xff]
    %v1751 = vld [vmem:[#allocation7 + $0xa08] sm:$0xff]
    %v1752 = vld [vmem:[#allocation7 + $0xa10] sm:$0xff]
    %v1753 = vld [vmem:[#allocation7 + $0xa18] sm:$0xff]
    %v1754 = vld [vmem:[#allocation7 + $0xa20] sm:$0xff]
    %v1755 = vld [vmem:[#allocation7 + $0xa28] sm:$0xff]
    %v1756 = vld [vmem:[#allocation7 + $0xa30] sm:$0xff]
    %v1757 = vld [vmem:[#allocation7 + $0xa38] sm:$0xff]
    %v1758 = vld [vmem:[#allocation7 + $0xa40] sm:$0xff]
    %v1759 = vld [vmem:[#allocation7 + $0xa48] sm:$0xff]
    %v1760 = vld [vmem:[#allocation7 + $0xa50] sm:$0xff]
    %v1761 = vld [vmem:[#allocation7 + $0xa58] sm:$0xff]
    %v1762 = vld [vmem:[#allocation7 + $0xa60] sm:$0xff]
    %v1763 = vld [vmem:[#allocation7 + $0xa68] sm:$0xff]
    %v1764 = vld [vmem:[#allocation7 + $0xa70] sm:$0xff]
    %v1765 = vld [vmem:[#allocation7 + $0xa78] sm:$0xff]
    %v1766 = vld [vmem:[#allocation7 + $0xa80] sm:$0xff]
    %v1767 = vld [vmem:[#allocation7 + $0xa88] sm:$0xff]
    %v1768 = vld [vmem:[#allocation7 + $0xa90] sm:$0xff]
    %v1769 = vld [vmem:[#allocation7 + $0xa98] sm:$0xff]
    %v1770 = vld [vmem:[#allocation7 + $0xaa0] sm:$0xff]
    %v1771 = vld [vmem:[#allocation7 + $0xaa8] sm:$0xff]
    %v1772 = vld [vmem:[#allocation7 + $0xab0] sm:$0xff]
    %v1773 = vld [vmem:[#allocation7 + $0xab8] sm:$0xff]
    %v1774 = vld [vmem:[#allocation7 + $0xac0] sm:$0xff]
    %v1775 = vld [vmem:[#allocation7 + $0xac8] sm:$0xff]
    %v1776 = vld [vmem:[#allocation7 + $0xad0] sm:$0xff]
    %v1777 = vld [vmem:[#allocation7 + $0xad8] sm:$0xff]
    %v1778 = vld [vmem:[#allocation7 + $0xae0] sm:$0xff]
    %v1779 = vld [vmem:[#allocation7 + $0xae8] sm:$0xff]
    %v1780 = vld [vmem:[#allocation7 + $0xaf0] sm:$0xff]
    %v1781 = vld [vmem:[#allocation7 + $0xaf8] sm:$0xff]
    %v1782 = vld [vmem:[#allocation7 + $0xb00] sm:$0xff]
    %v1783 = vld [vmem:[#allocation7 + $0xb08] sm:$0xff]
    %v1784 = vld [vmem:[#allocation7 + $0xb10] sm:$0xff]
    %v1785 = vld [vmem:[#allocation7 + $0xb18] sm:$0xff]
    %v1786 = vld [vmem:[#allocation7 + $0xb20] sm:$0xff]
    %v1787 = vld [vmem:[#allocation7 + $0xb28] sm:$0xff]
    %v1788 = vld [vmem:[#allocation7 + $0xb30] sm:$0xff]
    %v1789 = vld [vmem:[#allocation7 + $0xb38] sm:$0xff]
    %v1790 = vld [vmem:[#allocation7 + $0xb40] sm:$0xff]
    %v1791 = vld [vmem:[#allocation7 + $0xb48] sm:$0xff]
    %v1792 = vld [vmem:[#allocation7 + $0xb50] sm:$0xff]
    %v1793 = vld [vmem:[#allocation7 + $0xb58] sm:$0xff]
    %v1794 = vld [vmem:[#allocation7 + $0xb60] sm:$0xff]
    %v1795 = vld [vmem:[#allocation7 + $0xb68] sm:$0xff]
    %v1796 = vld [vmem:[#allocation7 + $0xb70] sm:$0xff]
    %v1797 = vld [vmem:[#allocation7 + $0xb78] sm:$0xff]
    %v1798 = vld [vmem:[#allocation7 + $0xb80] sm:$0xff]
    %v1799 = vld [vmem:[#allocation7 + $0xb88] sm:$0xff]
    %v1800 = vld [vmem:[#allocation7 + $0xb90] sm:$0xff]
    %v1801 = vld [vmem:[#allocation7 + $0xb98] sm:$0xff]
    %v1802 = vld [vmem:[#allocation7 + $0xba0] sm:$0xff]
    %v1803 = vld [vmem:[#allocation7 + $0xba8] sm:$0xff]
    %v1804 = vld [vmem:[#allocation7 + $0xbb0] sm:$0xff]
    %v1805 = vld [vmem:[#allocation7 + $0xbb8] sm:$0xff]
    %v1806 = vld [vmem:[#allocation7 + $0xbc0] sm:$0xff]
    %v1807 = vld [vmem:[#allocation7 + $0xbc8] sm:$0xff]
    %v1808 = vld [vmem:[#allocation7 + $0xbd0] sm:$0xff]
    %v1809 = vld [vmem:[#allocation7 + $0xbd8] sm:$0xff]
    %v1810 = vld [vmem:[#allocation7 + $0xbe0] sm:$0xff]
    %v1811 = vld [vmem:[#allocation7 + $0xbe8] sm:$0xff]
    %v1812 = vld [vmem:[#allocation7 + $0xbf0] sm:$0xff]
    %v1813 = vld [vmem:[#allocation7 + $0xbf8] sm:$0xff]
    %v1814 = vld [vmem:[#allocation7 + $0xc00] sm:$0xff]
    %v1815 = vld [vmem:[#allocation7 + $0xc08] sm:$0xff]
    %v1816 = vld [vmem:[#allocation7 + $0xc10] sm:$0xff]
    %v1817 = vld [vmem:[#allocation7 + $0xc18] sm:$0xff]
    %v1818 = vld [vmem:[#allocation7 + $0xc20] sm:$0xff]
    %v1819 = vld [vmem:[#allocation7 + $0xc28] sm:$0xff]
    %v1820 = vld [vmem:[#allocation7 + $0xc30] sm:$0xff]
    %v1821 = vld [vmem:[#allocation7 + $0xc38] sm:$0xff]
    %v1822 = vld [vmem:[#allocation7 + $0xc40] sm:$0xff]
    %v1823 = vld [vmem:[#allocation7 + $0xc48] sm:$0xff]
    %v1824 = vld [vmem:[#allocation7 + $0xc50] sm:$0xff]
    %v1825 = vld [vmem:[#allocation7 + $0xc58] sm:$0xff]
    %v1826 = vld [vmem:[#allocation7 + $0xc60] sm:$0xff]
    %v1827 = vld [vmem:[#allocation7 + $0xc68] sm:$0xff]
    %v1828 = vld [vmem:[#allocation7 + $0xc70] sm:$0xff]
    %v1829 = vld [vmem:[#allocation7 + $0xc78] sm:$0xff]
    %v1830 = vld [vmem:[#allocation7 + $0xc80] sm:$0xff]
    %v1831 = vld [vmem:[#allocation7 + $0xc88] sm:$0xff]
    %v1832 = vld [vmem:[#allocation7 + $0xc90] sm:$0xff]
    %v1833 = vld [vmem:[#allocation7 + $0xc98] sm:$0xff]
    %v1834 = vld [vmem:[#allocation7 + $0xca0] sm:$0xff]
    %v1835 = vld [vmem:[#allocation7 + $0xca8] sm:$0xff]
    %v1836 = vld [vmem:[#allocation7 + $0xcb0] sm:$0xff]
    %v1837 = vld [vmem:[#allocation7 + $0xcb8] sm:$0xff]
    %v1838 = vld [vmem:[#allocation7 + $0xcc0] sm:$0xff]
    %v1839 = vld [vmem:[#allocation7 + $0xcc8] sm:$0xff]
    %v1840 = vld [vmem:[#allocation7 + $0xcd0] sm:$0xff]
    %v1841 = vld [vmem:[#allocation7 + $0xcd8] sm:$0xff]
    %v1842 = vld [vmem:[#allocation7 + $0xce0] sm:$0xff]
    %v1843 = vld [vmem:[#allocation7 + $0xce8] sm:$0xff]
    %v1844 = vld [vmem:[#allocation7 + $0xcf0] sm:$0xff]
    %v1845 = vld [vmem:[#allocation7 + $0xcf8] sm:$0xff]
    %v1846 = vld [vmem:[#allocation7 + $0xd00] sm:$0xff]
    %v1847 = vld [vmem:[#allocation7 + $0xd08] sm:$0xff]
    %v1848 = vld [vmem:[#allocation7 + $0xd10] sm:$0xff]
    %v1849 = vld [vmem:[#allocation7 + $0xd18] sm:$0xff]
    %v1850 = vld [vmem:[#allocation7 + $0xd20] sm:$0xff]
    %v1851 = vld [vmem:[#allocation7 + $0xd28] sm:$0xff]
    %v1852 = vld [vmem:[#allocation7 + $0xd30] sm:$0xff]
    %v1853 = vld [vmem:[#allocation7 + $0xd38] sm:$0xff]
    %v1854 = vld [vmem:[#allocation7 + $0xd40] sm:$0xff]
    %v1855 = vld [vmem:[#allocation7 + $0xd48] sm:$0xff]
    %v1856 = vld [vmem:[#allocation7 + $0xd50] sm:$0xff]
    %v1857 = vld [vmem:[#allocation7 + $0xd58] sm:$0xff]
    %v1858 = vld [vmem:[#allocation7 + $0xd60] sm:$0xff]
    %v1859 = vld [vmem:[#allocation7 + $0xd68] sm:$0xff]
    %v1860 = vld [vmem:[#allocation7 + $0xd70] sm:$0xff]
    %v1861 = vld [vmem:[#allocation7 + $0xd78] sm:$0xff]
    %v1862 = vld [vmem:[#allocation7 + $0xd80] sm:$0xff]
    %v1863 = vld [vmem:[#allocation7 + $0xd88] sm:$0xff]
    %v1864 = vld [vmem:[#allocation7 + $0xd90] sm:$0xff]
    %v1865 = vld [vmem:[#allocation7 + $0xd98] sm:$0xff]
    %v1866 = vld [vmem:[#allocation7 + $0xda0] sm:$0xff]
    %v1867 = vld [vmem:[#allocation7 + $0xda8] sm:$0xff]
    %v1868 = vld [vmem:[#allocation7 + $0xdb0] sm:$0xff]
    %v1869 = vld [vmem:[#allocation7 + $0xdb8] sm:$0xff]
    %v1870 = vld [vmem:[#allocation7 + $0xdc0] sm:$0xff]
    %v1871 = vld [vmem:[#allocation7 + $0xdc8] sm:$0xff]
    %v1872 = vld [vmem:[#allocation7 + $0xdd0] sm:$0xff]
    %v1873 = vld [vmem:[#allocation7 + $0xdd8] sm:$0xff]
    %v1874 = vld [vmem:[#allocation7 + $0xde0] sm:$0xff]
    %v1875 = vld [vmem:[#allocation7 + $0xde8] sm:$0xff]
    %v1876 = vld [vmem:[#allocation7 + $0xdf0] sm:$0xff]
    %v1877 = vld [vmem:[#allocation7 + $0xdf8] sm:$0xff]
    %v1878 = vld [vmem:[#allocation7 + $0xe00] sm:$0xff]
    %v1879 = vld [vmem:[#allocation7 + $0xe08] sm:$0xff]
    %v1880 = vld [vmem:[#allocation7 + $0xe10] sm:$0xff]
    %v1881 = vld [vmem:[#allocation7 + $0xe18] sm:$0xff]
    %v1882 = vld [vmem:[#allocation7 + $0xe20] sm:$0xff]
    %v1883 = vld [vmem:[#allocation7 + $0xe28] sm:$0xff]
    %v1884 = vld [vmem:[#allocation7 + $0xe30] sm:$0xff]
    %v1885 = vld [vmem:[#allocation7 + $0xe38] sm:$0xff]
    %v1886 = vld [vmem:[#allocation7 + $0xe40] sm:$0xff]
    %v1887 = vld [vmem:[#allocation7 + $0xe48] sm:$0xff]
    %v1888 = vld [vmem:[#allocation7 + $0xe50] sm:$0xff]
    %v1889 = vld [vmem:[#allocation7 + $0xe58] sm:$0xff]
    %v1890 = vld [vmem:[#allocation7 + $0xe60] sm:$0xff]
    %v1891 = vld [vmem:[#allocation7 + $0xe68] sm:$0xff]
    %v1892 = vld [vmem:[#allocation7 + $0xe70] sm:$0xff]
    %v1893 = vld [vmem:[#allocation7 + $0xe78] sm:$0xff]
    %v1894 = vld [vmem:[#allocation7 + $0xe80] sm:$0xff]
    %v1895 = vld [vmem:[#allocation7 + $0xe88] sm:$0xff]
    %v1896 = vld [vmem:[#allocation7 + $0xe90] sm:$0xff]
    %v1897 = vld [vmem:[#allocation7 + $0xe98] sm:$0xff]
    %v1898 = vld [vmem:[#allocation7 + $0xea0] sm:$0xff]
    %v1899 = vld [vmem:[#allocation7 + $0xea8] sm:$0xff]
    %v1900 = vld [vmem:[#allocation7 + $0xeb0] sm:$0xff]
    %v1901 = vld [vmem:[#allocation7 + $0xeb8] sm:$0xff]
    %v1902 = vld [vmem:[#allocation7 + $0xec0] sm:$0xff]
    %v1903 = vld [vmem:[#allocation7 + $0xec8] sm:$0xff]
    %v1904 = vld [vmem:[#allocation7 + $0xed0] sm:$0xff]
    %v1905 = vld [vmem:[#allocation7 + $0xed8] sm:$0xff]
    %v1906 = vld [vmem:[#allocation7 + $0xee0] sm:$0xff]
    %v1907 = vld [vmem:[#allocation7 + $0xee8] sm:$0xff]
    %v1908 = vld [vmem:[#allocation7 + $0xef0] sm:$0xff]
    %v1909 = vld [vmem:[#allocation7 + $0xef8] sm:$0xff]
    %v1910 = vld [vmem:[#allocation7 + $0xf00] sm:$0xff]
    %v1911 = vld [vmem:[#allocation7 + $0xf08] sm:$0xff]
    %v1912 = vld [vmem:[#allocation7 + $0xf10] sm:$0xff]
    %v1913 = vld [vmem:[#allocation7 + $0xf18] sm:$0xff]
    %v1914 = vld [vmem:[#allocation7 + $0xf20] sm:$0xff]
    %v1915 = vld [vmem:[#allocation7 + $0xf28] sm:$0xff]
    %v1916 = vld [vmem:[#allocation7 + $0xf30] sm:$0xff]
    %v1917 = vld [vmem:[#allocation7 + $0xf38] sm:$0xff]
    %v1918 = vld [vmem:[#allocation7 + $0xf40] sm:$0xff]
    %v1919 = vld [vmem:[#allocation7 + $0xf48] sm:$0xff]
    %v1920 = vld [vmem:[#allocation7 + $0xf50] sm:$0xff]
    %v1921 = vld [vmem:[#allocation7 + $0xf58] sm:$0xff]
    %v1922 = vld [vmem:[#allocation7 + $0xf60] sm:$0xff]
    %v1923 = vld [vmem:[#allocation7 + $0xf68] sm:$0xff]
    %v1924 = vld [vmem:[#allocation7 + $0xf70] sm:$0xff]
    %v1925 = vld [vmem:[#allocation7 + $0xf78] sm:$0xff]
    %v1926 = vld [vmem:[#allocation7 + $0xf80] sm:$0xff]
    %v1927 = vld [vmem:[#allocation7 + $0xf88] sm:$0xff]
    %v1928 = vld [vmem:[#allocation7 + $0xf90] sm:$0xff]
    %v1929 = vld [vmem:[#allocation7 + $0xf98] sm:$0xff]
    %v1930 = vld [vmem:[#allocation7 + $0xfa0] sm:$0xff]
    %v1931 = vld [vmem:[#allocation7 + $0xfa8] sm:$0xff]
    %v1932 = vld [vmem:[#allocation7 + $0xfb0] sm:$0xff]
    %v1933 = vld [vmem:[#allocation7 + $0xfb8] sm:$0xff]
    %v1934 = vld [vmem:[#allocation7 + $0xfc0] sm:$0xff]
    %v1935 = vld [vmem:[#allocation7 + $0xfc8] sm:$0xff]
    %v1936 = vld [vmem:[#allocation7 + $0xfd0] sm:$0xff]
    %v1937 = vld [vmem:[#allocation7 + $0xfd8] sm:$0xff]
    %v1938 = vld [vmem:[#allocation7 + $0xfe0] sm:$0xff]
    %v1939 = vld [vmem:[#allocation7 + $0xfe8] sm:$0xff]
    %v1940 = vld [vmem:[#allocation7 + $0xff0] sm:$0xff]
    %v1941 = vld [vmem:[#allocation7 + $0xff8] sm:$0xff]
    %v1942 = vunpack.c.l.bf16 %v1430
    %v1943 = vunpack.c.h.bf16 %v1430
    %v1944 = vunpack.c.l.bf16 %v1431
    %v1945 = vunpack.c.h.bf16 %v1431
    %v1946 = vunpack.c.l.bf16 %v1432
    %v1947 = vunpack.c.h.bf16 %v1432
    %v1948 = vunpack.c.l.bf16 %v1433
    %v1949 = vunpack.c.h.bf16 %v1433
    %v1950 = vunpack.c.l.bf16 %v1434
    %v1951 = vunpack.c.h.bf16 %v1434
    %v1952 = vunpack.c.l.bf16 %v1435
    %v1953 = vunpack.c.h.bf16 %v1435
    %v1954 = vunpack.c.l.bf16 %v1436
    %v1955 = vunpack.c.h.bf16 %v1436
    %v1956 = vunpack.c.l.bf16 %v1437
    %v1957 = vunpack.c.h.bf16 %v1437
    %v1958 = vunpack.c.l.bf16 %v1438
    %v1959 = vunpack.c.h.bf16 %v1438
    %v1960 = vunpack.c.l.bf16 %v1439
    %v1961 = vunpack.c.h.bf16 %v1439
    %v1962 = vunpack.c.l.bf16 %v1440
    %v1963 = vunpack.c.h.bf16 %v1440
    %v1964 = vunpack.c.l.bf16 %v1441
    %v1965 = vunpack.c.h.bf16 %v1441
    %v1966 = vunpack.c.l.bf16 %v1442
    %v1967 = vunpack.c.h.bf16 %v1442
    %v1968 = vunpack.c.l.bf16 %v1443
    %v1969 = vunpack.c.h.bf16 %v1443
    %v1970 = vunpack.c.l.bf16 %v1444
    %v1971 = vunpack.c.h.bf16 %v1444
    %v1972 = vunpack.c.l.bf16 %v1445
    %v1973 = vunpack.c.h.bf16 %v1445
    %v1974 = vunpack.c.l.bf16 %v1446
    %v1975 = vunpack.c.h.bf16 %v1446
    %v1976 = vunpack.c.l.bf16 %v1447
    %v1977 = vunpack.c.h.bf16 %v1447
    %v1978 = vunpack.c.l.bf16 %v1448
    %v1979 = vunpack.c.h.bf16 %v1448
    %v1980 = vunpack.c.l.bf16 %v1449
    %v1981 = vunpack.c.h.bf16 %v1449
    %v1982 = vunpack.c.l.bf16 %v1450
    %v1983 = vunpack.c.h.bf16 %v1450
    %v1984 = vunpack.c.l.bf16 %v1451
    %v1985 = vunpack.c.h.bf16 %v1451
    %v1986 = vunpack.c.l.bf16 %v1452
    %v1987 = vunpack.c.h.bf16 %v1452
    %v1988 = vunpack.c.l.bf16 %v1453
    %v1989 = vunpack.c.h.bf16 %v1453
    %v1990 = vunpack.c.l.bf16 %v1454
    %v1991 = vunpack.c.h.bf16 %v1454
    %v1992 = vunpack.c.l.bf16 %v1455
    %v1993 = vunpack.c.h.bf16 %v1455
    %v1994 = vunpack.c.l.bf16 %v1456
    %v1995 = vunpack.c.h.bf16 %v1456
    %v1996 = vunpack.c.l.bf16 %v1457
    %v1997 = vunpack.c.h.bf16 %v1457
    %v1998 = vunpack.c.l.bf16 %v1458
    %v1999 = vunpack.c.h.bf16 %v1458
    %v2000 = vunpack.c.l.bf16 %v1459
    %v2001 = vunpack.c.h.bf16 %v1459
    %v2002 = vunpack.c.l.bf16 %v1460
    %v2003 = vunpack.c.h.bf16 %v1460
    %v2004 = vunpack.c.l.bf16 %v1461
    %v2005 = vunpack.c.h.bf16 %v1461
    %v2006 = vunpack.c.l.bf16 %v1462
    %v2007 = vunpack.c.h.bf16 %v1462
    %v2008 = vunpack.c.l.bf16 %v1463
    %v2009 = vunpack.c.h.bf16 %v1463
    %v2010 = vunpack.c.l.bf16 %v1464
    %v2011 = vunpack.c.h.bf16 %v1464
    %v2012 = vunpack.c.l.bf16 %v1465
    %v2013 = vunpack.c.h.bf16 %v1465
    %v2014 = vunpack.c.l.bf16 %v1466
    %v2015 = vunpack.c.h.bf16 %v1466
    %v2016 = vunpack.c.l.bf16 %v1467
    %v2017 = vunpack.c.h.bf16 %v1467
    %v2018 = vunpack.c.l.bf16 %v1468
    %v2019 = vunpack.c.h.bf16 %v1468
    %v2020 = vunpack.c.l.bf16 %v1469
    %v2021 = vunpack.c.h.bf16 %v1469
    %v2022 = vunpack.c.l.bf16 %v1470
    %v2023 = vunpack.c.h.bf16 %v1470
    %v2024 = vunpack.c.l.bf16 %v1471
    %v2025 = vunpack.c.h.bf16 %v1471
    %v2026 = vunpack.c.l.bf16 %v1472
    %v2027 = vunpack.c.h.bf16 %v1472
    %v2028 = vunpack.c.l.bf16 %v1473
    %v2029 = vunpack.c.h.bf16 %v1473
    %v2030 = vunpack.c.l.bf16 %v1474
    %v2031 = vunpack.c.h.bf16 %v1474
    %v2032 = vunpack.c.l.bf16 %v1475
    %v2033 = vunpack.c.h.bf16 %v1475
    %v2034 = vunpack.c.l.bf16 %v1476
    %v2035 = vunpack.c.h.bf16 %v1476
    %v2036 = vunpack.c.l.bf16 %v1477
    %v2037 = vunpack.c.h.bf16 %v1477
    %v2038 = vunpack.c.l.bf16 %v1478
    %v2039 = vunpack.c.h.bf16 %v1478
    %v2040 = vunpack.c.l.bf16 %v1479
    %v2041 = vunpack.c.h.bf16 %v1479
    %v2042 = vunpack.c.l.bf16 %v1480
    %v2043 = vunpack.c.h.bf16 %v1480
    %v2044 = vunpack.c.l.bf16 %v1481
    %v2045 = vunpack.c.h.bf16 %v1481
    %v2046 = vunpack.c.l.bf16 %v1482
    %v2047 = vunpack.c.h.bf16 %v1482
    %v2048 = vunpack.c.l.bf16 %v1483
    %v2049 = vunpack.c.h.bf16 %v1483
    %v2050 = vunpack.c.l.bf16 %v1484
    %v2051 = vunpack.c.h.bf16 %v1484
    %v2052 = vunpack.c.l.bf16 %v1485
    %v2053 = vunpack.c.h.bf16 %v1485
    %v2054 = vunpack.c.l.bf16 %v1486
    %v2055 = vunpack.c.h.bf16 %v1486
    %v2056 = vunpack.c.l.bf16 %v1487
    %v2057 = vunpack.c.h.bf16 %v1487
    %v2058 = vunpack.c.l.bf16 %v1488
    %v2059 = vunpack.c.h.bf16 %v1488
    %v2060 = vunpack.c.l.bf16 %v1489
    %v2061 = vunpack.c.h.bf16 %v1489
    %v2062 = vunpack.c.l.bf16 %v1490
    %v2063 = vunpack.c.h.bf16 %v1490
    %v2064 = vunpack.c.l.bf16 %v1491
    %v2065 = vunpack.c.h.bf16 %v1491
    %v2066 = vunpack.c.l.bf16 %v1492
    %v2067 = vunpack.c.h.bf16 %v1492
    %v2068 = vunpack.c.l.bf16 %v1493
    %v2069 = vunpack.c.h.bf16 %v1493
    %v2070 = vunpack.c.l.bf16 %v1494
    %v2071 = vunpack.c.h.bf16 %v1494
    %v2072 = vunpack.c.l.bf16 %v1495
    %v2073 = vunpack.c.h.bf16 %v1495
    %v2074 = vunpack.c.l.bf16 %v1496
    %v2075 = vunpack.c.h.bf16 %v1496
    %v2076 = vunpack.c.l.bf16 %v1497
    %v2077 = vunpack.c.h.bf16 %v1497
    %v2078 = vunpack.c.l.bf16 %v1498
    %v2079 = vunpack.c.h.bf16 %v1498
    %v2080 = vunpack.c.l.bf16 %v1499
    %v2081 = vunpack.c.h.bf16 %v1499
    %v2082 = vunpack.c.l.bf16 %v1500
    %v2083 = vunpack.c.h.bf16 %v1500
    %v2084 = vunpack.c.l.bf16 %v1501
    %v2085 = vunpack.c.h.bf16 %v1501
    %v2086 = vunpack.c.l.bf16 %v1502
    %v2087 = vunpack.c.h.bf16 %v1502
    %v2088 = vunpack.c.l.bf16 %v1503
    %v2089 = vunpack.c.h.bf16 %v1503
    %v2090 = vunpack.c.l.bf16 %v1504
    %v2091 = vunpack.c.h.bf16 %v1504
    %v2092 = vunpack.c.l.bf16 %v1505
    %v2093 = vunpack.c.h.bf16 %v1505
    %v2094 = vunpack.c.l.bf16 %v1506
    %v2095 = vunpack.c.h.bf16 %v1506
    %v2096 = vunpack.c.l.bf16 %v1507
    %v2097 = vunpack.c.h.bf16 %v1507
    %v2098 = vunpack.c.l.bf16 %v1508
    %v2099 = vunpack.c.h.bf16 %v1508
    %v2100 = vunpack.c.l.bf16 %v1509
    %v2101 = vunpack.c.h.bf16 %v1509
    %v2102 = vunpack.c.l.bf16 %v1510
    %v2103 = vunpack.c.h.bf16 %v1510
    %v2104 = vunpack.c.l.bf16 %v1511
    %v2105 = vunpack.c.h.bf16 %v1511
    %v2106 = vunpack.c.l.bf16 %v1512
    %v2107 = vunpack.c.h.bf16 %v1512
    %v2108 = vunpack.c.l.bf16 %v1513
    %v2109 = vunpack.c.h.bf16 %v1513
    %v2110 = vunpack.c.l.bf16 %v1514
    %v2111 = vunpack.c.h.bf16 %v1514
    %v2112 = vunpack.c.l.bf16 %v1515
    %v2113 = vunpack.c.h.bf16 %v1515
    %v2114 = vunpack.c.l.bf16 %v1516
    %v2115 = vunpack.c.h.bf16 %v1516
    %v2116 = vunpack.c.l.bf16 %v1517
    %v2117 = vunpack.c.h.bf16 %v1517
    %v2118 = vunpack.c.l.bf16 %v1518
    %v2119 = vunpack.c.h.bf16 %v1518
    %v2120 = vunpack.c.l.bf16 %v1519
    %v2121 = vunpack.c.h.bf16 %v1519
    %v2122 = vunpack.c.l.bf16 %v1520
    %v2123 = vunpack.c.h.bf16 %v1520
    %v2124 = vunpack.c.l.bf16 %v1521
    %v2125 = vunpack.c.h.bf16 %v1521
    %v2126 = vunpack.c.l.bf16 %v1522
    %v2127 = vunpack.c.h.bf16 %v1522
    %v2128 = vunpack.c.l.bf16 %v1523
    %v2129 = vunpack.c.h.bf16 %v1523
    %v2130 = vunpack.c.l.bf16 %v1524
    %v2131 = vunpack.c.h.bf16 %v1524
    %v2132 = vunpack.c.l.bf16 %v1525
    %v2133 = vunpack.c.h.bf16 %v1525
    %v2134 = vunpack.c.l.bf16 %v1526
    %v2135 = vunpack.c.h.bf16 %v1526
    %v2136 = vunpack.c.l.bf16 %v1527
    %v2137 = vunpack.c.h.bf16 %v1527
    %v2138 = vunpack.c.l.bf16 %v1528
    %v2139 = vunpack.c.h.bf16 %v1528
    %v2140 = vunpack.c.l.bf16 %v1529
    %v2141 = vunpack.c.h.bf16 %v1529
    %v2142 = vunpack.c.l.bf16 %v1530
    %v2143 = vunpack.c.h.bf16 %v1530
    %v2144 = vunpack.c.l.bf16 %v1531
    %v2145 = vunpack.c.h.bf16 %v1531
    %v2146 = vunpack.c.l.bf16 %v1532
    %v2147 = vunpack.c.h.bf16 %v1532
    %v2148 = vunpack.c.l.bf16 %v1533
    %v2149 = vunpack.c.h.bf16 %v1533
    %v2150 = vunpack.c.l.bf16 %v1534
    %v2151 = vunpack.c.h.bf16 %v1534
    %v2152 = vunpack.c.l.bf16 %v1535
    %v2153 = vunpack.c.h.bf16 %v1535
    %v2154 = vunpack.c.l.bf16 %v1536
    %v2155 = vunpack.c.h.bf16 %v1536
    %v2156 = vunpack.c.l.bf16 %v1537
    %v2157 = vunpack.c.h.bf16 %v1537
    %v2158 = vunpack.c.l.bf16 %v1538
    %v2159 = vunpack.c.h.bf16 %v1538
    %v2160 = vunpack.c.l.bf16 %v1539
    %v2161 = vunpack.c.h.bf16 %v1539
    %v2162 = vunpack.c.l.bf16 %v1540
    %v2163 = vunpack.c.h.bf16 %v1540
    %v2164 = vunpack.c.l.bf16 %v1541
    %v2165 = vunpack.c.h.bf16 %v1541
    %v2166 = vunpack.c.l.bf16 %v1542
    %v2167 = vunpack.c.h.bf16 %v1542
    %v2168 = vunpack.c.l.bf16 %v1543
    %v2169 = vunpack.c.h.bf16 %v1543
    %v2170 = vunpack.c.l.bf16 %v1544
    %v2171 = vunpack.c.h.bf16 %v1544
    %v2172 = vunpack.c.l.bf16 %v1545
    %v2173 = vunpack.c.h.bf16 %v1545
    %v2174 = vunpack.c.l.bf16 %v1546
    %v2175 = vunpack.c.h.bf16 %v1546
    %v2176 = vunpack.c.l.bf16 %v1547
    %v2177 = vunpack.c.h.bf16 %v1547
    %v2178 = vunpack.c.l.bf16 %v1548
    %v2179 = vunpack.c.h.bf16 %v1548
    %v2180 = vunpack.c.l.bf16 %v1549
    %v2181 = vunpack.c.h.bf16 %v1549
    %v2182 = vunpack.c.l.bf16 %v1550
    %v2183 = vunpack.c.h.bf16 %v1550
    %v2184 = vunpack.c.l.bf16 %v1551
    %v2185 = vunpack.c.h.bf16 %v1551
    %v2186 = vunpack.c.l.bf16 %v1552
    %v2187 = vunpack.c.h.bf16 %v1552
    %v2188 = vunpack.c.l.bf16 %v1553
    %v2189 = vunpack.c.h.bf16 %v1553
    %v2190 = vunpack.c.l.bf16 %v1554
    %v2191 = vunpack.c.h.bf16 %v1554
    %v2192 = vunpack.c.l.bf16 %v1555
    %v2193 = vunpack.c.h.bf16 %v1555
    %v2194 = vunpack.c.l.bf16 %v1556
    %v2195 = vunpack.c.h.bf16 %v1556
    %v2196 = vunpack.c.l.bf16 %v1557
    %v2197 = vunpack.c.h.bf16 %v1557
    %v2198 = vunpack.c.l.bf16 %v1558
    %v2199 = vunpack.c.h.bf16 %v1558
    %v2200 = vunpack.c.l.bf16 %v1559
    %v2201 = vunpack.c.h.bf16 %v1559
    %v2202 = vunpack.c.l.bf16 %v1560
    %v2203 = vunpack.c.h.bf16 %v1560
    %v2204 = vunpack.c.l.bf16 %v1561
    %v2205 = vunpack.c.h.bf16 %v1561
    %v2206 = vunpack.c.l.bf16 %v1562
    %v2207 = vunpack.c.h.bf16 %v1562
    %v2208 = vunpack.c.l.bf16 %v1563
    %v2209 = vunpack.c.h.bf16 %v1563
    %v2210 = vunpack.c.l.bf16 %v1564
    %v2211 = vunpack.c.h.bf16 %v1564
    %v2212 = vunpack.c.l.bf16 %v1565
    %v2213 = vunpack.c.h.bf16 %v1565
    %v2214 = vunpack.c.l.bf16 %v1566
    %v2215 = vunpack.c.h.bf16 %v1566
    %v2216 = vunpack.c.l.bf16 %v1567
    %v2217 = vunpack.c.h.bf16 %v1567
    %v2218 = vunpack.c.l.bf16 %v1568
    %v2219 = vunpack.c.h.bf16 %v1568
    %v2220 = vunpack.c.l.bf16 %v1569
    %v2221 = vunpack.c.h.bf16 %v1569
    %v2222 = vunpack.c.l.bf16 %v1570
    %v2223 = vunpack.c.h.bf16 %v1570
    %v2224 = vunpack.c.l.bf16 %v1571
    %v2225 = vunpack.c.h.bf16 %v1571
    %v2226 = vunpack.c.l.bf16 %v1572
    %v2227 = vunpack.c.h.bf16 %v1572
    %v2228 = vunpack.c.l.bf16 %v1573
    %v2229 = vunpack.c.h.bf16 %v1573
    %v2230 = vunpack.c.l.bf16 %v1574
    %v2231 = vunpack.c.h.bf16 %v1574
    %v2232 = vunpack.c.l.bf16 %v1575
    %v2233 = vunpack.c.h.bf16 %v1575
    %v2234 = vunpack.c.l.bf16 %v1576
    %v2235 = vunpack.c.h.bf16 %v1576
    %v2236 = vunpack.c.l.bf16 %v1577
    %v2237 = vunpack.c.h.bf16 %v1577
    %v2238 = vunpack.c.l.bf16 %v1578
    %v2239 = vunpack.c.h.bf16 %v1578
    %v2240 = vunpack.c.l.bf16 %v1579
    %v2241 = vunpack.c.h.bf16 %v1579
    %v2242 = vunpack.c.l.bf16 %v1580
    %v2243 = vunpack.c.h.bf16 %v1580
    %v2244 = vunpack.c.l.bf16 %v1581
    %v2245 = vunpack.c.h.bf16 %v1581
    %v2246 = vunpack.c.l.bf16 %v1582
    %v2247 = vunpack.c.h.bf16 %v1582
    %v2248 = vunpack.c.l.bf16 %v1583
    %v2249 = vunpack.c.h.bf16 %v1583
    %v2250 = vunpack.c.l.bf16 %v1584
    %v2251 = vunpack.c.h.bf16 %v1584
    %v2252 = vunpack.c.l.bf16 %v1585
    %v2253 = vunpack.c.h.bf16 %v1585
    %v2254 = vunpack.c.l.bf16 %v1586
    %v2255 = vunpack.c.h.bf16 %v1586
    %v2256 = vunpack.c.l.bf16 %v1587
    %v2257 = vunpack.c.h.bf16 %v1587
    %v2258 = vunpack.c.l.bf16 %v1588
    %v2259 = vunpack.c.h.bf16 %v1588
    %v2260 = vunpack.c.l.bf16 %v1589
    %v2261 = vunpack.c.h.bf16 %v1589
    %v2262 = vunpack.c.l.bf16 %v1590
    %v2263 = vunpack.c.h.bf16 %v1590
    %v2264 = vunpack.c.l.bf16 %v1591
    %v2265 = vunpack.c.h.bf16 %v1591
    %v2266 = vunpack.c.l.bf16 %v1592
    %v2267 = vunpack.c.h.bf16 %v1592
    %v2268 = vunpack.c.l.bf16 %v1593
    %v2269 = vunpack.c.h.bf16 %v1593
    %v2270 = vunpack.c.l.bf16 %v1594
    %v2271 = vunpack.c.h.bf16 %v1594
    %v2272 = vunpack.c.l.bf16 %v1595
    %v2273 = vunpack.c.h.bf16 %v1595
    %v2274 = vunpack.c.l.bf16 %v1596
    %v2275 = vunpack.c.h.bf16 %v1596
    %v2276 = vunpack.c.l.bf16 %v1597
    %v2277 = vunpack.c.h.bf16 %v1597
    %v2278 = vunpack.c.l.bf16 %v1598
    %v2279 = vunpack.c.h.bf16 %v1598
    %v2280 = vunpack.c.l.bf16 %v1599
    %v2281 = vunpack.c.h.bf16 %v1599
    %v2282 = vunpack.c.l.bf16 %v1600
    %v2283 = vunpack.c.h.bf16 %v1600
    %v2284 = vunpack.c.l.bf16 %v1601
    %v2285 = vunpack.c.h.bf16 %v1601
    %v2286 = vunpack.c.l.bf16 %v1602
    %v2287 = vunpack.c.h.bf16 %v1602
    %v2288 = vunpack.c.l.bf16 %v1603
    %v2289 = vunpack.c.h.bf16 %v1603
    %v2290 = vunpack.c.l.bf16 %v1604
    %v2291 = vunpack.c.h.bf16 %v1604
    %v2292 = vunpack.c.l.bf16 %v1605
    %v2293 = vunpack.c.h.bf16 %v1605
    %v2294 = vunpack.c.l.bf16 %v1606
    %v2295 = vunpack.c.h.bf16 %v1606
    %v2296 = vunpack.c.l.bf16 %v1607
    %v2297 = vunpack.c.h.bf16 %v1607
    %v2298 = vunpack.c.l.bf16 %v1608
    %v2299 = vunpack.c.h.bf16 %v1608
    %v2300 = vunpack.c.l.bf16 %v1609
    %v2301 = vunpack.c.h.bf16 %v1609
    %v2302 = vunpack.c.l.bf16 %v1610
    %v2303 = vunpack.c.h.bf16 %v1610
    %v2304 = vunpack.c.l.bf16 %v1611
    %v2305 = vunpack.c.h.bf16 %v1611
    %v2306 = vunpack.c.l.bf16 %v1612
    %v2307 = vunpack.c.h.bf16 %v1612
    %v2308 = vunpack.c.l.bf16 %v1613
    %v2309 = vunpack.c.h.bf16 %v1613
    %v2310 = vunpack.c.l.bf16 %v1614
    %v2311 = vunpack.c.h.bf16 %v1614
    %v2312 = vunpack.c.l.bf16 %v1615
    %v2313 = vunpack.c.h.bf16 %v1615
    %v2314 = vunpack.c.l.bf16 %v1616
    %v2315 = vunpack.c.h.bf16 %v1616
    %v2316 = vunpack.c.l.bf16 %v1617
    %v2317 = vunpack.c.h.bf16 %v1617
    %v2318 = vunpack.c.l.bf16 %v1618
    %v2319 = vunpack.c.h.bf16 %v1618
    %v2320 = vunpack.c.l.bf16 %v1619
    %v2321 = vunpack.c.h.bf16 %v1619
    %v2322 = vunpack.c.l.bf16 %v1620
    %v2323 = vunpack.c.h.bf16 %v1620
    %v2324 = vunpack.c.l.bf16 %v1621
    %v2325 = vunpack.c.h.bf16 %v1621
    %v2326 = vunpack.c.l.bf16 %v1622
    %v2327 = vunpack.c.h.bf16 %v1622
    %v2328 = vunpack.c.l.bf16 %v1623
    %v2329 = vunpack.c.h.bf16 %v1623
    %v2330 = vunpack.c.l.bf16 %v1624
    %v2331 = vunpack.c.h.bf16 %v1624
    %v2332 = vunpack.c.l.bf16 %v1625
    %v2333 = vunpack.c.h.bf16 %v1625
    %v2334 = vunpack.c.l.bf16 %v1626
    %v2335 = vunpack.c.h.bf16 %v1626
    %v2336 = vunpack.c.l.bf16 %v1627
    %v2337 = vunpack.c.h.bf16 %v1627
    %v2338 = vunpack.c.l.bf16 %v1628
    %v2339 = vunpack.c.h.bf16 %v1628
    %v2340 = vunpack.c.l.bf16 %v1629
    %v2341 = vunpack.c.h.bf16 %v1629
    %v2342 = vunpack.c.l.bf16 %v1630
    %v2343 = vunpack.c.h.bf16 %v1630
    %v2344 = vunpack.c.l.bf16 %v1631
    %v2345 = vunpack.c.h.bf16 %v1631
    %v2346 = vunpack.c.l.bf16 %v1632
    %v2347 = vunpack.c.h.bf16 %v1632
    %v2348 = vunpack.c.l.bf16 %v1633
    %v2349 = vunpack.c.h.bf16 %v1633
    %v2350 = vunpack.c.l.bf16 %v1634
    %v2351 = vunpack.c.h.bf16 %v1634
    %v2352 = vunpack.c.l.bf16 %v1635
    %v2353 = vunpack.c.h.bf16 %v1635
    %v2354 = vunpack.c.l.bf16 %v1636
    %v2355 = vunpack.c.h.bf16 %v1636
    %v2356 = vunpack.c.l.bf16 %v1637
    %v2357 = vunpack.c.h.bf16 %v1637
    %v2358 = vunpack.c.l.bf16 %v1638
    %v2359 = vunpack.c.h.bf16 %v1638
    %v2360 = vunpack.c.l.bf16 %v1639
    %v2361 = vunpack.c.h.bf16 %v1639
    %v2362 = vunpack.c.l.bf16 %v1640
    %v2363 = vunpack.c.h.bf16 %v1640
    %v2364 = vunpack.c.l.bf16 %v1641
    %v2365 = vunpack.c.h.bf16 %v1641
    %v2366 = vunpack.c.l.bf16 %v1642
    %v2367 = vunpack.c.h.bf16 %v1642
    %v2368 = vunpack.c.l.bf16 %v1643
    %v2369 = vunpack.c.h.bf16 %v1643
    %v2370 = vunpack.c.l.bf16 %v1644
    %v2371 = vunpack.c.h.bf16 %v1644
    %v2372 = vunpack.c.l.bf16 %v1645
    %v2373 = vunpack.c.h.bf16 %v1645
    %v2374 = vunpack.c.l.bf16 %v1646
    %v2375 = vunpack.c.h.bf16 %v1646
    %v2376 = vunpack.c.l.bf16 %v1647
    %v2377 = vunpack.c.h.bf16 %v1647
    %v2378 = vunpack.c.l.bf16 %v1648
    %v2379 = vunpack.c.h.bf16 %v1648
    %v2380 = vunpack.c.l.bf16 %v1649
    %v2381 = vunpack.c.h.bf16 %v1649
    %v2382 = vunpack.c.l.bf16 %v1650
    %v2383 = vunpack.c.h.bf16 %v1650
    %v2384 = vunpack.c.l.bf16 %v1651
    %v2385 = vunpack.c.h.bf16 %v1651
    %v2386 = vunpack.c.l.bf16 %v1652
    %v2387 = vunpack.c.h.bf16 %v1652
    %v2388 = vunpack.c.l.bf16 %v1653
    %v2389 = vunpack.c.h.bf16 %v1653
    %v2390 = vunpack.c.l.bf16 %v1654
    %v2391 = vunpack.c.h.bf16 %v1654
    %v2392 = vunpack.c.l.bf16 %v1655
    %v2393 = vunpack.c.h.bf16 %v1655
    %v2394 = vunpack.c.l.bf16 %v1656
    %v2395 = vunpack.c.h.bf16 %v1656
    %v2396 = vunpack.c.l.bf16 %v1657
    %v2397 = vunpack.c.h.bf16 %v1657
    %v2398 = vunpack.c.l.bf16 %v1658
    %v2399 = vunpack.c.h.bf16 %v1658
    %v2400 = vunpack.c.l.bf16 %v1659
    %v2401 = vunpack.c.h.bf16 %v1659
    %v2402 = vunpack.c.l.bf16 %v1660
    %v2403 = vunpack.c.h.bf16 %v1660
    %v2404 = vunpack.c.l.bf16 %v1661
    %v2405 = vunpack.c.h.bf16 %v1661
    %v2406 = vunpack.c.l.bf16 %v1662
    %v2407 = vunpack.c.h.bf16 %v1662
    %v2408 = vunpack.c.l.bf16 %v1663
    %v2409 = vunpack.c.h.bf16 %v1663
    %v2410 = vunpack.c.l.bf16 %v1664
    %v2411 = vunpack.c.h.bf16 %v1664
    %v2412 = vunpack.c.l.bf16 %v1665
    %v2413 = vunpack.c.h.bf16 %v1665
    %v2414 = vunpack.c.l.bf16 %v1666
    %v2415 = vunpack.c.h.bf16 %v1666
    %v2416 = vunpack.c.l.bf16 %v1667
    %v2417 = vunpack.c.h.bf16 %v1667
    %v2418 = vunpack.c.l.bf16 %v1668
    %v2419 = vunpack.c.h.bf16 %v1668
    %v2420 = vunpack.c.l.bf16 %v1669
    %v2421 = vunpack.c.h.bf16 %v1669
    %v2422 = vunpack.c.l.bf16 %v1670
    %v2423 = vunpack.c.h.bf16 %v1670
    %v2424 = vunpack.c.l.bf16 %v1671
    %v2425 = vunpack.c.h.bf16 %v1671
    %v2426 = vunpack.c.l.bf16 %v1672
    %v2427 = vunpack.c.h.bf16 %v1672
    %v2428 = vunpack.c.l.bf16 %v1673
    %v2429 = vunpack.c.h.bf16 %v1673
    %v2430 = vunpack.c.l.bf16 %v1674
    %v2431 = vunpack.c.h.bf16 %v1674
    %v2432 = vunpack.c.l.bf16 %v1675
    %v2433 = vunpack.c.h.bf16 %v1675
    %v2434 = vunpack.c.l.bf16 %v1676
    %v2435 = vunpack.c.h.bf16 %v1676
    %v2436 = vunpack.c.l.bf16 %v1677
    %v2437 = vunpack.c.h.bf16 %v1677
    %v2438 = vunpack.c.l.bf16 %v1678
    %v2439 = vunpack.c.h.bf16 %v1678
    %v2440 = vunpack.c.l.bf16 %v1679
    %v2441 = vunpack.c.h.bf16 %v1679
    %v2442 = vunpack.c.l.bf16 %v1680
    %v2443 = vunpack.c.h.bf16 %v1680
    %v2444 = vunpack.c.l.bf16 %v1681
    %v2445 = vunpack.c.h.bf16 %v1681
    %v2446 = vunpack.c.l.bf16 %v1682
    %v2447 = vunpack.c.h.bf16 %v1682
    %v2448 = vunpack.c.l.bf16 %v1683
    %v2449 = vunpack.c.h.bf16 %v1683
    %v2450 = vunpack.c.l.bf16 %v1684
    %v2451 = vunpack.c.h.bf16 %v1684
    %v2452 = vunpack.c.l.bf16 %v1685
    %v2453 = vunpack.c.h.bf16 %v1685
    %v2454 = vunpack.c.l.bf16 %v1686
    %v2455 = vunpack.c.h.bf16 %v1686
    %v2456 = vunpack.c.l.bf16 %v1687
    %v2457 = vunpack.c.h.bf16 %v1687
    %v2458 = vunpack.c.l.bf16 %v1688
    %v2459 = vunpack.c.h.bf16 %v1688
    %v2460 = vunpack.c.l.bf16 %v1689
    %v2461 = vunpack.c.h.bf16 %v1689
    %v2462 = vunpack.c.l.bf16 %v1690
    %v2463 = vunpack.c.h.bf16 %v1690
    %v2464 = vunpack.c.l.bf16 %v1691
    %v2465 = vunpack.c.h.bf16 %v1691
    %v2466 = vunpack.c.l.bf16 %v1692
    %v2467 = vunpack.c.h.bf16 %v1692
    %v2468 = vunpack.c.l.bf16 %v1693
    %v2469 = vunpack.c.h.bf16 %v1693
    %v2470 = vunpack.c.l.bf16 %v1694
    %v2471 = vunpack.c.h.bf16 %v1694
    %v2472 = vunpack.c.l.bf16 %v1695
    %v2473 = vunpack.c.h.bf16 %v1695
    %v2474 = vunpack.c.l.bf16 %v1696
    %v2475 = vunpack.c.h.bf16 %v1696
    %v2476 = vunpack.c.l.bf16 %v1697
    %v2477 = vunpack.c.h.bf16 %v1697
    %v2478 = vunpack.c.l.bf16 %v1698
    %v2479 = vunpack.c.h.bf16 %v1698
    %v2480 = vunpack.c.l.bf16 %v1699
    %v2481 = vunpack.c.h.bf16 %v1699
    %v2482 = vunpack.c.l.bf16 %v1700
    %v2483 = vunpack.c.h.bf16 %v1700
    %v2484 = vunpack.c.l.bf16 %v1701
    %v2485 = vunpack.c.h.bf16 %v1701
    %v2486 = vunpack.c.l.bf16 %v1702
    %v2487 = vunpack.c.h.bf16 %v1702
    %v2488 = vunpack.c.l.bf16 %v1703
    %v2489 = vunpack.c.h.bf16 %v1703
    %v2490 = vunpack.c.l.bf16 %v1704
    %v2491 = vunpack.c.h.bf16 %v1704
    %v2492 = vunpack.c.l.bf16 %v1705
    %v2493 = vunpack.c.h.bf16 %v1705
    %v2494 = vunpack.c.l.bf16 %v1706
    %v2495 = vunpack.c.h.bf16 %v1706
    %v2496 = vunpack.c.l.bf16 %v1707
    %v2497 = vunpack.c.h.bf16 %v1707
    %v2498 = vunpack.c.l.bf16 %v1708
    %v2499 = vunpack.c.h.bf16 %v1708
    %v2500 = vunpack.c.l.bf16 %v1709
    %v2501 = vunpack.c.h.bf16 %v1709
    %v2502 = vunpack.c.l.bf16 %v1710
    %v2503 = vunpack.c.h.bf16 %v1710
    %v2504 = vunpack.c.l.bf16 %v1711
    %v2505 = vunpack.c.h.bf16 %v1711
    %v2506 = vunpack.c.l.bf16 %v1712
    %v2507 = vunpack.c.h.bf16 %v1712
    %v2508 = vunpack.c.l.bf16 %v1713
    %v2509 = vunpack.c.h.bf16 %v1713
    %v2510 = vunpack.c.l.bf16 %v1714
    %v2511 = vunpack.c.h.bf16 %v1714
    %v2512 = vunpack.c.l.bf16 %v1715
    %v2513 = vunpack.c.h.bf16 %v1715
    %v2514 = vunpack.c.l.bf16 %v1716
    %v2515 = vunpack.c.h.bf16 %v1716
    %v2516 = vunpack.c.l.bf16 %v1717
    %v2517 = vunpack.c.h.bf16 %v1717
    %v2518 = vunpack.c.l.bf16 %v1718
    %v2519 = vunpack.c.h.bf16 %v1718
    %v2520 = vunpack.c.l.bf16 %v1719
    %v2521 = vunpack.c.h.bf16 %v1719
    %v2522 = vunpack.c.l.bf16 %v1720
    %v2523 = vunpack.c.h.bf16 %v1720
    %v2524 = vunpack.c.l.bf16 %v1721
    %v2525 = vunpack.c.h.bf16 %v1721
    %v2526 = vunpack.c.l.bf16 %v1722
    %v2527 = vunpack.c.h.bf16 %v1722
    %v2528 = vunpack.c.l.bf16 %v1723
    %v2529 = vunpack.c.h.bf16 %v1723
    %v2530 = vunpack.c.l.bf16 %v1724
    %v2531 = vunpack.c.h.bf16 %v1724
    %v2532 = vunpack.c.l.bf16 %v1725
    %v2533 = vunpack.c.h.bf16 %v1725
    %v2534 = vunpack.c.l.bf16 %v1726
    %v2535 = vunpack.c.h.bf16 %v1726
    %v2536 = vunpack.c.l.bf16 %v1727
    %v2537 = vunpack.c.h.bf16 %v1727
    %v2538 = vunpack.c.l.bf16 %v1728
    %v2539 = vunpack.c.h.bf16 %v1728
    %v2540 = vunpack.c.l.bf16 %v1729
    %v2541 = vunpack.c.h.bf16 %v1729
    %v2542 = vunpack.c.l.bf16 %v1730
    %v2543 = vunpack.c.h.bf16 %v1730
    %v2544 = vunpack.c.l.bf16 %v1731
    %v2545 = vunpack.c.h.bf16 %v1731
    %v2546 = vunpack.c.l.bf16 %v1732
    %v2547 = vunpack.c.h.bf16 %v1732
    %v2548 = vunpack.c.l.bf16 %v1733
    %v2549 = vunpack.c.h.bf16 %v1733
    %v2550 = vunpack.c.l.bf16 %v1734
    %v2551 = vunpack.c.h.bf16 %v1734
    %v2552 = vunpack.c.l.bf16 %v1735
    %v2553 = vunpack.c.h.bf16 %v1735
    %v2554 = vunpack.c.l.bf16 %v1736
    %v2555 = vunpack.c.h.bf16 %v1736
    %v2556 = vunpack.c.l.bf16 %v1737
    %v2557 = vunpack.c.h.bf16 %v1737
    %v2558 = vunpack.c.l.bf16 %v1738
    %v2559 = vunpack.c.h.bf16 %v1738
    %v2560 = vunpack.c.l.bf16 %v1739
    %v2561 = vunpack.c.h.bf16 %v1739
    %v2562 = vunpack.c.l.bf16 %v1740
    %v2563 = vunpack.c.h.bf16 %v1740
    %v2564 = vunpack.c.l.bf16 %v1741
    %v2565 = vunpack.c.h.bf16 %v1741
    %v2566 = vunpack.c.l.bf16 %v1742
    %v2567 = vunpack.c.h.bf16 %v1742
    %v2568 = vunpack.c.l.bf16 %v1743
    %v2569 = vunpack.c.h.bf16 %v1743
    %v2570 = vunpack.c.l.bf16 %v1744
    %v2571 = vunpack.c.h.bf16 %v1744
    %v2572 = vunpack.c.l.bf16 %v1745
    %v2573 = vunpack.c.h.bf16 %v1745
    %v2574 = vunpack.c.l.bf16 %v1746
    %v2575 = vunpack.c.h.bf16 %v1746
    %v2576 = vunpack.c.l.bf16 %v1747
    %v2577 = vunpack.c.h.bf16 %v1747
    %v2578 = vunpack.c.l.bf16 %v1748
    %v2579 = vunpack.c.h.bf16 %v1748
    %v2580 = vunpack.c.l.bf16 %v1749
    %v2581 = vunpack.c.h.bf16 %v1749
    %v2582 = vunpack.c.l.bf16 %v1750
    %v2583 = vunpack.c.h.bf16 %v1750
    %v2584 = vunpack.c.l.bf16 %v1751
    %v2585 = vunpack.c.h.bf16 %v1751
    %v2586 = vunpack.c.l.bf16 %v1752
    %v2587 = vunpack.c.h.bf16 %v1752
    %v2588 = vunpack.c.l.bf16 %v1753
    %v2589 = vunpack.c.h.bf16 %v1753
    %v2590 = vunpack.c.l.bf16 %v1754
    %v2591 = vunpack.c.h.bf16 %v1754
    %v2592 = vunpack.c.l.bf16 %v1755
    %v2593 = vunpack.c.h.bf16 %v1755
    %v2594 = vunpack.c.l.bf16 %v1756
    %v2595 = vunpack.c.h.bf16 %v1756
    %v2596 = vunpack.c.l.bf16 %v1757
    %v2597 = vunpack.c.h.bf16 %v1757
    %v2598 = vunpack.c.l.bf16 %v1758
    %v2599 = vunpack.c.h.bf16 %v1758
    %v2600 = vunpack.c.l.bf16 %v1759
    %v2601 = vunpack.c.h.bf16 %v1759
    %v2602 = vunpack.c.l.bf16 %v1760
    %v2603 = vunpack.c.h.bf16 %v1760
    %v2604 = vunpack.c.l.bf16 %v1761
    %v2605 = vunpack.c.h.bf16 %v1761
    %v2606 = vunpack.c.l.bf16 %v1762
    %v2607 = vunpack.c.h.bf16 %v1762
    %v2608 = vunpack.c.l.bf16 %v1763
    %v2609 = vunpack.c.h.bf16 %v1763
    %v2610 = vunpack.c.l.bf16 %v1764
    %v2611 = vunpack.c.h.bf16 %v1764
    %v2612 = vunpack.c.l.bf16 %v1765
    %v2613 = vunpack.c.h.bf16 %v1765
    %v2614 = vunpack.c.l.bf16 %v1766
    %v2615 = vunpack.c.h.bf16 %v1766
    %v2616 = vunpack.c.l.bf16 %v1767
    %v2617 = vunpack.c.h.bf16 %v1767
    %v2618 = vunpack.c.l.bf16 %v1768
    %v2619 = vunpack.c.h.bf16 %v1768
    %v2620 = vunpack.c.l.bf16 %v1769
    %v2621 = vunpack.c.h.bf16 %v1769
    %v2622 = vunpack.c.l.bf16 %v1770
    %v2623 = vunpack.c.h.bf16 %v1770
    %v2624 = vunpack.c.l.bf16 %v1771
    %v2625 = vunpack.c.h.bf16 %v1771
    %v2626 = vunpack.c.l.bf16 %v1772
    %v2627 = vunpack.c.h.bf16 %v1772
    %v2628 = vunpack.c.l.bf16 %v1773
    %v2629 = vunpack.c.h.bf16 %v1773
    %v2630 = vunpack.c.l.bf16 %v1774
    %v2631 = vunpack.c.h.bf16 %v1774
    %v2632 = vunpack.c.l.bf16 %v1775
    %v2633 = vunpack.c.h.bf16 %v1775
    %v2634 = vunpack.c.l.bf16 %v1776
    %v2635 = vunpack.c.h.bf16 %v1776
    %v2636 = vunpack.c.l.bf16 %v1777
    %v2637 = vunpack.c.h.bf16 %v1777
    %v2638 = vunpack.c.l.bf16 %v1778
    %v2639 = vunpack.c.h.bf16 %v1778
    %v2640 = vunpack.c.l.bf16 %v1779
    %v2641 = vunpack.c.h.bf16 %v1779
    %v2642 = vunpack.c.l.bf16 %v1780
    %v2643 = vunpack.c.h.bf16 %v1780
    %v2644 = vunpack.c.l.bf16 %v1781
    %v2645 = vunpack.c.h.bf16 %v1781
    %v2646 = vunpack.c.l.bf16 %v1782
    %v2647 = vunpack.c.h.bf16 %v1782
    %v2648 = vunpack.c.l.bf16 %v1783
    %v2649 = vunpack.c.h.bf16 %v1783
    %v2650 = vunpack.c.l.bf16 %v1784
    %v2651 = vunpack.c.h.bf16 %v1784
    %v2652 = vunpack.c.l.bf16 %v1785
    %v2653 = vunpack.c.h.bf16 %v1785
    %v2654 = vunpack.c.l.bf16 %v1786
    %v2655 = vunpack.c.h.bf16 %v1786
    %v2656 = vunpack.c.l.bf16 %v1787
    %v2657 = vunpack.c.h.bf16 %v1787
    %v2658 = vunpack.c.l.bf16 %v1788
    %v2659 = vunpack.c.h.bf16 %v1788
    %v2660 = vunpack.c.l.bf16 %v1789
    %v2661 = vunpack.c.h.bf16 %v1789
    %v2662 = vunpack.c.l.bf16 %v1790
    %v2663 = vunpack.c.h.bf16 %v1790
    %v2664 = vunpack.c.l.bf16 %v1791
    %v2665 = vunpack.c.h.bf16 %v1791
    %v2666 = vunpack.c.l.bf16 %v1792
    %v2667 = vunpack.c.h.bf16 %v1792
    %v2668 = vunpack.c.l.bf16 %v1793
    %v2669 = vunpack.c.h.bf16 %v1793
    %v2670 = vunpack.c.l.bf16 %v1794
    %v2671 = vunpack.c.h.bf16 %v1794
    %v2672 = vunpack.c.l.bf16 %v1795
    %v2673 = vunpack.c.h.bf16 %v1795
    %v2674 = vunpack.c.l.bf16 %v1796
    %v2675 = vunpack.c.h.bf16 %v1796
    %v2676 = vunpack.c.l.bf16 %v1797
    %v2677 = vunpack.c.h.bf16 %v1797
    %v2678 = vunpack.c.l.bf16 %v1798
    %v2679 = vunpack.c.h.bf16 %v1798
    %v2680 = vunpack.c.l.bf16 %v1799
    %v2681 = vunpack.c.h.bf16 %v1799
    %v2682 = vunpack.c.l.bf16 %v1800
    %v2683 = vunpack.c.h.bf16 %v1800
    %v2684 = vunpack.c.l.bf16 %v1801
    %v2685 = vunpack.c.h.bf16 %v1801
    %v2686 = vunpack.c.l.bf16 %v1802
    %v2687 = vunpack.c.h.bf16 %v1802
    %v2688 = vunpack.c.l.bf16 %v1803
    %v2689 = vunpack.c.h.bf16 %v1803
    %v2690 = vunpack.c.l.bf16 %v1804
    %v2691 = vunpack.c.h.bf16 %v1804
    %v2692 = vunpack.c.l.bf16 %v1805
    %v2693 = vunpack.c.h.bf16 %v1805
    %v2694 = vunpack.c.l.bf16 %v1806
    %v2695 = vunpack.c.h.bf16 %v1806
    %v2696 = vunpack.c.l.bf16 %v1807
    %v2697 = vunpack.c.h.bf16 %v1807
    %v2698 = vunpack.c.l.bf16 %v1808
    %v2699 = vunpack.c.h.bf16 %v1808
    %v2700 = vunpack.c.l.bf16 %v1809
    %v2701 = vunpack.c.h.bf16 %v1809
    %v2702 = vunpack.c.l.bf16 %v1810
    %v2703 = vunpack.c.h.bf16 %v1810
    %v2704 = vunpack.c.l.bf16 %v1811
    %v2705 = vunpack.c.h.bf16 %v1811
    %v2706 = vunpack.c.l.bf16 %v1812
    %v2707 = vunpack.c.h.bf16 %v1812
    %v2708 = vunpack.c.l.bf16 %v1813
    %v2709 = vunpack.c.h.bf16 %v1813
    %v2710 = vunpack.c.l.bf16 %v1814
    %v2711 = vunpack.c.h.bf16 %v1814
    %v2712 = vunpack.c.l.bf16 %v1815
    %v2713 = vunpack.c.h.bf16 %v1815
    %v2714 = vunpack.c.l.bf16 %v1816
    %v2715 = vunpack.c.h.bf16 %v1816
    %v2716 = vunpack.c.l.bf16 %v1817
    %v2717 = vunpack.c.h.bf16 %v1817
    %v2718 = vunpack.c.l.bf16 %v1818
    %v2719 = vunpack.c.h.bf16 %v1818
    %v2720 = vunpack.c.l.bf16 %v1819
    %v2721 = vunpack.c.h.bf16 %v1819
    %v2722 = vunpack.c.l.bf16 %v1820
    %v2723 = vunpack.c.h.bf16 %v1820
    %v2724 = vunpack.c.l.bf16 %v1821
    %v2725 = vunpack.c.h.bf16 %v1821
    %v2726 = vunpack.c.l.bf16 %v1822
    %v2727 = vunpack.c.h.bf16 %v1822
    %v2728 = vunpack.c.l.bf16 %v1823
    %v2729 = vunpack.c.h.bf16 %v1823
    %v2730 = vunpack.c.l.bf16 %v1824
    %v2731 = vunpack.c.h.bf16 %v1824
    %v2732 = vunpack.c.l.bf16 %v1825
    %v2733 = vunpack.c.h.bf16 %v1825
    %v2734 = vunpack.c.l.bf16 %v1826
    %v2735 = vunpack.c.h.bf16 %v1826
    %v2736 = vunpack.c.l.bf16 %v1827
    %v2737 = vunpack.c.h.bf16 %v1827
    %v2738 = vunpack.c.l.bf16 %v1828
    %v2739 = vunpack.c.h.bf16 %v1828
    %v2740 = vunpack.c.l.bf16 %v1829
    %v2741 = vunpack.c.h.bf16 %v1829
    %v2742 = vunpack.c.l.bf16 %v1830
    %v2743 = vunpack.c.h.bf16 %v1830
    %v2744 = vunpack.c.l.bf16 %v1831
    %v2745 = vunpack.c.h.bf16 %v1831
    %v2746 = vunpack.c.l.bf16 %v1832
    %v2747 = vunpack.c.h.bf16 %v1832
    %v2748 = vunpack.c.l.bf16 %v1833
    %v2749 = vunpack.c.h.bf16 %v1833
    %v2750 = vunpack.c.l.bf16 %v1834
    %v2751 = vunpack.c.h.bf16 %v1834
    %v2752 = vunpack.c.l.bf16 %v1835
    %v2753 = vunpack.c.h.bf16 %v1835
    %v2754 = vunpack.c.l.bf16 %v1836
    %v2755 = vunpack.c.h.bf16 %v1836
    %v2756 = vunpack.c.l.bf16 %v1837
    %v2757 = vunpack.c.h.bf16 %v1837
    %v2758 = vunpack.c.l.bf16 %v1838
    %v2759 = vunpack.c.h.bf16 %v1838
    %v2760 = vunpack.c.l.bf16 %v1839
    %v2761 = vunpack.c.h.bf16 %v1839
    %v2762 = vunpack.c.l.bf16 %v1840
    %v2763 = vunpack.c.h.bf16 %v1840
    %v2764 = vunpack.c.l.bf16 %v1841
    %v2765 = vunpack.c.h.bf16 %v1841
    %v2766 = vunpack.c.l.bf16 %v1842
    %v2767 = vunpack.c.h.bf16 %v1842
    %v2768 = vunpack.c.l.bf16 %v1843
    %v2769 = vunpack.c.h.bf16 %v1843
    %v2770 = vunpack.c.l.bf16 %v1844
    %v2771 = vunpack.c.h.bf16 %v1844
    %v2772 = vunpack.c.l.bf16 %v1845
    %v2773 = vunpack.c.h.bf16 %v1845
    %v2774 = vunpack.c.l.bf16 %v1846
    %v2775 = vunpack.c.h.bf16 %v1846
    %v2776 = vunpack.c.l.bf16 %v1847
    %v2777 = vunpack.c.h.bf16 %v1847
    %v2778 = vunpack.c.l.bf16 %v1848
    %v2779 = vunpack.c.h.bf16 %v1848
    %v2780 = vunpack.c.l.bf16 %v1849
    %v2781 = vunpack.c.h.bf16 %v1849
    %v2782 = vunpack.c.l.bf16 %v1850
    %v2783 = vunpack.c.h.bf16 %v1850
    %v2784 = vunpack.c.l.bf16 %v1851
    %v2785 = vunpack.c.h.bf16 %v1851
    %v2786 = vunpack.c.l.bf16 %v1852
    %v2787 = vunpack.c.h.bf16 %v1852
    %v2788 = vunpack.c.l.bf16 %v1853
    %v2789 = vunpack.c.h.bf16 %v1853
    %v2790 = vunpack.c.l.bf16 %v1854
    %v2791 = vunpack.c.h.bf16 %v1854
    %v2792 = vunpack.c.l.bf16 %v1855
    %v2793 = vunpack.c.h.bf16 %v1855
    %v2794 = vunpack.c.l.bf16 %v1856
    %v2795 = vunpack.c.h.bf16 %v1856
    %v2796 = vunpack.c.l.bf16 %v1857
    %v2797 = vunpack.c.h.bf16 %v1857
    %v2798 = vunpack.c.l.bf16 %v1858
    %v2799 = vunpack.c.h.bf16 %v1858
    %v2800 = vunpack.c.l.bf16 %v1859
    %v2801 = vunpack.c.h.bf16 %v1859
    %v2802 = vunpack.c.l.bf16 %v1860
    %v2803 = vunpack.c.h.bf16 %v1860
    %v2804 = vunpack.c.l.bf16 %v1861
    %v2805 = vunpack.c.h.bf16 %v1861
    %v2806 = vunpack.c.l.bf16 %v1862
    %v2807 = vunpack.c.h.bf16 %v1862
    %v2808 = vunpack.c.l.bf16 %v1863
    %v2809 = vunpack.c.h.bf16 %v1863
    %v2810 = vunpack.c.l.bf16 %v1864
    %v2811 = vunpack.c.h.bf16 %v1864
    %v2812 = vunpack.c.l.bf16 %v1865
    %v2813 = vunpack.c.h.bf16 %v1865
    %v2814 = vunpack.c.l.bf16 %v1866
    %v2815 = vunpack.c.h.bf16 %v1866
    %v2816 = vunpack.c.l.bf16 %v1867
    %v2817 = vunpack.c.h.bf16 %v1867
    %v2818 = vunpack.c.l.bf16 %v1868
    %v2819 = vunpack.c.h.bf16 %v1868
    %v2820 = vunpack.c.l.bf16 %v1869
    %v2821 = vunpack.c.h.bf16 %v1869
    %v2822 = vunpack.c.l.bf16 %v1870
    %v2823 = vunpack.c.h.bf16 %v1870
    %v2824 = vunpack.c.l.bf16 %v1871
    %v2825 = vunpack.c.h.bf16 %v1871
    %v2826 = vunpack.c.l.bf16 %v1872
    %v2827 = vunpack.c.h.bf16 %v1872
    %v2828 = vunpack.c.l.bf16 %v1873
    %v2829 = vunpack.c.h.bf16 %v1873
    %v2830 = vunpack.c.l.bf16 %v1874
    %v2831 = vunpack.c.h.bf16 %v1874
    %v2832 = vunpack.c.l.bf16 %v1875
    %v2833 = vunpack.c.h.bf16 %v1875
    %v2834 = vunpack.c.l.bf16 %v1876
    %v2835 = vunpack.c.h.bf16 %v1876
    %v2836 = vunpack.c.l.bf16 %v1877
    %v2837 = vunpack.c.h.bf16 %v1877
    %v2838 = vunpack.c.l.bf16 %v1878
    %v2839 = vunpack.c.h.bf16 %v1878
    %v2840 = vunpack.c.l.bf16 %v1879
    %v2841 = vunpack.c.h.bf16 %v1879
    %v2842 = vunpack.c.l.bf16 %v1880
    %v2843 = vunpack.c.h.bf16 %v1880
    %v2844 = vunpack.c.l.bf16 %v1881
    %v2845 = vunpack.c.h.bf16 %v1881
    %v2846 = vunpack.c.l.bf16 %v1882
    %v2847 = vunpack.c.h.bf16 %v1882
    %v2848 = vunpack.c.l.bf16 %v1883
    %v2849 = vunpack.c.h.bf16 %v1883
    %v2850 = vunpack.c.l.bf16 %v1884
    %v2851 = vunpack.c.h.bf16 %v1884
    %v2852 = vunpack.c.l.bf16 %v1885
    %v2853 = vunpack.c.h.bf16 %v1885
    %v2854 = vunpack.c.l.bf16 %v1886
    %v2855 = vunpack.c.h.bf16 %v1886
    %v2856 = vunpack.c.l.bf16 %v1887
    %v2857 = vunpack.c.h.bf16 %v1887
    %v2858 = vunpack.c.l.bf16 %v1888
    %v2859 = vunpack.c.h.bf16 %v1888
    %v2860 = vunpack.c.l.bf16 %v1889
    %v2861 = vunpack.c.h.bf16 %v1889
    %v2862 = vunpack.c.l.bf16 %v1890
    %v2863 = vunpack.c.h.bf16 %v1890
    %v2864 = vunpack.c.l.bf16 %v1891
    %v2865 = vunpack.c.h.bf16 %v1891
    %v2866 = vunpack.c.l.bf16 %v1892
    %v2867 = vunpack.c.h.bf16 %v1892
    %v2868 = vunpack.c.l.bf16 %v1893
    %v2869 = vunpack.c.h.bf16 %v1893
    %v2870 = vunpack.c.l.bf16 %v1894
    %v2871 = vunpack.c.h.bf16 %v1894
    %v2872 = vunpack.c.l.bf16 %v1895
    %v2873 = vunpack.c.h.bf16 %v1895
    %v2874 = vunpack.c.l.bf16 %v1896
    %v2875 = vunpack.c.h.bf16 %v1896
    %v2876 = vunpack.c.l.bf16 %v1897
    %v2877 = vunpack.c.h.bf16 %v1897
    %v2878 = vunpack.c.l.bf16 %v1898
    %v2879 = vunpack.c.h.bf16 %v1898
    %v2880 = vunpack.c.l.bf16 %v1899
    %v2881 = vunpack.c.h.bf16 %v1899
    %v2882 = vunpack.c.l.bf16 %v1900
    %v2883 = vunpack.c.h.bf16 %v1900
    %v2884 = vunpack.c.l.bf16 %v1901
    %v2885 = vunpack.c.h.bf16 %v1901
    %v2886 = vunpack.c.l.bf16 %v1902
    %v2887 = vunpack.c.h.bf16 %v1902
    %v2888 = vunpack.c.l.bf16 %v1903
    %v2889 = vunpack.c.h.bf16 %v1903
    %v2890 = vunpack.c.l.bf16 %v1904
    %v2891 = vunpack.c.h.bf16 %v1904
    %v2892 = vunpack.c.l.bf16 %v1905
    %v2893 = vunpack.c.h.bf16 %v1905
    %v2894 = vunpack.c.l.bf16 %v1906
    %v2895 = vunpack.c.h.bf16 %v1906
    %v2896 = vunpack.c.l.bf16 %v1907
    %v2897 = vunpack.c.h.bf16 %v1907
    %v2898 = vunpack.c.l.bf16 %v1908
    %v2899 = vunpack.c.h.bf16 %v1908
    %v2900 = vunpack.c.l.bf16 %v1909
    %v2901 = vunpack.c.h.bf16 %v1909
    %v2902 = vunpack.c.l.bf16 %v1910
    %v2903 = vunpack.c.h.bf16 %v1910
    %v2904 = vunpack.c.l.bf16 %v1911
    %v2905 = vunpack.c.h.bf16 %v1911
    %v2906 = vunpack.c.l.bf16 %v1912
    %v2907 = vunpack.c.h.bf16 %v1912
    %v2908 = vunpack.c.l.bf16 %v1913
    %v2909 = vunpack.c.h.bf16 %v1913
    %v2910 = vunpack.c.l.bf16 %v1914
    %v2911 = vunpack.c.h.bf16 %v1914
    %v2912 = vunpack.c.l.bf16 %v1915
    %v2913 = vunpack.c.h.bf16 %v1915
    %v2914 = vunpack.c.l.bf16 %v1916
    %v2915 = vunpack.c.h.bf16 %v1916
    %v2916 = vunpack.c.l.bf16 %v1917
    %v2917 = vunpack.c.h.bf16 %v1917
    %v2918 = vunpack.c.l.bf16 %v1918
    %v2919 = vunpack.c.h.bf16 %v1918
    %v2920 = vunpack.c.l.bf16 %v1919
    %v2921 = vunpack.c.h.bf16 %v1919
    %v2922 = vunpack.c.l.bf16 %v1920
    %v2923 = vunpack.c.h.bf16 %v1920
    %v2924 = vunpack.c.l.bf16 %v1921
    %v2925 = vunpack.c.h.bf16 %v1921
    %v2926 = vunpack.c.l.bf16 %v1922
    %v2927 = vunpack.c.h.bf16 %v1922
    %v2928 = vunpack.c.l.bf16 %v1923
    %v2929 = vunpack.c.h.bf16 %v1923
    %v2930 = vunpack.c.l.bf16 %v1924
    %v2931 = vunpack.c.h.bf16 %v1924
    %v2932 = vunpack.c.l.bf16 %v1925
    %v2933 = vunpack.c.h.bf16 %v1925
    %v2934 = vunpack.c.l.bf16 %v1926
    %v2935 = vunpack.c.h.bf16 %v1926
    %v2936 = vunpack.c.l.bf16 %v1927
    %v2937 = vunpack.c.h.bf16 %v1927
    %v2938 = vunpack.c.l.bf16 %v1928
    %v2939 = vunpack.c.h.bf16 %v1928
    %v2940 = vunpack.c.l.bf16 %v1929
    %v2941 = vunpack.c.h.bf16 %v1929
    %v2942 = vunpack.c.l.bf16 %v1930
    %v2943 = vunpack.c.h.bf16 %v1930
    %v2944 = vunpack.c.l.bf16 %v1931
    %v2945 = vunpack.c.h.bf16 %v1931
    %v2946 = vunpack.c.l.bf16 %v1932
    %v2947 = vunpack.c.h.bf16 %v1932
    %v2948 = vunpack.c.l.bf16 %v1933
    %v2949 = vunpack.c.h.bf16 %v1933
    %v2950 = vunpack.c.l.bf16 %v1934
    %v2951 = vunpack.c.h.bf16 %v1934
    %v2952 = vunpack.c.l.bf16 %v1935
    %v2953 = vunpack.c.h.bf16 %v1935
    %v2954 = vunpack.c.l.bf16 %v1936
    %v2955 = vunpack.c.h.bf16 %v1936
    %v2956 = vunpack.c.l.bf16 %v1937
    %v2957 = vunpack.c.h.bf16 %v1937
    %v2958 = vunpack.c.l.bf16 %v1938
    %v2959 = vunpack.c.h.bf16 %v1938
    %v2960 = vunpack.c.l.bf16 %v1939
    %v2961 = vunpack.c.h.bf16 %v1939
    %v2962 = vunpack.c.l.bf16 %v1940
    %v2963 = vunpack.c.h.bf16 %v1940
    %v2964 = vunpack.c.l.bf16 %v1941
    %v2965 = vunpack.c.h.bf16 %v1941
    %2966 = vmatpush.msra.mxu0 %v2062
    %2967 = vmatpush.msra.mxu0 %v2054
    %2968 = vmatpush.msra.mxu0 %v2046
    %2969 = vmatpush.msra.mxu0 %v2038
    %2970 = vmatpush.msra.mxu0 %v2030
    %2971 = vmatpush.msra.mxu0 %v2022
    %2972 = vmatpush.msra.mxu0 %v2014
    %2973 = vmatpush.msra.mxu0 %v2006
    %2974 = vmatpush.msra.mxu0 %v1998
    %2975 = vmatpush.msra.mxu0 %v1990
    %2976 = vmatpush.msra.mxu0 %v1982
    %2977 = vmatpush.msra.mxu0 %v1974
    %2978 = vmatpush.msra.mxu0 %v1966
    %2979 = vmatpush.msra.mxu0 %v1958
    %2980 = vmatpush.msra.mxu0 %v1950
    %2981 = vmatpush.msra.mxu0 %v1942
    %2982 = vmatmul.f32.gmra.mxu0 %v1422
    %v2983 = vpop.f32.mrf.mxu0
    %v2984 = vadd.f32 0.0, %v2983
    %2985 = vdwg.mxu0
    %2986 = vmatpush.msra.mxu0 %v2190
    %2987 = vmatpush.msra.mxu0 %v2182
    %2988 = vmatpush.msra.mxu0 %v2174
    %2989 = vmatpush.msra.mxu0 %v2166
    %2990 = vmatpush.msra.mxu0 %v2158
    %2991 = vmatpush.msra.mxu0 %v2150
    %2992 = vmatpush.msra.mxu0 %v2142
    %2993 = vmatpush.msra.mxu0 %v2134
    %2994 = vmatpush.msra.mxu0 %v2126
    %2995 = vmatpush.msra.mxu0 %v2118
    %2996 = vmatpush.msra.mxu0 %v2110
    %2997 = vmatpush.msra.mxu0 %v2102
    %2998 = vmatpush.msra.mxu0 %v2094
    %2999 = vmatpush.msra.mxu0 %v2086
    %3000 = vmatpush.msra.mxu0 %v2078
    %3001 = vmatpush.msra.mxu0 %v2070
    %3002 = vmatmul.f32.gmra.mxu0 %v1423
    %v3003 = vpop.f32.mrf.mxu0
    %v3004 = vadd.f32 %v2984, %v3003
    %3005 = vdwg.mxu0
    %3006 = vmatpush.msra.mxu0 %v2318
    %3007 = vmatpush.msra.mxu0 %v2310
    %3008 = vmatpush.msra.mxu0 %v2302
    %3009 = vmatpush.msra.mxu0 %v2294
    %3010 = vmatpush.msra.mxu0 %v2286
    %3011 = vmatpush.msra.mxu0 %v2278
    %3012 = vmatpush.msra.mxu0 %v2270
    %3013 = vmatpush.msra.mxu0 %v2262
    %3014 = vmatpush.msra.mxu0 %v2254
    %3015 = vmatpush.msra.mxu0 %v2246
    %3016 = vmatpush.msra.mxu0 %v2238
    %3017 = vmatpush.msra.mxu0 %v2230
    %3018 = vmatpush.msra.mxu0 %v2222
    %3019 = vmatpush.msra.mxu0 %v2214
    %3020 = vmatpush.msra.mxu0 %v2206
    %3021 = vmatpush.msra.mxu0 %v2198
    %3022 = vmatmul.f32.gmra.mxu0 %v1424
    %v3023 = vpop.f32.mrf.mxu0
    %v3024 = vadd.f32 %v3004, %v3023
    %3025 = vdwg.mxu0
    %3026 = vmatpush.msra.mxu0 %v2446
    %3027 = vmatpush.msra.mxu0 %v2438
    %3028 = vmatpush.msra.mxu0 %v2430
    %3029 = vmatpush.msra.mxu0 %v2422
    %3030 = vmatpush.msra.mxu0 %v2414
    %3031 = vmatpush.msra.mxu0 %v2406
    %3032 = vmatpush.msra.mxu0 %v2398
    %3033 = vmatpush.msra.mxu0 %v2390
    %3034 = vmatpush.msra.mxu0 %v2382
    %3035 = vmatpush.msra.mxu0 %v2374
    %3036 = vmatpush.msra.mxu0 %v2366
    %3037 = vmatpush.msra.mxu0 %v2358
    %3038 = vmatpush.msra.mxu0 %v2350
    %3039 = vmatpush.msra.mxu0 %v2342
    %3040 = vmatpush.msra.mxu0 %v2334
    %3041 = vmatpush.msra.mxu0 %v2326
    %3042 = vmatmul.f32.gmra.mxu0 %v1425
    %v3043 = vpop.f32.mrf.mxu0
    %v3044 = vadd.f32 %v3024, %v3043
    %3045 = vdwg.mxu0
    %3046 = vmatpush.msra.mxu0 %v2574
    %3047 = vmatpush.msra.mxu0 %v2566
    %3048 = vmatpush.msra.mxu0 %v2558
    %3049 = vmatpush.msra.mxu0 %v2550
    %3050 = vmatpush.msra.mxu0 %v2542
    %3051 = vmatpush.msra.mxu0 %v2534
    %3052 = vmatpush.msra.mxu0 %v2526
    %3053 = vmatpush.msra.mxu0 %v2518
    %3054 = vmatpush.msra.mxu0 %v2510
    %3055 = vmatpush.msra.mxu0 %v2502
    %3056 = vmatpush.msra.mxu0 %v2494
    %3057 = vmatpush.msra.mxu0 %v2486
    %3058 = vmatpush.msra.mxu0 %v2478
    %3059 = vmatpush.msra.mxu0 %v2470
    %3060 = vmatpush.msra.mxu0 %v2462
    %3061 = vmatpush.msra.mxu0 %v2454
    %3062 = vmatmul.f32.gmra.mxu0 %v1426
    %v3063 = vpop.f32.mrf.mxu0
    %v3064 = vadd.f32 %v3044, %v3063
    %3065 = vdwg.mxu0
    %3066 = vmatpush.msra.mxu0 %v2702
    %3067 = vmatpush.msra.mxu0 %v2694
    %3068 = vmatpush.msra.mxu0 %v2686
    %3069 = vmatpush.msra.mxu0 %v2678
    %3070 = vmatpush.msra.mxu0 %v2670
    %3071 = vmatpush.msra.mxu0 %v2662
    %3072 = vmatpush.msra.mxu0 %v2654
    %3073 = vmatpush.msra.mxu0 %v2646
    %3074 = vmatpush.msra.mxu0 %v2638
    %3075 = vmatpush.msra.mxu0 %v2630
    %3076 = vmatpush.msra.mxu0 %v2622
    %3077 = vmatpush.msra.mxu0 %v2614
    %3078 = vmatpush.msra.mxu0 %v2606
    %3079 = vmatpush.msra.mxu0 %v2598
    %3080 = vmatpush.msra.mxu0 %v2590
    %3081 = vmatpush.msra.mxu0 %v2582
    %3082 = vmatmul.f32.gmra.mxu0 %v1427
    %v3083 = vpop.f32.mrf.mxu0
    %v3084 = vadd.f32 %v3064, %v3083
    %3085 = vdwg.mxu0
    %3086 = vmatpush.msra.mxu0 %v2830
    %3087 = vmatpush.msra.mxu0 %v2822
    %3088 = vmatpush.msra.mxu0 %v2814
    %3089 = vmatpush.msra.mxu0 %v2806
    %3090 = vmatpush.msra.mxu0 %v2798
    %3091 = vmatpush.msra.mxu0 %v2790
    %3092 = vmatpush.msra.mxu0 %v2782
    %3093 = vmatpush.msra.mxu0 %v2774
    %3094 = vmatpush.msra.mxu0 %v2766
    %3095 = vmatpush.msra.mxu0 %v2758
    %3096 = vmatpush.msra.mxu0 %v2750
    %3097 = vmatpush.msra.mxu0 %v2742
    %3098 = vmatpush.msra.mxu0 %v2734
    %3099 = vmatpush.msra.mxu0 %v2726
    %3100 = vmatpush.msra.mxu0 %v2718
    %3101 = vmatpush.msra.mxu0 %v2710
    %3102 = vmatmul.f32.gmra.mxu0 %v1428
    %v3103 = vpop.f32.mrf.mxu0
    %v3104 = vadd.f32 %v3084, %v3103
    %3105 = vdwg.mxu0
    %3106 = vmatpush.msra.mxu0 %v2958
    %3107 = vmatpush.msra.mxu0 %v2950
    %3108 = vmatpush.msra.mxu0 %v2942
    %3109 = vmatpush.msra.mxu0 %v2934
    %3110 = vmatpush.msra.mxu0 %v2926
    %3111 = vmatpush.msra.mxu0 %v2918
    %3112 = vmatpush.msra.mxu0 %v2910
    %3113 = vmatpush.msra.mxu0 %v2902
    %3114 = vmatpush.msra.mxu0 %v2894
    %3115 = vmatpush.msra.mxu0 %v2886
    %3116 = vmatpush.msra.mxu0 %v2878
    %3117 = vmatpush.msra.mxu0 %v2870
    %3118 = vmatpush.msra.mxu0 %v2862
    %3119 = vmatpush.msra.mxu0 %v2854
    %3120 = vmatpush.msra.mxu0 %v2846
    %3121 = vmatpush.msra.mxu0 %v2838
    %3122 = vmatmul.f32.gmra.mxu0 %v1429
    %v3123 = vpop.f32.mrf.mxu0
    %v3124 = vadd.f32 %v3104, %v3123
    %3125 = vdwg.mxu0
    %3126 = vmatpush.msra.mxu0 %v2063
    %3127 = vmatpush.msra.mxu0 %v2055
    %3128 = vmatpush.msra.mxu0 %v2047
    %3129 = vmatpush.msra.mxu0 %v2039
    %3130 = vmatpush.msra.mxu0 %v2031
    %3131 = vmatpush.msra.mxu0 %v2023
    %3132 = vmatpush.msra.mxu0 %v2015
    %3133 = vmatpush.msra.mxu0 %v2007
    %3134 = vmatpush.msra.mxu0 %v1999
    %3135 = vmatpush.msra.mxu0 %v1991
    %3136 = vmatpush.msra.mxu0 %v1983
    %3137 = vmatpush.msra.mxu0 %v1975
    %3138 = vmatpush.msra.mxu0 %v1967
    %3139 = vmatpush.msra.mxu0 %v1959
    %3140 = vmatpush.msra.mxu0 %v1951
    %3141 = vmatpush.msra.mxu0 %v1943
    %3142 = vmatmul.f32.gmra.mxu0 %v1422
    %v3143 = vpop.f32.mrf.mxu0
    %v3144 = vadd.f32 0.0, %v3143
    %3145 = vdwg.mxu0
    %3146 = vmatpush.msra.mxu0 %v2191
    %3147 = vmatpush.msra.mxu0 %v2183
    %3148 = vmatpush.msra.mxu0 %v2175
    %3149 = vmatpush.msra.mxu0 %v2167
    %3150 = vmatpush.msra.mxu0 %v2159
    %3151 = vmatpush.msra.mxu0 %v2151
    %3152 = vmatpush.msra.mxu0 %v2143
    %3153 = vmatpush.msra.mxu0 %v2135
    %3154 = vmatpush.msra.mxu0 %v2127
    %3155 = vmatpush.msra.mxu0 %v2119
    %3156 = vmatpush.msra.mxu0 %v2111
    %3157 = vmatpush.msra.mxu0 %v2103
    %3158 = vmatpush.msra.mxu0 %v2095
    %3159 = vmatpush.msra.mxu0 %v2087
    %3160 = vmatpush.msra.mxu0 %v2079
    %3161 = vmatpush.msra.mxu0 %v2071
    %3162 = vmatmul.f32.gmra.mxu0 %v1423
    %v3163 = vpop.f32.mrf.mxu0
    %v3164 = vadd.f32 %v3144, %v3163
    %3165 = vdwg.mxu0
    %3166 = vmatpush.msra.mxu0 %v2319
    %3167 = vmatpush.msra.mxu0 %v2311
    %3168 = vmatpush.msra.mxu0 %v2303
    %3169 = vmatpush.msra.mxu0 %v2295
    %3170 = vmatpush.msra.mxu0 %v2287
    %3171 = vmatpush.msra.mxu0 %v2279
    %3172 = vmatpush.msra.mxu0 %v2271
    %3173 = vmatpush.msra.mxu0 %v2263
    %3174 = vmatpush.msra.mxu0 %v2255
    %3175 = vmatpush.msra.mxu0 %v2247
    %3176 = vmatpush.msra.mxu0 %v2239
    %3177 = vmatpush.msra.mxu0 %v2231
    %3178 = vmatpush.msra.mxu0 %v2223
    %3179 = vmatpush.msra.mxu0 %v2215
    %3180 = vmatpush.msra.mxu0 %v2207
    %3181 = vmatpush.msra.mxu0 %v2199
    %3182 = vmatmul.f32.gmra.mxu0 %v1424
    %v3183 = vpop.f32.mrf.mxu0
    %v3184 = vadd.f32 %v3164, %v3183
    %3185 = vdwg.mxu0
    %3186 = vmatpush.msra.mxu0 %v2447
    %3187 = vmatpush.msra.mxu0 %v2439
    %3188 = vmatpush.msra.mxu0 %v2431
    %3189 = vmatpush.msra.mxu0 %v2423
    %3190 = vmatpush.msra.mxu0 %v2415
    %3191 = vmatpush.msra.mxu0 %v2407
    %3192 = vmatpush.msra.mxu0 %v2399
    %3193 = vmatpush.msra.mxu0 %v2391
    %3194 = vmatpush.msra.mxu0 %v2383
    %3195 = vmatpush.msra.mxu0 %v2375
    %3196 = vmatpush.msra.mxu0 %v2367
    %3197 = vmatpush.msra.mxu0 %v2359
    %3198 = vmatpush.msra.mxu0 %v2351
    %3199 = vmatpush.msra.mxu0 %v2343
    %3200 = vmatpush.msra.mxu0 %v2335
    %3201 = vmatpush.msra.mxu0 %v2327
    %3202 = vmatmul.f32.gmra.mxu0 %v1425
    %v3203 = vpop.f32.mrf.mxu0
    %v3204 = vadd.f32 %v3184, %v3203
    %3205 = vdwg.mxu0
    %3206 = vmatpush.msra.mxu0 %v2575
    %3207 = vmatpush.msra.mxu0 %v2567
    %3208 = vmatpush.msra.mxu0 %v2559
    %3209 = vmatpush.msra.mxu0 %v2551
    %3210 = vmatpush.msra.mxu0 %v2543
    %3211 = vmatpush.msra.mxu0 %v2535
    %3212 = vmatpush.msra.mxu0 %v2527
    %3213 = vmatpush.msra.mxu0 %v2519
    %3214 = vmatpush.msra.mxu0 %v2511
    %3215 = vmatpush.msra.mxu0 %v2503
    %3216 = vmatpush.msra.mxu0 %v2495
    %3217 = vmatpush.msra.mxu0 %v2487
    %3218 = vmatpush.msra.mxu0 %v2479
    %3219 = vmatpush.msra.mxu0 %v2471
    %3220 = vmatpush.msra.mxu0 %v2463
    %3221 = vmatpush.msra.mxu0 %v2455
    %3222 = vmatmul.f32.gmra.mxu0 %v1426
    %v3223 = vpop.f32.mrf.mxu0
    %v3224 = vadd.f32 %v3204, %v3223
    %3225 = vdwg.mxu0
    %3226 = vmatpush.msra.mxu0 %v2703
    %3227 = vmatpush.msra.mxu0 %v2695
    %3228 = vmatpush.msra.mxu0 %v2687
    %3229 = vmatpush.msra.mxu0 %v2679
    %3230 = vmatpush.msra.mxu0 %v2671
    %3231 = vmatpush.msra.mxu0 %v2663
    %3232 = vmatpush.msra.mxu0 %v2655
    %3233 = vmatpush.msra.mxu0 %v2647
    %3234 = vmatpush.msra.mxu0 %v2639
    %3235 = vmatpush.msra.mxu0 %v2631
    %3236 = vmatpush.msra.mxu0 %v2623
    %3237 = vmatpush.msra.mxu0 %v2615
    %3238 = vmatpush.msra.mxu0 %v2607
    %3239 = vmatpush.msra.mxu0 %v2599
    %3240 = vmatpush.msra.mxu0 %v2591
    %3241 = vmatpush.msra.mxu0 %v2583
    %3242 = vmatmul.f32.gmra.mxu0 %v1427
    %v3243 = vpop.f32.mrf.mxu0
    %v3244 = vadd.f32 %v3224, %v3243
    %3245 = vdwg.mxu0
    %3246 = vmatpush.msra.mxu0 %v2831
    %3247 = vmatpush.msra.mxu0 %v2823
    %3248 = vmatpush.msra.mxu0 %v2815
    %3249 = vmatpush.msra.mxu0 %v2807
    %3250 = vmatpush.msra.mxu0 %v2799
    %3251 = vmatpush.msra.mxu0 %v2791
    %3252 = vmatpush.msra.mxu0 %v2783
    %3253 = vmatpush.msra.mxu0 %v2775
    %3254 = vmatpush.msra.mxu0 %v2767
    %3255 = vmatpush.msra.mxu0 %v2759
    %3256 = vmatpush.msra.mxu0 %v2751
    %3257 = vmatpush.msra.mxu0 %v2743
    %3258 = vmatpush.msra.mxu0 %v2735
    %3259 = vmatpush.msra.mxu0 %v2727
    %3260 = vmatpush.msra.mxu0 %v2719
    %3261 = vmatpush.msra.mxu0 %v2711
    %3262 = vmatmul.f32.gmra.mxu0 %v1428
    %v3263 = vpop.f32.mrf.mxu0
    %v3264 = vadd.f32 %v3244, %v3263
    %3265 = vdwg.mxu0
    %3266 = vmatpush.msra.mxu0 %v2959
    %3267 = vmatpush.msra.mxu0 %v2951
    %3268 = vmatpush.msra.mxu0 %v2943
    %3269 = vmatpush.msra.mxu0 %v2935
    %3270 = vmatpush.msra.mxu0 %v2927
    %3271 = vmatpush.msra.mxu0 %v2919
    %3272 = vmatpush.msra.mxu0 %v2911
    %3273 = vmatpush.msra.mxu0 %v2903
    %3274 = vmatpush.msra.mxu0 %v2895
    %3275 = vmatpush.msra.mxu0 %v2887
    %3276 = vmatpush.msra.mxu0 %v2879
    %3277 = vmatpush.msra.mxu0 %v2871
    %3278 = vmatpush.msra.mxu0 %v2863
    %3279 = vmatpush.msra.mxu0 %v2855
    %3280 = vmatpush.msra.mxu0 %v2847
    %3281 = vmatpush.msra.mxu0 %v2839
    %3282 = vmatmul.f32.gmra.mxu0 %v1429
    %v3283 = vpop.f32.mrf.mxu0
    %v3284 = vadd.f32 %v3264, %v3283
    %3285 = vdwg.mxu0
    %3286 = vmatpush.msra.mxu0 %v2064
    %3287 = vmatpush.msra.mxu0 %v2056
    %3288 = vmatpush.msra.mxu0 %v2048
    %3289 = vmatpush.msra.mxu0 %v2040
    %3290 = vmatpush.msra.mxu0 %v2032
    %3291 = vmatpush.msra.mxu0 %v2024
    %3292 = vmatpush.msra.mxu0 %v2016
    %3293 = vmatpush.msra.mxu0 %v2008
    %3294 = vmatpush.msra.mxu0 %v2000
    %3295 = vmatpush.msra.mxu0 %v1992
    %3296 = vmatpush.msra.mxu0 %v1984
    %3297 = vmatpush.msra.mxu0 %v1976
    %3298 = vmatpush.msra.mxu0 %v1968
    %3299 = vmatpush.msra.mxu0 %v1960
    %3300 = vmatpush.msra.mxu0 %v1952
    %3301 = vmatpush.msra.mxu0 %v1944
    %3302 = vmatmul.f32.gmra.mxu0 %v1422
    %v3303 = vpop.f32.mrf.mxu0
    %v3304 = vadd.f32 0.0, %v3303
    %3305 = vdwg.mxu0
    %3306 = vmatpush.msra.mxu0 %v2192
    %3307 = vmatpush.msra.mxu0 %v2184
    %3308 = vmatpush.msra.mxu0 %v2176
    %3309 = vmatpush.msra.mxu0 %v2168
    %3310 = vmatpush.msra.mxu0 %v2160
    %3311 = vmatpush.msra.mxu0 %v2152
    %3312 = vmatpush.msra.mxu0 %v2144
    %3313 = vmatpush.msra.mxu0 %v2136
    %3314 = vmatpush.msra.mxu0 %v2128
    %3315 = vmatpush.msra.mxu0 %v2120
    %3316 = vmatpush.msra.mxu0 %v2112
    %3317 = vmatpush.msra.mxu0 %v2104
    %3318 = vmatpush.msra.mxu0 %v2096
    %3319 = vmatpush.msra.mxu0 %v2088
    %3320 = vmatpush.msra.mxu0 %v2080
    %3321 = vmatpush.msra.mxu0 %v2072
    %3322 = vmatmul.f32.gmra.mxu0 %v1423
    %v3323 = vpop.f32.mrf.mxu0
    %v3324 = vadd.f32 %v3304, %v3323
    %3325 = vdwg.mxu0
    %3326 = vmatpush.msra.mxu0 %v2320
    %3327 = vmatpush.msra.mxu0 %v2312
    %3328 = vmatpush.msra.mxu0 %v2304
    %3329 = vmatpush.msra.mxu0 %v2296
    %3330 = vmatpush.msra.mxu0 %v2288
    %3331 = vmatpush.msra.mxu0 %v2280
    %3332 = vmatpush.msra.mxu0 %v2272
    %3333 = vmatpush.msra.mxu0 %v2264
    %3334 = vmatpush.msra.mxu0 %v2256
    %3335 = vmatpush.msra.mxu0 %v2248
    %3336 = vmatpush.msra.mxu0 %v2240
    %3337 = vmatpush.msra.mxu0 %v2232
    %3338 = vmatpush.msra.mxu0 %v2224
    %3339 = vmatpush.msra.mxu0 %v2216
    %3340 = vmatpush.msra.mxu0 %v2208
    %3341 = vmatpush.msra.mxu0 %v2200
    %3342 = vmatmul.f32.gmra.mxu0 %v1424
    %v3343 = vpop.f32.mrf.mxu0
    %v3344 = vadd.f32 %v3324, %v3343
    %3345 = vdwg.mxu0
    %3346 = vmatpush.msra.mxu0 %v2448
    %3347 = vmatpush.msra.mxu0 %v2440
    %3348 = vmatpush.msra.mxu0 %v2432
    %3349 = vmatpush.msra.mxu0 %v2424
    %3350 = vmatpush.msra.mxu0 %v2416
    %3351 = vmatpush.msra.mxu0 %v2408
    %3352 = vmatpush.msra.mxu0 %v2400
    %3353 = vmatpush.msra.mxu0 %v2392
    %3354 = vmatpush.msra.mxu0 %v2384
    %3355 = vmatpush.msra.mxu0 %v2376
    %3356 = vmatpush.msra.mxu0 %v2368
    %3357 = vmatpush.msra.mxu0 %v2360
    %3358 = vmatpush.msra.mxu0 %v2352
    %3359 = vmatpush.msra.mxu0 %v2344
    %3360 = vmatpush.msra.mxu0 %v2336
    %3361 = vmatpush.msra.mxu0 %v2328
    %3362 = vmatmul.f32.gmra.mxu0 %v1425
    %v3363 = vpop.f32.mrf.mxu0
    %v3364 = vadd.f32 %v3344, %v3363
    %3365 = vdwg.mxu0
    %3366 = vmatpush.msra.mxu0 %v2576
    %3367 = vmatpush.msra.mxu0 %v2568
    %3368 = vmatpush.msra.mxu0 %v2560
    %3369 = vmatpush.msra.mxu0 %v2552
    %3370 = vmatpush.msra.mxu0 %v2544
    %3371 = vmatpush.msra.mxu0 %v2536
    %3372 = vmatpush.msra.mxu0 %v2528
    %3373 = vmatpush.msra.mxu0 %v2520
    %3374 = vmatpush.msra.mxu0 %v2512
    %3375 = vmatpush.msra.mxu0 %v2504
    %3376 = vmatpush.msra.mxu0 %v2496
    %3377 = vmatpush.msra.mxu0 %v2488
    %3378 = vmatpush.msra.mxu0 %v2480
    %3379 = vmatpush.msra.mxu0 %v2472
    %3380 = vmatpush.msra.mxu0 %v2464
    %3381 = vmatpush.msra.mxu0 %v2456
    %3382 = vmatmul.f32.gmra.mxu0 %v1426
    %v3383 = vpop.f32.mrf.mxu0
    %v3384 = vadd.f32 %v3364, %v3383
    %3385 = vdwg.mxu0
    %3386 = vmatpush.msra.mxu0 %v2704
    %3387 = vmatpush.msra.mxu0 %v2696
    %3388 = vmatpush.msra.mxu0 %v2688
    %3389 = vmatpush.msra.mxu0 %v2680
    %3390 = vmatpush.msra.mxu0 %v2672
    %3391 = vmatpush.msra.mxu0 %v2664
    %3392 = vmatpush.msra.mxu0 %v2656
    %3393 = vmatpush.msra.mxu0 %v2648
    %3394 = vmatpush.msra.mxu0 %v2640
    %3395 = vmatpush.msra.mxu0 %v2632
    %3396 = vmatpush.msra.mxu0 %v2624
    %3397 = vmatpush.msra.mxu0 %v2616
    %3398 = vmatpush.msra.mxu0 %v2608
    %3399 = vmatpush.msra.mxu0 %v2600
    %3400 = vmatpush.msra.mxu0 %v2592
    %3401 = vmatpush.msra.mxu0 %v2584
    %3402 = vmatmul.f32.gmra.mxu0 %v1427
    %v3403 = vpop.f32.mrf.mxu0
    %v3404 = vadd.f32 %v3384, %v3403
    %3405 = vdwg.mxu0
    %3406 = vmatpush.msra.mxu0 %v2832
    %3407 = vmatpush.msra.mxu0 %v2824
    %3408 = vmatpush.msra.mxu0 %v2816
    %3409 = vmatpush.msra.mxu0 %v2808
    %3410 = vmatpush.msra.mxu0 %v2800
    %3411 = vmatpush.msra.mxu0 %v2792
    %3412 = vmatpush.msra.mxu0 %v2784
    %3413 = vmatpush.msra.mxu0 %v2776
    %3414 = vmatpush.msra.mxu0 %v2768
    %3415 = vmatpush.msra.mxu0 %v2760
    %3416 = vmatpush.msra.mxu0 %v2752
    %3417 = vmatpush.msra.mxu0 %v2744
    %3418 = vmatpush.msra.mxu0 %v2736
    %3419 = vmatpush.msra.mxu0 %v2728
    %3420 = vmatpush.msra.mxu0 %v2720
    %3421 = vmatpush.msra.mxu0 %v2712
    %3422 = vmatmul.f32.gmra.mxu0 %v1428
    %v3423 = vpop.f32.mrf.mxu0
    %v3424 = vadd.f32 %v3404, %v3423
    %3425 = vdwg.mxu0
    %3426 = vmatpush.msra.mxu0 %v2960
    %3427 = vmatpush.msra.mxu0 %v2952
    %3428 = vmatpush.msra.mxu0 %v2944
    %3429 = vmatpush.msra.mxu0 %v2936
    %3430 = vmatpush.msra.mxu0 %v2928
    %3431 = vmatpush.msra.mxu0 %v2920
    %3432 = vmatpush.msra.mxu0 %v2912
    %3433 = vmatpush.msra.mxu0 %v2904
    %3434 = vmatpush.msra.mxu0 %v2896
    %3435 = vmatpush.msra.mxu0 %v2888
    %3436 = vmatpush.msra.mxu0 %v2880
    %3437 = vmatpush.msra.mxu0 %v2872
    %3438 = vmatpush.msra.mxu0 %v2864
    %3439 = vmatpush.msra.mxu0 %v2856
    %3440 = vmatpush.msra.mxu0 %v2848
    %3441 = vmatpush.msra.mxu0 %v2840
    %3442 = vmatmul.f32.gmra.mxu0 %v1429
    %v3443 = vpop.f32.mrf.mxu0
    %v3444 = vadd.f32 %v3424, %v3443
    %3445 = vdwg.mxu0
    %3446 = vmatpush.msra.mxu0 %v2065
    %3447 = vmatpush.msra.mxu0 %v2057
    %3448 = vmatpush.msra.mxu0 %v2049
    %3449 = vmatpush.msra.mxu0 %v2041
    %3450 = vmatpush.msra.mxu0 %v2033
    %3451 = vmatpush.msra.mxu0 %v2025
    %3452 = vmatpush.msra.mxu0 %v2017
    %3453 = vmatpush.msra.mxu0 %v2009
    %3454 = vmatpush.msra.mxu0 %v2001
    %3455 = vmatpush.msra.mxu0 %v1993
    %3456 = vmatpush.msra.mxu0 %v1985
    %3457 = vmatpush.msra.mxu0 %v1977
    %3458 = vmatpush.msra.mxu0 %v1969
    %3459 = vmatpush.msra.mxu0 %v1961
    %3460 = vmatpush.msra.mxu0 %v1953
    %3461 = vmatpush.msra.mxu0 %v1945
    %3462 = vmatmul.f32.gmra.mxu0 %v1422
    %v3463 = vpop.f32.mrf.mxu0
    %v3464 = vadd.f32 0.0, %v3463
    %3465 = vdwg.mxu0
    %3466 = vmatpush.msra.mxu0 %v2193
    %3467 = vmatpush.msra.mxu0 %v2185
    %3468 = vmatpush.msra.mxu0 %v2177
    %3469 = vmatpush.msra.mxu0 %v2169
    %3470 = vmatpush.msra.mxu0 %v2161
    %3471 = vmatpush.msra.mxu0 %v2153
    %3472 = vmatpush.msra.mxu0 %v2145
    %3473 = vmatpush.msra.mxu0 %v2137
    %3474 = vmatpush.msra.mxu0 %v2129
    %3475 = vmatpush.msra.mxu0 %v2121
    %3476 = vmatpush.msra.mxu0 %v2113
    %3477 = vmatpush.msra.mxu0 %v2105
    %3478 = vmatpush.msra.mxu0 %v2097
    %3479 = vmatpush.msra.mxu0 %v2089
    %3480 = vmatpush.msra.mxu0 %v2081
    %3481 = vmatpush.msra.mxu0 %v2073
    %3482 = vmatmul.f32.gmra.mxu0 %v1423
    %v3483 = vpop.f32.mrf.mxu0
    %v3484 = vadd.f32 %v3464, %v3483
    %3485 = vdwg.mxu0
    %3486 = vmatpush.msra.mxu0 %v2321
    %3487 = vmatpush.msra.mxu0 %v2313
    %3488 = vmatpush.msra.mxu0 %v2305
    %3489 = vmatpush.msra.mxu0 %v2297
    %3490 = vmatpush.msra.mxu0 %v2289
    %3491 = vmatpush.msra.mxu0 %v2281
    %3492 = vmatpush.msra.mxu0 %v2273
    %3493 = vmatpush.msra.mxu0 %v2265
    %3494 = vmatpush.msra.mxu0 %v2257
    %3495 = vmatpush.msra.mxu0 %v2249
    %3496 = vmatpush.msra.mxu0 %v2241
    %3497 = vmatpush.msra.mxu0 %v2233
    %3498 = vmatpush.msra.mxu0 %v2225
    %3499 = vmatpush.msra.mxu0 %v2217
    %3500 = vmatpush.msra.mxu0 %v2209
    %3501 = vmatpush.msra.mxu0 %v2201
    %3502 = vmatmul.f32.gmra.mxu0 %v1424
    %v3503 = vpop.f32.mrf.mxu0
    %v3504 = vadd.f32 %v3484, %v3503
    %3505 = vdwg.mxu0
    %3506 = vmatpush.msra.mxu0 %v2449
    %3507 = vmatpush.msra.mxu0 %v2441
    %3508 = vmatpush.msra.mxu0 %v2433
    %3509 = vmatpush.msra.mxu0 %v2425
    %3510 = vmatpush.msra.mxu0 %v2417
    %3511 = vmatpush.msra.mxu0 %v2409
    %3512 = vmatpush.msra.mxu0 %v2401
    %3513 = vmatpush.msra.mxu0 %v2393
    %3514 = vmatpush.msra.mxu0 %v2385
    %3515 = vmatpush.msra.mxu0 %v2377
    %3516 = vmatpush.msra.mxu0 %v2369
    %3517 = vmatpush.msra.mxu0 %v2361
    %3518 = vmatpush.msra.mxu0 %v2353
    %3519 = vmatpush.msra.mxu0 %v2345
    %3520 = vmatpush.msra.mxu0 %v2337
    %3521 = vmatpush.msra.mxu0 %v2329
    %3522 = vmatmul.f32.gmra.mxu0 %v1425
    %v3523 = vpop.f32.mrf.mxu0
    %v3524 = vadd.f32 %v3504, %v3523
    %3525 = vdwg.mxu0
    %3526 = vmatpush.msra.mxu0 %v2577
    %3527 = vmatpush.msra.mxu0 %v2569
    %3528 = vmatpush.msra.mxu0 %v2561
    %3529 = vmatpush.msra.mxu0 %v2553
    %3530 = vmatpush.msra.mxu0 %v2545
    %3531 = vmatpush.msra.mxu0 %v2537
    %3532 = vmatpush.msra.mxu0 %v2529
    %3533 = vmatpush.msra.mxu0 %v2521
    %3534 = vmatpush.msra.mxu0 %v2513
    %3535 = vmatpush.msra.mxu0 %v2505
    %3536 = vmatpush.msra.mxu0 %v2497
    %3537 = vmatpush.msra.mxu0 %v2489
    %3538 = vmatpush.msra.mxu0 %v2481
    %3539 = vmatpush.msra.mxu0 %v2473
    %3540 = vmatpush.msra.mxu0 %v2465
    %3541 = vmatpush.msra.mxu0 %v2457
    %3542 = vmatmul.f32.gmra.mxu0 %v1426
    %v3543 = vpop.f32.mrf.mxu0
    %v3544 = vadd.f32 %v3524, %v3543
    %3545 = vdwg.mxu0
    %3546 = vmatpush.msra.mxu0 %v2705
    %3547 = vmatpush.msra.mxu0 %v2697
    %3548 = vmatpush.msra.mxu0 %v2689
    %3549 = vmatpush.msra.mxu0 %v2681
    %3550 = vmatpush.msra.mxu0 %v2673
    %3551 = vmatpush.msra.mxu0 %v2665
    %3552 = vmatpush.msra.mxu0 %v2657
    %3553 = vmatpush.msra.mxu0 %v2649
    %3554 = vmatpush.msra.mxu0 %v2641
    %3555 = vmatpush.msra.mxu0 %v2633
    %3556 = vmatpush.msra.mxu0 %v2625
    %3557 = vmatpush.msra.mxu0 %v2617
    %3558 = vmatpush.msra.mxu0 %v2609
    %3559 = vmatpush.msra.mxu0 %v2601
    %3560 = vmatpush.msra.mxu0 %v2593
    %3561 = vmatpush.msra.mxu0 %v2585
    %3562 = vmatmul.f32.gmra.mxu0 %v1427
    %v3563 = vpop.f32.mrf.mxu0
    %v3564 = vadd.f32 %v3544, %v3563
    %3565 = vdwg.mxu0
    %3566 = vmatpush.msra.mxu0 %v2833
    %3567 = vmatpush.msra.mxu0 %v2825
    %3568 = vmatpush.msra.mxu0 %v2817
    %3569 = vmatpush.msra.mxu0 %v2809
    %3570 = vmatpush.msra.mxu0 %v2801
    %3571 = vmatpush.msra.mxu0 %v2793
    %3572 = vmatpush.msra.mxu0 %v2785
    %3573 = vmatpush.msra.mxu0 %v2777
    %3574 = vmatpush.msra.mxu0 %v2769
    %3575 = vmatpush.msra.mxu0 %v2761
    %3576 = vmatpush.msra.mxu0 %v2753
    %3577 = vmatpush.msra.mxu0 %v2745
    %3578 = vmatpush.msra.mxu0 %v2737
    %3579 = vmatpush.msra.mxu0 %v2729
    %3580 = vmatpush.msra.mxu0 %v2721
    %3581 = vmatpush.msra.mxu0 %v2713
    %3582 = vmatmul.f32.gmra.mxu0 %v1428
    %v3583 = vpop.f32.mrf.mxu0
    %v3584 = vadd.f32 %v3564, %v3583
    %3585 = vdwg.mxu0
    %3586 = vmatpush.msra.mxu0 %v2961
    %3587 = vmatpush.msra.mxu0 %v2953
    %3588 = vmatpush.msra.mxu0 %v2945
    %3589 = vmatpush.msra.mxu0 %v2937
    %3590 = vmatpush.msra.mxu0 %v2929
    %3591 = vmatpush.msra.mxu0 %v2921
    %3592 = vmatpush.msra.mxu0 %v2913
    %3593 = vmatpush.msra.mxu0 %v2905
    %3594 = vmatpush.msra.mxu0 %v2897
    %3595 = vmatpush.msra.mxu0 %v2889
    %3596 = vmatpush.msra.mxu0 %v2881
    %3597 = vmatpush.msra.mxu0 %v2873
    %3598 = vmatpush.msra.mxu0 %v2865
    %3599 = vmatpush.msra.mxu0 %v2857
    %3600 = vmatpush.msra.mxu0 %v2849
    %3601 = vmatpush.msra.mxu0 %v2841
    %3602 = vmatmul.f32.gmra.mxu0 %v1429
    %v3603 = vpop.f32.mrf.mxu0
    %v3604 = vadd.f32 %v3584, %v3603
    %3605 = vdwg.mxu0
    %3606 = vmatpush.msra.mxu0 %v2066
    %3607 = vmatpush.msra.mxu0 %v2058
    %3608 = vmatpush.msra.mxu0 %v2050
    %3609 = vmatpush.msra.mxu0 %v2042
    %3610 = vmatpush.msra.mxu0 %v2034
    %3611 = vmatpush.msra.mxu0 %v2026
    %3612 = vmatpush.msra.mxu0 %v2018
    %3613 = vmatpush.msra.mxu0 %v2010
    %3614 = vmatpush.msra.mxu0 %v2002
    %3615 = vmatpush.msra.mxu0 %v1994
    %3616 = vmatpush.msra.mxu0 %v1986
    %3617 = vmatpush.msra.mxu0 %v1978
    %3618 = vmatpush.msra.mxu0 %v1970
    %3619 = vmatpush.msra.mxu0 %v1962
    %3620 = vmatpush.msra.mxu0 %v1954
    %3621 = vmatpush.msra.mxu0 %v1946
    %3622 = vmatmul.f32.gmra.mxu0 %v1422
    %v3623 = vpop.f32.mrf.mxu0
    %v3624 = vadd.f32 0.0, %v3623
    %3625 = vdwg.mxu0
    %3626 = vmatpush.msra.mxu0 %v2194
    %3627 = vmatpush.msra.mxu0 %v2186
    %3628 = vmatpush.msra.mxu0 %v2178
    %3629 = vmatpush.msra.mxu0 %v2170
    %3630 = vmatpush.msra.mxu0 %v2162
    %3631 = vmatpush.msra.mxu0 %v2154
    %3632 = vmatpush.msra.mxu0 %v2146
    %3633 = vmatpush.msra.mxu0 %v2138
    %3634 = vmatpush.msra.mxu0 %v2130
    %3635 = vmatpush.msra.mxu0 %v2122
    %3636 = vmatpush.msra.mxu0 %v2114
    %3637 = vmatpush.msra.mxu0 %v2106
    %3638 = vmatpush.msra.mxu0 %v2098
    %3639 = vmatpush.msra.mxu0 %v2090
    %3640 = vmatpush.msra.mxu0 %v2082
    %3641 = vmatpush.msra.mxu0 %v2074
    %3642 = vmatmul.f32.gmra.mxu0 %v1423
    %v3643 = vpop.f32.mrf.mxu0
    %v3644 = vadd.f32 %v3624, %v3643
    %3645 = vdwg.mxu0
    %3646 = vmatpush.msra.mxu0 %v2322
    %3647 = vmatpush.msra.mxu0 %v2314
    %3648 = vmatpush.msra.mxu0 %v2306
    %3649 = vmatpush.msra.mxu0 %v2298
    %3650 = vmatpush.msra.mxu0 %v2290
    %3651 = vmatpush.msra.mxu0 %v2282
    %3652 = vmatpush.msra.mxu0 %v2274
    %3653 = vmatpush.msra.mxu0 %v2266
    %3654 = vmatpush.msra.mxu0 %v2258
    %3655 = vmatpush.msra.mxu0 %v2250
    %3656 = vmatpush.msra.mxu0 %v2242
    %3657 = vmatpush.msra.mxu0 %v2234
    %3658 = vmatpush.msra.mxu0 %v2226
    %3659 = vmatpush.msra.mxu0 %v2218
    %3660 = vmatpush.msra.mxu0 %v2210
    %3661 = vmatpush.msra.mxu0 %v2202
    %3662 = vmatmul.f32.gmra.mxu0 %v1424
    %v3663 = vpop.f32.mrf.mxu0
    %v3664 = vadd.f32 %v3644, %v3663
    %3665 = vdwg.mxu0
    %3666 = vmatpush.msra.mxu0 %v2450
    %3667 = vmatpush.msra.mxu0 %v2442
    %3668 = vmatpush.msra.mxu0 %v2434
    %3669 = vmatpush.msra.mxu0 %v2426
    %3670 = vmatpush.msra.mxu0 %v2418
    %3671 = vmatpush.msra.mxu0 %v2410
    %3672 = vmatpush.msra.mxu0 %v2402
    %3673 = vmatpush.msra.mxu0 %v2394
    %3674 = vmatpush.msra.mxu0 %v2386
    %3675 = vmatpush.msra.mxu0 %v2378
    %3676 = vmatpush.msra.mxu0 %v2370
    %3677 = vmatpush.msra.mxu0 %v2362
    %3678 = vmatpush.msra.mxu0 %v2354
    %3679 = vmatpush.msra.mxu0 %v2346
    %3680 = vmatpush.msra.mxu0 %v2338
    %3681 = vmatpush.msra.mxu0 %v2330
    %3682 = vmatmul.f32.gmra.mxu0 %v1425
    %v3683 = vpop.f32.mrf.mxu0
    %v3684 = vadd.f32 %v3664, %v3683
    %3685 = vdwg.mxu0
    %3686 = vmatpush.msra.mxu0 %v2578
    %3687 = vmatpush.msra.mxu0 %v2570
    %3688 = vmatpush.msra.mxu0 %v2562
    %3689 = vmatpush.msra.mxu0 %v2554
    %3690 = vmatpush.msra.mxu0 %v2546
    %3691 = vmatpush.msra.mxu0 %v2538
    %3692 = vmatpush.msra.mxu0 %v2530
    %3693 = vmatpush.msra.mxu0 %v2522
    %3694 = vmatpush.msra.mxu0 %v2514
    %3695 = vmatpush.msra.mxu0 %v2506
    %3696 = vmatpush.msra.mxu0 %v2498
    %3697 = vmatpush.msra.mxu0 %v2490
    %3698 = vmatpush.msra.mxu0 %v2482
    %3699 = vmatpush.msra.mxu0 %v2474
    %3700 = vmatpush.msra.mxu0 %v2466
    %3701 = vmatpush.msra.mxu0 %v2458
    %3702 = vmatmul.f32.gmra.mxu0 %v1426
    %v3703 = vpop.f32.mrf.mxu0
    %v3704 = vadd.f32 %v3684, %v3703
    %3705 = vdwg.mxu0
    %3706 = vmatpush.msra.mxu0 %v2706
    %3707 = vmatpush.msra.mxu0 %v2698
    %3708 = vmatpush.msra.mxu0 %v2690
    %3709 = vmatpush.msra.mxu0 %v2682
    %3710 = vmatpush.msra.mxu0 %v2674
    %3711 = vmatpush.msra.mxu0 %v2666
    %3712 = vmatpush.msra.mxu0 %v2658
    %3713 = vmatpush.msra.mxu0 %v2650
    %3714 = vmatpush.msra.mxu0 %v2642
    %3715 = vmatpush.msra.mxu0 %v2634
    %3716 = vmatpush.msra.mxu0 %v2626
    %3717 = vmatpush.msra.mxu0 %v2618
    %3718 = vmatpush.msra.mxu0 %v2610
    %3719 = vmatpush.msra.mxu0 %v2602
    %3720 = vmatpush.msra.mxu0 %v2594
    %3721 = vmatpush.msra.mxu0 %v2586
    %3722 = vmatmul.f32.gmra.mxu0 %v1427
    %v3723 = vpop.f32.mrf.mxu0
    %v3724 = vadd.f32 %v3704, %v3723
    %3725 = vdwg.mxu0
    %3726 = vmatpush.msra.mxu0 %v2834
    %3727 = vmatpush.msra.mxu0 %v2826
    %3728 = vmatpush.msra.mxu0 %v2818
    %3729 = vmatpush.msra.mxu0 %v2810
    %3730 = vmatpush.msra.mxu0 %v2802
    %3731 = vmatpush.msra.mxu0 %v2794
    %3732 = vmatpush.msra.mxu0 %v2786
    %3733 = vmatpush.msra.mxu0 %v2778
    %3734 = vmatpush.msra.mxu0 %v2770
    %3735 = vmatpush.msra.mxu0 %v2762
    %3736 = vmatpush.msra.mxu0 %v2754
    %3737 = vmatpush.msra.mxu0 %v2746
    %3738 = vmatpush.msra.mxu0 %v2738
    %3739 = vmatpush.msra.mxu0 %v2730
    %3740 = vmatpush.msra.mxu0 %v2722
    %3741 = vmatpush.msra.mxu0 %v2714
    %3742 = vmatmul.f32.gmra.mxu0 %v1428
    %v3743 = vpop.f32.mrf.mxu0
    %v3744 = vadd.f32 %v3724, %v3743
    %3745 = vdwg.mxu0
    %3746 = vmatpush.msra.mxu0 %v2962
    %3747 = vmatpush.msra.mxu0 %v2954
    %3748 = vmatpush.msra.mxu0 %v2946
    %3749 = vmatpush.msra.mxu0 %v2938
    %3750 = vmatpush.msra.mxu0 %v2930
    %3751 = vmatpush.msra.mxu0 %v2922
    %3752 = vmatpush.msra.mxu0 %v2914
    %3753 = vmatpush.msra.mxu0 %v2906
    %3754 = vmatpush.msra.mxu0 %v2898
    %3755 = vmatpush.msra.mxu0 %v2890
    %3756 = vmatpush.msra.mxu0 %v2882
    %3757 = vmatpush.msra.mxu0 %v2874
    %3758 = vmatpush.msra.mxu0 %v2866
    %3759 = vmatpush.msra.mxu0 %v2858
    %3760 = vmatpush.msra.mxu0 %v2850
    %3761 = vmatpush.msra.mxu0 %v2842
    %3762 = vmatmul.f32.gmra.mxu0 %v1429
    %v3763 = vpop.f32.mrf.mxu0
    %v3764 = vadd.f32 %v3744, %v3763
    %3765 = vdwg.mxu0
    %3766 = vmatpush.msra.mxu0 %v2067
    %3767 = vmatpush.msra.mxu0 %v2059
    %3768 = vmatpush.msra.mxu0 %v2051
    %3769 = vmatpush.msra.mxu0 %v2043
    %3770 = vmatpush.msra.mxu0 %v2035
    %3771 = vmatpush.msra.mxu0 %v2027
    %3772 = vmatpush.msra.mxu0 %v2019
    %3773 = vmatpush.msra.mxu0 %v2011
    %3774 = vmatpush.msra.mxu0 %v2003
    %3775 = vmatpush.msra.mxu0 %v1995
    %3776 = vmatpush.msra.mxu0 %v1987
    %3777 = vmatpush.msra.mxu0 %v1979
    %3778 = vmatpush.msra.mxu0 %v1971
    %3779 = vmatpush.msra.mxu0 %v1963
    %3780 = vmatpush.msra.mxu0 %v1955
    %3781 = vmatpush.msra.mxu0 %v1947
    %3782 = vmatmul.f32.gmra.mxu0 %v1422
    %v3783 = vpop.f32.mrf.mxu0
    %v3784 = vadd.f32 0.0, %v3783
    %3785 = vdwg.mxu0
    %3786 = vmatpush.msra.mxu0 %v2195
    %3787 = vmatpush.msra.mxu0 %v2187
    %3788 = vmatpush.msra.mxu0 %v2179
    %3789 = vmatpush.msra.mxu0 %v2171
    %3790 = vmatpush.msra.mxu0 %v2163
    %3791 = vmatpush.msra.mxu0 %v2155
    %3792 = vmatpush.msra.mxu0 %v2147
    %3793 = vmatpush.msra.mxu0 %v2139
    %3794 = vmatpush.msra.mxu0 %v2131
    %3795 = vmatpush.msra.mxu0 %v2123
    %3796 = vmatpush.msra.mxu0 %v2115
    %3797 = vmatpush.msra.mxu0 %v2107
    %3798 = vmatpush.msra.mxu0 %v2099
    %3799 = vmatpush.msra.mxu0 %v2091
    %3800 = vmatpush.msra.mxu0 %v2083
    %3801 = vmatpush.msra.mxu0 %v2075
    %3802 = vmatmul.f32.gmra.mxu0 %v1423
    %v3803 = vpop.f32.mrf.mxu0
    %v3804 = vadd.f32 %v3784, %v3803
    %3805 = vdwg.mxu0
    %3806 = vmatpush.msra.mxu0 %v2323
    %3807 = vmatpush.msra.mxu0 %v2315
    %3808 = vmatpush.msra.mxu0 %v2307
    %3809 = vmatpush.msra.mxu0 %v2299
    %3810 = vmatpush.msra.mxu0 %v2291
    %3811 = vmatpush.msra.mxu0 %v2283
    %3812 = vmatpush.msra.mxu0 %v2275
    %3813 = vmatpush.msra.mxu0 %v2267
    %3814 = vmatpush.msra.mxu0 %v2259
    %3815 = vmatpush.msra.mxu0 %v2251
    %3816 = vmatpush.msra.mxu0 %v2243
    %3817 = vmatpush.msra.mxu0 %v2235
    %3818 = vmatpush.msra.mxu0 %v2227
    %3819 = vmatpush.msra.mxu0 %v2219
    %3820 = vmatpush.msra.mxu0 %v2211
    %3821 = vmatpush.msra.mxu0 %v2203
    %3822 = vmatmul.f32.gmra.mxu0 %v1424
    %v3823 = vpop.f32.mrf.mxu0
    %v3824 = vadd.f32 %v3804, %v3823
    %3825 = vdwg.mxu0
    %3826 = vmatpush.msra.mxu0 %v2451
    %3827 = vmatpush.msra.mxu0 %v2443
    %3828 = vmatpush.msra.mxu0 %v2435
    %3829 = vmatpush.msra.mxu0 %v2427
    %3830 = vmatpush.msra.mxu0 %v2419
    %3831 = vmatpush.msra.mxu0 %v2411
    %3832 = vmatpush.msra.mxu0 %v2403
    %3833 = vmatpush.msra.mxu0 %v2395
    %3834 = vmatpush.msra.mxu0 %v2387
    %3835 = vmatpush.msra.mxu0 %v2379
    %3836 = vmatpush.msra.mxu0 %v2371
    %3837 = vmatpush.msra.mxu0 %v2363
    %3838 = vmatpush.msra.mxu0 %v2355
    %3839 = vmatpush.msra.mxu0 %v2347
    %3840 = vmatpush.msra.mxu0 %v2339
    %3841 = vmatpush.msra.mxu0 %v2331
    %3842 = vmatmul.f32.gmra.mxu0 %v1425
    %v3843 = vpop.f32.mrf.mxu0
    %v3844 = vadd.f32 %v3824, %v3843
    %3845 = vdwg.mxu0
    %3846 = vmatpush.msra.mxu0 %v2579
    %3847 = vmatpush.msra.mxu0 %v2571
    %3848 = vmatpush.msra.mxu0 %v2563
    %3849 = vmatpush.msra.mxu0 %v2555
    %3850 = vmatpush.msra.mxu0 %v2547
    %3851 = vmatpush.msra.mxu0 %v2539
    %3852 = vmatpush.msra.mxu0 %v2531
    %3853 = vmatpush.msra.mxu0 %v2523
    %3854 = vmatpush.msra.mxu0 %v2515
    %3855 = vmatpush.msra.mxu0 %v2507
    %3856 = vmatpush.msra.mxu0 %v2499
    %3857 = vmatpush.msra.mxu0 %v2491
    %3858 = vmatpush.msra.mxu0 %v2483
    %3859 = vmatpush.msra.mxu0 %v2475
    %3860 = vmatpush.msra.mxu0 %v2467
    %3861 = vmatpush.msra.mxu0 %v2459
    %3862 = vmatmul.f32.gmra.mxu0 %v1426
    %v3863 = vpop.f32.mrf.mxu0
    %v3864 = vadd.f32 %v3844, %v3863
    %3865 = vdwg.mxu0
    %3866 = vmatpush.msra.mxu0 %v2707
    %3867 = vmatpush.msra.mxu0 %v2699
    %3868 = vmatpush.msra.mxu0 %v2691
    %3869 = vmatpush.msra.mxu0 %v2683
    %3870 = vmatpush.msra.mxu0 %v2675
    %3871 = vmatpush.msra.mxu0 %v2667
    %3872 = vmatpush.msra.mxu0 %v2659
    %3873 = vmatpush.msra.mxu0 %v2651
    %3874 = vmatpush.msra.mxu0 %v2643
    %3875 = vmatpush.msra.mxu0 %v2635
    %3876 = vmatpush.msra.mxu0 %v2627
    %3877 = vmatpush.msra.mxu0 %v2619
    %3878 = vmatpush.msra.mxu0 %v2611
    %3879 = vmatpush.msra.mxu0 %v2603
    %3880 = vmatpush.msra.mxu0 %v2595
    %3881 = vmatpush.msra.mxu0 %v2587
    %3882 = vmatmul.f32.gmra.mxu0 %v1427
    %v3883 = vpop.f32.mrf.mxu0
    %v3884 = vadd.f32 %v3864, %v3883
    %3885 = vdwg.mxu0
    %3886 = vmatpush.msra.mxu0 %v2835
    %3887 = vmatpush.msra.mxu0 %v2827
    %3888 = vmatpush.msra.mxu0 %v2819
    %3889 = vmatpush.msra.mxu0 %v2811
    %3890 = vmatpush.msra.mxu0 %v2803
    %3891 = vmatpush.msra.mxu0 %v2795
    %3892 = vmatpush.msra.mxu0 %v2787
    %3893 = vmatpush.msra.mxu0 %v2779
    %3894 = vmatpush.msra.mxu0 %v2771
    %3895 = vmatpush.msra.mxu0 %v2763
    %3896 = vmatpush.msra.mxu0 %v2755
    %3897 = vmatpush.msra.mxu0 %v2747
    %3898 = vmatpush.msra.mxu0 %v2739
    %3899 = vmatpush.msra.mxu0 %v2731
    %3900 = vmatpush.msra.mxu0 %v2723
    %3901 = vmatpush.msra.mxu0 %v2715
    %3902 = vmatmul.f32.gmra.mxu0 %v1428
    %v3903 = vpop.f32.mrf.mxu0
    %v3904 = vadd.f32 %v3884, %v3903
    %3905 = vdwg.mxu0
    %3906 = vmatpush.msra.mxu0 %v2963
    %3907 = vmatpush.msra.mxu0 %v2955
    %3908 = vmatpush.msra.mxu0 %v2947
    %3909 = vmatpush.msra.mxu0 %v2939
    %3910 = vmatpush.msra.mxu0 %v2931
    %3911 = vmatpush.msra.mxu0 %v2923
    %3912 = vmatpush.msra.mxu0 %v2915
    %3913 = vmatpush.msra.mxu0 %v2907
    %3914 = vmatpush.msra.mxu0 %v2899
    %3915 = vmatpush.msra.mxu0 %v2891
    %3916 = vmatpush.msra.mxu0 %v2883
    %3917 = vmatpush.msra.mxu0 %v2875
    %3918 = vmatpush.msra.mxu0 %v2867
    %3919 = vmatpush.msra.mxu0 %v2859
    %3920 = vmatpush.msra.mxu0 %v2851
    %3921 = vmatpush.msra.mxu0 %v2843
    %3922 = vmatmul.f32.gmra.mxu0 %v1429
    %v3923 = vpop.f32.mrf.mxu0
    %v3924 = vadd.f32 %v3904, %v3923
    %3925 = vdwg.mxu0
    %3926 = vmatpush.msra.mxu0 %v2068
    %3927 = vmatpush.msra.mxu0 %v2060
    %3928 = vmatpush.msra.mxu0 %v2052
    %3929 = vmatpush.msra.mxu0 %v2044
    %3930 = vmatpush.msra.mxu0 %v2036
    %3931 = vmatpush.msra.mxu0 %v2028
    %3932 = vmatpush.msra.mxu0 %v2020
    %3933 = vmatpush.msra.mxu0 %v2012
    %3934 = vmatpush.msra.mxu0 %v2004
    %3935 = vmatpush.msra.mxu0 %v1996
    %3936 = vmatpush.msra.mxu0 %v1988
    %3937 = vmatpush.msra.mxu0 %v1980
    %3938 = vmatpush.msra.mxu0 %v1972
    %3939 = vmatpush.msra.mxu0 %v1964
    %3940 = vmatpush.msra.mxu0 %v1956
    %3941 = vmatpush.msra.mxu0 %v1948
    %3942 = vmatmul.f32.gmra.mxu0 %v1422
    %v3943 = vpop.f32.mrf.mxu0
    %v3944 = vadd.f32 0.0, %v3943
    %3945 = vdwg.mxu0
    %3946 = vmatpush.msra.mxu0 %v2196
    %3947 = vmatpush.msra.mxu0 %v2188
    %3948 = vmatpush.msra.mxu0 %v2180
    %3949 = vmatpush.msra.mxu0 %v2172
    %3950 = vmatpush.msra.mxu0 %v2164
    %3951 = vmatpush.msra.mxu0 %v2156
    %3952 = vmatpush.msra.mxu0 %v2148
    %3953 = vmatpush.msra.mxu0 %v2140
    %3954 = vmatpush.msra.mxu0 %v2132
    %3955 = vmatpush.msra.mxu0 %v2124
    %3956 = vmatpush.msra.mxu0 %v2116
    %3957 = vmatpush.msra.mxu0 %v2108
    %3958 = vmatpush.msra.mxu0 %v2100
    %3959 = vmatpush.msra.mxu0 %v2092
    %3960 = vmatpush.msra.mxu0 %v2084
    %3961 = vmatpush.msra.mxu0 %v2076
    %3962 = vmatmul.f32.gmra.mxu0 %v1423
    %v3963 = vpop.f32.mrf.mxu0
    %v3964 = vadd.f32 %v3944, %v3963
    %3965 = vdwg.mxu0
    %3966 = vmatpush.msra.mxu0 %v2324
    %3967 = vmatpush.msra.mxu0 %v2316
    %3968 = vmatpush.msra.mxu0 %v2308
    %3969 = vmatpush.msra.mxu0 %v2300
    %3970 = vmatpush.msra.mxu0 %v2292
    %3971 = vmatpush.msra.mxu0 %v2284
    %3972 = vmatpush.msra.mxu0 %v2276
    %3973 = vmatpush.msra.mxu0 %v2268
    %3974 = vmatpush.msra.mxu0 %v2260
    %3975 = vmatpush.msra.mxu0 %v2252
    %3976 = vmatpush.msra.mxu0 %v2244
    %3977 = vmatpush.msra.mxu0 %v2236
    %3978 = vmatpush.msra.mxu0 %v2228
    %3979 = vmatpush.msra.mxu0 %v2220
    %3980 = vmatpush.msra.mxu0 %v2212
    %3981 = vmatpush.msra.mxu0 %v2204
    %3982 = vmatmul.f32.gmra.mxu0 %v1424
    %v3983 = vpop.f32.mrf.mxu0
    %v3984 = vadd.f32 %v3964, %v3983
    %3985 = vdwg.mxu0
    %3986 = vmatpush.msra.mxu0 %v2452
    %3987 = vmatpush.msra.mxu0 %v2444
    %3988 = vmatpush.msra.mxu0 %v2436
    %3989 = vmatpush.msra.mxu0 %v2428
    %3990 = vmatpush.msra.mxu0 %v2420
    %3991 = vmatpush.msra.mxu0 %v2412
    %3992 = vmatpush.msra.mxu0 %v2404
    %3993 = vmatpush.msra.mxu0 %v2396
    %3994 = vmatpush.msra.mxu0 %v2388
    %3995 = vmatpush.msra.mxu0 %v2380
    %3996 = vmatpush.msra.mxu0 %v2372
    %3997 = vmatpush.msra.mxu0 %v2364
    %3998 = vmatpush.msra.mxu0 %v2356
    %3999 = vmatpush.msra.mxu0 %v2348
    %4000 = vmatpush.msra.mxu0 %v2340
    %4001 = vmatpush.msra.mxu0 %v2332
    %4002 = vmatmul.f32.gmra.mxu0 %v1425
    %v4003 = vpop.f32.mrf.mxu0
    %v4004 = vadd.f32 %v3984, %v4003
    %4005 = vdwg.mxu0
    %4006 = vmatpush.msra.mxu0 %v2580
    %4007 = vmatpush.msra.mxu0 %v2572
    %4008 = vmatpush.msra.mxu0 %v2564
    %4009 = vmatpush.msra.mxu0 %v2556
    %4010 = vmatpush.msra.mxu0 %v2548
    %4011 = vmatpush.msra.mxu0 %v2540
    %4012 = vmatpush.msra.mxu0 %v2532
    %4013 = vmatpush.msra.mxu0 %v2524
    %4014 = vmatpush.msra.mxu0 %v2516
    %4015 = vmatpush.msra.mxu0 %v2508
    %4016 = vmatpush.msra.mxu0 %v2500
    %4017 = vmatpush.msra.mxu0 %v2492
    %4018 = vmatpush.msra.mxu0 %v2484
    %4019 = vmatpush.msra.mxu0 %v2476
    %4020 = vmatpush.msra.mxu0 %v2468
    %4021 = vmatpush.msra.mxu0 %v2460
    %4022 = vmatmul.f32.gmra.mxu0 %v1426
    %v4023 = vpop.f32.mrf.mxu0
    %v4024 = vadd.f32 %v4004, %v4023
    %4025 = vdwg.mxu0
    %4026 = vmatpush.msra.mxu0 %v2708
    %4027 = vmatpush.msra.mxu0 %v2700
    %4028 = vmatpush.msra.mxu0 %v2692
    %4029 = vmatpush.msra.mxu0 %v2684
    %4030 = vmatpush.msra.mxu0 %v2676
    %4031 = vmatpush.msra.mxu0 %v2668
    %4032 = vmatpush.msra.mxu0 %v2660
    %4033 = vmatpush.msra.mxu0 %v2652
    %4034 = vmatpush.msra.mxu0 %v2644
    %4035 = vmatpush.msra.mxu0 %v2636
    %4036 = vmatpush.msra.mxu0 %v2628
    %4037 = vmatpush.msra.mxu0 %v2620
    %4038 = vmatpush.msra.mxu0 %v2612
    %4039 = vmatpush.msra.mxu0 %v2604
    %4040 = vmatpush.msra.mxu0 %v2596
    %4041 = vmatpush.msra.mxu0 %v2588
    %4042 = vmatmul.f32.gmra.mxu0 %v1427
    %v4043 = vpop.f32.mrf.mxu0
    %v4044 = vadd.f32 %v4024, %v4043
    %4045 = vdwg.mxu0
    %4046 = vmatpush.msra.mxu0 %v2836
    %4047 = vmatpush.msra.mxu0 %v2828
    %4048 = vmatpush.msra.mxu0 %v2820
    %4049 = vmatpush.msra.mxu0 %v2812
    %4050 = vmatpush.msra.mxu0 %v2804
    %4051 = vmatpush.msra.mxu0 %v2796
    %4052 = vmatpush.msra.mxu0 %v2788
    %4053 = vmatpush.msra.mxu0 %v2780
    %4054 = vmatpush.msra.mxu0 %v2772
    %4055 = vmatpush.msra.mxu0 %v2764
    %4056 = vmatpush.msra.mxu0 %v2756
    %4057 = vmatpush.msra.mxu0 %v2748
    %4058 = vmatpush.msra.mxu0 %v2740
    %4059 = vmatpush.msra.mxu0 %v2732
    %4060 = vmatpush.msra.mxu0 %v2724
    %4061 = vmatpush.msra.mxu0 %v2716
    %4062 = vmatmul.f32.gmra.mxu0 %v1428
    %v4063 = vpop.f32.mrf.mxu0
    %v4064 = vadd.f32 %v4044, %v4063
    %4065 = vdwg.mxu0
    %4066 = vmatpush.msra.mxu0 %v2964
    %4067 = vmatpush.msra.mxu0 %v2956
    %4068 = vmatpush.msra.mxu0 %v2948
    %4069 = vmatpush.msra.mxu0 %v2940
    %4070 = vmatpush.msra.mxu0 %v2932
    %4071 = vmatpush.msra.mxu0 %v2924
    %4072 = vmatpush.msra.mxu0 %v2916
    %4073 = vmatpush.msra.mxu0 %v2908
    %4074 = vmatpush.msra.mxu0 %v2900
    %4075 = vmatpush.msra.mxu0 %v2892
    %4076 = vmatpush.msra.mxu0 %v2884
    %4077 = vmatpush.msra.mxu0 %v2876
    %4078 = vmatpush.msra.mxu0 %v2868
    %4079 = vmatpush.msra.mxu0 %v2860
    %4080 = vmatpush.msra.mxu0 %v2852
    %4081 = vmatpush.msra.mxu0 %v2844
    %4082 = vmatmul.f32.gmra.mxu0 %v1429
    %v4083 = vpop.f32.mrf.mxu0
    %v4084 = vadd.f32 %v4064, %v4083
    %4085 = vdwg.mxu0
    %4086 = vmatpush.msra.mxu0 %v2069
    %4087 = vmatpush.msra.mxu0 %v2061
    %4088 = vmatpush.msra.mxu0 %v2053
    %4089 = vmatpush.msra.mxu0 %v2045
    %4090 = vmatpush.msra.mxu0 %v2037
    %4091 = vmatpush.msra.mxu0 %v2029
    %4092 = vmatpush.msra.mxu0 %v2021
    %4093 = vmatpush.msra.mxu0 %v2013
    %4094 = vmatpush.msra.mxu0 %v2005
    %4095 = vmatpush.msra.mxu0 %v1997
    %4096 = vmatpush.msra.mxu0 %v1989
    %4097 = vmatpush.msra.mxu0 %v1981
    %4098 = vmatpush.msra.mxu0 %v1973
    %4099 = vmatpush.msra.mxu0 %v1965
    %4100 = vmatpush.msra.mxu0 %v1957
    %4101 = vmatpush.msra.mxu0 %v1949
    %4102 = vmatmul.f32.gmra.mxu0 %v1422
    %v4103 = vpop.f32.mrf.mxu0
    %v4104 = vadd.f32 0.0, %v4103
    %4105 = vdwg.mxu0
    %4106 = vmatpush.msra.mxu0 %v2197
    %4107 = vmatpush.msra.mxu0 %v2189
    %4108 = vmatpush.msra.mxu0 %v2181
    %4109 = vmatpush.msra.mxu0 %v2173
    %4110 = vmatpush.msra.mxu0 %v2165
    %4111 = vmatpush.msra.mxu0 %v2157
    %4112 = vmatpush.msra.mxu0 %v2149
    %4113 = vmatpush.msra.mxu0 %v2141
    %4114 = vmatpush.msra.mxu0 %v2133
    %4115 = vmatpush.msra.mxu0 %v2125
    %4116 = vmatpush.msra.mxu0 %v2117
    %4117 = vmatpush.msra.mxu0 %v2109
    %4118 = vmatpush.msra.mxu0 %v2101
    %4119 = vmatpush.msra.mxu0 %v2093
    %4120 = vmatpush.msra.mxu0 %v2085
    %4121 = vmatpush.msra.mxu0 %v2077
    %4122 = vmatmul.f32.gmra.mxu0 %v1423
    %v4123 = vpop.f32.mrf.mxu0
    %v4124 = vadd.f32 %v4104, %v4123
    %4125 = vdwg.mxu0
    %4126 = vmatpush.msra.mxu0 %v2325
    %4127 = vmatpush.msra.mxu0 %v2317
    %4128 = vmatpush.msra.mxu0 %v2309
    %4129 = vmatpush.msra.mxu0 %v2301
    %4130 = vmatpush.msra.mxu0 %v2293
    %4131 = vmatpush.msra.mxu0 %v2285
    %4132 = vmatpush.msra.mxu0 %v2277
    %4133 = vmatpush.msra.mxu0 %v2269
    %4134 = vmatpush.msra.mxu0 %v2261
    %4135 = vmatpush.msra.mxu0 %v2253
    %4136 = vmatpush.msra.mxu0 %v2245
    %4137 = vmatpush.msra.mxu0 %v2237
    %4138 = vmatpush.msra.mxu0 %v2229
    %4139 = vmatpush.msra.mxu0 %v2221
    %4140 = vmatpush.msra.mxu0 %v2213
    %4141 = vmatpush.msra.mxu0 %v2205
    %4142 = vmatmul.f32.gmra.mxu0 %v1424
    %v4143 = vpop.f32.mrf.mxu0
    %v4144 = vadd.f32 %v4124, %v4143
    %4145 = vdwg.mxu0
    %4146 = vmatpush.msra.mxu0 %v2453
    %4147 = vmatpush.msra.mxu0 %v2445
    %4148 = vmatpush.msra.mxu0 %v2437
    %4149 = vmatpush.msra.mxu0 %v2429
    %4150 = vmatpush.msra.mxu0 %v2421
    %4151 = vmatpush.msra.mxu0 %v2413
    %4152 = vmatpush.msra.mxu0 %v2405
    %4153 = vmatpush.msra.mxu0 %v2397
    %4154 = vmatpush.msra.mxu0 %v2389
    %4155 = vmatpush.msra.mxu0 %v2381
    %4156 = vmatpush.msra.mxu0 %v2373
    %4157 = vmatpush.msra.mxu0 %v2365
    %4158 = vmatpush.msra.mxu0 %v2357
    %4159 = vmatpush.msra.mxu0 %v2349
    %4160 = vmatpush.msra.mxu0 %v2341
    %4161 = vmatpush.msra.mxu0 %v2333
    %4162 = vmatmul.f32.gmra.mxu0 %v1425
    %v4163 = vpop.f32.mrf.mxu0
    %v4164 = vadd.f32 %v4144, %v4163
    %4165 = vdwg.mxu0
    %4166 = vmatpush.msra.mxu0 %v2581
    %4167 = vmatpush.msra.mxu0 %v2573
    %4168 = vmatpush.msra.mxu0 %v2565
    %4169 = vmatpush.msra.mxu0 %v2557
    %4170 = vmatpush.msra.mxu0 %v2549
    %4171 = vmatpush.msra.mxu0 %v2541
    %4172 = vmatpush.msra.mxu0 %v2533
    %4173 = vmatpush.msra.mxu0 %v2525
    %4174 = vmatpush.msra.mxu0 %v2517
    %4175 = vmatpush.msra.mxu0 %v2509
    %4176 = vmatpush.msra.mxu0 %v2501
    %4177 = vmatpush.msra.mxu0 %v2493
    %4178 = vmatpush.msra.mxu0 %v2485
    %4179 = vmatpush.msra.mxu0 %v2477
    %4180 = vmatpush.msra.mxu0 %v2469
    %4181 = vmatpush.msra.mxu0 %v2461
    %4182 = vmatmul.f32.gmra.mxu0 %v1426
    %v4183 = vpop.f32.mrf.mxu0
    %v4184 = vadd.f32 %v4164, %v4183
    %4185 = vdwg.mxu0
    %4186 = vmatpush.msra.mxu0 %v2709
    %4187 = vmatpush.msra.mxu0 %v2701
    %4188 = vmatpush.msra.mxu0 %v2693
    %4189 = vmatpush.msra.mxu0 %v2685
    %4190 = vmatpush.msra.mxu0 %v2677
    %4191 = vmatpush.msra.mxu0 %v2669
    %4192 = vmatpush.msra.mxu0 %v2661
    %4193 = vmatpush.msra.mxu0 %v2653
    %4194 = vmatpush.msra.mxu0 %v2645
    %4195 = vmatpush.msra.mxu0 %v2637
    %4196 = vmatpush.msra.mxu0 %v2629
    %4197 = vmatpush.msra.mxu0 %v2621
    %4198 = vmatpush.msra.mxu0 %v2613
    %4199 = vmatpush.msra.mxu0 %v2605
    %4200 = vmatpush.msra.mxu0 %v2597
    %4201 = vmatpush.msra.mxu0 %v2589
    %4202 = vmatmul.f32.gmra.mxu0 %v1427
    %v4203 = vpop.f32.mrf.mxu0
    %v4204 = vadd.f32 %v4184, %v4203
    %4205 = vdwg.mxu0
    %4206 = vmatpush.msra.mxu0 %v2837
    %4207 = vmatpush.msra.mxu0 %v2829
    %4208 = vmatpush.msra.mxu0 %v2821
    %4209 = vmatpush.msra.mxu0 %v2813
    %4210 = vmatpush.msra.mxu0 %v2805
    %4211 = vmatpush.msra.mxu0 %v2797
    %4212 = vmatpush.msra.mxu0 %v2789
    %4213 = vmatpush.msra.mxu0 %v2781
    %4214 = vmatpush.msra.mxu0 %v2773
    %4215 = vmatpush.msra.mxu0 %v2765
    %4216 = vmatpush.msra.mxu0 %v2757
    %4217 = vmatpush.msra.mxu0 %v2749
    %4218 = vmatpush.msra.mxu0 %v2741
    %4219 = vmatpush.msra.mxu0 %v2733
    %4220 = vmatpush.msra.mxu0 %v2725
    %4221 = vmatpush.msra.mxu0 %v2717
    %4222 = vmatmul.f32.gmra.mxu0 %v1428
    %v4223 = vpop.f32.mrf.mxu0
    %v4224 = vadd.f32 %v4204, %v4223
    %4225 = vdwg.mxu0
    %4226 = vmatpush.msra.mxu0 %v2965
    %4227 = vmatpush.msra.mxu0 %v2957
    %4228 = vmatpush.msra.mxu0 %v2949
    %4229 = vmatpush.msra.mxu0 %v2941
    %4230 = vmatpush.msra.mxu0 %v2933
    %4231 = vmatpush.msra.mxu0 %v2925
    %4232 = vmatpush.msra.mxu0 %v2917
    %4233 = vmatpush.msra.mxu0 %v2909
    %4234 = vmatpush.msra.mxu0 %v2901
    %4235 = vmatpush.msra.mxu0 %v2893
    %4236 = vmatpush.msra.mxu0 %v2885
    %4237 = vmatpush.msra.mxu0 %v2877
    %4238 = vmatpush.msra.mxu0 %v2869
    %4239 = vmatpush.msra.mxu0 %v2861
    %4240 = vmatpush.msra.mxu0 %v2853
    %4241 = vmatpush.msra.mxu0 %v2845
    %4242 = vmatmul.f32.gmra.mxu0 %v1429
    %v4243 = vpop.f32.mrf.mxu0
    %v4244 = vadd.f32 %v4224, %v4243
    %4245 = vdwg.mxu0
    %v4246 = vrot.slane %v3124, 4
    %v4247 = vadd.f32 %v3124, %v4246
    %v4248 = vrot.slane %v4247, 2
    %v4249 = vadd.f32 %v4247, %v4248
    %v4250 = vrot.slane %v4249, 1
    %v4251 = vadd.f32 %v4249, %v4250
    %v4252 = vrot.slane %v3284, 4
    %v4253 = vadd.f32 %v3284, %v4252
    %v4254 = vrot.slane %v4253, 2
    %v4255 = vadd.f32 %v4253, %v4254
    %v4256 = vrot.slane %v4255, 1
    %v4257 = vadd.f32 %v4255, %v4256
    %v4258 = vrot.slane %v3444, 4
    %v4259 = vadd.f32 %v3444, %v4258
    %v4260 = vrot.slane %v4259, 2
    %v4261 = vadd.f32 %v4259, %v4260
    %v4262 = vrot.slane %v4261, 1
    %v4263 = vadd.f32 %v4261, %v4262
    %v4264 = vrot.slane %v3604, 4
    %v4265 = vadd.f32 %v3604, %v4264
    %v4266 = vrot.slane %v4265, 2
    %v4267 = vadd.f32 %v4265, %v4266
    %v4268 = vrot.slane %v4267, 1
    %v4269 = vadd.f32 %v4267, %v4268
    %v4270 = vrot.slane %v3764, 4
    %v4271 = vadd.f32 %v3764, %v4270
    %v4272 = vrot.slane %v4271, 2
    %v4273 = vadd.f32 %v4271, %v4272
    %v4274 = vrot.slane %v4273, 1
    %v4275 = vadd.f32 %v4273, %v4274
    %v4276 = vrot.slane %v3924, 4
    %v4277 = vadd.f32 %v3924, %v4276
    %v4278 = vrot.slane %v4277, 2
    %v4279 = vadd.f32 %v4277, %v4278
    %v4280 = vrot.slane %v4279, 1
    %v4281 = vadd.f32 %v4279, %v4280
    %v4282 = vrot.slane %v4084, 4
    %v4283 = vadd.f32 %v4084, %v4282
    %v4284 = vrot.slane %v4283, 2
    %v4285 = vadd.f32 %v4283, %v4284
    %v4286 = vrot.slane %v4285, 1
    %v4287 = vadd.f32 %v4285, %v4286
    %v4288 = vrot.slane %v4244, 4
    %v4289 = vadd.f32 %v4244, %v4288
    %v4290 = vrot.slane %v4289, 2
    %v4291 = vadd.f32 %v4289, %v4290
    %v4292 = vrot.slane %v4291, 1
    %v4293 = vadd.f32 %v4291, %v4292
    %v4294 = vmul.f32 %v4251, %v1245
    %v4295 = vmul.f32 %v4257, %v1245
    %v4296 = vmul.f32 %v4263, %v1245
    %v4297 = vmul.f32 %v4269, %v1245
    %v4298 = vmul.f32 %v4275, %v1245
    %v4299 = vmul.f32 %v4281, %v1245
    %v4300 = vmul.f32 %v4287, %v1245
    %v4301 = vmul.f32 %v4293, %v1245
    %v4302 = vsub.f32 %v3124, %v4294
    %v4303 = vsub.f32 %v3284, %v4295
    %v4304 = vsub.f32 %v3444, %v4296
    %v4305 = vsub.f32 %v3604, %v4297
    %v4306 = vsub.f32 %v3764, %v4298
    %v4307 = vsub.f32 %v3924, %v4299
    %v4308 = vsub.f32 %v4084, %v4300
    %v4309 = vsub.f32 %v4244, %v4301
    %v4310 = vmul.f32 %v4302, %v4302
    %v4311 = vmul.f32 %v4303, %v4303
    %v4312 = vmul.f32 %v4304, %v4304
    %v4313 = vmul.f32 %v4305, %v4305
    %v4314 = vmul.f32 %v4306, %v4306
    %v4315 = vmul.f32 %v4307, %v4307
    %v4316 = vmul.f32 %v4308, %v4308
    %v4317 = vmul.f32 %v4309, %v4309
    %v4318 = vrot.slane %v4310, 4
    %v4319 = vadd.f32 %v4310, %v4318
    %v4320 = vrot.slane %v4319, 2
    %v4321 = vadd.f32 %v4319, %v4320
    %v4322 = vrot.slane %v4321, 1
    %v4323 = vadd.f32 %v4321, %v4322
    %v4324 = vrot.slane %v4311, 4
    %v4325 = vadd.f32 %v4311, %v4324
    %v4326 = vrot.slane %v4325, 2
    %v4327 = vadd.f32 %v4325, %v4326
    %v4328 = vrot.slane %v4327, 1
    %v4329 = vadd.f32 %v4327, %v4328
    %v4330 = vrot.slane %v4312, 4
    %v4331 = vadd.f32 %v4312, %v4330
    %v4332 = vrot.slane %v4331, 2
    %v4333 = vadd.f32 %v4331, %v4332
    %v4334 = vrot.slane %v4333, 1
    %v4335 = vadd.f32 %v4333, %v4334
    %v4336 = vrot.slane %v4313, 4
    %v4337 = vadd.f32 %v4313, %v4336
    %v4338 = vrot.slane %v4337, 2
    %v4339 = vadd.f32 %v4337, %v4338
    %v4340 = vrot.slane %v4339, 1
    %v4341 = vadd.f32 %v4339, %v4340
    %v4342 = vrot.slane %v4314, 4
    %v4343 = vadd.f32 %v4314, %v4342
    %v4344 = vrot.slane %v4343, 2
    %v4345 = vadd.f32 %v4343, %v4344
    %v4346 = vrot.slane %v4345, 1
    %v4347 = vadd.f32 %v4345, %v4346
    %v4348 = vrot.slane %v4315, 4
    %v4349 = vadd.f32 %v4315, %v4348
    %v4350 = vrot.slane %v4349, 2
    %v4351 = vadd.f32 %v4349, %v4350
    %v4352 = vrot.slane %v4351, 1
    %v4353 = vadd.f32 %v4351, %v4352
    %v4354 = vrot.slane %v4316, 4
    %v4355 = vadd.f32 %v4316, %v4354
    %v4356 = vrot.slane %v4355, 2
    %v4357 = vadd.f32 %v4355, %v4356
    %v4358 = vrot.slane %v4357, 1
    %v4359 = vadd.f32 %v4357, %v4358
    %v4360 = vrot.slane %v4317, 4
    %v4361 = vadd.f32 %v4317, %v4360
    %v4362 = vrot.slane %v4361, 2
    %v4363 = vadd.f32 %v4361, %v4362
    %v4364 = vrot.slane %v4363, 1
    %v4365 = vadd.f32 %v4363, %v4364
    %v4366 = vmul.f32 %v4323, %v1245
    %v4367 = vmul.f32 %v4329, %v1245
    %v4368 = vmul.f32 %v4335, %v1245
    %v4369 = vmul.f32 %v4341, %v1245
    %v4370 = vmul.f32 %v4347, %v1245
    %v4371 = vmul.f32 %v4353, %v1245
    %v4372 = vmul.f32 %v4359, %v1245
    %v4373 = vmul.f32 %v4365, %v1245
    %v4374 = vadd.f32 %v4366, 1e-05
    %v4375 = vadd.f32 %v4367, 1e-05
    %v4376 = vadd.f32 %v4368, 1e-05
    %v4377 = vadd.f32 %v4369, 1e-05
    %v4378 = vadd.f32 %v4370, 1e-05
    %v4379 = vadd.f32 %v4371, 1e-05
    %v4380 = vadd.f32 %v4372, 1e-05
    %v4381 = vadd.f32 %v4373, 1e-05
    %v4382 = vrsqrt.pop %v4374
    %v4383 = vmul.f32 %v4382, %v4374
    %v4384 = vmul.f32 %v4383, %v4382
    %v4385 = vmul.f32 0.5, %v4384
    %v4386 = vsub.f32 1.5, %v4385
    %v4387 = vmul.f32 %v4382, %v4386
    %vm4388 = vweird.f32 %v4374
    %vm4389 = vweird.f32 %v4382
    %vm4390 = vmor %vm4388, %vm4389
    %v4391 = vsel %vm4390, %v4382, %v4387
    %v4392 = vrsqrt.pop %v4375
    %v4393 = vmul.f32 %v4392, %v4375
    %v4394 = vmul.f32 %v4393, %v4392
    %v4395 = vmul.f32 0.5, %v4394
    %v4396 = vsub.f32 1.5, %v4395
    %v4397 = vmul.f32 %v4392, %v4396
    %vm4398 = vweird.f32 %v4375
    %vm4399 = vweird.f32 %v4392
    %vm4400 = vmor %vm4398, %vm4399
    %v4401 = vsel %vm4400, %v4392, %v4397
    %v4402 = vrsqrt.pop %v4376
    %v4403 = vmul.f32 %v4402, %v4376
    %v4404 = vmul.f32 %v4403, %v4402
    %v4405 = vmul.f32 0.5, %v4404
    %v4406 = vsub.f32 1.5, %v4405
    %v4407 = vmul.f32 %v4402, %v4406
    %vm4408 = vweird.f32 %v4376
    %vm4409 = vweird.f32 %v4402
    %vm4410 = vmor %vm4408, %vm4409
    %v4411 = vsel %vm4410, %v4402, %v4407
    %v4412 = vrsqrt.pop %v4377
    %v4413 = vmul.f32 %v4412, %v4377
    %v4414 = vmul.f32 %v4413, %v4412
    %v4415 = vmul.f32 0.5, %v4414
    %v4416 = vsub.f32 1.5, %v4415
    %v4417 = vmul.f32 %v4412, %v4416
    %vm4418 = vweird.f32 %v4377
    %vm4419 = vweird.f32 %v4412
    %vm4420 = vmor %vm4418, %vm4419
    %v4421 = vsel %vm4420, %v4412, %v4417
    %v4422 = vrsqrt.pop %v4378
    %v4423 = vmul.f32 %v4422, %v4378
    %v4424 = vmul.f32 %v4423, %v4422
    %v4425 = vmul.f32 0.5, %v4424
    %v4426 = vsub.f32 1.5, %v4425
    %v4427 = vmul.f32 %v4422, %v4426
    %vm4428 = vweird.f32 %v4378
    %vm4429 = vweird.f32 %v4422
    %vm4430 = vmor %vm4428, %vm4429
    %v4431 = vsel %vm4430, %v4422, %v4427
    %v4432 = vrsqrt.pop %v4379
    %v4433 = vmul.f32 %v4432, %v4379
    %v4434 = vmul.f32 %v4433, %v4432
    %v4435 = vmul.f32 0.5, %v4434
    %v4436 = vsub.f32 1.5, %v4435
    %v4437 = vmul.f32 %v4432, %v4436
    %vm4438 = vweird.f32 %v4379
    %vm4439 = vweird.f32 %v4432
    %vm4440 = vmor %vm4438, %vm4439
    %v4441 = vsel %vm4440, %v4432, %v4437
    %v4442 = vrsqrt.pop %v4380
    %v4443 = vmul.f32 %v4442, %v4380
    %v4444 = vmul.f32 %v4443, %v4442
    %v4445 = vmul.f32 0.5, %v4444
    %v4446 = vsub.f32 1.5, %v4445
    %v4447 = vmul.f32 %v4442, %v4446
    %vm4448 = vweird.f32 %v4380
    %vm4449 = vweird.f32 %v4442
    %vm4450 = vmor %vm4448, %vm4449
    %v4451 = vsel %vm4450, %v4442, %v4447
    %v4452 = vrsqrt.pop %v4381
    %v4453 = vmul.f32 %v4452, %v4381
    %v4454 = vmul.f32 %v4453, %v4452
    %v4455 = vmul.f32 0.5, %v4454
    %v4456 = vsub.f32 1.5, %v4455
    %v4457 = vmul.f32 %v4452, %v4456
    %vm4458 = vweird.f32 %v4381
    %vm4459 = vweird.f32 %v4452
    %vm4460 = vmor %vm4458, %vm4459
    %v4461 = vsel %vm4460, %v4452, %v4457
    %v4462 = vmul.f32 %v4302, %v4391
    %v4463 = vmul.f32 %v4303, %v4401
    %v4464 = vmul.f32 %v4304, %v4411
    %v4465 = vmul.f32 %v4305, %v4421
    %v4466 = vmul.f32 %v4306, %v4431
    %v4467 = vmul.f32 %v4307, %v4441
    %v4468 = vmul.f32 %v4308, %v4451
    %v4469 = vmul.f32 %v4309, %v4461
    %v4470 = vmax.f32 %v4462, 0.0
    %v4471 = vmax.f32 %v4463, 0.0
    %v4472 = vmax.f32 %v4464, 0.0
    %v4473 = vmax.f32 %v4465, 0.0
    %v4474 = vmax.f32 %v4466, 0.0
    %v4475 = vmax.f32 %v4467, 0.0
    %v4476 = vmax.f32 %v4468, 0.0
    %v4477 = vmax.f32 %v4469, 0.0
    %v4478 = vld [vmem:[#allocation8] sm:$0xff]
    %v4479 = vld [vmem:[#allocation8 + $0x8] sm:$0xff]
    %v4480 = vld [vmem:[#allocation8 + $0x10] sm:$0xff]
    %v4481 = vld [vmem:[#allocation8 + $0x18] sm:$0xff]
    %v4482 = vld [vmem:[#allocation8 + $0x20] sm:$0xff]
    %v4483 = vld [vmem:[#allocation8 + $0x28] sm:$0xff]
    %v4484 = vld [vmem:[#allocation8 + $0x30] sm:$0xff]
    %v4485 = vld [vmem:[#allocation8 + $0x38] sm:$0xff]
    %v4486 = vld [vmem:[#allocation8 + $0x40] sm:$0xff]
    %v4487 = vld [vmem:[#allocation8 + $0x48] sm:$0xff]
    %v4488 = vld [vmem:[#allocation8 + $0x50] sm:$0xff]
    %v4489 = vld [vmem:[#allocation8 + $0x58] sm:$0xff]
    %v4490 = vld [vmem:[#allocation8 + $0x60] sm:$0xff]
    %v4491 = vld [vmem:[#allocation8 + $0x68] sm:$0xff]
    %v4492 = vld [vmem:[#allocation8 + $0x70] sm:$0xff]
    %v4493 = vld [vmem:[#allocation8 + $0x78] sm:$0xff]
    %v4494 = vld [vmem:[#allocation8 + $0x80] sm:$0xff]
    %v4495 = vld [vmem:[#allocation8 + $0x88] sm:$0xff]
    %v4496 = vld [vmem:[#allocation8 + $0x90] sm:$0xff]
    %v4497 = vld [vmem:[#allocation8 + $0x98] sm:$0xff]
    %v4498 = vld [vmem:[#allocation8 + $0xa0] sm:$0xff]
    %v4499 = vld [vmem:[#allocation8 + $0xa8] sm:$0xff]
    %v4500 = vld [vmem:[#allocation8 + $0xb0] sm:$0xff]
    %v4501 = vld [vmem:[#allocation8 + $0xb8] sm:$0xff]
    %v4502 = vld [vmem:[#allocation8 + $0xc0] sm:$0xff]
    %v4503 = vld [vmem:[#allocation8 + $0xc8] sm:$0xff]
    %v4504 = vld [vmem:[#allocation8 + $0xd0] sm:$0xff]
    %v4505 = vld [vmem:[#allocation8 + $0xd8] sm:$0xff]
    %v4506 = vld [vmem:[#allocation8 + $0xe0] sm:$0xff]
    %v4507 = vld [vmem:[#allocation8 + $0xe8] sm:$0xff]
    %v4508 = vld [vmem:[#allocation8 + $0xf0] sm:$0xff]
    %v4509 = vld [vmem:[#allocation8 + $0xf8] sm:$0xff]
    %v4510 = vld [vmem:[#allocation8 + $0x100] sm:$0xff]
    %v4511 = vld [vmem:[#allocation8 + $0x108] sm:$0xff]
    %v4512 = vld [vmem:[#allocation8 + $0x110] sm:$0xff]
    %v4513 = vld [vmem:[#allocation8 + $0x118] sm:$0xff]
    %v4514 = vld [vmem:[#allocation8 + $0x120] sm:$0xff]
    %v4515 = vld [vmem:[#allocation8 + $0x128] sm:$0xff]
    %v4516 = vld [vmem:[#allocation8 + $0x130] sm:$0xff]
    %v4517 = vld [vmem:[#allocation8 + $0x138] sm:$0xff]
    %v4518 = vld [vmem:[#allocation8 + $0x140] sm:$0xff]
    %v4519 = vld [vmem:[#allocation8 + $0x148] sm:$0xff]
    %v4520 = vld [vmem:[#allocation8 + $0x150] sm:$0xff]
    %v4521 = vld [vmem:[#allocation8 + $0x158] sm:$0xff]
    %v4522 = vld [vmem:[#allocation8 + $0x160] sm:$0xff]
    %v4523 = vld [vmem:[#allocation8 + $0x168] sm:$0xff]
    %v4524 = vld [vmem:[#allocation8 + $0x170] sm:$0xff]
    %v4525 = vld [vmem:[#allocation8 + $0x178] sm:$0xff]
    %v4526 = vld [vmem:[#allocation8 + $0x180] sm:$0xff]
    %v4527 = vld [vmem:[#allocation8 + $0x188] sm:$0xff]
    %v4528 = vld [vmem:[#allocation8 + $0x190] sm:$0xff]
    %v4529 = vld [vmem:[#allocation8 + $0x198] sm:$0xff]
    %v4530 = vld [vmem:[#allocation8 + $0x1a0] sm:$0xff]
    %v4531 = vld [vmem:[#allocation8 + $0x1a8] sm:$0xff]
    %v4532 = vld [vmem:[#allocation8 + $0x1b0] sm:$0xff]
    %v4533 = vld [vmem:[#allocation8 + $0x1b8] sm:$0xff]
    %v4534 = vld [vmem:[#allocation8 + $0x1c0] sm:$0xff]
    %v4535 = vld [vmem:[#allocation8 + $0x1c8] sm:$0xff]
    %v4536 = vld [vmem:[#allocation8 + $0x1d0] sm:$0xff]
    %v4537 = vld [vmem:[#allocation8 + $0x1d8] sm:$0xff]
    %v4538 = vld [vmem:[#allocation8 + $0x1e0] sm:$0xff]
    %v4539 = vld [vmem:[#allocation8 + $0x1e8] sm:$0xff]
    %v4540 = vld [vmem:[#allocation8 + $0x1f0] sm:$0xff]
    %v4541 = vld [vmem:[#allocation8 + $0x1f8] sm:$0xff]
    %v4542 = vld [vmem:[#allocation8 + $0x200] sm:$0xff]
    %v4543 = vld [vmem:[#allocation8 + $0x208] sm:$0xff]
    %v4544 = vld [vmem:[#allocation8 + $0x210] sm:$0xff]
    %v4545 = vld [vmem:[#allocation8 + $0x218] sm:$0xff]
    %v4546 = vld [vmem:[#allocation8 + $0x220] sm:$0xff]
    %v4547 = vld [vmem:[#allocation8 + $0x228] sm:$0xff]
    %v4548 = vld [vmem:[#allocation8 + $0x230] sm:$0xff]
    %v4549 = vld [vmem:[#allocation8 + $0x238] sm:$0xff]
    %v4550 = vld [vmem:[#allocation8 + $0x240] sm:$0xff]
    %v4551 = vld [vmem:[#allocation8 + $0x248] sm:$0xff]
    %v4552 = vld [vmem:[#allocation8 + $0x250] sm:$0xff]
    %v4553 = vld [vmem:[#allocation8 + $0x258] sm:$0xff]
    %v4554 = vld [vmem:[#allocation8 + $0x260] sm:$0xff]
    %v4555 = vld [vmem:[#allocation8 + $0x268] sm:$0xff]
    %v4556 = vld [vmem:[#allocation8 + $0x270] sm:$0xff]
    %v4557 = vld [vmem:[#allocation8 + $0x278] sm:$0xff]
    %v4558 = vld [vmem:[#allocation8 + $0x280] sm:$0xff]
    %v4559 = vld [vmem:[#allocation8 + $0x288] sm:$0xff]
    %v4560 = vld [vmem:[#allocation8 + $0x290] sm:$0xff]
    %v4561 = vld [vmem:[#allocation8 + $0x298] sm:$0xff]
    %v4562 = vld [vmem:[#allocation8 + $0x2a0] sm:$0xff]
    %v4563 = vld [vmem:[#allocation8 + $0x2a8] sm:$0xff]
    %v4564 = vld [vmem:[#allocation8 + $0x2b0] sm:$0xff]
    %v4565 = vld [vmem:[#allocation8 + $0x2b8] sm:$0xff]
    %v4566 = vld [vmem:[#allocation8 + $0x2c0] sm:$0xff]
    %v4567 = vld [vmem:[#allocation8 + $0x2c8] sm:$0xff]
    %v4568 = vld [vmem:[#allocation8 + $0x2d0] sm:$0xff]
    %v4569 = vld [vmem:[#allocation8 + $0x2d8] sm:$0xff]
    %v4570 = vld [vmem:[#allocation8 + $0x2e0] sm:$0xff]
    %v4571 = vld [vmem:[#allocation8 + $0x2e8] sm:$0xff]
    %v4572 = vld [vmem:[#allocation8 + $0x2f0] sm:$0xff]
    %v4573 = vld [vmem:[#allocation8 + $0x2f8] sm:$0xff]
    %v4574 = vld [vmem:[#allocation8 + $0x300] sm:$0xff]
    %v4575 = vld [vmem:[#allocation8 + $0x308] sm:$0xff]
    %v4576 = vld [vmem:[#allocation8 + $0x310] sm:$0xff]
    %v4577 = vld [vmem:[#allocation8 + $0x318] sm:$0xff]
    %v4578 = vld [vmem:[#allocation8 + $0x320] sm:$0xff]
    %v4579 = vld [vmem:[#allocation8 + $0x328] sm:$0xff]
    %v4580 = vld [vmem:[#allocation8 + $0x330] sm:$0xff]
    %v4581 = vld [vmem:[#allocation8 + $0x338] sm:$0xff]
    %v4582 = vld [vmem:[#allocation8 + $0x340] sm:$0xff]
    %v4583 = vld [vmem:[#allocation8 + $0x348] sm:$0xff]
    %v4584 = vld [vmem:[#allocation8 + $0x350] sm:$0xff]
    %v4585 = vld [vmem:[#allocation8 + $0x358] sm:$0xff]
    %v4586 = vld [vmem:[#allocation8 + $0x360] sm:$0xff]
    %v4587 = vld [vmem:[#allocation8 + $0x368] sm:$0xff]
    %v4588 = vld [vmem:[#allocation8 + $0x370] sm:$0xff]
    %v4589 = vld [vmem:[#allocation8 + $0x378] sm:$0xff]
    %v4590 = vld [vmem:[#allocation8 + $0x380] sm:$0xff]
    %v4591 = vld [vmem:[#allocation8 + $0x388] sm:$0xff]
    %v4592 = vld [vmem:[#allocation8 + $0x390] sm:$0xff]
    %v4593 = vld [vmem:[#allocation8 + $0x398] sm:$0xff]
    %v4594 = vld [vmem:[#allocation8 + $0x3a0] sm:$0xff]
    %v4595 = vld [vmem:[#allocation8 + $0x3a8] sm:$0xff]
    %v4596 = vld [vmem:[#allocation8 + $0x3b0] sm:$0xff]
    %v4597 = vld [vmem:[#allocation8 + $0x3b8] sm:$0xff]
    %v4598 = vld [vmem:[#allocation8 + $0x3c0] sm:$0xff]
    %v4599 = vld [vmem:[#allocation8 + $0x3c8] sm:$0xff]
    %v4600 = vld [vmem:[#allocation8 + $0x3d0] sm:$0xff]
    %v4601 = vld [vmem:[#allocation8 + $0x3d8] sm:$0xff]
    %v4602 = vld [vmem:[#allocation8 + $0x3e0] sm:$0xff]
    %v4603 = vld [vmem:[#allocation8 + $0x3e8] sm:$0xff]
    %v4604 = vld [vmem:[#allocation8 + $0x3f0] sm:$0xff]
    %v4605 = vld [vmem:[#allocation8 + $0x3f8] sm:$0xff]
    %v4606 = vld [vmem:[#allocation8 + $0x400] sm:$0xff]
    %v4607 = vld [vmem:[#allocation8 + $0x408] sm:$0xff]
    %v4608 = vld [vmem:[#allocation8 + $0x410] sm:$0xff]
    %v4609 = vld [vmem:[#allocation8 + $0x418] sm:$0xff]
    %v4610 = vld [vmem:[#allocation8 + $0x420] sm:$0xff]
    %v4611 = vld [vmem:[#allocation8 + $0x428] sm:$0xff]
    %v4612 = vld [vmem:[#allocation8 + $0x430] sm:$0xff]
    %v4613 = vld [vmem:[#allocation8 + $0x438] sm:$0xff]
    %v4614 = vld [vmem:[#allocation8 + $0x440] sm:$0xff]
    %v4615 = vld [vmem:[#allocation8 + $0x448] sm:$0xff]
    %v4616 = vld [vmem:[#allocation8 + $0x450] sm:$0xff]
    %v4617 = vld [vmem:[#allocation8 + $0x458] sm:$0xff]
    %v4618 = vld [vmem:[#allocation8 + $0x460] sm:$0xff]
    %v4619 = vld [vmem:[#allocation8 + $0x468] sm:$0xff]
    %v4620 = vld [vmem:[#allocation8 + $0x470] sm:$0xff]
    %v4621 = vld [vmem:[#allocation8 + $0x478] sm:$0xff]
    %v4622 = vld [vmem:[#allocation8 + $0x480] sm:$0xff]
    %v4623 = vld [vmem:[#allocation8 + $0x488] sm:$0xff]
    %v4624 = vld [vmem:[#allocation8 + $0x490] sm:$0xff]
    %v4625 = vld [vmem:[#allocation8 + $0x498] sm:$0xff]
    %v4626 = vld [vmem:[#allocation8 + $0x4a0] sm:$0xff]
    %v4627 = vld [vmem:[#allocation8 + $0x4a8] sm:$0xff]
    %v4628 = vld [vmem:[#allocation8 + $0x4b0] sm:$0xff]
    %v4629 = vld [vmem:[#allocation8 + $0x4b8] sm:$0xff]
    %v4630 = vld [vmem:[#allocation8 + $0x4c0] sm:$0xff]
    %v4631 = vld [vmem:[#allocation8 + $0x4c8] sm:$0xff]
    %v4632 = vld [vmem:[#allocation8 + $0x4d0] sm:$0xff]
    %v4633 = vld [vmem:[#allocation8 + $0x4d8] sm:$0xff]
    %v4634 = vld [vmem:[#allocation8 + $0x4e0] sm:$0xff]
    %v4635 = vld [vmem:[#allocation8 + $0x4e8] sm:$0xff]
    %v4636 = vld [vmem:[#allocation8 + $0x4f0] sm:$0xff]
    %v4637 = vld [vmem:[#allocation8 + $0x4f8] sm:$0xff]
    %v4638 = vld [vmem:[#allocation8 + $0x500] sm:$0xff]
    %v4639 = vld [vmem:[#allocation8 + $0x508] sm:$0xff]
    %v4640 = vld [vmem:[#allocation8 + $0x510] sm:$0xff]
    %v4641 = vld [vmem:[#allocation8 + $0x518] sm:$0xff]
    %v4642 = vld [vmem:[#allocation8 + $0x520] sm:$0xff]
    %v4643 = vld [vmem:[#allocation8 + $0x528] sm:$0xff]
    %v4644 = vld [vmem:[#allocation8 + $0x530] sm:$0xff]
    %v4645 = vld [vmem:[#allocation8 + $0x538] sm:$0xff]
    %v4646 = vld [vmem:[#allocation8 + $0x540] sm:$0xff]
    %v4647 = vld [vmem:[#allocation8 + $0x548] sm:$0xff]
    %v4648 = vld [vmem:[#allocation8 + $0x550] sm:$0xff]
    %v4649 = vld [vmem:[#allocation8 + $0x558] sm:$0xff]
    %v4650 = vld [vmem:[#allocation8 + $0x560] sm:$0xff]
    %v4651 = vld [vmem:[#allocation8 + $0x568] sm:$0xff]
    %v4652 = vld [vmem:[#allocation8 + $0x570] sm:$0xff]
    %v4653 = vld [vmem:[#allocation8 + $0x578] sm:$0xff]
    %v4654 = vld [vmem:[#allocation8 + $0x580] sm:$0xff]
    %v4655 = vld [vmem:[#allocation8 + $0x588] sm:$0xff]
    %v4656 = vld [vmem:[#allocation8 + $0x590] sm:$0xff]
    %v4657 = vld [vmem:[#allocation8 + $0x598] sm:$0xff]
    %v4658 = vld [vmem:[#allocation8 + $0x5a0] sm:$0xff]
    %v4659 = vld [vmem:[#allocation8 + $0x5a8] sm:$0xff]
    %v4660 = vld [vmem:[#allocation8 + $0x5b0] sm:$0xff]
    %v4661 = vld [vmem:[#allocation8 + $0x5b8] sm:$0xff]
    %v4662 = vld [vmem:[#allocation8 + $0x5c0] sm:$0xff]
    %v4663 = vld [vmem:[#allocation8 + $0x5c8] sm:$0xff]
    %v4664 = vld [vmem:[#allocation8 + $0x5d0] sm:$0xff]
    %v4665 = vld [vmem:[#allocation8 + $0x5d8] sm:$0xff]
    %v4666 = vld [vmem:[#allocation8 + $0x5e0] sm:$0xff]
    %v4667 = vld [vmem:[#allocation8 + $0x5e8] sm:$0xff]
    %v4668 = vld [vmem:[#allocation8 + $0x5f0] sm:$0xff]
    %v4669 = vld [vmem:[#allocation8 + $0x5f8] sm:$0xff]
    %v4670 = vld [vmem:[#allocation8 + $0x600] sm:$0xff]
    %v4671 = vld [vmem:[#allocation8 + $0x608] sm:$0xff]
    %v4672 = vld [vmem:[#allocation8 + $0x610] sm:$0xff]
    %v4673 = vld [vmem:[#allocation8 + $0x618] sm:$0xff]
    %v4674 = vld [vmem:[#allocation8 + $0x620] sm:$0xff]
    %v4675 = vld [vmem:[#allocation8 + $0x628] sm:$0xff]
    %v4676 = vld [vmem:[#allocation8 + $0x630] sm:$0xff]
    %v4677 = vld [vmem:[#allocation8 + $0x638] sm:$0xff]
    %v4678 = vld [vmem:[#allocation8 + $0x640] sm:$0xff]
    %v4679 = vld [vmem:[#allocation8 + $0x648] sm:$0xff]
    %v4680 = vld [vmem:[#allocation8 + $0x650] sm:$0xff]
    %v4681 = vld [vmem:[#allocation8 + $0x658] sm:$0xff]
    %v4682 = vld [vmem:[#allocation8 + $0x660] sm:$0xff]
    %v4683 = vld [vmem:[#allocation8 + $0x668] sm:$0xff]
    %v4684 = vld [vmem:[#allocation8 + $0x670] sm:$0xff]
    %v4685 = vld [vmem:[#allocation8 + $0x678] sm:$0xff]
    %v4686 = vld [vmem:[#allocation8 + $0x680] sm:$0xff]
    %v4687 = vld [vmem:[#allocation8 + $0x688] sm:$0xff]
    %v4688 = vld [vmem:[#allocation8 + $0x690] sm:$0xff]
    %v4689 = vld [vmem:[#allocation8 + $0x698] sm:$0xff]
    %v4690 = vld [vmem:[#allocation8 + $0x6a0] sm:$0xff]
    %v4691 = vld [vmem:[#allocation8 + $0x6a8] sm:$0xff]
    %v4692 = vld [vmem:[#allocation8 + $0x6b0] sm:$0xff]
    %v4693 = vld [vmem:[#allocation8 + $0x6b8] sm:$0xff]
    %v4694 = vld [vmem:[#allocation8 + $0x6c0] sm:$0xff]
    %v4695 = vld [vmem:[#allocation8 + $0x6c8] sm:$0xff]
    %v4696 = vld [vmem:[#allocation8 + $0x6d0] sm:$0xff]
    %v4697 = vld [vmem:[#allocation8 + $0x6d8] sm:$0xff]
    %v4698 = vld [vmem:[#allocation8 + $0x6e0] sm:$0xff]
    %v4699 = vld [vmem:[#allocation8 + $0x6e8] sm:$0xff]
    %v4700 = vld [vmem:[#allocation8 + $0x6f0] sm:$0xff]
    %v4701 = vld [vmem:[#allocation8 + $0x6f8] sm:$0xff]
    %v4702 = vld [vmem:[#allocation8 + $0x700] sm:$0xff]
    %v4703 = vld [vmem:[#allocation8 + $0x708] sm:$0xff]
    %v4704 = vld [vmem:[#allocation8 + $0x710] sm:$0xff]
    %v4705 = vld [vmem:[#allocation8 + $0x718] sm:$0xff]
    %v4706 = vld [vmem:[#allocation8 + $0x720] sm:$0xff]
    %v4707 = vld [vmem:[#allocation8 + $0x728] sm:$0xff]
    %v4708 = vld [vmem:[#allocation8 + $0x730] sm:$0xff]
    %v4709 = vld [vmem:[#allocation8 + $0x738] sm:$0xff]
    %v4710 = vld [vmem:[#allocation8 + $0x740] sm:$0xff]
    %v4711 = vld [vmem:[#allocation8 + $0x748] sm:$0xff]
    %v4712 = vld [vmem:[#allocation8 + $0x750] sm:$0xff]
    %v4713 = vld [vmem:[#allocation8 + $0x758] sm:$0xff]
    %v4714 = vld [vmem:[#allocation8 + $0x760] sm:$0xff]
    %v4715 = vld [vmem:[#allocation8 + $0x768] sm:$0xff]
    %v4716 = vld [vmem:[#allocation8 + $0x770] sm:$0xff]
    %v4717 = vld [vmem:[#allocation8 + $0x778] sm:$0xff]
    %v4718 = vld [vmem:[#allocation8 + $0x780] sm:$0xff]
    %v4719 = vld [vmem:[#allocation8 + $0x788] sm:$0xff]
    %v4720 = vld [vmem:[#allocation8 + $0x790] sm:$0xff]
    %v4721 = vld [vmem:[#allocation8 + $0x798] sm:$0xff]
    %v4722 = vld [vmem:[#allocation8 + $0x7a0] sm:$0xff]
    %v4723 = vld [vmem:[#allocation8 + $0x7a8] sm:$0xff]
    %v4724 = vld [vmem:[#allocation8 + $0x7b0] sm:$0xff]
    %v4725 = vld [vmem:[#allocation8 + $0x7b8] sm:$0xff]
    %v4726 = vld [vmem:[#allocation8 + $0x7c0] sm:$0xff]
    %v4727 = vld [vmem:[#allocation8 + $0x7c8] sm:$0xff]
    %v4728 = vld [vmem:[#allocation8 + $0x7d0] sm:$0xff]
    %v4729 = vld [vmem:[#allocation8 + $0x7d8] sm:$0xff]
    %v4730 = vld [vmem:[#allocation8 + $0x7e0] sm:$0xff]
    %v4731 = vld [vmem:[#allocation8 + $0x7e8] sm:$0xff]
    %v4732 = vld [vmem:[#allocation8 + $0x7f0] sm:$0xff]
    %v4733 = vld [vmem:[#allocation8 + $0x7f8] sm:$0xff]
    %v4734 = vld [vmem:[#allocation8 + $0x800] sm:$0xff]
    %v4735 = vld [vmem:[#allocation8 + $0x808] sm:$0xff]
    %v4736 = vld [vmem:[#allocation8 + $0x810] sm:$0xff]
    %v4737 = vld [vmem:[#allocation8 + $0x818] sm:$0xff]
    %v4738 = vld [vmem:[#allocation8 + $0x820] sm:$0xff]
    %v4739 = vld [vmem:[#allocation8 + $0x828] sm:$0xff]
    %v4740 = vld [vmem:[#allocation8 + $0x830] sm:$0xff]
    %v4741 = vld [vmem:[#allocation8 + $0x838] sm:$0xff]
    %v4742 = vld [vmem:[#allocation8 + $0x840] sm:$0xff]
    %v4743 = vld [vmem:[#allocation8 + $0x848] sm:$0xff]
    %v4744 = vld [vmem:[#allocation8 + $0x850] sm:$0xff]
    %v4745 = vld [vmem:[#allocation8 + $0x858] sm:$0xff]
    %v4746 = vld [vmem:[#allocation8 + $0x860] sm:$0xff]
    %v4747 = vld [vmem:[#allocation8 + $0x868] sm:$0xff]
    %v4748 = vld [vmem:[#allocation8 + $0x870] sm:$0xff]
    %v4749 = vld [vmem:[#allocation8 + $0x878] sm:$0xff]
    %v4750 = vld [vmem:[#allocation8 + $0x880] sm:$0xff]
    %v4751 = vld [vmem:[#allocation8 + $0x888] sm:$0xff]
    %v4752 = vld [vmem:[#allocation8 + $0x890] sm:$0xff]
    %v4753 = vld [vmem:[#allocation8 + $0x898] sm:$0xff]
    %v4754 = vld [vmem:[#allocation8 + $0x8a0] sm:$0xff]
    %v4755 = vld [vmem:[#allocation8 + $0x8a8] sm:$0xff]
    %v4756 = vld [vmem:[#allocation8 + $0x8b0] sm:$0xff]
    %v4757 = vld [vmem:[#allocation8 + $0x8b8] sm:$0xff]
    %v4758 = vld [vmem:[#allocation8 + $0x8c0] sm:$0xff]
    %v4759 = vld [vmem:[#allocation8 + $0x8c8] sm:$0xff]
    %v4760 = vld [vmem:[#allocation8 + $0x8d0] sm:$0xff]
    %v4761 = vld [vmem:[#allocation8 + $0x8d8] sm:$0xff]
    %v4762 = vld [vmem:[#allocation8 + $0x8e0] sm:$0xff]
    %v4763 = vld [vmem:[#allocation8 + $0x8e8] sm:$0xff]
    %v4764 = vld [vmem:[#allocation8 + $0x8f0] sm:$0xff]
    %v4765 = vld [vmem:[#allocation8 + $0x8f8] sm:$0xff]
    %v4766 = vld [vmem:[#allocation8 + $0x900] sm:$0xff]
    %v4767 = vld [vmem:[#allocation8 + $0x908] sm:$0xff]
    %v4768 = vld [vmem:[#allocation8 + $0x910] sm:$0xff]
    %v4769 = vld [vmem:[#allocation8 + $0x918] sm:$0xff]
    %v4770 = vld [vmem:[#allocation8 + $0x920] sm:$0xff]
    %v4771 = vld [vmem:[#allocation8 + $0x928] sm:$0xff]
    %v4772 = vld [vmem:[#allocation8 + $0x930] sm:$0xff]
    %v4773 = vld [vmem:[#allocation8 + $0x938] sm:$0xff]
    %v4774 = vld [vmem:[#allocation8 + $0x940] sm:$0xff]
    %v4775 = vld [vmem:[#allocation8 + $0x948] sm:$0xff]
    %v4776 = vld [vmem:[#allocation8 + $0x950] sm:$0xff]
    %v4777 = vld [vmem:[#allocation8 + $0x958] sm:$0xff]
    %v4778 = vld [vmem:[#allocation8 + $0x960] sm:$0xff]
    %v4779 = vld [vmem:[#allocation8 + $0x968] sm:$0xff]
    %v4780 = vld [vmem:[#allocation8 + $0x970] sm:$0xff]
    %v4781 = vld [vmem:[#allocation8 + $0x978] sm:$0xff]
    %v4782 = vld [vmem:[#allocation8 + $0x980] sm:$0xff]
    %v4783 = vld [vmem:[#allocation8 + $0x988] sm:$0xff]
    %v4784 = vld [vmem:[#allocation8 + $0x990] sm:$0xff]
    %v4785 = vld [vmem:[#allocation8 + $0x998] sm:$0xff]
    %v4786 = vld [vmem:[#allocation8 + $0x9a0] sm:$0xff]
    %v4787 = vld [vmem:[#allocation8 + $0x9a8] sm:$0xff]
    %v4788 = vld [vmem:[#allocation8 + $0x9b0] sm:$0xff]
    %v4789 = vld [vmem:[#allocation8 + $0x9b8] sm:$0xff]
    %v4790 = vld [vmem:[#allocation8 + $0x9c0] sm:$0xff]
    %v4791 = vld [vmem:[#allocation8 + $0x9c8] sm:$0xff]
    %v4792 = vld [vmem:[#allocation8 + $0x9d0] sm:$0xff]
    %v4793 = vld [vmem:[#allocation8 + $0x9d8] sm:$0xff]
    %v4794 = vld [vmem:[#allocation8 + $0x9e0] sm:$0xff]
    %v4795 = vld [vmem:[#allocation8 + $0x9e8] sm:$0xff]
    %v4796 = vld [vmem:[#allocation8 + $0x9f0] sm:$0xff]
    %v4797 = vld [vmem:[#allocation8 + $0x9f8] sm:$0xff]
    %v4798 = vld [vmem:[#allocation8 + $0xa00] sm:$0xff]
    %v4799 = vld [vmem:[#allocation8 + $0xa08] sm:$0xff]
    %v4800 = vld [vmem:[#allocation8 + $0xa10] sm:$0xff]
    %v4801 = vld [vmem:[#allocation8 + $0xa18] sm:$0xff]
    %v4802 = vld [vmem:[#allocation8 + $0xa20] sm:$0xff]
    %v4803 = vld [vmem:[#allocation8 + $0xa28] sm:$0xff]
    %v4804 = vld [vmem:[#allocation8 + $0xa30] sm:$0xff]
    %v4805 = vld [vmem:[#allocation8 + $0xa38] sm:$0xff]
    %v4806 = vld [vmem:[#allocation8 + $0xa40] sm:$0xff]
    %v4807 = vld [vmem:[#allocation8 + $0xa48] sm:$0xff]
    %v4808 = vld [vmem:[#allocation8 + $0xa50] sm:$0xff]
    %v4809 = vld [vmem:[#allocation8 + $0xa58] sm:$0xff]
    %v4810 = vld [vmem:[#allocation8 + $0xa60] sm:$0xff]
    %v4811 = vld [vmem:[#allocation8 + $0xa68] sm:$0xff]
    %v4812 = vld [vmem:[#allocation8 + $0xa70] sm:$0xff]
    %v4813 = vld [vmem:[#allocation8 + $0xa78] sm:$0xff]
    %v4814 = vld [vmem:[#allocation8 + $0xa80] sm:$0xff]
    %v4815 = vld [vmem:[#allocation8 + $0xa88] sm:$0xff]
    %v4816 = vld [vmem:[#allocation8 + $0xa90] sm:$0xff]
    %v4817 = vld [vmem:[#allocation8 + $0xa98] sm:$0xff]
    %v4818 = vld [vmem:[#allocation8 + $0xaa0] sm:$0xff]
    %v4819 = vld [vmem:[#allocation8 + $0xaa8] sm:$0xff]
    %v4820 = vld [vmem:[#allocation8 + $0xab0] sm:$0xff]
    %v4821 = vld [vmem:[#allocation8 + $0xab8] sm:$0xff]
    %v4822 = vld [vmem:[#allocation8 + $0xac0] sm:$0xff]
    %v4823 = vld [vmem:[#allocation8 + $0xac8] sm:$0xff]
    %v4824 = vld [vmem:[#allocation8 + $0xad0] sm:$0xff]
    %v4825 = vld [vmem:[#allocation8 + $0xad8] sm:$0xff]
    %v4826 = vld [vmem:[#allocation8 + $0xae0] sm:$0xff]
    %v4827 = vld [vmem:[#allocation8 + $0xae8] sm:$0xff]
    %v4828 = vld [vmem:[#allocation8 + $0xaf0] sm:$0xff]
    %v4829 = vld [vmem:[#allocation8 + $0xaf8] sm:$0xff]
    %v4830 = vld [vmem:[#allocation8 + $0xb00] sm:$0xff]
    %v4831 = vld [vmem:[#allocation8 + $0xb08] sm:$0xff]
    %v4832 = vld [vmem:[#allocation8 + $0xb10] sm:$0xff]
    %v4833 = vld [vmem:[#allocation8 + $0xb18] sm:$0xff]
    %v4834 = vld [vmem:[#allocation8 + $0xb20] sm:$0xff]
    %v4835 = vld [vmem:[#allocation8 + $0xb28] sm:$0xff]
    %v4836 = vld [vmem:[#allocation8 + $0xb30] sm:$0xff]
    %v4837 = vld [vmem:[#allocation8 + $0xb38] sm:$0xff]
    %v4838 = vld [vmem:[#allocation8 + $0xb40] sm:$0xff]
    %v4839 = vld [vmem:[#allocation8 + $0xb48] sm:$0xff]
    %v4840 = vld [vmem:[#allocation8 + $0xb50] sm:$0xff]
    %v4841 = vld [vmem:[#allocation8 + $0xb58] sm:$0xff]
    %v4842 = vld [vmem:[#allocation8 + $0xb60] sm:$0xff]
    %v4843 = vld [vmem:[#allocation8 + $0xb68] sm:$0xff]
    %v4844 = vld [vmem:[#allocation8 + $0xb70] sm:$0xff]
    %v4845 = vld [vmem:[#allocation8 + $0xb78] sm:$0xff]
    %v4846 = vld [vmem:[#allocation8 + $0xb80] sm:$0xff]
    %v4847 = vld [vmem:[#allocation8 + $0xb88] sm:$0xff]
    %v4848 = vld [vmem:[#allocation8 + $0xb90] sm:$0xff]
    %v4849 = vld [vmem:[#allocation8 + $0xb98] sm:$0xff]
    %v4850 = vld [vmem:[#allocation8 + $0xba0] sm:$0xff]
    %v4851 = vld [vmem:[#allocation8 + $0xba8] sm:$0xff]
    %v4852 = vld [vmem:[#allocation8 + $0xbb0] sm:$0xff]
    %v4853 = vld [vmem:[#allocation8 + $0xbb8] sm:$0xff]
    %v4854 = vld [vmem:[#allocation8 + $0xbc0] sm:$0xff]
    %v4855 = vld [vmem:[#allocation8 + $0xbc8] sm:$0xff]
    %v4856 = vld [vmem:[#allocation8 + $0xbd0] sm:$0xff]
    %v4857 = vld [vmem:[#allocation8 + $0xbd8] sm:$0xff]
    %v4858 = vld [vmem:[#allocation8 + $0xbe0] sm:$0xff]
    %v4859 = vld [vmem:[#allocation8 + $0xbe8] sm:$0xff]
    %v4860 = vld [vmem:[#allocation8 + $0xbf0] sm:$0xff]
    %v4861 = vld [vmem:[#allocation8 + $0xbf8] sm:$0xff]
    %v4862 = vld [vmem:[#allocation8 + $0xc00] sm:$0xff]
    %v4863 = vld [vmem:[#allocation8 + $0xc08] sm:$0xff]
    %v4864 = vld [vmem:[#allocation8 + $0xc10] sm:$0xff]
    %v4865 = vld [vmem:[#allocation8 + $0xc18] sm:$0xff]
    %v4866 = vld [vmem:[#allocation8 + $0xc20] sm:$0xff]
    %v4867 = vld [vmem:[#allocation8 + $0xc28] sm:$0xff]
    %v4868 = vld [vmem:[#allocation8 + $0xc30] sm:$0xff]
    %v4869 = vld [vmem:[#allocation8 + $0xc38] sm:$0xff]
    %v4870 = vld [vmem:[#allocation8 + $0xc40] sm:$0xff]
    %v4871 = vld [vmem:[#allocation8 + $0xc48] sm:$0xff]
    %v4872 = vld [vmem:[#allocation8 + $0xc50] sm:$0xff]
    %v4873 = vld [vmem:[#allocation8 + $0xc58] sm:$0xff]
    %v4874 = vld [vmem:[#allocation8 + $0xc60] sm:$0xff]
    %v4875 = vld [vmem:[#allocation8 + $0xc68] sm:$0xff]
    %v4876 = vld [vmem:[#allocation8 + $0xc70] sm:$0xff]
    %v4877 = vld [vmem:[#allocation8 + $0xc78] sm:$0xff]
    %v4878 = vld [vmem:[#allocation8 + $0xc80] sm:$0xff]
    %v4879 = vld [vmem:[#allocation8 + $0xc88] sm:$0xff]
    %v4880 = vld [vmem:[#allocation8 + $0xc90] sm:$0xff]
    %v4881 = vld [vmem:[#allocation8 + $0xc98] sm:$0xff]
    %v4882 = vld [vmem:[#allocation8 + $0xca0] sm:$0xff]
    %v4883 = vld [vmem:[#allocation8 + $0xca8] sm:$0xff]
    %v4884 = vld [vmem:[#allocation8 + $0xcb0] sm:$0xff]
    %v4885 = vld [vmem:[#allocation8 + $0xcb8] sm:$0xff]
    %v4886 = vld [vmem:[#allocation8 + $0xcc0] sm:$0xff]
    %v4887 = vld [vmem:[#allocation8 + $0xcc8] sm:$0xff]
    %v4888 = vld [vmem:[#allocation8 + $0xcd0] sm:$0xff]
    %v4889 = vld [vmem:[#allocation8 + $0xcd8] sm:$0xff]
    %v4890 = vld [vmem:[#allocation8 + $0xce0] sm:$0xff]
    %v4891 = vld [vmem:[#allocation8 + $0xce8] sm:$0xff]
    %v4892 = vld [vmem:[#allocation8 + $0xcf0] sm:$0xff]
    %v4893 = vld [vmem:[#allocation8 + $0xcf8] sm:$0xff]
    %v4894 = vld [vmem:[#allocation8 + $0xd00] sm:$0xff]
    %v4895 = vld [vmem:[#allocation8 + $0xd08] sm:$0xff]
    %v4896 = vld [vmem:[#allocation8 + $0xd10] sm:$0xff]
    %v4897 = vld [vmem:[#allocation8 + $0xd18] sm:$0xff]
    %v4898 = vld [vmem:[#allocation8 + $0xd20] sm:$0xff]
    %v4899 = vld [vmem:[#allocation8 + $0xd28] sm:$0xff]
    %v4900 = vld [vmem:[#allocation8 + $0xd30] sm:$0xff]
    %v4901 = vld [vmem:[#allocation8 + $0xd38] sm:$0xff]
    %v4902 = vld [vmem:[#allocation8 + $0xd40] sm:$0xff]
    %v4903 = vld [vmem:[#allocation8 + $0xd48] sm:$0xff]
    %v4904 = vld [vmem:[#allocation8 + $0xd50] sm:$0xff]
    %v4905 = vld [vmem:[#allocation8 + $0xd58] sm:$0xff]
    %v4906 = vld [vmem:[#allocation8 + $0xd60] sm:$0xff]
    %v4907 = vld [vmem:[#allocation8 + $0xd68] sm:$0xff]
    %v4908 = vld [vmem:[#allocation8 + $0xd70] sm:$0xff]
    %v4909 = vld [vmem:[#allocation8 + $0xd78] sm:$0xff]
    %v4910 = vld [vmem:[#allocation8 + $0xd80] sm:$0xff]
    %v4911 = vld [vmem:[#allocation8 + $0xd88] sm:$0xff]
    %v4912 = vld [vmem:[#allocation8 + $0xd90] sm:$0xff]
    %v4913 = vld [vmem:[#allocation8 + $0xd98] sm:$0xff]
    %v4914 = vld [vmem:[#allocation8 + $0xda0] sm:$0xff]
    %v4915 = vld [vmem:[#allocation8 + $0xda8] sm:$0xff]
    %v4916 = vld [vmem:[#allocation8 + $0xdb0] sm:$0xff]
    %v4917 = vld [vmem:[#allocation8 + $0xdb8] sm:$0xff]
    %v4918 = vld [vmem:[#allocation8 + $0xdc0] sm:$0xff]
    %v4919 = vld [vmem:[#allocation8 + $0xdc8] sm:$0xff]
    %v4920 = vld [vmem:[#allocation8 + $0xdd0] sm:$0xff]
    %v4921 = vld [vmem:[#allocation8 + $0xdd8] sm:$0xff]
    %v4922 = vld [vmem:[#allocation8 + $0xde0] sm:$0xff]
    %v4923 = vld [vmem:[#allocation8 + $0xde8] sm:$0xff]
    %v4924 = vld [vmem:[#allocation8 + $0xdf0] sm:$0xff]
    %v4925 = vld [vmem:[#allocation8 + $0xdf8] sm:$0xff]
    %v4926 = vld [vmem:[#allocation8 + $0xe00] sm:$0xff]
    %v4927 = vld [vmem:[#allocation8 + $0xe08] sm:$0xff]
    %v4928 = vld [vmem:[#allocation8 + $0xe10] sm:$0xff]
    %v4929 = vld [vmem:[#allocation8 + $0xe18] sm:$0xff]
    %v4930 = vld [vmem:[#allocation8 + $0xe20] sm:$0xff]
    %v4931 = vld [vmem:[#allocation8 + $0xe28] sm:$0xff]
    %v4932 = vld [vmem:[#allocation8 + $0xe30] sm:$0xff]
    %v4933 = vld [vmem:[#allocation8 + $0xe38] sm:$0xff]
    %v4934 = vld [vmem:[#allocation8 + $0xe40] sm:$0xff]
    %v4935 = vld [vmem:[#allocation8 + $0xe48] sm:$0xff]
    %v4936 = vld [vmem:[#allocation8 + $0xe50] sm:$0xff]
    %v4937 = vld [vmem:[#allocation8 + $0xe58] sm:$0xff]
    %v4938 = vld [vmem:[#allocation8 + $0xe60] sm:$0xff]
    %v4939 = vld [vmem:[#allocation8 + $0xe68] sm:$0xff]
    %v4940 = vld [vmem:[#allocation8 + $0xe70] sm:$0xff]
    %v4941 = vld [vmem:[#allocation8 + $0xe78] sm:$0xff]
    %v4942 = vld [vmem:[#allocation8 + $0xe80] sm:$0xff]
    %v4943 = vld [vmem:[#allocation8 + $0xe88] sm:$0xff]
    %v4944 = vld [vmem:[#allocation8 + $0xe90] sm:$0xff]
    %v4945 = vld [vmem:[#allocation8 + $0xe98] sm:$0xff]
    %v4946 = vld [vmem:[#allocation8 + $0xea0] sm:$0xff]
    %v4947 = vld [vmem:[#allocation8 + $0xea8] sm:$0xff]
    %v4948 = vld [vmem:[#allocation8 + $0xeb0] sm:$0xff]
    %v4949 = vld [vmem:[#allocation8 + $0xeb8] sm:$0xff]
    %v4950 = vld [vmem:[#allocation8 + $0xec0] sm:$0xff]
    %v4951 = vld [vmem:[#allocation8 + $0xec8] sm:$0xff]
    %v4952 = vld [vmem:[#allocation8 + $0xed0] sm:$0xff]
    %v4953 = vld [vmem:[#allocation8 + $0xed8] sm:$0xff]
    %v4954 = vld [vmem:[#allocation8 + $0xee0] sm:$0xff]
    %v4955 = vld [vmem:[#allocation8 + $0xee8] sm:$0xff]
    %v4956 = vld [vmem:[#allocation8 + $0xef0] sm:$0xff]
    %v4957 = vld [vmem:[#allocation8 + $0xef8] sm:$0xff]
    %v4958 = vld [vmem:[#allocation8 + $0xf00] sm:$0xff]
    %v4959 = vld [vmem:[#allocation8 + $0xf08] sm:$0xff]
    %v4960 = vld [vmem:[#allocation8 + $0xf10] sm:$0xff]
    %v4961 = vld [vmem:[#allocation8 + $0xf18] sm:$0xff]
    %v4962 = vld [vmem:[#allocation8 + $0xf20] sm:$0xff]
    %v4963 = vld [vmem:[#allocation8 + $0xf28] sm:$0xff]
    %v4964 = vld [vmem:[#allocation8 + $0xf30] sm:$0xff]
    %v4965 = vld [vmem:[#allocation8 + $0xf38] sm:$0xff]
    %v4966 = vld [vmem:[#allocation8 + $0xf40] sm:$0xff]
    %v4967 = vld [vmem:[#allocation8 + $0xf48] sm:$0xff]
    %v4968 = vld [vmem:[#allocation8 + $0xf50] sm:$0xff]
    %v4969 = vld [vmem:[#allocation8 + $0xf58] sm:$0xff]
    %v4970 = vld [vmem:[#allocation8 + $0xf60] sm:$0xff]
    %v4971 = vld [vmem:[#allocation8 + $0xf68] sm:$0xff]
    %v4972 = vld [vmem:[#allocation8 + $0xf70] sm:$0xff]
    %v4973 = vld [vmem:[#allocation8 + $0xf78] sm:$0xff]
    %v4974 = vld [vmem:[#allocation8 + $0xf80] sm:$0xff]
    %v4975 = vld [vmem:[#allocation8 + $0xf88] sm:$0xff]
    %v4976 = vld [vmem:[#allocation8 + $0xf90] sm:$0xff]
    %v4977 = vld [vmem:[#allocation8 + $0xf98] sm:$0xff]
    %v4978 = vld [vmem:[#allocation8 + $0xfa0] sm:$0xff]
    %v4979 = vld [vmem:[#allocation8 + $0xfa8] sm:$0xff]
    %v4980 = vld [vmem:[#allocation8 + $0xfb0] sm:$0xff]
    %v4981 = vld [vmem:[#allocation8 + $0xfb8] sm:$0xff]
    %v4982 = vld [vmem:[#allocation8 + $0xfc0] sm:$0xff]
    %v4983 = vld [vmem:[#allocation8 + $0xfc8] sm:$0xff]
    %v4984 = vld [vmem:[#allocation8 + $0xfd0] sm:$0xff]
    %v4985 = vld [vmem:[#allocation8 + $0xfd8] sm:$0xff]
    %v4986 = vld [vmem:[#allocation8 + $0xfe0] sm:$0xff]
    %v4987 = vld [vmem:[#allocation8 + $0xfe8] sm:$0xff]
    %v4988 = vld [vmem:[#allocation8 + $0xff0] sm:$0xff]
    %v4989 = vld [vmem:[#allocation8 + $0xff8] sm:$0xff]
    %v4990 = vunpack.c.l.bf16 %v4478
    %v4991 = vunpack.c.h.bf16 %v4478
    %v4992 = vunpack.c.l.bf16 %v4479
    %v4993 = vunpack.c.h.bf16 %v4479
    %v4994 = vunpack.c.l.bf16 %v4480
    %v4995 = vunpack.c.h.bf16 %v4480
    %v4996 = vunpack.c.l.bf16 %v4481
    %v4997 = vunpack.c.h.bf16 %v4481
    %v4998 = vunpack.c.l.bf16 %v4482
    %v4999 = vunpack.c.h.bf16 %v4482
    %v5000 = vunpack.c.l.bf16 %v4483
    %v5001 = vunpack.c.h.bf16 %v4483
    %v5002 = vunpack.c.l.bf16 %v4484
    %v5003 = vunpack.c.h.bf16 %v4484
    %v5004 = vunpack.c.l.bf16 %v4485
    %v5005 = vunpack.c.h.bf16 %v4485
    %v5006 = vunpack.c.l.bf16 %v4486
    %v5007 = vunpack.c.h.bf16 %v4486
    %v5008 = vunpack.c.l.bf16 %v4487
    %v5009 = vunpack.c.h.bf16 %v4487
    %v5010 = vunpack.c.l.bf16 %v4488
    %v5011 = vunpack.c.h.bf16 %v4488
    %v5012 = vunpack.c.l.bf16 %v4489
    %v5013 = vunpack.c.h.bf16 %v4489
    %v5014 = vunpack.c.l.bf16 %v4490
    %v5015 = vunpack.c.h.bf16 %v4490
    %v5016 = vunpack.c.l.bf16 %v4491
    %v5017 = vunpack.c.h.bf16 %v4491
    %v5018 = vunpack.c.l.bf16 %v4492
    %v5019 = vunpack.c.h.bf16 %v4492
    %v5020 = vunpack.c.l.bf16 %v4493
    %v5021 = vunpack.c.h.bf16 %v4493
    %v5022 = vunpack.c.l.bf16 %v4494
    %v5023 = vunpack.c.h.bf16 %v4494
    %v5024 = vunpack.c.l.bf16 %v4495
    %v5025 = vunpack.c.h.bf16 %v4495
    %v5026 = vunpack.c.l.bf16 %v4496
    %v5027 = vunpack.c.h.bf16 %v4496
    %v5028 = vunpack.c.l.bf16 %v4497
    %v5029 = vunpack.c.h.bf16 %v4497
    %v5030 = vunpack.c.l.bf16 %v4498
    %v5031 = vunpack.c.h.bf16 %v4498
    %v5032 = vunpack.c.l.bf16 %v4499
    %v5033 = vunpack.c.h.bf16 %v4499
    %v5034 = vunpack.c.l.bf16 %v4500
    %v5035 = vunpack.c.h.bf16 %v4500
    %v5036 = vunpack.c.l.bf16 %v4501
    %v5037 = vunpack.c.h.bf16 %v4501
    %v5038 = vunpack.c.l.bf16 %v4502
    %v5039 = vunpack.c.h.bf16 %v4502
    %v5040 = vunpack.c.l.bf16 %v4503
    %v5041 = vunpack.c.h.bf16 %v4503
    %v5042 = vunpack.c.l.bf16 %v4504
    %v5043 = vunpack.c.h.bf16 %v4504
    %v5044 = vunpack.c.l.bf16 %v4505
    %v5045 = vunpack.c.h.bf16 %v4505
    %v5046 = vunpack.c.l.bf16 %v4506
    %v5047 = vunpack.c.h.bf16 %v4506
    %v5048 = vunpack.c.l.bf16 %v4507
    %v5049 = vunpack.c.h.bf16 %v4507
    %v5050 = vunpack.c.l.bf16 %v4508
    %v5051 = vunpack.c.h.bf16 %v4508
    %v5052 = vunpack.c.l.bf16 %v4509
    %v5053 = vunpack.c.h.bf16 %v4509
    %v5054 = vunpack.c.l.bf16 %v4510
    %v5055 = vunpack.c.h.bf16 %v4510
    %v5056 = vunpack.c.l.bf16 %v4511
    %v5057 = vunpack.c.h.bf16 %v4511
    %v5058 = vunpack.c.l.bf16 %v4512
    %v5059 = vunpack.c.h.bf16 %v4512
    %v5060 = vunpack.c.l.bf16 %v4513
    %v5061 = vunpack.c.h.bf16 %v4513
    %v5062 = vunpack.c.l.bf16 %v4514
    %v5063 = vunpack.c.h.bf16 %v4514
    %v5064 = vunpack.c.l.bf16 %v4515
    %v5065 = vunpack.c.h.bf16 %v4515
    %v5066 = vunpack.c.l.bf16 %v4516
    %v5067 = vunpack.c.h.bf16 %v4516
    %v5068 = vunpack.c.l.bf16 %v4517
    %v5069 = vunpack.c.h.bf16 %v4517
    %v5070 = vunpack.c.l.bf16 %v4518
    %v5071 = vunpack.c.h.bf16 %v4518
    %v5072 = vunpack.c.l.bf16 %v4519
    %v5073 = vunpack.c.h.bf16 %v4519
    %v5074 = vunpack.c.l.bf16 %v4520
    %v5075 = vunpack.c.h.bf16 %v4520
    %v5076 = vunpack.c.l.bf16 %v4521
    %v5077 = vunpack.c.h.bf16 %v4521
    %v5078 = vunpack.c.l.bf16 %v4522
    %v5079 = vunpack.c.h.bf16 %v4522
    %v5080 = vunpack.c.l.bf16 %v4523
    %v5081 = vunpack.c.h.bf16 %v4523
    %v5082 = vunpack.c.l.bf16 %v4524
    %v5083 = vunpack.c.h.bf16 %v4524
    %v5084 = vunpack.c.l.bf16 %v4525
    %v5085 = vunpack.c.h.bf16 %v4525
    %v5086 = vunpack.c.l.bf16 %v4526
    %v5087 = vunpack.c.h.bf16 %v4526
    %v5088 = vunpack.c.l.bf16 %v4527
    %v5089 = vunpack.c.h.bf16 %v4527
    %v5090 = vunpack.c.l.bf16 %v4528
    %v5091 = vunpack.c.h.bf16 %v4528
    %v5092 = vunpack.c.l.bf16 %v4529
    %v5093 = vunpack.c.h.bf16 %v4529
    %v5094 = vunpack.c.l.bf16 %v4530
    %v5095 = vunpack.c.h.bf16 %v4530
    %v5096 = vunpack.c.l.bf16 %v4531
    %v5097 = vunpack.c.h.bf16 %v4531
    %v5098 = vunpack.c.l.bf16 %v4532
    %v5099 = vunpack.c.h.bf16 %v4532
    %v5100 = vunpack.c.l.bf16 %v4533
    %v5101 = vunpack.c.h.bf16 %v4533
    %v5102 = vunpack.c.l.bf16 %v4534
    %v5103 = vunpack.c.h.bf16 %v4534
    %v5104 = vunpack.c.l.bf16 %v4535
    %v5105 = vunpack.c.h.bf16 %v4535
    %v5106 = vunpack.c.l.bf16 %v4536
    %v5107 = vunpack.c.h.bf16 %v4536
    %v5108 = vunpack.c.l.bf16 %v4537
    %v5109 = vunpack.c.h.bf16 %v4537
    %v5110 = vunpack.c.l.bf16 %v4538
    %v5111 = vunpack.c.h.bf16 %v4538
    %v5112 = vunpack.c.l.bf16 %v4539
    %v5113 = vunpack.c.h.bf16 %v4539
    %v5114 = vunpack.c.l.bf16 %v4540
    %v5115 = vunpack.c.h.bf16 %v4540
    %v5116 = vunpack.c.l.bf16 %v4541
    %v5117 = vunpack.c.h.bf16 %v4541
    %v5118 = vunpack.c.l.bf16 %v4542
    %v5119 = vunpack.c.h.bf16 %v4542
    %v5120 = vunpack.c.l.bf16 %v4543
    %v5121 = vunpack.c.h.bf16 %v4543
    %v5122 = vunpack.c.l.bf16 %v4544
    %v5123 = vunpack.c.h.bf16 %v4544
    %v5124 = vunpack.c.l.bf16 %v4545
    %v5125 = vunpack.c.h.bf16 %v4545
    %v5126 = vunpack.c.l.bf16 %v4546
    %v5127 = vunpack.c.h.bf16 %v4546
    %v5128 = vunpack.c.l.bf16 %v4547
    %v5129 = vunpack.c.h.bf16 %v4547
    %v5130 = vunpack.c.l.bf16 %v4548
    %v5131 = vunpack.c.h.bf16 %v4548
    %v5132 = vunpack.c.l.bf16 %v4549
    %v5133 = vunpack.c.h.bf16 %v4549
    %v5134 = vunpack.c.l.bf16 %v4550
    %v5135 = vunpack.c.h.bf16 %v4550
    %v5136 = vunpack.c.l.bf16 %v4551
    %v5137 = vunpack.c.h.bf16 %v4551
    %v5138 = vunpack.c.l.bf16 %v4552
    %v5139 = vunpack.c.h.bf16 %v4552
    %v5140 = vunpack.c.l.bf16 %v4553
    %v5141 = vunpack.c.h.bf16 %v4553
    %v5142 = vunpack.c.l.bf16 %v4554
    %v5143 = vunpack.c.h.bf16 %v4554
    %v5144 = vunpack.c.l.bf16 %v4555
    %v5145 = vunpack.c.h.bf16 %v4555
    %v5146 = vunpack.c.l.bf16 %v4556
    %v5147 = vunpack.c.h.bf16 %v4556
    %v5148 = vunpack.c.l.bf16 %v4557
    %v5149 = vunpack.c.h.bf16 %v4557
    %v5150 = vunpack.c.l.bf16 %v4558
    %v5151 = vunpack.c.h.bf16 %v4558
    %v5152 = vunpack.c.l.bf16 %v4559
    %v5153 = vunpack.c.h.bf16 %v4559
    %v5154 = vunpack.c.l.bf16 %v4560
    %v5155 = vunpack.c.h.bf16 %v4560
    %v5156 = vunpack.c.l.bf16 %v4561
    %v5157 = vunpack.c.h.bf16 %v4561
    %v5158 = vunpack.c.l.bf16 %v4562
    %v5159 = vunpack.c.h.bf16 %v4562
    %v5160 = vunpack.c.l.bf16 %v4563
    %v5161 = vunpack.c.h.bf16 %v4563
    %v5162 = vunpack.c.l.bf16 %v4564
    %v5163 = vunpack.c.h.bf16 %v4564
    %v5164 = vunpack.c.l.bf16 %v4565
    %v5165 = vunpack.c.h.bf16 %v4565
    %v5166 = vunpack.c.l.bf16 %v4566
    %v5167 = vunpack.c.h.bf16 %v4566
    %v5168 = vunpack.c.l.bf16 %v4567
    %v5169 = vunpack.c.h.bf16 %v4567
    %v5170 = vunpack.c.l.bf16 %v4568
    %v5171 = vunpack.c.h.bf16 %v4568
    %v5172 = vunpack.c.l.bf16 %v4569
    %v5173 = vunpack.c.h.bf16 %v4569
    %v5174 = vunpack.c.l.bf16 %v4570
    %v5175 = vunpack.c.h.bf16 %v4570
    %v5176 = vunpack.c.l.bf16 %v4571
    %v5177 = vunpack.c.h.bf16 %v4571
    %v5178 = vunpack.c.l.bf16 %v4572
    %v5179 = vunpack.c.h.bf16 %v4572
    %v5180 = vunpack.c.l.bf16 %v4573
    %v5181 = vunpack.c.h.bf16 %v4573
    %v5182 = vunpack.c.l.bf16 %v4574
    %v5183 = vunpack.c.h.bf16 %v4574
    %v5184 = vunpack.c.l.bf16 %v4575
    %v5185 = vunpack.c.h.bf16 %v4575
    %v5186 = vunpack.c.l.bf16 %v4576
    %v5187 = vunpack.c.h.bf16 %v4576
    %v5188 = vunpack.c.l.bf16 %v4577
    %v5189 = vunpack.c.h.bf16 %v4577
    %v5190 = vunpack.c.l.bf16 %v4578
    %v5191 = vunpack.c.h.bf16 %v4578
    %v5192 = vunpack.c.l.bf16 %v4579
    %v5193 = vunpack.c.h.bf16 %v4579
    %v5194 = vunpack.c.l.bf16 %v4580
    %v5195 = vunpack.c.h.bf16 %v4580
    %v5196 = vunpack.c.l.bf16 %v4581
    %v5197 = vunpack.c.h.bf16 %v4581
    %v5198 = vunpack.c.l.bf16 %v4582
    %v5199 = vunpack.c.h.bf16 %v4582
    %v5200 = vunpack.c.l.bf16 %v4583
    %v5201 = vunpack.c.h.bf16 %v4583
    %v5202 = vunpack.c.l.bf16 %v4584
    %v5203 = vunpack.c.h.bf16 %v4584
    %v5204 = vunpack.c.l.bf16 %v4585
    %v5205 = vunpack.c.h.bf16 %v4585
    %v5206 = vunpack.c.l.bf16 %v4586
    %v5207 = vunpack.c.h.bf16 %v4586
    %v5208 = vunpack.c.l.bf16 %v4587
    %v5209 = vunpack.c.h.bf16 %v4587
    %v5210 = vunpack.c.l.bf16 %v4588
    %v5211 = vunpack.c.h.bf16 %v4588
    %v5212 = vunpack.c.l.bf16 %v4589
    %v5213 = vunpack.c.h.bf16 %v4589
    %v5214 = vunpack.c.l.bf16 %v4590
    %v5215 = vunpack.c.h.bf16 %v4590
    %v5216 = vunpack.c.l.bf16 %v4591
    %v5217 = vunpack.c.h.bf16 %v4591
    %v5218 = vunpack.c.l.bf16 %v4592
    %v5219 = vunpack.c.h.bf16 %v4592
    %v5220 = vunpack.c.l.bf16 %v4593
    %v5221 = vunpack.c.h.bf16 %v4593
    %v5222 = vunpack.c.l.bf16 %v4594
    %v5223 = vunpack.c.h.bf16 %v4594
    %v5224 = vunpack.c.l.bf16 %v4595
    %v5225 = vunpack.c.h.bf16 %v4595
    %v5226 = vunpack.c.l.bf16 %v4596
    %v5227 = vunpack.c.h.bf16 %v4596
    %v5228 = vunpack.c.l.bf16 %v4597
    %v5229 = vunpack.c.h.bf16 %v4597
    %v5230 = vunpack.c.l.bf16 %v4598
    %v5231 = vunpack.c.h.bf16 %v4598
    %v5232 = vunpack.c.l.bf16 %v4599
    %v5233 = vunpack.c.h.bf16 %v4599
    %v5234 = vunpack.c.l.bf16 %v4600
    %v5235 = vunpack.c.h.bf16 %v4600
    %v5236 = vunpack.c.l.bf16 %v4601
    %v5237 = vunpack.c.h.bf16 %v4601
    %v5238 = vunpack.c.l.bf16 %v4602
    %v5239 = vunpack.c.h.bf16 %v4602
    %v5240 = vunpack.c.l.bf16 %v4603
    %v5241 = vunpack.c.h.bf16 %v4603
    %v5242 = vunpack.c.l.bf16 %v4604
    %v5243 = vunpack.c.h.bf16 %v4604
    %v5244 = vunpack.c.l.bf16 %v4605
    %v5245 = vunpack.c.h.bf16 %v4605
    %v5246 = vunpack.c.l.bf16 %v4606
    %v5247 = vunpack.c.h.bf16 %v4606
    %v5248 = vunpack.c.l.bf16 %v4607
    %v5249 = vunpack.c.h.bf16 %v4607
    %v5250 = vunpack.c.l.bf16 %v4608
    %v5251 = vunpack.c.h.bf16 %v4608
    %v5252 = vunpack.c.l.bf16 %v4609
    %v5253 = vunpack.c.h.bf16 %v4609
    %v5254 = vunpack.c.l.bf16 %v4610
    %v5255 = vunpack.c.h.bf16 %v4610
    %v5256 = vunpack.c.l.bf16 %v4611
    %v5257 = vunpack.c.h.bf16 %v4611
    %v5258 = vunpack.c.l.bf16 %v4612
    %v5259 = vunpack.c.h.bf16 %v4612
    %v5260 = vunpack.c.l.bf16 %v4613
    %v5261 = vunpack.c.h.bf16 %v4613
    %v5262 = vunpack.c.l.bf16 %v4614
    %v5263 = vunpack.c.h.bf16 %v4614
    %v5264 = vunpack.c.l.bf16 %v4615
    %v5265 = vunpack.c.h.bf16 %v4615
    %v5266 = vunpack.c.l.bf16 %v4616
    %v5267 = vunpack.c.h.bf16 %v4616
    %v5268 = vunpack.c.l.bf16 %v4617
    %v5269 = vunpack.c.h.bf16 %v4617
    %v5270 = vunpack.c.l.bf16 %v4618
    %v5271 = vunpack.c.h.bf16 %v4618
    %v5272 = vunpack.c.l.bf16 %v4619
    %v5273 = vunpack.c.h.bf16 %v4619
    %v5274 = vunpack.c.l.bf16 %v4620
    %v5275 = vunpack.c.h.bf16 %v4620
    %v5276 = vunpack.c.l.bf16 %v4621
    %v5277 = vunpack.c.h.bf16 %v4621
    %v5278 = vunpack.c.l.bf16 %v4622
    %v5279 = vunpack.c.h.bf16 %v4622
    %v5280 = vunpack.c.l.bf16 %v4623
    %v5281 = vunpack.c.h.bf16 %v4623
    %v5282 = vunpack.c.l.bf16 %v4624
    %v5283 = vunpack.c.h.bf16 %v4624
    %v5284 = vunpack.c.l.bf16 %v4625
    %v5285 = vunpack.c.h.bf16 %v4625
    %v5286 = vunpack.c.l.bf16 %v4626
    %v5287 = vunpack.c.h.bf16 %v4626
    %v5288 = vunpack.c.l.bf16 %v4627
    %v5289 = vunpack.c.h.bf16 %v4627
    %v5290 = vunpack.c.l.bf16 %v4628
    %v5291 = vunpack.c.h.bf16 %v4628
    %v5292 = vunpack.c.l.bf16 %v4629
    %v5293 = vunpack.c.h.bf16 %v4629
    %v5294 = vunpack.c.l.bf16 %v4630
    %v5295 = vunpack.c.h.bf16 %v4630
    %v5296 = vunpack.c.l.bf16 %v4631
    %v5297 = vunpack.c.h.bf16 %v4631
    %v5298 = vunpack.c.l.bf16 %v4632
    %v5299 = vunpack.c.h.bf16 %v4632
    %v5300 = vunpack.c.l.bf16 %v4633
    %v5301 = vunpack.c.h.bf16 %v4633
    %v5302 = vunpack.c.l.bf16 %v4634
    %v5303 = vunpack.c.h.bf16 %v4634
    %v5304 = vunpack.c.l.bf16 %v4635
    %v5305 = vunpack.c.h.bf16 %v4635
    %v5306 = vunpack.c.l.bf16 %v4636
    %v5307 = vunpack.c.h.bf16 %v4636
    %v5308 = vunpack.c.l.bf16 %v4637
    %v5309 = vunpack.c.h.bf16 %v4637
    %v5310 = vunpack.c.l.bf16 %v4638
    %v5311 = vunpack.c.h.bf16 %v4638
    %v5312 = vunpack.c.l.bf16 %v4639
    %v5313 = vunpack.c.h.bf16 %v4639
    %v5314 = vunpack.c.l.bf16 %v4640
    %v5315 = vunpack.c.h.bf16 %v4640
    %v5316 = vunpack.c.l.bf16 %v4641
    %v5317 = vunpack.c.h.bf16 %v4641
    %v5318 = vunpack.c.l.bf16 %v4642
    %v5319 = vunpack.c.h.bf16 %v4642
    %v5320 = vunpack.c.l.bf16 %v4643
    %v5321 = vunpack.c.h.bf16 %v4643
    %v5322 = vunpack.c.l.bf16 %v4644
    %v5323 = vunpack.c.h.bf16 %v4644
    %v5324 = vunpack.c.l.bf16 %v4645
    %v5325 = vunpack.c.h.bf16 %v4645
    %v5326 = vunpack.c.l.bf16 %v4646
    %v5327 = vunpack.c.h.bf16 %v4646
    %v5328 = vunpack.c.l.bf16 %v4647
    %v5329 = vunpack.c.h.bf16 %v4647
    %v5330 = vunpack.c.l.bf16 %v4648
    %v5331 = vunpack.c.h.bf16 %v4648
    %v5332 = vunpack.c.l.bf16 %v4649
    %v5333 = vunpack.c.h.bf16 %v4649
    %v5334 = vunpack.c.l.bf16 %v4650
    %v5335 = vunpack.c.h.bf16 %v4650
    %v5336 = vunpack.c.l.bf16 %v4651
    %v5337 = vunpack.c.h.bf16 %v4651
    %v5338 = vunpack.c.l.bf16 %v4652
    %v5339 = vunpack.c.h.bf16 %v4652
    %v5340 = vunpack.c.l.bf16 %v4653
    %v5341 = vunpack.c.h.bf16 %v4653
    %v5342 = vunpack.c.l.bf16 %v4654
    %v5343 = vunpack.c.h.bf16 %v4654
    %v5344 = vunpack.c.l.bf16 %v4655
    %v5345 = vunpack.c.h.bf16 %v4655
    %v5346 = vunpack.c.l.bf16 %v4656
    %v5347 = vunpack.c.h.bf16 %v4656
    %v5348 = vunpack.c.l.bf16 %v4657
    %v5349 = vunpack.c.h.bf16 %v4657
    %v5350 = vunpack.c.l.bf16 %v4658
    %v5351 = vunpack.c.h.bf16 %v4658
    %v5352 = vunpack.c.l.bf16 %v4659
    %v5353 = vunpack.c.h.bf16 %v4659
    %v5354 = vunpack.c.l.bf16 %v4660
    %v5355 = vunpack.c.h.bf16 %v4660
    %v5356 = vunpack.c.l.bf16 %v4661
    %v5357 = vunpack.c.h.bf16 %v4661
    %v5358 = vunpack.c.l.bf16 %v4662
    %v5359 = vunpack.c.h.bf16 %v4662
    %v5360 = vunpack.c.l.bf16 %v4663
    %v5361 = vunpack.c.h.bf16 %v4663
    %v5362 = vunpack.c.l.bf16 %v4664
    %v5363 = vunpack.c.h.bf16 %v4664
    %v5364 = vunpack.c.l.bf16 %v4665
    %v5365 = vunpack.c.h.bf16 %v4665
    %v5366 = vunpack.c.l.bf16 %v4666
    %v5367 = vunpack.c.h.bf16 %v4666
    %v5368 = vunpack.c.l.bf16 %v4667
    %v5369 = vunpack.c.h.bf16 %v4667
    %v5370 = vunpack.c.l.bf16 %v4668
    %v5371 = vunpack.c.h.bf16 %v4668
    %v5372 = vunpack.c.l.bf16 %v4669
    %v5373 = vunpack.c.h.bf16 %v4669
    %v5374 = vunpack.c.l.bf16 %v4670
    %v5375 = vunpack.c.h.bf16 %v4670
    %v5376 = vunpack.c.l.bf16 %v4671
    %v5377 = vunpack.c.h.bf16 %v4671
    %v5378 = vunpack.c.l.bf16 %v4672
    %v5379 = vunpack.c.h.bf16 %v4672
    %v5380 = vunpack.c.l.bf16 %v4673
    %v5381 = vunpack.c.h.bf16 %v4673
    %v5382 = vunpack.c.l.bf16 %v4674
    %v5383 = vunpack.c.h.bf16 %v4674
    %v5384 = vunpack.c.l.bf16 %v4675
    %v5385 = vunpack.c.h.bf16 %v4675
    %v5386 = vunpack.c.l.bf16 %v4676
    %v5387 = vunpack.c.h.bf16 %v4676
    %v5388 = vunpack.c.l.bf16 %v4677
    %v5389 = vunpack.c.h.bf16 %v4677
    %v5390 = vunpack.c.l.bf16 %v4678
    %v5391 = vunpack.c.h.bf16 %v4678
    %v5392 = vunpack.c.l.bf16 %v4679
    %v5393 = vunpack.c.h.bf16 %v4679
    %v5394 = vunpack.c.l.bf16 %v4680
    %v5395 = vunpack.c.h.bf16 %v4680
    %v5396 = vunpack.c.l.bf16 %v4681
    %v5397 = vunpack.c.h.bf16 %v4681
    %v5398 = vunpack.c.l.bf16 %v4682
    %v5399 = vunpack.c.h.bf16 %v4682
    %v5400 = vunpack.c.l.bf16 %v4683
    %v5401 = vunpack.c.h.bf16 %v4683
    %v5402 = vunpack.c.l.bf16 %v4684
    %v5403 = vunpack.c.h.bf16 %v4684
    %v5404 = vunpack.c.l.bf16 %v4685
    %v5405 = vunpack.c.h.bf16 %v4685
    %v5406 = vunpack.c.l.bf16 %v4686
    %v5407 = vunpack.c.h.bf16 %v4686
    %v5408 = vunpack.c.l.bf16 %v4687
    %v5409 = vunpack.c.h.bf16 %v4687
    %v5410 = vunpack.c.l.bf16 %v4688
    %v5411 = vunpack.c.h.bf16 %v4688
    %v5412 = vunpack.c.l.bf16 %v4689
    %v5413 = vunpack.c.h.bf16 %v4689
    %v5414 = vunpack.c.l.bf16 %v4690
    %v5415 = vunpack.c.h.bf16 %v4690
    %v5416 = vunpack.c.l.bf16 %v4691
    %v5417 = vunpack.c.h.bf16 %v4691
    %v5418 = vunpack.c.l.bf16 %v4692
    %v5419 = vunpack.c.h.bf16 %v4692
    %v5420 = vunpack.c.l.bf16 %v4693
    %v5421 = vunpack.c.h.bf16 %v4693
    %v5422 = vunpack.c.l.bf16 %v4694
    %v5423 = vunpack.c.h.bf16 %v4694
    %v5424 = vunpack.c.l.bf16 %v4695
    %v5425 = vunpack.c.h.bf16 %v4695
    %v5426 = vunpack.c.l.bf16 %v4696
    %v5427 = vunpack.c.h.bf16 %v4696
    %v5428 = vunpack.c.l.bf16 %v4697
    %v5429 = vunpack.c.h.bf16 %v4697
    %v5430 = vunpack.c.l.bf16 %v4698
    %v5431 = vunpack.c.h.bf16 %v4698
    %v5432 = vunpack.c.l.bf16 %v4699
    %v5433 = vunpack.c.h.bf16 %v4699
    %v5434 = vunpack.c.l.bf16 %v4700
    %v5435 = vunpack.c.h.bf16 %v4700
    %v5436 = vunpack.c.l.bf16 %v4701
    %v5437 = vunpack.c.h.bf16 %v4701
    %v5438 = vunpack.c.l.bf16 %v4702
    %v5439 = vunpack.c.h.bf16 %v4702
    %v5440 = vunpack.c.l.bf16 %v4703
    %v5441 = vunpack.c.h.bf16 %v4703
    %v5442 = vunpack.c.l.bf16 %v4704
    %v5443 = vunpack.c.h.bf16 %v4704
    %v5444 = vunpack.c.l.bf16 %v4705
    %v5445 = vunpack.c.h.bf16 %v4705
    %v5446 = vunpack.c.l.bf16 %v4706
    %v5447 = vunpack.c.h.bf16 %v4706
    %v5448 = vunpack.c.l.bf16 %v4707
    %v5449 = vunpack.c.h.bf16 %v4707
    %v5450 = vunpack.c.l.bf16 %v4708
    %v5451 = vunpack.c.h.bf16 %v4708
    %v5452 = vunpack.c.l.bf16 %v4709
    %v5453 = vunpack.c.h.bf16 %v4709
    %v5454 = vunpack.c.l.bf16 %v4710
    %v5455 = vunpack.c.h.bf16 %v4710
    %v5456 = vunpack.c.l.bf16 %v4711
    %v5457 = vunpack.c.h.bf16 %v4711
    %v5458 = vunpack.c.l.bf16 %v4712
    %v5459 = vunpack.c.h.bf16 %v4712
    %v5460 = vunpack.c.l.bf16 %v4713
    %v5461 = vunpack.c.h.bf16 %v4713
    %v5462 = vunpack.c.l.bf16 %v4714
    %v5463 = vunpack.c.h.bf16 %v4714
    %v5464 = vunpack.c.l.bf16 %v4715
    %v5465 = vunpack.c.h.bf16 %v4715
    %v5466 = vunpack.c.l.bf16 %v4716
    %v5467 = vunpack.c.h.bf16 %v4716
    %v5468 = vunpack.c.l.bf16 %v4717
    %v5469 = vunpack.c.h.bf16 %v4717
    %v5470 = vunpack.c.l.bf16 %v4718
    %v5471 = vunpack.c.h.bf16 %v4718
    %v5472 = vunpack.c.l.bf16 %v4719
    %v5473 = vunpack.c.h.bf16 %v4719
    %v5474 = vunpack.c.l.bf16 %v4720
    %v5475 = vunpack.c.h.bf16 %v4720
    %v5476 = vunpack.c.l.bf16 %v4721
    %v5477 = vunpack.c.h.bf16 %v4721
    %v5478 = vunpack.c.l.bf16 %v4722
    %v5479 = vunpack.c.h.bf16 %v4722
    %v5480 = vunpack.c.l.bf16 %v4723
    %v5481 = vunpack.c.h.bf16 %v4723
    %v5482 = vunpack.c.l.bf16 %v4724
    %v5483 = vunpack.c.h.bf16 %v4724
    %v5484 = vunpack.c.l.bf16 %v4725
    %v5485 = vunpack.c.h.bf16 %v4725
    %v5486 = vunpack.c.l.bf16 %v4726
    %v5487 = vunpack.c.h.bf16 %v4726
    %v5488 = vunpack.c.l.bf16 %v4727
    %v5489 = vunpack.c.h.bf16 %v4727
    %v5490 = vunpack.c.l.bf16 %v4728
    %v5491 = vunpack.c.h.bf16 %v4728
    %v5492 = vunpack.c.l.bf16 %v4729
    %v5493 = vunpack.c.h.bf16 %v4729
    %v5494 = vunpack.c.l.bf16 %v4730
    %v5495 = vunpack.c.h.bf16 %v4730
    %v5496 = vunpack.c.l.bf16 %v4731
    %v5497 = vunpack.c.h.bf16 %v4731
    %v5498 = vunpack.c.l.bf16 %v4732
    %v5499 = vunpack.c.h.bf16 %v4732
    %v5500 = vunpack.c.l.bf16 %v4733
    %v5501 = vunpack.c.h.bf16 %v4733
    %v5502 = vunpack.c.l.bf16 %v4734
    %v5503 = vunpack.c.h.bf16 %v4734
    %v5504 = vunpack.c.l.bf16 %v4735
    %v5505 = vunpack.c.h.bf16 %v4735
    %v5506 = vunpack.c.l.bf16 %v4736
    %v5507 = vunpack.c.h.bf16 %v4736
    %v5508 = vunpack.c.l.bf16 %v4737
    %v5509 = vunpack.c.h.bf16 %v4737
    %v5510 = vunpack.c.l.bf16 %v4738
    %v5511 = vunpack.c.h.bf16 %v4738
    %v5512 = vunpack.c.l.bf16 %v4739
    %v5513 = vunpack.c.h.bf16 %v4739
    %v5514 = vunpack.c.l.bf16 %v4740
    %v5515 = vunpack.c.h.bf16 %v4740
    %v5516 = vunpack.c.l.bf16 %v4741
    %v5517 = vunpack.c.h.bf16 %v4741
    %v5518 = vunpack.c.l.bf16 %v4742
    %v5519 = vunpack.c.h.bf16 %v4742
    %v5520 = vunpack.c.l.bf16 %v4743
    %v5521 = vunpack.c.h.bf16 %v4743
    %v5522 = vunpack.c.l.bf16 %v4744
    %v5523 = vunpack.c.h.bf16 %v4744
    %v5524 = vunpack.c.l.bf16 %v4745
    %v5525 = vunpack.c.h.bf16 %v4745
    %v5526 = vunpack.c.l.bf16 %v4746
    %v5527 = vunpack.c.h.bf16 %v4746
    %v5528 = vunpack.c.l.bf16 %v4747
    %v5529 = vunpack.c.h.bf16 %v4747
    %v5530 = vunpack.c.l.bf16 %v4748
    %v5531 = vunpack.c.h.bf16 %v4748
    %v5532 = vunpack.c.l.bf16 %v4749
    %v5533 = vunpack.c.h.bf16 %v4749
    %v5534 = vunpack.c.l.bf16 %v4750
    %v5535 = vunpack.c.h.bf16 %v4750
    %v5536 = vunpack.c.l.bf16 %v4751
    %v5537 = vunpack.c.h.bf16 %v4751
    %v5538 = vunpack.c.l.bf16 %v4752
    %v5539 = vunpack.c.h.bf16 %v4752
    %v5540 = vunpack.c.l.bf16 %v4753
    %v5541 = vunpack.c.h.bf16 %v4753
    %v5542 = vunpack.c.l.bf16 %v4754
    %v5543 = vunpack.c.h.bf16 %v4754
    %v5544 = vunpack.c.l.bf16 %v4755
    %v5545 = vunpack.c.h.bf16 %v4755
    %v5546 = vunpack.c.l.bf16 %v4756
    %v5547 = vunpack.c.h.bf16 %v4756
    %v5548 = vunpack.c.l.bf16 %v4757
    %v5549 = vunpack.c.h.bf16 %v4757
    %v5550 = vunpack.c.l.bf16 %v4758
    %v5551 = vunpack.c.h.bf16 %v4758
    %v5552 = vunpack.c.l.bf16 %v4759
    %v5553 = vunpack.c.h.bf16 %v4759
    %v5554 = vunpack.c.l.bf16 %v4760
    %v5555 = vunpack.c.h.bf16 %v4760
    %v5556 = vunpack.c.l.bf16 %v4761
    %v5557 = vunpack.c.h.bf16 %v4761
    %v5558 = vunpack.c.l.bf16 %v4762
    %v5559 = vunpack.c.h.bf16 %v4762
    %v5560 = vunpack.c.l.bf16 %v4763
    %v5561 = vunpack.c.h.bf16 %v4763
    %v5562 = vunpack.c.l.bf16 %v4764
    %v5563 = vunpack.c.h.bf16 %v4764
    %v5564 = vunpack.c.l.bf16 %v4765
    %v5565 = vunpack.c.h.bf16 %v4765
    %v5566 = vunpack.c.l.bf16 %v4766
    %v5567 = vunpack.c.h.bf16 %v4766
    %v5568 = vunpack.c.l.bf16 %v4767
    %v5569 = vunpack.c.h.bf16 %v4767
    %v5570 = vunpack.c.l.bf16 %v4768
    %v5571 = vunpack.c.h.bf16 %v4768
    %v5572 = vunpack.c.l.bf16 %v4769
    %v5573 = vunpack.c.h.bf16 %v4769
    %v5574 = vunpack.c.l.bf16 %v4770
    %v5575 = vunpack.c.h.bf16 %v4770
    %v5576 = vunpack.c.l.bf16 %v4771
    %v5577 = vunpack.c.h.bf16 %v4771
    %v5578 = vunpack.c.l.bf16 %v4772
    %v5579 = vunpack.c.h.bf16 %v4772
    %v5580 = vunpack.c.l.bf16 %v4773
    %v5581 = vunpack.c.h.bf16 %v4773
    %v5582 = vunpack.c.l.bf16 %v4774
    %v5583 = vunpack.c.h.bf16 %v4774
    %v5584 = vunpack.c.l.bf16 %v4775
    %v5585 = vunpack.c.h.bf16 %v4775
    %v5586 = vunpack.c.l.bf16 %v4776
    %v5587 = vunpack.c.h.bf16 %v4776
    %v5588 = vunpack.c.l.bf16 %v4777
    %v5589 = vunpack.c.h.bf16 %v4777
    %v5590 = vunpack.c.l.bf16 %v4778
    %v5591 = vunpack.c.h.bf16 %v4778
    %v5592 = vunpack.c.l.bf16 %v4779
    %v5593 = vunpack.c.h.bf16 %v4779
    %v5594 = vunpack.c.l.bf16 %v4780
    %v5595 = vunpack.c.h.bf16 %v4780
    %v5596 = vunpack.c.l.bf16 %v4781
    %v5597 = vunpack.c.h.bf16 %v4781
    %v5598 = vunpack.c.l.bf16 %v4782
    %v5599 = vunpack.c.h.bf16 %v4782
    %v5600 = vunpack.c.l.bf16 %v4783
    %v5601 = vunpack.c.h.bf16 %v4783
    %v5602 = vunpack.c.l.bf16 %v4784
    %v5603 = vunpack.c.h.bf16 %v4784
    %v5604 = vunpack.c.l.bf16 %v4785
    %v5605 = vunpack.c.h.bf16 %v4785
    %v5606 = vunpack.c.l.bf16 %v4786
    %v5607 = vunpack.c.h.bf16 %v4786
    %v5608 = vunpack.c.l.bf16 %v4787
    %v5609 = vunpack.c.h.bf16 %v4787
    %v5610 = vunpack.c.l.bf16 %v4788
    %v5611 = vunpack.c.h.bf16 %v4788
    %v5612 = vunpack.c.l.bf16 %v4789
    %v5613 = vunpack.c.h.bf16 %v4789
    %v5614 = vunpack.c.l.bf16 %v4790
    %v5615 = vunpack.c.h.bf16 %v4790
    %v5616 = vunpack.c.l.bf16 %v4791
    %v5617 = vunpack.c.h.bf16 %v4791
    %v5618 = vunpack.c.l.bf16 %v4792
    %v5619 = vunpack.c.h.bf16 %v4792
    %v5620 = vunpack.c.l.bf16 %v4793
    %v5621 = vunpack.c.h.bf16 %v4793
    %v5622 = vunpack.c.l.bf16 %v4794
    %v5623 = vunpack.c.h.bf16 %v4794
    %v5624 = vunpack.c.l.bf16 %v4795
    %v5625 = vunpack.c.h.bf16 %v4795
    %v5626 = vunpack.c.l.bf16 %v4796
    %v5627 = vunpack.c.h.bf16 %v4796
    %v5628 = vunpack.c.l.bf16 %v4797
    %v5629 = vunpack.c.h.bf16 %v4797
    %v5630 = vunpack.c.l.bf16 %v4798
    %v5631 = vunpack.c.h.bf16 %v4798
    %v5632 = vunpack.c.l.bf16 %v4799
    %v5633 = vunpack.c.h.bf16 %v4799
    %v5634 = vunpack.c.l.bf16 %v4800
    %v5635 = vunpack.c.h.bf16 %v4800
    %v5636 = vunpack.c.l.bf16 %v4801
    %v5637 = vunpack.c.h.bf16 %v4801
    %v5638 = vunpack.c.l.bf16 %v4802
    %v5639 = vunpack.c.h.bf16 %v4802
    %v5640 = vunpack.c.l.bf16 %v4803
    %v5641 = vunpack.c.h.bf16 %v4803
    %v5642 = vunpack.c.l.bf16 %v4804
    %v5643 = vunpack.c.h.bf16 %v4804
    %v5644 = vunpack.c.l.bf16 %v4805
    %v5645 = vunpack.c.h.bf16 %v4805
    %v5646 = vunpack.c.l.bf16 %v4806
    %v5647 = vunpack.c.h.bf16 %v4806
    %v5648 = vunpack.c.l.bf16 %v4807
    %v5649 = vunpack.c.h.bf16 %v4807
    %v5650 = vunpack.c.l.bf16 %v4808
    %v5651 = vunpack.c.h.bf16 %v4808
    %v5652 = vunpack.c.l.bf16 %v4809
    %v5653 = vunpack.c.h.bf16 %v4809
    %v5654 = vunpack.c.l.bf16 %v4810
    %v5655 = vunpack.c.h.bf16 %v4810
    %v5656 = vunpack.c.l.bf16 %v4811
    %v5657 = vunpack.c.h.bf16 %v4811
    %v5658 = vunpack.c.l.bf16 %v4812
    %v5659 = vunpack.c.h.bf16 %v4812
    %v5660 = vunpack.c.l.bf16 %v4813
    %v5661 = vunpack.c.h.bf16 %v4813
    %v5662 = vunpack.c.l.bf16 %v4814
    %v5663 = vunpack.c.h.bf16 %v4814
    %v5664 = vunpack.c.l.bf16 %v4815
    %v5665 = vunpack.c.h.bf16 %v4815
    %v5666 = vunpack.c.l.bf16 %v4816
    %v5667 = vunpack.c.h.bf16 %v4816
    %v5668 = vunpack.c.l.bf16 %v4817
    %v5669 = vunpack.c.h.bf16 %v4817
    %v5670 = vunpack.c.l.bf16 %v4818
    %v5671 = vunpack.c.h.bf16 %v4818
    %v5672 = vunpack.c.l.bf16 %v4819
    %v5673 = vunpack.c.h.bf16 %v4819
    %v5674 = vunpack.c.l.bf16 %v4820
    %v5675 = vunpack.c.h.bf16 %v4820
    %v5676 = vunpack.c.l.bf16 %v4821
    %v5677 = vunpack.c.h.bf16 %v4821
    %v5678 = vunpack.c.l.bf16 %v4822
    %v5679 = vunpack.c.h.bf16 %v4822
    %v5680 = vunpack.c.l.bf16 %v4823
    %v5681 = vunpack.c.h.bf16 %v4823
    %v5682 = vunpack.c.l.bf16 %v4824
    %v5683 = vunpack.c.h.bf16 %v4824
    %v5684 = vunpack.c.l.bf16 %v4825
    %v5685 = vunpack.c.h.bf16 %v4825
    %v5686 = vunpack.c.l.bf16 %v4826
    %v5687 = vunpack.c.h.bf16 %v4826
    %v5688 = vunpack.c.l.bf16 %v4827
    %v5689 = vunpack.c.h.bf16 %v4827
    %v5690 = vunpack.c.l.bf16 %v4828
    %v5691 = vunpack.c.h.bf16 %v4828
    %v5692 = vunpack.c.l.bf16 %v4829
    %v5693 = vunpack.c.h.bf16 %v4829
    %v5694 = vunpack.c.l.bf16 %v4830
    %v5695 = vunpack.c.h.bf16 %v4830
    %v5696 = vunpack.c.l.bf16 %v4831
    %v5697 = vunpack.c.h.bf16 %v4831
    %v5698 = vunpack.c.l.bf16 %v4832
    %v5699 = vunpack.c.h.bf16 %v4832
    %v5700 = vunpack.c.l.bf16 %v4833
    %v5701 = vunpack.c.h.bf16 %v4833
    %v5702 = vunpack.c.l.bf16 %v4834
    %v5703 = vunpack.c.h.bf16 %v4834
    %v5704 = vunpack.c.l.bf16 %v4835
    %v5705 = vunpack.c.h.bf16 %v4835
    %v5706 = vunpack.c.l.bf16 %v4836
    %v5707 = vunpack.c.h.bf16 %v4836
    %v5708 = vunpack.c.l.bf16 %v4837
    %v5709 = vunpack.c.h.bf16 %v4837
    %v5710 = vunpack.c.l.bf16 %v4838
    %v5711 = vunpack.c.h.bf16 %v4838
    %v5712 = vunpack.c.l.bf16 %v4839
    %v5713 = vunpack.c.h.bf16 %v4839
    %v5714 = vunpack.c.l.bf16 %v4840
    %v5715 = vunpack.c.h.bf16 %v4840
    %v5716 = vunpack.c.l.bf16 %v4841
    %v5717 = vunpack.c.h.bf16 %v4841
    %v5718 = vunpack.c.l.bf16 %v4842
    %v5719 = vunpack.c.h.bf16 %v4842
    %v5720 = vunpack.c.l.bf16 %v4843
    %v5721 = vunpack.c.h.bf16 %v4843
    %v5722 = vunpack.c.l.bf16 %v4844
    %v5723 = vunpack.c.h.bf16 %v4844
    %v5724 = vunpack.c.l.bf16 %v4845
    %v5725 = vunpack.c.h.bf16 %v4845
    %v5726 = vunpack.c.l.bf16 %v4846
    %v5727 = vunpack.c.h.bf16 %v4846
    %v5728 = vunpack.c.l.bf16 %v4847
    %v5729 = vunpack.c.h.bf16 %v4847
    %v5730 = vunpack.c.l.bf16 %v4848
    %v5731 = vunpack.c.h.bf16 %v4848
    %v5732 = vunpack.c.l.bf16 %v4849
    %v5733 = vunpack.c.h.bf16 %v4849
    %v5734 = vunpack.c.l.bf16 %v4850
    %v5735 = vunpack.c.h.bf16 %v4850
    %v5736 = vunpack.c.l.bf16 %v4851
    %v5737 = vunpack.c.h.bf16 %v4851
    %v5738 = vunpack.c.l.bf16 %v4852
    %v5739 = vunpack.c.h.bf16 %v4852
    %v5740 = vunpack.c.l.bf16 %v4853
    %v5741 = vunpack.c.h.bf16 %v4853
    %v5742 = vunpack.c.l.bf16 %v4854
    %v5743 = vunpack.c.h.bf16 %v4854
    %v5744 = vunpack.c.l.bf16 %v4855
    %v5745 = vunpack.c.h.bf16 %v4855
    %v5746 = vunpack.c.l.bf16 %v4856
    %v5747 = vunpack.c.h.bf16 %v4856
    %v5748 = vunpack.c.l.bf16 %v4857
    %v5749 = vunpack.c.h.bf16 %v4857
    %v5750 = vunpack.c.l.bf16 %v4858
    %v5751 = vunpack.c.h.bf16 %v4858
    %v5752 = vunpack.c.l.bf16 %v4859
    %v5753 = vunpack.c.h.bf16 %v4859
    %v5754 = vunpack.c.l.bf16 %v4860
    %v5755 = vunpack.c.h.bf16 %v4860
    %v5756 = vunpack.c.l.bf16 %v4861
    %v5757 = vunpack.c.h.bf16 %v4861
    %v5758 = vunpack.c.l.bf16 %v4862
    %v5759 = vunpack.c.h.bf16 %v4862
    %v5760 = vunpack.c.l.bf16 %v4863
    %v5761 = vunpack.c.h.bf16 %v4863
    %v5762 = vunpack.c.l.bf16 %v4864
    %v5763 = vunpack.c.h.bf16 %v4864
    %v5764 = vunpack.c.l.bf16 %v4865
    %v5765 = vunpack.c.h.bf16 %v4865
    %v5766 = vunpack.c.l.bf16 %v4866
    %v5767 = vunpack.c.h.bf16 %v4866
    %v5768 = vunpack.c.l.bf16 %v4867
    %v5769 = vunpack.c.h.bf16 %v4867
    %v5770 = vunpack.c.l.bf16 %v4868
    %v5771 = vunpack.c.h.bf16 %v4868
    %v5772 = vunpack.c.l.bf16 %v4869
    %v5773 = vunpack.c.h.bf16 %v4869
    %v5774 = vunpack.c.l.bf16 %v4870
    %v5775 = vunpack.c.h.bf16 %v4870
    %v5776 = vunpack.c.l.bf16 %v4871
    %v5777 = vunpack.c.h.bf16 %v4871
    %v5778 = vunpack.c.l.bf16 %v4872
    %v5779 = vunpack.c.h.bf16 %v4872
    %v5780 = vunpack.c.l.bf16 %v4873
    %v5781 = vunpack.c.h.bf16 %v4873
    %v5782 = vunpack.c.l.bf16 %v4874
    %v5783 = vunpack.c.h.bf16 %v4874
    %v5784 = vunpack.c.l.bf16 %v4875
    %v5785 = vunpack.c.h.bf16 %v4875
    %v5786 = vunpack.c.l.bf16 %v4876
    %v5787 = vunpack.c.h.bf16 %v4876
    %v5788 = vunpack.c.l.bf16 %v4877
    %v5789 = vunpack.c.h.bf16 %v4877
    %v5790 = vunpack.c.l.bf16 %v4878
    %v5791 = vunpack.c.h.bf16 %v4878
    %v5792 = vunpack.c.l.bf16 %v4879
    %v5793 = vunpack.c.h.bf16 %v4879
    %v5794 = vunpack.c.l.bf16 %v4880
    %v5795 = vunpack.c.h.bf16 %v4880
    %v5796 = vunpack.c.l.bf16 %v4881
    %v5797 = vunpack.c.h.bf16 %v4881
    %v5798 = vunpack.c.l.bf16 %v4882
    %v5799 = vunpack.c.h.bf16 %v4882
    %v5800 = vunpack.c.l.bf16 %v4883
    %v5801 = vunpack.c.h.bf16 %v4883
    %v5802 = vunpack.c.l.bf16 %v4884
    %v5803 = vunpack.c.h.bf16 %v4884
    %v5804 = vunpack.c.l.bf16 %v4885
    %v5805 = vunpack.c.h.bf16 %v4885
    %v5806 = vunpack.c.l.bf16 %v4886
    %v5807 = vunpack.c.h.bf16 %v4886
    %v5808 = vunpack.c.l.bf16 %v4887
    %v5809 = vunpack.c.h.bf16 %v4887
    %v5810 = vunpack.c.l.bf16 %v4888
    %v5811 = vunpack.c.h.bf16 %v4888
    %v5812 = vunpack.c.l.bf16 %v4889
    %v5813 = vunpack.c.h.bf16 %v4889
    %v5814 = vunpack.c.l.bf16 %v4890
    %v5815 = vunpack.c.h.bf16 %v4890
    %v5816 = vunpack.c.l.bf16 %v4891
    %v5817 = vunpack.c.h.bf16 %v4891
    %v5818 = vunpack.c.l.bf16 %v4892
    %v5819 = vunpack.c.h.bf16 %v4892
    %v5820 = vunpack.c.l.bf16 %v4893
    %v5821 = vunpack.c.h.bf16 %v4893
    %v5822 = vunpack.c.l.bf16 %v4894
    %v5823 = vunpack.c.h.bf16 %v4894
    %v5824 = vunpack.c.l.bf16 %v4895
    %v5825 = vunpack.c.h.bf16 %v4895
    %v5826 = vunpack.c.l.bf16 %v4896
    %v5827 = vunpack.c.h.bf16 %v4896
    %v5828 = vunpack.c.l.bf16 %v4897
    %v5829 = vunpack.c.h.bf16 %v4897
    %v5830 = vunpack.c.l.bf16 %v4898
    %v5831 = vunpack.c.h.bf16 %v4898
    %v5832 = vunpack.c.l.bf16 %v4899
    %v5833 = vunpack.c.h.bf16 %v4899
    %v5834 = vunpack.c.l.bf16 %v4900
    %v5835 = vunpack.c.h.bf16 %v4900
    %v5836 = vunpack.c.l.bf16 %v4901
    %v5837 = vunpack.c.h.bf16 %v4901
    %v5838 = vunpack.c.l.bf16 %v4902
    %v5839 = vunpack.c.h.bf16 %v4902
    %v5840 = vunpack.c.l.bf16 %v4903
    %v5841 = vunpack.c.h.bf16 %v4903
    %v5842 = vunpack.c.l.bf16 %v4904
    %v5843 = vunpack.c.h.bf16 %v4904
    %v5844 = vunpack.c.l.bf16 %v4905
    %v5845 = vunpack.c.h.bf16 %v4905
    %v5846 = vunpack.c.l.bf16 %v4906
    %v5847 = vunpack.c.h.bf16 %v4906
    %v5848 = vunpack.c.l.bf16 %v4907
    %v5849 = vunpack.c.h.bf16 %v4907
    %v5850 = vunpack.c.l.bf16 %v4908
    %v5851 = vunpack.c.h.bf16 %v4908
    %v5852 = vunpack.c.l.bf16 %v4909
    %v5853 = vunpack.c.h.bf16 %v4909
    %v5854 = vunpack.c.l.bf16 %v4910
    %v5855 = vunpack.c.h.bf16 %v4910
    %v5856 = vunpack.c.l.bf16 %v4911
    %v5857 = vunpack.c.h.bf16 %v4911
    %v5858 = vunpack.c.l.bf16 %v4912
    %v5859 = vunpack.c.h.bf16 %v4912
    %v5860 = vunpack.c.l.bf16 %v4913
    %v5861 = vunpack.c.h.bf16 %v4913
    %v5862 = vunpack.c.l.bf16 %v4914
    %v5863 = vunpack.c.h.bf16 %v4914
    %v5864 = vunpack.c.l.bf16 %v4915
    %v5865 = vunpack.c.h.bf16 %v4915
    %v5866 = vunpack.c.l.bf16 %v4916
    %v5867 = vunpack.c.h.bf16 %v4916
    %v5868 = vunpack.c.l.bf16 %v4917
    %v5869 = vunpack.c.h.bf16 %v4917
    %v5870 = vunpack.c.l.bf16 %v4918
    %v5871 = vunpack.c.h.bf16 %v4918
    %v5872 = vunpack.c.l.bf16 %v4919
    %v5873 = vunpack.c.h.bf16 %v4919
    %v5874 = vunpack.c.l.bf16 %v4920
    %v5875 = vunpack.c.h.bf16 %v4920
    %v5876 = vunpack.c.l.bf16 %v4921
    %v5877 = vunpack.c.h.bf16 %v4921
    %v5878 = vunpack.c.l.bf16 %v4922
    %v5879 = vunpack.c.h.bf16 %v4922
    %v5880 = vunpack.c.l.bf16 %v4923
    %v5881 = vunpack.c.h.bf16 %v4923
    %v5882 = vunpack.c.l.bf16 %v4924
    %v5883 = vunpack.c.h.bf16 %v4924
    %v5884 = vunpack.c.l.bf16 %v4925
    %v5885 = vunpack.c.h.bf16 %v4925
    %v5886 = vunpack.c.l.bf16 %v4926
    %v5887 = vunpack.c.h.bf16 %v4926
    %v5888 = vunpack.c.l.bf16 %v4927
    %v5889 = vunpack.c.h.bf16 %v4927
    %v5890 = vunpack.c.l.bf16 %v4928
    %v5891 = vunpack.c.h.bf16 %v4928
    %v5892 = vunpack.c.l.bf16 %v4929
    %v5893 = vunpack.c.h.bf16 %v4929
    %v5894 = vunpack.c.l.bf16 %v4930
    %v5895 = vunpack.c.h.bf16 %v4930
    %v5896 = vunpack.c.l.bf16 %v4931
    %v5897 = vunpack.c.h.bf16 %v4931
    %v5898 = vunpack.c.l.bf16 %v4932
    %v5899 = vunpack.c.h.bf16 %v4932
    %v5900 = vunpack.c.l.bf16 %v4933
    %v5901 = vunpack.c.h.bf16 %v4933
    %v5902 = vunpack.c.l.bf16 %v4934
    %v5903 = vunpack.c.h.bf16 %v4934
    %v5904 = vunpack.c.l.bf16 %v4935
    %v5905 = vunpack.c.h.bf16 %v4935
    %v5906 = vunpack.c.l.bf16 %v4936
    %v5907 = vunpack.c.h.bf16 %v4936
    %v5908 = vunpack.c.l.bf16 %v4937
    %v5909 = vunpack.c.h.bf16 %v4937
    %v5910 = vunpack.c.l.bf16 %v4938
    %v5911 = vunpack.c.h.bf16 %v4938
    %v5912 = vunpack.c.l.bf16 %v4939
    %v5913 = vunpack.c.h.bf16 %v4939
    %v5914 = vunpack.c.l.bf16 %v4940
    %v5915 = vunpack.c.h.bf16 %v4940
    %v5916 = vunpack.c.l.bf16 %v4941
    %v5917 = vunpack.c.h.bf16 %v4941
    %v5918 = vunpack.c.l.bf16 %v4942
    %v5919 = vunpack.c.h.bf16 %v4942
    %v5920 = vunpack.c.l.bf16 %v4943
    %v5921 = vunpack.c.h.bf16 %v4943
    %v5922 = vunpack.c.l.bf16 %v4944
    %v5923 = vunpack.c.h.bf16 %v4944
    %v5924 = vunpack.c.l.bf16 %v4945
    %v5925 = vunpack.c.h.bf16 %v4945
    %v5926 = vunpack.c.l.bf16 %v4946
    %v5927 = vunpack.c.h.bf16 %v4946
    %v5928 = vunpack.c.l.bf16 %v4947
    %v5929 = vunpack.c.h.bf16 %v4947
    %v5930 = vunpack.c.l.bf16 %v4948
    %v5931 = vunpack.c.h.bf16 %v4948
    %v5932 = vunpack.c.l.bf16 %v4949
    %v5933 = vunpack.c.h.bf16 %v4949
    %v5934 = vunpack.c.l.bf16 %v4950
    %v5935 = vunpack.c.h.bf16 %v4950
    %v5936 = vunpack.c.l.bf16 %v4951
    %v5937 = vunpack.c.h.bf16 %v4951
    %v5938 = vunpack.c.l.bf16 %v4952
    %v5939 = vunpack.c.h.bf16 %v4952
    %v5940 = vunpack.c.l.bf16 %v4953
    %v5941 = vunpack.c.h.bf16 %v4953
    %v5942 = vunpack.c.l.bf16 %v4954
    %v5943 = vunpack.c.h.bf16 %v4954
    %v5944 = vunpack.c.l.bf16 %v4955
    %v5945 = vunpack.c.h.bf16 %v4955
    %v5946 = vunpack.c.l.bf16 %v4956
    %v5947 = vunpack.c.h.bf16 %v4956
    %v5948 = vunpack.c.l.bf16 %v4957
    %v5949 = vunpack.c.h.bf16 %v4957
    %v5950 = vunpack.c.l.bf16 %v4958
    %v5951 = vunpack.c.h.bf16 %v4958
    %v5952 = vunpack.c.l.bf16 %v4959
    %v5953 = vunpack.c.h.bf16 %v4959
    %v5954 = vunpack.c.l.bf16 %v4960
    %v5955 = vunpack.c.h.bf16 %v4960
    %v5956 = vunpack.c.l.bf16 %v4961
    %v5957 = vunpack.c.h.bf16 %v4961
    %v5958 = vunpack.c.l.bf16 %v4962
    %v5959 = vunpack.c.h.bf16 %v4962
    %v5960 = vunpack.c.l.bf16 %v4963
    %v5961 = vunpack.c.h.bf16 %v4963
    %v5962 = vunpack.c.l.bf16 %v4964
    %v5963 = vunpack.c.h.bf16 %v4964
    %v5964 = vunpack.c.l.bf16 %v4965
    %v5965 = vunpack.c.h.bf16 %v4965
    %v5966 = vunpack.c.l.bf16 %v4966
    %v5967 = vunpack.c.h.bf16 %v4966
    %v5968 = vunpack.c.l.bf16 %v4967
    %v5969 = vunpack.c.h.bf16 %v4967
    %v5970 = vunpack.c.l.bf16 %v4968
    %v5971 = vunpack.c.h.bf16 %v4968
    %v5972 = vunpack.c.l.bf16 %v4969
    %v5973 = vunpack.c.h.bf16 %v4969
    %v5974 = vunpack.c.l.bf16 %v4970
    %v5975 = vunpack.c.h.bf16 %v4970
    %v5976 = vunpack.c.l.bf16 %v4971
    %v5977 = vunpack.c.h.bf16 %v4971
    %v5978 = vunpack.c.l.bf16 %v4972
    %v5979 = vunpack.c.h.bf16 %v4972
    %v5980 = vunpack.c.l.bf16 %v4973
    %v5981 = vunpack.c.h.bf16 %v4973
    %v5982 = vunpack.c.l.bf16 %v4974
    %v5983 = vunpack.c.h.bf16 %v4974
    %v5984 = vunpack.c.l.bf16 %v4975
    %v5985 = vunpack.c.h.bf16 %v4975
    %v5986 = vunpack.c.l.bf16 %v4976
    %v5987 = vunpack.c.h.bf16 %v4976
    %v5988 = vunpack.c.l.bf16 %v4977
    %v5989 = vunpack.c.h.bf16 %v4977
    %v5990 = vunpack.c.l.bf16 %v4978
    %v5991 = vunpack.c.h.bf16 %v4978
    %v5992 = vunpack.c.l.bf16 %v4979
    %v5993 = vunpack.c.h.bf16 %v4979
    %v5994 = vunpack.c.l.bf16 %v4980
    %v5995 = vunpack.c.h.bf16 %v4980
    %v5996 = vunpack.c.l.bf16 %v4981
    %v5997 = vunpack.c.h.bf16 %v4981
    %v5998 = vunpack.c.l.bf16 %v4982
    %v5999 = vunpack.c.h.bf16 %v4982
    %v6000 = vunpack.c.l.bf16 %v4983
    %v6001 = vunpack.c.h.bf16 %v4983
    %v6002 = vunpack.c.l.bf16 %v4984
    %v6003 = vunpack.c.h.bf16 %v4984
    %v6004 = vunpack.c.l.bf16 %v4985
    %v6005 = vunpack.c.h.bf16 %v4985
    %v6006 = vunpack.c.l.bf16 %v4986
    %v6007 = vunpack.c.h.bf16 %v4986
    %v6008 = vunpack.c.l.bf16 %v4987
    %v6009 = vunpack.c.h.bf16 %v4987
    %v6010 = vunpack.c.l.bf16 %v4988
    %v6011 = vunpack.c.h.bf16 %v4988
    %v6012 = vunpack.c.l.bf16 %v4989
    %v6013 = vunpack.c.h.bf16 %v4989
    %6014 = vmatpush.msra.mxu0 %v5110
    %6015 = vmatpush.msra.mxu0 %v5102
    %6016 = vmatpush.msra.mxu0 %v5094
    %6017 = vmatpush.msra.mxu0 %v5086
    %6018 = vmatpush.msra.mxu0 %v5078
    %6019 = vmatpush.msra.mxu0 %v5070
    %6020 = vmatpush.msra.mxu0 %v5062
    %6021 = vmatpush.msra.mxu0 %v5054
    %6022 = vmatpush.msra.mxu0 %v5046
    %6023 = vmatpush.msra.mxu0 %v5038
    %6024 = vmatpush.msra.mxu0 %v5030
    %6025 = vmatpush.msra.mxu0 %v5022
    %6026 = vmatpush.msra.mxu0 %v5014
    %6027 = vmatpush.msra.mxu0 %v5006
    %6028 = vmatpush.msra.mxu0 %v4998
    %6029 = vmatpush.msra.mxu0 %v4990
    %6030 = vmatmul.f32.gmra.mxu0 %v4470
    %v6031 = vpop.f32.mrf.mxu0
    %v6032 = vadd.f32 0.0, %v6031
    %6033 = vdwg.mxu0
    %6034 = vmatpush.msra.mxu0 %v5238
    %6035 = vmatpush.msra.mxu0 %v5230
    %6036 = vmatpush.msra.mxu0 %v5222
    %6037 = vmatpush.msra.mxu0 %v5214
    %6038 = vmatpush.msra.mxu0 %v5206
    %6039 = vmatpush.msra.mxu0 %v5198
    %6040 = vmatpush.msra.mxu0 %v5190
    %6041 = vmatpush.msra.mxu0 %v5182
    %6042 = vmatpush.msra.mxu0 %v5174
    %6043 = vmatpush.msra.mxu0 %v5166
    %6044 = vmatpush.msra.mxu0 %v5158
    %6045 = vmatpush.msra.mxu0 %v5150
    %6046 = vmatpush.msra.mxu0 %v5142
    %6047 = vmatpush.msra.mxu0 %v5134
    %6048 = vmatpush.msra.mxu0 %v5126
    %6049 = vmatpush.msra.mxu0 %v5118
    %6050 = vmatmul.f32.gmra.mxu0 %v4471
    %v6051 = vpop.f32.mrf.mxu0
    %v6052 = vadd.f32 %v6032, %v6051
    %6053 = vdwg.mxu0
    %6054 = vmatpush.msra.mxu0 %v5366
    %6055 = vmatpush.msra.mxu0 %v5358
    %6056 = vmatpush.msra.mxu0 %v5350
    %6057 = vmatpush.msra.mxu0 %v5342
    %6058 = vmatpush.msra.mxu0 %v5334
    %6059 = vmatpush.msra.mxu0 %v5326
    %6060 = vmatpush.msra.mxu0 %v5318
    %6061 = vmatpush.msra.mxu0 %v5310
    %6062 = vmatpush.msra.mxu0 %v5302
    %6063 = vmatpush.msra.mxu0 %v5294
    %6064 = vmatpush.msra.mxu0 %v5286
    %6065 = vmatpush.msra.mxu0 %v5278
    %6066 = vmatpush.msra.mxu0 %v5270
    %6067 = vmatpush.msra.mxu0 %v5262
    %6068 = vmatpush.msra.mxu0 %v5254
    %6069 = vmatpush.msra.mxu0 %v5246
    %6070 = vmatmul.f32.gmra.mxu0 %v4472
    %v6071 = vpop.f32.mrf.mxu0
    %v6072 = vadd.f32 %v6052, %v6071
    %6073 = vdwg.mxu0
    %6074 = vmatpush.msra.mxu0 %v5494
    %6075 = vmatpush.msra.mxu0 %v5486
    %6076 = vmatpush.msra.mxu0 %v5478
    %6077 = vmatpush.msra.mxu0 %v5470
    %6078 = vmatpush.msra.mxu0 %v5462
    %6079 = vmatpush.msra.mxu0 %v5454
    %6080 = vmatpush.msra.mxu0 %v5446
    %6081 = vmatpush.msra.mxu0 %v5438
    %6082 = vmatpush.msra.mxu0 %v5430
    %6083 = vmatpush.msra.mxu0 %v5422
    %6084 = vmatpush.msra.mxu0 %v5414
    %6085 = vmatpush.msra.mxu0 %v5406
    %6086 = vmatpush.msra.mxu0 %v5398
    %6087 = vmatpush.msra.mxu0 %v5390
    %6088 = vmatpush.msra.mxu0 %v5382
    %6089 = vmatpush.msra.mxu0 %v5374
    %6090 = vmatmul.f32.gmra.mxu0 %v4473
    %v6091 = vpop.f32.mrf.mxu0
    %v6092 = vadd.f32 %v6072, %v6091
    %6093 = vdwg.mxu0
    %6094 = vmatpush.msra.mxu0 %v5622
    %6095 = vmatpush.msra.mxu0 %v5614
    %6096 = vmatpush.msra.mxu0 %v5606
    %6097 = vmatpush.msra.mxu0 %v5598
    %6098 = vmatpush.msra.mxu0 %v5590
    %6099 = vmatpush.msra.mxu0 %v5582
    %6100 = vmatpush.msra.mxu0 %v5574
    %6101 = vmatpush.msra.mxu0 %v5566
    %6102 = vmatpush.msra.mxu0 %v5558
    %6103 = vmatpush.msra.mxu0 %v5550
    %6104 = vmatpush.msra.mxu0 %v5542
    %6105 = vmatpush.msra.mxu0 %v5534
    %6106 = vmatpush.msra.mxu0 %v5526
    %6107 = vmatpush.msra.mxu0 %v5518
    %6108 = vmatpush.msra.mxu0 %v5510
    %6109 = vmatpush.msra.mxu0 %v5502
    %6110 = vmatmul.f32.gmra.mxu0 %v4474
    %v6111 = vpop.f32.mrf.mxu0
    %v6112 = vadd.f32 %v6092, %v6111
    %6113 = vdwg.mxu0
    %6114 = vmatpush.msra.mxu0 %v5750
    %6115 = vmatpush.msra.mxu0 %v5742
    %6116 = vmatpush.msra.mxu0 %v5734
    %6117 = vmatpush.msra.mxu0 %v5726
    %6118 = vmatpush.msra.mxu0 %v5718
    %6119 = vmatpush.msra.mxu0 %v5710
    %6120 = vmatpush.msra.mxu0 %v5702
    %6121 = vmatpush.msra.mxu0 %v5694
    %6122 = vmatpush.msra.mxu0 %v5686
    %6123 = vmatpush.msra.mxu0 %v5678
    %6124 = vmatpush.msra.mxu0 %v5670
    %6125 = vmatpush.msra.mxu0 %v5662
    %6126 = vmatpush.msra.mxu0 %v5654
    %6127 = vmatpush.msra.mxu0 %v5646
    %6128 = vmatpush.msra.mxu0 %v5638
    %6129 = vmatpush.msra.mxu0 %v5630
    %6130 = vmatmul.f32.gmra.mxu0 %v4475
    %v6131 = vpop.f32.mrf.mxu0
    %v6132 = vadd.f32 %v6112, %v6131
    %6133 = vdwg.mxu0
    %6134 = vmatpush.msra.mxu0 %v5878
    %6135 = vmatpush.msra.mxu0 %v5870
    %6136 = vmatpush.msra.mxu0 %v5862
    %6137 = vmatpush.msra.mxu0 %v5854
    %6138 = vmatpush.msra.mxu0 %v5846
    %6139 = vmatpush.msra.mxu0 %v5838
    %6140 = vmatpush.msra.mxu0 %v5830
    %6141 = vmatpush.msra.mxu0 %v5822
    %6142 = vmatpush.msra.mxu0 %v5814
    %6143 = vmatpush.msra.mxu0 %v5806
    %6144 = vmatpush.msra.mxu0 %v5798
    %6145 = vmatpush.msra.mxu0 %v5790
    %6146 = vmatpush.msra.mxu0 %v5782
    %6147 = vmatpush.msra.mxu0 %v5774
    %6148 = vmatpush.msra.mxu0 %v5766
    %6149 = vmatpush.msra.mxu0 %v5758
    %6150 = vmatmul.f32.gmra.mxu0 %v4476
    %v6151 = vpop.f32.mrf.mxu0
    %v6152 = vadd.f32 %v6132, %v6151
    %6153 = vdwg.mxu0
    %6154 = vmatpush.msra.mxu0 %v6006
    %6155 = vmatpush.msra.mxu0 %v5998
    %6156 = vmatpush.msra.mxu0 %v5990
    %6157 = vmatpush.msra.mxu0 %v5982
    %6158 = vmatpush.msra.mxu0 %v5974
    %6159 = vmatpush.msra.mxu0 %v5966
    %6160 = vmatpush.msra.mxu0 %v5958
    %6161 = vmatpush.msra.mxu0 %v5950
    %6162 = vmatpush.msra.mxu0 %v5942
    %6163 = vmatpush.msra.mxu0 %v5934
    %6164 = vmatpush.msra.mxu0 %v5926
    %6165 = vmatpush.msra.mxu0 %v5918
    %6166 = vmatpush.msra.mxu0 %v5910
    %6167 = vmatpush.msra.mxu0 %v5902
    %6168 = vmatpush.msra.mxu0 %v5894
    %6169 = vmatpush.msra.mxu0 %v5886
    %6170 = vmatmul.f32.gmra.mxu0 %v4477
    %v6171 = vpop.f32.mrf.mxu0
    %v6172 = vadd.f32 %v6152, %v6171
    %6173 = vdwg.mxu0
    %6174 = vmatpush.msra.mxu0 %v5111
    %6175 = vmatpush.msra.mxu0 %v5103
    %6176 = vmatpush.msra.mxu0 %v5095
    %6177 = vmatpush.msra.mxu0 %v5087
    %6178 = vmatpush.msra.mxu0 %v5079
    %6179 = vmatpush.msra.mxu0 %v5071
    %6180 = vmatpush.msra.mxu0 %v5063
    %6181 = vmatpush.msra.mxu0 %v5055
    %6182 = vmatpush.msra.mxu0 %v5047
    %6183 = vmatpush.msra.mxu0 %v5039
    %6184 = vmatpush.msra.mxu0 %v5031
    %6185 = vmatpush.msra.mxu0 %v5023
    %6186 = vmatpush.msra.mxu0 %v5015
    %6187 = vmatpush.msra.mxu0 %v5007
    %6188 = vmatpush.msra.mxu0 %v4999
    %6189 = vmatpush.msra.mxu0 %v4991
    %6190 = vmatmul.f32.gmra.mxu0 %v4470
    %v6191 = vpop.f32.mrf.mxu0
    %v6192 = vadd.f32 0.0, %v6191
    %6193 = vdwg.mxu0
    %6194 = vmatpush.msra.mxu0 %v5239
    %6195 = vmatpush.msra.mxu0 %v5231
    %6196 = vmatpush.msra.mxu0 %v5223
    %6197 = vmatpush.msra.mxu0 %v5215
    %6198 = vmatpush.msra.mxu0 %v5207
    %6199 = vmatpush.msra.mxu0 %v5199
    %6200 = vmatpush.msra.mxu0 %v5191
    %6201 = vmatpush.msra.mxu0 %v5183
    %6202 = vmatpush.msra.mxu0 %v5175
    %6203 = vmatpush.msra.mxu0 %v5167
    %6204 = vmatpush.msra.mxu0 %v5159
    %6205 = vmatpush.msra.mxu0 %v5151
    %6206 = vmatpush.msra.mxu0 %v5143
    %6207 = vmatpush.msra.mxu0 %v5135
    %6208 = vmatpush.msra.mxu0 %v5127
    %6209 = vmatpush.msra.mxu0 %v5119
    %6210 = vmatmul.f32.gmra.mxu0 %v4471
    %v6211 = vpop.f32.mrf.mxu0
    %v6212 = vadd.f32 %v6192, %v6211
    %6213 = vdwg.mxu0
    %6214 = vmatpush.msra.mxu0 %v5367
    %6215 = vmatpush.msra.mxu0 %v5359
    %6216 = vmatpush.msra.mxu0 %v5351
    %6217 = vmatpush.msra.mxu0 %v5343
    %6218 = vmatpush.msra.mxu0 %v5335
    %6219 = vmatpush.msra.mxu0 %v5327
    %6220 = vmatpush.msra.mxu0 %v5319
    %6221 = vmatpush.msra.mxu0 %v5311
    %6222 = vmatpush.msra.mxu0 %v5303
    %6223 = vmatpush.msra.mxu0 %v5295
    %6224 = vmatpush.msra.mxu0 %v5287
    %6225 = vmatpush.msra.mxu0 %v5279
    %6226 = vmatpush.msra.mxu0 %v5271
    %6227 = vmatpush.msra.mxu0 %v5263
    %6228 = vmatpush.msra.mxu0 %v5255
    %6229 = vmatpush.msra.mxu0 %v5247
    %6230 = vmatmul.f32.gmra.mxu0 %v4472
    %v6231 = vpop.f32.mrf.mxu0
    %v6232 = vadd.f32 %v6212, %v6231
    %6233 = vdwg.mxu0
    %6234 = vmatpush.msra.mxu0 %v5495
    %6235 = vmatpush.msra.mxu0 %v5487
    %6236 = vmatpush.msra.mxu0 %v5479
    %6237 = vmatpush.msra.mxu0 %v5471
    %6238 = vmatpush.msra.mxu0 %v5463
    %6239 = vmatpush.msra.mxu0 %v5455
    %6240 = vmatpush.msra.mxu0 %v5447
    %6241 = vmatpush.msra.mxu0 %v5439
    %6242 = vmatpush.msra.mxu0 %v5431
    %6243 = vmatpush.msra.mxu0 %v5423
    %6244 = vmatpush.msra.mxu0 %v5415
    %6245 = vmatpush.msra.mxu0 %v5407
    %6246 = vmatpush.msra.mxu0 %v5399
    %6247 = vmatpush.msra.mxu0 %v5391
    %6248 = vmatpush.msra.mxu0 %v5383
    %6249 = vmatpush.msra.mxu0 %v5375
    %6250 = vmatmul.f32.gmra.mxu0 %v4473
    %v6251 = vpop.f32.mrf.mxu0
    %v6252 = vadd.f32 %v6232, %v6251
    %6253 = vdwg.mxu0
    %6254 = vmatpush.msra.mxu0 %v5623
    %6255 = vmatpush.msra.mxu0 %v5615
    %6256 = vmatpush.msra.mxu0 %v5607
    %6257 = vmatpush.msra.mxu0 %v5599
    %6258 = vmatpush.msra.mxu0 %v5591
    %6259 = vmatpush.msra.mxu0 %v5583
    %6260 = vmatpush.msra.mxu0 %v5575
    %6261 = vmatpush.msra.mxu0 %v5567
    %6262 = vmatpush.msra.mxu0 %v5559
    %6263 = vmatpush.msra.mxu0 %v5551
    %6264 = vmatpush.msra.mxu0 %v5543
    %6265 = vmatpush.msra.mxu0 %v5535
    %6266 = vmatpush.msra.mxu0 %v5527
    %6267 = vmatpush.msra.mxu0 %v5519
    %6268 = vmatpush.msra.mxu0 %v5511
    %6269 = vmatpush.msra.mxu0 %v5503
    %6270 = vmatmul.f32.gmra.mxu0 %v4474
    %v6271 = vpop.f32.mrf.mxu0
    %v6272 = vadd.f32 %v6252, %v6271
    %6273 = vdwg.mxu0
    %6274 = vmatpush.msra.mxu0 %v5751
    %6275 = vmatpush.msra.mxu0 %v5743
    %6276 = vmatpush.msra.mxu0 %v5735
    %6277 = vmatpush.msra.mxu0 %v5727
    %6278 = vmatpush.msra.mxu0 %v5719
    %6279 = vmatpush.msra.mxu0 %v5711
    %6280 = vmatpush.msra.mxu0 %v5703
    %6281 = vmatpush.msra.mxu0 %v5695
    %6282 = vmatpush.msra.mxu0 %v5687
    %6283 = vmatpush.msra.mxu0 %v5679
    %6284 = vmatpush.msra.mxu0 %v5671
    %6285 = vmatpush.msra.mxu0 %v5663
    %6286 = vmatpush.msra.mxu0 %v5655
    %6287 = vmatpush.msra.mxu0 %v5647
    %6288 = vmatpush.msra.mxu0 %v5639
    %6289 = vmatpush.msra.mxu0 %v5631
    %6290 = vmatmul.f32.gmra.mxu0 %v4475
    %v6291 = vpop.f32.mrf.mxu0
    %v6292 = vadd.f32 %v6272, %v6291
    %6293 = vdwg.mxu0
    %6294 = vmatpush.msra.mxu0 %v5879
    %6295 = vmatpush.msra.mxu0 %v5871
    %6296 = vmatpush.msra.mxu0 %v5863
    %6297 = vmatpush.msra.mxu0 %v5855
    %6298 = vmatpush.msra.mxu0 %v5847
    %6299 = vmatpush.msra.mxu0 %v5839
    %6300 = vmatpush.msra.mxu0 %v5831
    %6301 = vmatpush.msra.mxu0 %v5823
    %6302 = vmatpush.msra.mxu0 %v5815
    %6303 = vmatpush.msra.mxu0 %v5807
    %6304 = vmatpush.msra.mxu0 %v5799
    %6305 = vmatpush.msra.mxu0 %v5791
    %6306 = vmatpush.msra.mxu0 %v5783
    %6307 = vmatpush.msra.mxu0 %v5775
    %6308 = vmatpush.msra.mxu0 %v5767
    %6309 = vmatpush.msra.mxu0 %v5759
    %6310 = vmatmul.f32.gmra.mxu0 %v4476
    %v6311 = vpop.f32.mrf.mxu0
    %v6312 = vadd.f32 %v6292, %v6311
    %6313 = vdwg.mxu0
    %6314 = vmatpush.msra.mxu0 %v6007
    %6315 = vmatpush.msra.mxu0 %v5999
    %6316 = vmatpush.msra.mxu0 %v5991
    %6317 = vmatpush.msra.mxu0 %v5983
    %6318 = vmatpush.msra.mxu0 %v5975
    %6319 = vmatpush.msra.mxu0 %v5967
    %6320 = vmatpush.msra.mxu0 %v5959
    %6321 = vmatpush.msra.mxu0 %v5951
    %6322 = vmatpush.msra.mxu0 %v5943
    %6323 = vmatpush.msra.mxu0 %v5935
    %6324 = vmatpush.msra.mxu0 %v5927
    %6325 = vmatpush.msra.mxu0 %v5919
    %6326 = vmatpush.msra.mxu0 %v5911
    %6327 = vmatpush.msra.mxu0 %v5903
    %6328 = vmatpush.msra.mxu0 %v5895
    %6329 = vmatpush.msra.mxu0 %v5887
    %6330 = vmatmul.f32.gmra.mxu0 %v4477
    %v6331 = vpop.f32.mrf.mxu0
    %v6332 = vadd.f32 %v6312, %v6331
    %6333 = vdwg.mxu0
    %6334 = vmatpush.msra.mxu0 %v5112
    %6335 = vmatpush.msra.mxu0 %v5104
    %6336 = vmatpush.msra.mxu0 %v5096
    %6337 = vmatpush.msra.mxu0 %v5088
    %6338 = vmatpush.msra.mxu0 %v5080
    %6339 = vmatpush.msra.mxu0 %v5072
    %6340 = vmatpush.msra.mxu0 %v5064
    %6341 = vmatpush.msra.mxu0 %v5056
    %6342 = vmatpush.msra.mxu0 %v5048
    %6343 = vmatpush.msra.mxu0 %v5040
    %6344 = vmatpush.msra.mxu0 %v5032
    %6345 = vmatpush.msra.mxu0 %v5024
    %6346 = vmatpush.msra.mxu0 %v5016
    %6347 = vmatpush.msra.mxu0 %v5008
    %6348 = vmatpush.msra.mxu0 %v5000
    %6349 = vmatpush.msra.mxu0 %v4992
    %6350 = vmatmul.f32.gmra.mxu0 %v4470
    %v6351 = vpop.f32.mrf.mxu0
    %v6352 = vadd.f32 0.0, %v6351
    %6353 = vdwg.mxu0
    %6354 = vmatpush.msra.mxu0 %v5240
    %6355 = vmatpush.msra.mxu0 %v5232
    %6356 = vmatpush.msra.mxu0 %v5224
    %6357 = vmatpush.msra.mxu0 %v5216
    %6358 = vmatpush.msra.mxu0 %v5208
    %6359 = vmatpush.msra.mxu0 %v5200
    %6360 = vmatpush.msra.mxu0 %v5192
    %6361 = vmatpush.msra.mxu0 %v5184
    %6362 = vmatpush.msra.mxu0 %v5176
    %6363 = vmatpush.msra.mxu0 %v5168
    %6364 = vmatpush.msra.mxu0 %v5160
    %6365 = vmatpush.msra.mxu0 %v5152
    %6366 = vmatpush.msra.mxu0 %v5144
    %6367 = vmatpush.msra.mxu0 %v5136
    %6368 = vmatpush.msra.mxu0 %v5128
    %6369 = vmatpush.msra.mxu0 %v5120
    %6370 = vmatmul.f32.gmra.mxu0 %v4471
    %v6371 = vpop.f32.mrf.mxu0
    %v6372 = vadd.f32 %v6352, %v6371
    %6373 = vdwg.mxu0
    %6374 = vmatpush.msra.mxu0 %v5368
    %6375 = vmatpush.msra.mxu0 %v5360
    %6376 = vmatpush.msra.mxu0 %v5352
    %6377 = vmatpush.msra.mxu0 %v5344
    %6378 = vmatpush.msra.mxu0 %v5336
    %6379 = vmatpush.msra.mxu0 %v5328
    %6380 = vmatpush.msra.mxu0 %v5320
    %6381 = vmatpush.msra.mxu0 %v5312
    %6382 = vmatpush.msra.mxu0 %v5304
    %6383 = vmatpush.msra.mxu0 %v5296
    %6384 = vmatpush.msra.mxu0 %v5288
    %6385 = vmatpush.msra.mxu0 %v5280
    %6386 = vmatpush.msra.mxu0 %v5272
    %6387 = vmatpush.msra.mxu0 %v5264
    %6388 = vmatpush.msra.mxu0 %v5256
    %6389 = vmatpush.msra.mxu0 %v5248
    %6390 = vmatmul.f32.gmra.mxu0 %v4472
    %v6391 = vpop.f32.mrf.mxu0
    %v6392 = vadd.f32 %v6372, %v6391
    %6393 = vdwg.mxu0
    %6394 = vmatpush.msra.mxu0 %v5496
    %6395 = vmatpush.msra.mxu0 %v5488
    %6396 = vmatpush.msra.mxu0 %v5480
    %6397 = vmatpush.msra.mxu0 %v5472
    %6398 = vmatpush.msra.mxu0 %v5464
    %6399 = vmatpush.msra.mxu0 %v5456
    %6400 = vmatpush.msra.mxu0 %v5448
    %6401 = vmatpush.msra.mxu0 %v5440
    %6402 = vmatpush.msra.mxu0 %v5432
    %6403 = vmatpush.msra.mxu0 %v5424
    %6404 = vmatpush.msra.mxu0 %v5416
    %6405 = vmatpush.msra.mxu0 %v5408
    %6406 = vmatpush.msra.mxu0 %v5400
    %6407 = vmatpush.msra.mxu0 %v5392
    %6408 = vmatpush.msra.mxu0 %v5384
    %6409 = vmatpush.msra.mxu0 %v5376
    %6410 = vmatmul.f32.gmra.mxu0 %v4473
    %v6411 = vpop.f32.mrf.mxu0
    %v6412 = vadd.f32 %v6392, %v6411
    %6413 = vdwg.mxu0
    %6414 = vmatpush.msra.mxu0 %v5624
    %6415 = vmatpush.msra.mxu0 %v5616
    %6416 = vmatpush.msra.mxu0 %v5608
    %6417 = vmatpush.msra.mxu0 %v5600
    %6418 = vmatpush.msra.mxu0 %v5592
    %6419 = vmatpush.msra.mxu0 %v5584
    %6420 = vmatpush.msra.mxu0 %v5576
    %6421 = vmatpush.msra.mxu0 %v5568
    %6422 = vmatpush.msra.mxu0 %v5560
    %6423 = vmatpush.msra.mxu0 %v5552
    %6424 = vmatpush.msra.mxu0 %v5544
    %6425 = vmatpush.msra.mxu0 %v5536
    %6426 = vmatpush.msra.mxu0 %v5528
    %6427 = vmatpush.msra.mxu0 %v5520
    %6428 = vmatpush.msra.mxu0 %v5512
    %6429 = vmatpush.msra.mxu0 %v5504
    %6430 = vmatmul.f32.gmra.mxu0 %v4474
    %v6431 = vpop.f32.mrf.mxu0
    %v6432 = vadd.f32 %v6412, %v6431
    %6433 = vdwg.mxu0
    %6434 = vmatpush.msra.mxu0 %v5752
    %6435 = vmatpush.msra.mxu0 %v5744
    %6436 = vmatpush.msra.mxu0 %v5736
    %6437 = vmatpush.msra.mxu0 %v5728
    %6438 = vmatpush.msra.mxu0 %v5720
    %6439 = vmatpush.msra.mxu0 %v5712
    %6440 = vmatpush.msra.mxu0 %v5704
    %6441 = vmatpush.msra.mxu0 %v5696
    %6442 = vmatpush.msra.mxu0 %v5688
    %6443 = vmatpush.msra.mxu0 %v5680
    %6444 = vmatpush.msra.mxu0 %v5672
    %6445 = vmatpush.msra.mxu0 %v5664
    %6446 = vmatpush.msra.mxu0 %v5656
    %6447 = vmatpush.msra.mxu0 %v5648
    %6448 = vmatpush.msra.mxu0 %v5640
    %6449 = vmatpush.msra.mxu0 %v5632
    %6450 = vmatmul.f32.gmra.mxu0 %v4475
    %v6451 = vpop.f32.mrf.mxu0
    %v6452 = vadd.f32 %v6432, %v6451
    %6453 = vdwg.mxu0
    %6454 = vmatpush.msra.mxu0 %v5880
    %6455 = vmatpush.msra.mxu0 %v5872
    %6456 = vmatpush.msra.mxu0 %v5864
    %6457 = vmatpush.msra.mxu0 %v5856
    %6458 = vmatpush.msra.mxu0 %v5848
    %6459 = vmatpush.msra.mxu0 %v5840
    %6460 = vmatpush.msra.mxu0 %v5832
    %6461 = vmatpush.msra.mxu0 %v5824
    %6462 = vmatpush.msra.mxu0 %v5816
    %6463 = vmatpush.msra.mxu0 %v5808
    %6464 = vmatpush.msra.mxu0 %v5800
    %6465 = vmatpush.msra.mxu0 %v5792
    %6466 = vmatpush.msra.mxu0 %v5784
    %6467 = vmatpush.msra.mxu0 %v5776
    %6468 = vmatpush.msra.mxu0 %v5768
    %6469 = vmatpush.msra.mxu0 %v5760
    %6470 = vmatmul.f32.gmra.mxu0 %v4476
    %v6471 = vpop.f32.mrf.mxu0
    %v6472 = vadd.f32 %v6452, %v6471
    %6473 = vdwg.mxu0
    %6474 = vmatpush.msra.mxu0 %v6008
    %6475 = vmatpush.msra.mxu0 %v6000
    %6476 = vmatpush.msra.mxu0 %v5992
    %6477 = vmatpush.msra.mxu0 %v5984
    %6478 = vmatpush.msra.mxu0 %v5976
    %6479 = vmatpush.msra.mxu0 %v5968
    %6480 = vmatpush.msra.mxu0 %v5960
    %6481 = vmatpush.msra.mxu0 %v5952
    %6482 = vmatpush.msra.mxu0 %v5944
    %6483 = vmatpush.msra.mxu0 %v5936
    %6484 = vmatpush.msra.mxu0 %v5928
    %6485 = vmatpush.msra.mxu0 %v5920
    %6486 = vmatpush.msra.mxu0 %v5912
    %6487 = vmatpush.msra.mxu0 %v5904
    %6488 = vmatpush.msra.mxu0 %v5896
    %6489 = vmatpush.msra.mxu0 %v5888
    %6490 = vmatmul.f32.gmra.mxu0 %v4477
    %v6491 = vpop.f32.mrf.mxu0
    %v6492 = vadd.f32 %v6472, %v6491
    %6493 = vdwg.mxu0
    %6494 = vmatpush.msra.mxu0 %v5113
    %6495 = vmatpush.msra.mxu0 %v5105
    %6496 = vmatpush.msra.mxu0 %v5097
    %6497 = vmatpush.msra.mxu0 %v5089
    %6498 = vmatpush.msra.mxu0 %v5081
    %6499 = vmatpush.msra.mxu0 %v5073
    %6500 = vmatpush.msra.mxu0 %v5065
    %6501 = vmatpush.msra.mxu0 %v5057
    %6502 = vmatpush.msra.mxu0 %v5049
    %6503 = vmatpush.msra.mxu0 %v5041
    %6504 = vmatpush.msra.mxu0 %v5033
    %6505 = vmatpush.msra.mxu0 %v5025
    %6506 = vmatpush.msra.mxu0 %v5017
    %6507 = vmatpush.msra.mxu0 %v5009
    %6508 = vmatpush.msra.mxu0 %v5001
    %6509 = vmatpush.msra.mxu0 %v4993
    %6510 = vmatmul.f32.gmra.mxu0 %v4470
    %v6511 = vpop.f32.mrf.mxu0
    %v6512 = vadd.f32 0.0, %v6511
    %6513 = vdwg.mxu0
    %6514 = vmatpush.msra.mxu0 %v5241
    %6515 = vmatpush.msra.mxu0 %v5233
    %6516 = vmatpush.msra.mxu0 %v5225
    %6517 = vmatpush.msra.mxu0 %v5217
    %6518 = vmatpush.msra.mxu0 %v5209
    %6519 = vmatpush.msra.mxu0 %v5201
    %6520 = vmatpush.msra.mxu0 %v5193
    %6521 = vmatpush.msra.mxu0 %v5185
    %6522 = vmatpush.msra.mxu0 %v5177
    %6523 = vmatpush.msra.mxu0 %v5169
    %6524 = vmatpush.msra.mxu0 %v5161
    %6525 = vmatpush.msra.mxu0 %v5153
    %6526 = vmatpush.msra.mxu0 %v5145
    %6527 = vmatpush.msra.mxu0 %v5137
    %6528 = vmatpush.msra.mxu0 %v5129
    %6529 = vmatpush.msra.mxu0 %v5121
    %6530 = vmatmul.f32.gmra.mxu0 %v4471
    %v6531 = vpop.f32.mrf.mxu0
    %v6532 = vadd.f32 %v6512, %v6531
    %6533 = vdwg.mxu0
    %6534 = vmatpush.msra.mxu0 %v5369
    %6535 = vmatpush.msra.mxu0 %v5361
    %6536 = vmatpush.msra.mxu0 %v5353
    %6537 = vmatpush.msra.mxu0 %v5345
    %6538 = vmatpush.msra.mxu0 %v5337
    %6539 = vmatpush.msra.mxu0 %v5329
    %6540 = vmatpush.msra.mxu0 %v5321
    %6541 = vmatpush.msra.mxu0 %v5313
    %6542 = vmatpush.msra.mxu0 %v5305
    %6543 = vmatpush.msra.mxu0 %v5297
    %6544 = vmatpush.msra.mxu0 %v5289
    %6545 = vmatpush.msra.mxu0 %v5281
    %6546 = vmatpush.msra.mxu0 %v5273
    %6547 = vmatpush.msra.mxu0 %v5265
    %6548 = vmatpush.msra.mxu0 %v5257
    %6549 = vmatpush.msra.mxu0 %v5249
    %6550 = vmatmul.f32.gmra.mxu0 %v4472
    %v6551 = vpop.f32.mrf.mxu0
    %v6552 = vadd.f32 %v6532, %v6551
    %6553 = vdwg.mxu0
    %6554 = vmatpush.msra.mxu0 %v5497
    %6555 = vmatpush.msra.mxu0 %v5489
    %6556 = vmatpush.msra.mxu0 %v5481
    %6557 = vmatpush.msra.mxu0 %v5473
    %6558 = vmatpush.msra.mxu0 %v5465
    %6559 = vmatpush.msra.mxu0 %v5457
    %6560 = vmatpush.msra.mxu0 %v5449
    %6561 = vmatpush.msra.mxu0 %v5441
    %6562 = vmatpush.msra.mxu0 %v5433
    %6563 = vmatpush.msra.mxu0 %v5425
    %6564 = vmatpush.msra.mxu0 %v5417
    %6565 = vmatpush.msra.mxu0 %v5409
    %6566 = vmatpush.msra.mxu0 %v5401
    %6567 = vmatpush.msra.mxu0 %v5393
    %6568 = vmatpush.msra.mxu0 %v5385
    %6569 = vmatpush.msra.mxu0 %v5377
    %6570 = vmatmul.f32.gmra.mxu0 %v4473
    %v6571 = vpop.f32.mrf.mxu0
    %v6572 = vadd.f32 %v6552, %v6571
    %6573 = vdwg.mxu0
    %6574 = vmatpush.msra.mxu0 %v5625
    %6575 = vmatpush.msra.mxu0 %v5617
    %6576 = vmatpush.msra.mxu0 %v5609
    %6577 = vmatpush.msra.mxu0 %v5601
    %6578 = vmatpush.msra.mxu0 %v5593
    %6579 = vmatpush.msra.mxu0 %v5585
    %6580 = vmatpush.msra.mxu0 %v5577
    %6581 = vmatpush.msra.mxu0 %v5569
    %6582 = vmatpush.msra.mxu0 %v5561
    %6583 = vmatpush.msra.mxu0 %v5553
    %6584 = vmatpush.msra.mxu0 %v5545
    %6585 = vmatpush.msra.mxu0 %v5537
    %6586 = vmatpush.msra.mxu0 %v5529
    %6587 = vmatpush.msra.mxu0 %v5521
    %6588 = vmatpush.msra.mxu0 %v5513
    %6589 = vmatpush.msra.mxu0 %v5505
    %6590 = vmatmul.f32.gmra.mxu0 %v4474
    %v6591 = vpop.f32.mrf.mxu0
    %v6592 = vadd.f32 %v6572, %v6591
    %6593 = vdwg.mxu0
    %6594 = vmatpush.msra.mxu0 %v5753
    %6595 = vmatpush.msra.mxu0 %v5745
    %6596 = vmatpush.msra.mxu0 %v5737
    %6597 = vmatpush.msra.mxu0 %v5729
    %6598 = vmatpush.msra.mxu0 %v5721
    %6599 = vmatpush.msra.mxu0 %v5713
    %6600 = vmatpush.msra.mxu0 %v5705
    %6601 = vmatpush.msra.mxu0 %v5697
    %6602 = vmatpush.msra.mxu0 %v5689
    %6603 = vmatpush.msra.mxu0 %v5681
    %6604 = vmatpush.msra.mxu0 %v5673
    %6605 = vmatpush.msra.mxu0 %v5665
    %6606 = vmatpush.msra.mxu0 %v5657
    %6607 = vmatpush.msra.mxu0 %v5649
    %6608 = vmatpush.msra.mxu0 %v5641
    %6609 = vmatpush.msra.mxu0 %v5633
    %6610 = vmatmul.f32.gmra.mxu0 %v4475
    %v6611 = vpop.f32.mrf.mxu0
    %v6612 = vadd.f32 %v6592, %v6611
    %6613 = vdwg.mxu0
    %6614 = vmatpush.msra.mxu0 %v5881
    %6615 = vmatpush.msra.mxu0 %v5873
    %6616 = vmatpush.msra.mxu0 %v5865
    %6617 = vmatpush.msra.mxu0 %v5857
    %6618 = vmatpush.msra.mxu0 %v5849
    %6619 = vmatpush.msra.mxu0 %v5841
    %6620 = vmatpush.msra.mxu0 %v5833
    %6621 = vmatpush.msra.mxu0 %v5825
    %6622 = vmatpush.msra.mxu0 %v5817
    %6623 = vmatpush.msra.mxu0 %v5809
    %6624 = vmatpush.msra.mxu0 %v5801
    %6625 = vmatpush.msra.mxu0 %v5793
    %6626 = vmatpush.msra.mxu0 %v5785
    %6627 = vmatpush.msra.mxu0 %v5777
    %6628 = vmatpush.msra.mxu0 %v5769
    %6629 = vmatpush.msra.mxu0 %v5761
    %6630 = vmatmul.f32.gmra.mxu0 %v4476
    %v6631 = vpop.f32.mrf.mxu0
    %v6632 = vadd.f32 %v6612, %v6631
    %6633 = vdwg.mxu0
    %6634 = vmatpush.msra.mxu0 %v6009
    %6635 = vmatpush.msra.mxu0 %v6001
    %6636 = vmatpush.msra.mxu0 %v5993
    %6637 = vmatpush.msra.mxu0 %v5985
    %6638 = vmatpush.msra.mxu0 %v5977
    %6639 = vmatpush.msra.mxu0 %v5969
    %6640 = vmatpush.msra.mxu0 %v5961
    %6641 = vmatpush.msra.mxu0 %v5953
    %6642 = vmatpush.msra.mxu0 %v5945
    %6643 = vmatpush.msra.mxu0 %v5937
    %6644 = vmatpush.msra.mxu0 %v5929
    %6645 = vmatpush.msra.mxu0 %v5921
    %6646 = vmatpush.msra.mxu0 %v5913
    %6647 = vmatpush.msra.mxu0 %v5905
    %6648 = vmatpush.msra.mxu0 %v5897
    %6649 = vmatpush.msra.mxu0 %v5889
    %6650 = vmatmul.f32.gmra.mxu0 %v4477
    %v6651 = vpop.f32.mrf.mxu0
    %v6652 = vadd.f32 %v6632, %v6651
    %6653 = vdwg.mxu0
    %6654 = vmatpush.msra.mxu0 %v5114
    %6655 = vmatpush.msra.mxu0 %v5106
    %6656 = vmatpush.msra.mxu0 %v5098
    %6657 = vmatpush.msra.mxu0 %v5090
    %6658 = vmatpush.msra.mxu0 %v5082
    %6659 = vmatpush.msra.mxu0 %v5074
    %6660 = vmatpush.msra.mxu0 %v5066
    %6661 = vmatpush.msra.mxu0 %v5058
    %6662 = vmatpush.msra.mxu0 %v5050
    %6663 = vmatpush.msra.mxu0 %v5042
    %6664 = vmatpush.msra.mxu0 %v5034
    %6665 = vmatpush.msra.mxu0 %v5026
    %6666 = vmatpush.msra.mxu0 %v5018
    %6667 = vmatpush.msra.mxu0 %v5010
    %6668 = vmatpush.msra.mxu0 %v5002
    %6669 = vmatpush.msra.mxu0 %v4994
    %6670 = vmatmul.f32.gmra.mxu0 %v4470
    %v6671 = vpop.f32.mrf.mxu0
    %v6672 = vadd.f32 0.0, %v6671
    %6673 = vdwg.mxu0
    %6674 = vmatpush.msra.mxu0 %v5242
    %6675 = vmatpush.msra.mxu0 %v5234
    %6676 = vmatpush.msra.mxu0 %v5226
    %6677 = vmatpush.msra.mxu0 %v5218
    %6678 = vmatpush.msra.mxu0 %v5210
    %6679 = vmatpush.msra.mxu0 %v5202
    %6680 = vmatpush.msra.mxu0 %v5194
    %6681 = vmatpush.msra.mxu0 %v5186
    %6682 = vmatpush.msra.mxu0 %v5178
    %6683 = vmatpush.msra.mxu0 %v5170
    %6684 = vmatpush.msra.mxu0 %v5162
    %6685 = vmatpush.msra.mxu0 %v5154
    %6686 = vmatpush.msra.mxu0 %v5146
    %6687 = vmatpush.msra.mxu0 %v5138
    %6688 = vmatpush.msra.mxu0 %v5130
    %6689 = vmatpush.msra.mxu0 %v5122
    %6690 = vmatmul.f32.gmra.mxu0 %v4471
    %v6691 = vpop.f32.mrf.mxu0
    %v6692 = vadd.f32 %v6672, %v6691
    %6693 = vdwg.mxu0
    %6694 = vmatpush.msra.mxu0 %v5370
    %6695 = vmatpush.msra.mxu0 %v5362
    %6696 = vmatpush.msra.mxu0 %v5354
    %6697 = vmatpush.msra.mxu0 %v5346
    %6698 = vmatpush.msra.mxu0 %v5338
    %6699 = vmatpush.msra.mxu0 %v5330
    %6700 = vmatpush.msra.mxu0 %v5322
    %6701 = vmatpush.msra.mxu0 %v5314
    %6702 = vmatpush.msra.mxu0 %v5306
    %6703 = vmatpush.msra.mxu0 %v5298
    %6704 = vmatpush.msra.mxu0 %v5290
    %6705 = vmatpush.msra.mxu0 %v5282
    %6706 = vmatpush.msra.mxu0 %v5274
    %6707 = vmatpush.msra.mxu0 %v5266
    %6708 = vmatpush.msra.mxu0 %v5258
    %6709 = vmatpush.msra.mxu0 %v5250
    %6710 = vmatmul.f32.gmra.mxu0 %v4472
    %v6711 = vpop.f32.mrf.mxu0
    %v6712 = vadd.f32 %v6692, %v6711
    %6713 = vdwg.mxu0
    %6714 = vmatpush.msra.mxu0 %v5498
    %6715 = vmatpush.msra.mxu0 %v5490
    %6716 = vmatpush.msra.mxu0 %v5482
    %6717 = vmatpush.msra.mxu0 %v5474
    %6718 = vmatpush.msra.mxu0 %v5466
    %6719 = vmatpush.msra.mxu0 %v5458
    %6720 = vmatpush.msra.mxu0 %v5450
    %6721 = vmatpush.msra.mxu0 %v5442
    %6722 = vmatpush.msra.mxu0 %v5434
    %6723 = vmatpush.msra.mxu0 %v5426
    %6724 = vmatpush.msra.mxu0 %v5418
    %6725 = vmatpush.msra.mxu0 %v5410
    %6726 = vmatpush.msra.mxu0 %v5402
    %6727 = vmatpush.msra.mxu0 %v5394
    %6728 = vmatpush.msra.mxu0 %v5386
    %6729 = vmatpush.msra.mxu0 %v5378
    %6730 = vmatmul.f32.gmra.mxu0 %v4473
    %v6731 = vpop.f32.mrf.mxu0
    %v6732 = vadd.f32 %v6712, %v6731
    %6733 = vdwg.mxu0
    %6734 = vmatpush.msra.mxu0 %v5626
    %6735 = vmatpush.msra.mxu0 %v5618
    %6736 = vmatpush.msra.mxu0 %v5610
    %6737 = vmatpush.msra.mxu0 %v5602
    %6738 = vmatpush.msra.mxu0 %v5594
    %6739 = vmatpush.msra.mxu0 %v5586
    %6740 = vmatpush.msra.mxu0 %v5578
    %6741 = vmatpush.msra.mxu0 %v5570
    %6742 = vmatpush.msra.mxu0 %v5562
    %6743 = vmatpush.msra.mxu0 %v5554
    %6744 = vmatpush.msra.mxu0 %v5546
    %6745 = vmatpush.msra.mxu0 %v5538
    %6746 = vmatpush.msra.mxu0 %v5530
    %6747 = vmatpush.msra.mxu0 %v5522
    %6748 = vmatpush.msra.mxu0 %v5514
    %6749 = vmatpush.msra.mxu0 %v5506
    %6750 = vmatmul.f32.gmra.mxu0 %v4474
    %v6751 = vpop.f32.mrf.mxu0
    %v6752 = vadd.f32 %v6732, %v6751
    %6753 = vdwg.mxu0
    %6754 = vmatpush.msra.mxu0 %v5754
    %6755 = vmatpush.msra.mxu0 %v5746
    %6756 = vmatpush.msra.mxu0 %v5738
    %6757 = vmatpush.msra.mxu0 %v5730
    %6758 = vmatpush.msra.mxu0 %v5722
    %6759 = vmatpush.msra.mxu0 %v5714
    %6760 = vmatpush.msra.mxu0 %v5706
    %6761 = vmatpush.msra.mxu0 %v5698
    %6762 = vmatpush.msra.mxu0 %v5690
    %6763 = vmatpush.msra.mxu0 %v5682
    %6764 = vmatpush.msra.mxu0 %v5674
    %6765 = vmatpush.msra.mxu0 %v5666
    %6766 = vmatpush.msra.mxu0 %v5658
    %6767 = vmatpush.msra.mxu0 %v5650
    %6768 = vmatpush.msra.mxu0 %v5642
    %6769 = vmatpush.msra.mxu0 %v5634
    %6770 = vmatmul.f32.gmra.mxu0 %v4475
    %v6771 = vpop.f32.mrf.mxu0
    %v6772 = vadd.f32 %v6752, %v6771
    %6773 = vdwg.mxu0
    %6774 = vmatpush.msra.mxu0 %v5882
    %6775 = vmatpush.msra.mxu0 %v5874
    %6776 = vmatpush.msra.mxu0 %v5866
    %6777 = vmatpush.msra.mxu0 %v5858
    %6778 = vmatpush.msra.mxu0 %v5850
    %6779 = vmatpush.msra.mxu0 %v5842
    %6780 = vmatpush.msra.mxu0 %v5834
    %6781 = vmatpush.msra.mxu0 %v5826
    %6782 = vmatpush.msra.mxu0 %v5818
    %6783 = vmatpush.msra.mxu0 %v5810
    %6784 = vmatpush.msra.mxu0 %v5802
    %6785 = vmatpush.msra.mxu0 %v5794
    %6786 = vmatpush.msra.mxu0 %v5786
    %6787 = vmatpush.msra.mxu0 %v5778
    %6788 = vmatpush.msra.mxu0 %v5770
    %6789 = vmatpush.msra.mxu0 %v5762
    %6790 = vmatmul.f32.gmra.mxu0 %v4476
    %v6791 = vpop.f32.mrf.mxu0
    %v6792 = vadd.f32 %v6772, %v6791
    %6793 = vdwg.mxu0
    %6794 = vmatpush.msra.mxu0 %v6010
    %6795 = vmatpush.msra.mxu0 %v6002
    %6796 = vmatpush.msra.mxu0 %v5994
    %6797 = vmatpush.msra.mxu0 %v5986
    %6798 = vmatpush.msra.mxu0 %v5978
    %6799 = vmatpush.msra.mxu0 %v5970
    %6800 = vmatpush.msra.mxu0 %v5962
    %6801 = vmatpush.msra.mxu0 %v5954
    %6802 = vmatpush.msra.mxu0 %v5946
    %6803 = vmatpush.msra.mxu0 %v5938
    %6804 = vmatpush.msra.mxu0 %v5930
    %6805 = vmatpush.msra.mxu0 %v5922
    %6806 = vmatpush.msra.mxu0 %v5914
    %6807 = vmatpush.msra.mxu0 %v5906
    %6808 = vmatpush.msra.mxu0 %v5898
    %6809 = vmatpush.msra.mxu0 %v5890
    %6810 = vmatmul.f32.gmra.mxu0 %v4477
    %v6811 = vpop.f32.mrf.mxu0
    %v6812 = vadd.f32 %v6792, %v6811
    %6813 = vdwg.mxu0
    %6814 = vmatpush.msra.mxu0 %v5115
    %6815 = vmatpush.msra.mxu0 %v5107
    %6816 = vmatpush.msra.mxu0 %v5099
    %6817 = vmatpush.msra.mxu0 %v5091
    %6818 = vmatpush.msra.mxu0 %v5083
    %6819 = vmatpush.msra.mxu0 %v5075
    %6820 = vmatpush.msra.mxu0 %v5067
    %6821 = vmatpush.msra.mxu0 %v5059
    %6822 = vmatpush.msra.mxu0 %v5051
    %6823 = vmatpush.msra.mxu0 %v5043
    %6824 = vmatpush.msra.mxu0 %v5035
    %6825 = vmatpush.msra.mxu0 %v5027
    %6826 = vmatpush.msra.mxu0 %v5019
    %6827 = vmatpush.msra.mxu0 %v5011
    %6828 = vmatpush.msra.mxu0 %v5003
    %6829 = vmatpush.msra.mxu0 %v4995
    %6830 = vmatmul.f32.gmra.mxu0 %v4470
    %v6831 = vpop.f32.mrf.mxu0
    %v6832 = vadd.f32 0.0, %v6831
    %6833 = vdwg.mxu0
    %6834 = vmatpush.msra.mxu0 %v5243
    %6835 = vmatpush.msra.mxu0 %v5235
    %6836 = vmatpush.msra.mxu0 %v5227
    %6837 = vmatpush.msra.mxu0 %v5219
    %6838 = vmatpush.msra.mxu0 %v5211
    %6839 = vmatpush.msra.mxu0 %v5203
    %6840 = vmatpush.msra.mxu0 %v5195
    %6841 = vmatpush.msra.mxu0 %v5187
    %6842 = vmatpush.msra.mxu0 %v5179
    %6843 = vmatpush.msra.mxu0 %v5171
    %6844 = vmatpush.msra.mxu0 %v5163
    %6845 = vmatpush.msra.mxu0 %v5155
    %6846 = vmatpush.msra.mxu0 %v5147
    %6847 = vmatpush.msra.mxu0 %v5139
    %6848 = vmatpush.msra.mxu0 %v5131
    %6849 = vmatpush.msra.mxu0 %v5123
    %6850 = vmatmul.f32.gmra.mxu0 %v4471
    %v6851 = vpop.f32.mrf.mxu0
    %v6852 = vadd.f32 %v6832, %v6851
    %6853 = vdwg.mxu0
    %6854 = vmatpush.msra.mxu0 %v5371
    %6855 = vmatpush.msra.mxu0 %v5363
    %6856 = vmatpush.msra.mxu0 %v5355
    %6857 = vmatpush.msra.mxu0 %v5347
    %6858 = vmatpush.msra.mxu0 %v5339
    %6859 = vmatpush.msra.mxu0 %v5331
    %6860 = vmatpush.msra.mxu0 %v5323
    %6861 = vmatpush.msra.mxu0 %v5315
    %6862 = vmatpush.msra.mxu0 %v5307
    %6863 = vmatpush.msra.mxu0 %v5299
    %6864 = vmatpush.msra.mxu0 %v5291
    %6865 = vmatpush.msra.mxu0 %v5283
    %6866 = vmatpush.msra.mxu0 %v5275
    %6867 = vmatpush.msra.mxu0 %v5267
    %6868 = vmatpush.msra.mxu0 %v5259
    %6869 = vmatpush.msra.mxu0 %v5251
    %6870 = vmatmul.f32.gmra.mxu0 %v4472
    %v6871 = vpop.f32.mrf.mxu0
    %v6872 = vadd.f32 %v6852, %v6871
    %6873 = vdwg.mxu0
    %6874 = vmatpush.msra.mxu0 %v5499
    %6875 = vmatpush.msra.mxu0 %v5491
    %6876 = vmatpush.msra.mxu0 %v5483
    %6877 = vmatpush.msra.mxu0 %v5475
    %6878 = vmatpush.msra.mxu0 %v5467
    %6879 = vmatpush.msra.mxu0 %v5459
    %6880 = vmatpush.msra.mxu0 %v5451
    %6881 = vmatpush.msra.mxu0 %v5443
    %6882 = vmatpush.msra.mxu0 %v5435
    %6883 = vmatpush.msra.mxu0 %v5427
    %6884 = vmatpush.msra.mxu0 %v5419
    %6885 = vmatpush.msra.mxu0 %v5411
    %6886 = vmatpush.msra.mxu0 %v5403
    %6887 = vmatpush.msra.mxu0 %v5395
    %6888 = vmatpush.msra.mxu0 %v5387
    %6889 = vmatpush.msra.mxu0 %v5379
    %6890 = vmatmul.f32.gmra.mxu0 %v4473
    %v6891 = vpop.f32.mrf.mxu0
    %v6892 = vadd.f32 %v6872, %v6891
    %6893 = vdwg.mxu0
    %6894 = vmatpush.msra.mxu0 %v5627
    %6895 = vmatpush.msra.mxu0 %v5619
    %6896 = vmatpush.msra.mxu0 %v5611
    %6897 = vmatpush.msra.mxu0 %v5603
    %6898 = vmatpush.msra.mxu0 %v5595
    %6899 = vmatpush.msra.mxu0 %v5587
    %6900 = vmatpush.msra.mxu0 %v5579
    %6901 = vmatpush.msra.mxu0 %v5571
    %6902 = vmatpush.msra.mxu0 %v5563
    %6903 = vmatpush.msra.mxu0 %v5555
    %6904 = vmatpush.msra.mxu0 %v5547
    %6905 = vmatpush.msra.mxu0 %v5539
    %6906 = vmatpush.msra.mxu0 %v5531
    %6907 = vmatpush.msra.mxu0 %v5523
    %6908 = vmatpush.msra.mxu0 %v5515
    %6909 = vmatpush.msra.mxu0 %v5507
    %6910 = vmatmul.f32.gmra.mxu0 %v4474
    %v6911 = vpop.f32.mrf.mxu0
    %v6912 = vadd.f32 %v6892, %v6911
    %6913 = vdwg.mxu0
    %6914 = vmatpush.msra.mxu0 %v5755
    %6915 = vmatpush.msra.mxu0 %v5747
    %6916 = vmatpush.msra.mxu0 %v5739
    %6917 = vmatpush.msra.mxu0 %v5731
    %6918 = vmatpush.msra.mxu0 %v5723
    %6919 = vmatpush.msra.mxu0 %v5715
    %6920 = vmatpush.msra.mxu0 %v5707
    %6921 = vmatpush.msra.mxu0 %v5699
    %6922 = vmatpush.msra.mxu0 %v5691
    %6923 = vmatpush.msra.mxu0 %v5683
    %6924 = vmatpush.msra.mxu0 %v5675
    %6925 = vmatpush.msra.mxu0 %v5667
    %6926 = vmatpush.msra.mxu0 %v5659
    %6927 = vmatpush.msra.mxu0 %v5651
    %6928 = vmatpush.msra.mxu0 %v5643
    %6929 = vmatpush.msra.mxu0 %v5635
    %6930 = vmatmul.f32.gmra.mxu0 %v4475
    %v6931 = vpop.f32.mrf.mxu0
    %v6932 = vadd.f32 %v6912, %v6931
    %6933 = vdwg.mxu0
    %6934 = vmatpush.msra.mxu0 %v5883
    %6935 = vmatpush.msra.mxu0 %v5875
    %6936 = vmatpush.msra.mxu0 %v5867
    %6937 = vmatpush.msra.mxu0 %v5859
    %6938 = vmatpush.msra.mxu0 %v5851
    %6939 = vmatpush.msra.mxu0 %v5843
    %6940 = vmatpush.msra.mxu0 %v5835
    %6941 = vmatpush.msra.mxu0 %v5827
    %6942 = vmatpush.msra.mxu0 %v5819
    %6943 = vmatpush.msra.mxu0 %v5811
    %6944 = vmatpush.msra.mxu0 %v5803
    %6945 = vmatpush.msra.mxu0 %v5795
    %6946 = vmatpush.msra.mxu0 %v5787
    %6947 = vmatpush.msra.mxu0 %v5779
    %6948 = vmatpush.msra.mxu0 %v5771
    %6949 = vmatpush.msra.mxu0 %v5763
    %6950 = vmatmul.f32.gmra.mxu0 %v4476
    %v6951 = vpop.f32.mrf.mxu0
    %v6952 = vadd.f32 %v6932, %v6951
    %6953 = vdwg.mxu0
    %6954 = vmatpush.msra.mxu0 %v6011
    %6955 = vmatpush.msra.mxu0 %v6003
    %6956 = vmatpush.msra.mxu0 %v5995
    %6957 = vmatpush.msra.mxu0 %v5987
    %6958 = vmatpush.msra.mxu0 %v5979
    %6959 = vmatpush.msra.mxu0 %v5971
    %6960 = vmatpush.msra.mxu0 %v5963
    %6961 = vmatpush.msra.mxu0 %v5955
    %6962 = vmatpush.msra.mxu0 %v5947
    %6963 = vmatpush.msra.mxu0 %v5939
    %6964 = vmatpush.msra.mxu0 %v5931
    %6965 = vmatpush.msra.mxu0 %v5923
    %6966 = vmatpush.msra.mxu0 %v5915
    %6967 = vmatpush.msra.mxu0 %v5907
    %6968 = vmatpush.msra.mxu0 %v5899
    %6969 = vmatpush.msra.mxu0 %v5891
    %6970 = vmatmul.f32.gmra.mxu0 %v4477
    %v6971 = vpop.f32.mrf.mxu0
    %v6972 = vadd.f32 %v6952, %v6971
    %6973 = vdwg.mxu0
    %6974 = vmatpush.msra.mxu0 %v5116
    %6975 = vmatpush.msra.mxu0 %v5108
    %6976 = vmatpush.msra.mxu0 %v5100
    %6977 = vmatpush.msra.mxu0 %v5092
    %6978 = vmatpush.msra.mxu0 %v5084
    %6979 = vmatpush.msra.mxu0 %v5076
    %6980 = vmatpush.msra.mxu0 %v5068
    %6981 = vmatpush.msra.mxu0 %v5060
    %6982 = vmatpush.msra.mxu0 %v5052
    %6983 = vmatpush.msra.mxu0 %v5044
    %6984 = vmatpush.msra.mxu0 %v5036
    %6985 = vmatpush.msra.mxu0 %v5028
    %6986 = vmatpush.msra.mxu0 %v5020
    %6987 = vmatpush.msra.mxu0 %v5012
    %6988 = vmatpush.msra.mxu0 %v5004
    %6989 = vmatpush.msra.mxu0 %v4996
    %6990 = vmatmul.f32.gmra.mxu0 %v4470
    %v6991 = vpop.f32.mrf.mxu0
    %v6992 = vadd.f32 0.0, %v6991
    %6993 = vdwg.mxu0
    %6994 = vmatpush.msra.mxu0 %v5244
    %6995 = vmatpush.msra.mxu0 %v5236
    %6996 = vmatpush.msra.mxu0 %v5228
    %6997 = vmatpush.msra.mxu0 %v5220
    %6998 = vmatpush.msra.mxu0 %v5212
    %6999 = vmatpush.msra.mxu0 %v5204
    %7000 = vmatpush.msra.mxu0 %v5196
    %7001 = vmatpush.msra.mxu0 %v5188
    %7002 = vmatpush.msra.mxu0 %v5180
    %7003 = vmatpush.msra.mxu0 %v5172
    %7004 = vmatpush.msra.mxu0 %v5164
    %7005 = vmatpush.msra.mxu0 %v5156
    %7006 = vmatpush.msra.mxu0 %v5148
    %7007 = vmatpush.msra.mxu0 %v5140
    %7008 = vmatpush.msra.mxu0 %v5132
    %7009 = vmatpush.msra.mxu0 %v5124
    %7010 = vmatmul.f32.gmra.mxu0 %v4471
    %v7011 = vpop.f32.mrf.mxu0
    %v7012 = vadd.f32 %v6992, %v7011
    %7013 = vdwg.mxu0
    %7014 = vmatpush.msra.mxu0 %v5372
    %7015 = vmatpush.msra.mxu0 %v5364
    %7016 = vmatpush.msra.mxu0 %v5356
    %7017 = vmatpush.msra.mxu0 %v5348
    %7018 = vmatpush.msra.mxu0 %v5340
    %7019 = vmatpush.msra.mxu0 %v5332
    %7020 = vmatpush.msra.mxu0 %v5324
    %7021 = vmatpush.msra.mxu0 %v5316
    %7022 = vmatpush.msra.mxu0 %v5308
    %7023 = vmatpush.msra.mxu0 %v5300
    %7024 = vmatpush.msra.mxu0 %v5292
    %7025 = vmatpush.msra.mxu0 %v5284
    %7026 = vmatpush.msra.mxu0 %v5276
    %7027 = vmatpush.msra.mxu0 %v5268
    %7028 = vmatpush.msra.mxu0 %v5260
    %7029 = vmatpush.msra.mxu0 %v5252
    %7030 = vmatmul.f32.gmra.mxu0 %v4472
    %v7031 = vpop.f32.mrf.mxu0
    %v7032 = vadd.f32 %v7012, %v7031
    %7033 = vdwg.mxu0
    %7034 = vmatpush.msra.mxu0 %v5500
    %7035 = vmatpush.msra.mxu0 %v5492
    %7036 = vmatpush.msra.mxu0 %v5484
    %7037 = vmatpush.msra.mxu0 %v5476
    %7038 = vmatpush.msra.mxu0 %v5468
    %7039 = vmatpush.msra.mxu0 %v5460
    %7040 = vmatpush.msra.mxu0 %v5452
    %7041 = vmatpush.msra.mxu0 %v5444
    %7042 = vmatpush.msra.mxu0 %v5436
    %7043 = vmatpush.msra.mxu0 %v5428
    %7044 = vmatpush.msra.mxu0 %v5420
    %7045 = vmatpush.msra.mxu0 %v5412
    %7046 = vmatpush.msra.mxu0 %v5404
    %7047 = vmatpush.msra.mxu0 %v5396
    %7048 = vmatpush.msra.mxu0 %v5388
    %7049 = vmatpush.msra.mxu0 %v5380
    %7050 = vmatmul.f32.gmra.mxu0 %v4473
    %v7051 = vpop.f32.mrf.mxu0
    %v7052 = vadd.f32 %v7032, %v7051
    %7053 = vdwg.mxu0
    %7054 = vmatpush.msra.mxu0 %v5628
    %7055 = vmatpush.msra.mxu0 %v5620
    %7056 = vmatpush.msra.mxu0 %v5612
    %7057 = vmatpush.msra.mxu0 %v5604
    %7058 = vmatpush.msra.mxu0 %v5596
    %7059 = vmatpush.msra.mxu0 %v5588
    %7060 = vmatpush.msra.mxu0 %v5580
    %7061 = vmatpush.msra.mxu0 %v5572
    %7062 = vmatpush.msra.mxu0 %v5564
    %7063 = vmatpush.msra.mxu0 %v5556
    %7064 = vmatpush.msra.mxu0 %v5548
    %7065 = vmatpush.msra.mxu0 %v5540
    %7066 = vmatpush.msra.mxu0 %v5532
    %7067 = vmatpush.msra.mxu0 %v5524
    %7068 = vmatpush.msra.mxu0 %v5516
    %7069 = vmatpush.msra.mxu0 %v5508
    %7070 = vmatmul.f32.gmra.mxu0 %v4474
    %v7071 = vpop.f32.mrf.mxu0
    %v7072 = vadd.f32 %v7052, %v7071
    %7073 = vdwg.mxu0
    %7074 = vmatpush.msra.mxu0 %v5756
    %7075 = vmatpush.msra.mxu0 %v5748
    %7076 = vmatpush.msra.mxu0 %v5740
    %7077 = vmatpush.msra.mxu0 %v5732
    %7078 = vmatpush.msra.mxu0 %v5724
    %7079 = vmatpush.msra.mxu0 %v5716
    %7080 = vmatpush.msra.mxu0 %v5708
    %7081 = vmatpush.msra.mxu0 %v5700
    %7082 = vmatpush.msra.mxu0 %v5692
    %7083 = vmatpush.msra.mxu0 %v5684
    %7084 = vmatpush.msra.mxu0 %v5676
    %7085 = vmatpush.msra.mxu0 %v5668
    %7086 = vmatpush.msra.mxu0 %v5660
    %7087 = vmatpush.msra.mxu0 %v5652
    %7088 = vmatpush.msra.mxu0 %v5644
    %7089 = vmatpush.msra.mxu0 %v5636
    %7090 = vmatmul.f32.gmra.mxu0 %v4475
    %v7091 = vpop.f32.mrf.mxu0
    %v7092 = vadd.f32 %v7072, %v7091
    %7093 = vdwg.mxu0
    %7094 = vmatpush.msra.mxu0 %v5884
    %7095 = vmatpush.msra.mxu0 %v5876
    %7096 = vmatpush.msra.mxu0 %v5868
    %7097 = vmatpush.msra.mxu0 %v5860
    %7098 = vmatpush.msra.mxu0 %v5852
    %7099 = vmatpush.msra.mxu0 %v5844
    %7100 = vmatpush.msra.mxu0 %v5836
    %7101 = vmatpush.msra.mxu0 %v5828
    %7102 = vmatpush.msra.mxu0 %v5820
    %7103 = vmatpush.msra.mxu0 %v5812
    %7104 = vmatpush.msra.mxu0 %v5804
    %7105 = vmatpush.msra.mxu0 %v5796
    %7106 = vmatpush.msra.mxu0 %v5788
    %7107 = vmatpush.msra.mxu0 %v5780
    %7108 = vmatpush.msra.mxu0 %v5772
    %7109 = vmatpush.msra.mxu0 %v5764
    %7110 = vmatmul.f32.gmra.mxu0 %v4476
    %v7111 = vpop.f32.mrf.mxu0
    %v7112 = vadd.f32 %v7092, %v7111
    %7113 = vdwg.mxu0
    %7114 = vmatpush.msra.mxu0 %v6012
    %7115 = vmatpush.msra.mxu0 %v6004
    %7116 = vmatpush.msra.mxu0 %v5996
    %7117 = vmatpush.msra.mxu0 %v5988
    %7118 = vmatpush.msra.mxu0 %v5980
    %7119 = vmatpush.msra.mxu0 %v5972
    %7120 = vmatpush.msra.mxu0 %v5964
    %7121 = vmatpush.msra.mxu0 %v5956
    %7122 = vmatpush.msra.mxu0 %v5948
    %7123 = vmatpush.msra.mxu0 %v5940
    %7124 = vmatpush.msra.mxu0 %v5932
    %7125 = vmatpush.msra.mxu0 %v5924
    %7126 = vmatpush.msra.mxu0 %v5916
    %7127 = vmatpush.msra.mxu0 %v5908
    %7128 = vmatpush.msra.mxu0 %v5900
    %7129 = vmatpush.msra.mxu0 %v5892
    %7130 = vmatmul.f32.gmra.mxu0 %v4477
    %v7131 = vpop.f32.mrf.mxu0
    %v7132 = vadd.f32 %v7112, %v7131
    %7133 = vdwg.mxu0
    %7134 = vmatpush.msra.mxu0 %v5117
    %7135 = vmatpush.msra.mxu0 %v5109
    %7136 = vmatpush.msra.mxu0 %v5101
    %7137 = vmatpush.msra.mxu0 %v5093
    %7138 = vmatpush.msra.mxu0 %v5085
    %7139 = vmatpush.msra.mxu0 %v5077
    %7140 = vmatpush.msra.mxu0 %v5069
    %7141 = vmatpush.msra.mxu0 %v5061
    %7142 = vmatpush.msra.mxu0 %v5053
    %7143 = vmatpush.msra.mxu0 %v5045
    %7144 = vmatpush.msra.mxu0 %v5037
    %7145 = vmatpush.msra.mxu0 %v5029
    %7146 = vmatpush.msra.mxu0 %v5021
    %7147 = vmatpush.msra.mxu0 %v5013
    %7148 = vmatpush.msra.mxu0 %v5005
    %7149 = vmatpush.msra.mxu0 %v4997
    %7150 = vmatmul.f32.gmra.mxu0 %v4470
    %v7151 = vpop.f32.mrf.mxu0
    %v7152 = vadd.f32 0.0, %v7151
    %7153 = vdwg.mxu0
    %7154 = vmatpush.msra.mxu0 %v5245
    %7155 = vmatpush.msra.mxu0 %v5237
    %7156 = vmatpush.msra.mxu0 %v5229
    %7157 = vmatpush.msra.mxu0 %v5221
    %7158 = vmatpush.msra.mxu0 %v5213
    %7159 = vmatpush.msra.mxu0 %v5205
    %7160 = vmatpush.msra.mxu0 %v5197
    %7161 = vmatpush.msra.mxu0 %v5189
    %7162 = vmatpush.msra.mxu0 %v5181
    %7163 = vmatpush.msra.mxu0 %v5173
    %7164 = vmatpush.msra.mxu0 %v5165
    %7165 = vmatpush.msra.mxu0 %v5157
    %7166 = vmatpush.msra.mxu0 %v5149
    %7167 = vmatpush.msra.mxu0 %v5141
    %7168 = vmatpush.msra.mxu0 %v5133
    %7169 = vmatpush.msra.mxu0 %v5125
    %7170 = vmatmul.f32.gmra.mxu0 %v4471
    %v7171 = vpop.f32.mrf.mxu0
    %v7172 = vadd.f32 %v7152, %v7171
    %7173 = vdwg.mxu0
    %7174 = vmatpush.msra.mxu0 %v5373
    %7175 = vmatpush.msra.mxu0 %v5365
    %7176 = vmatpush.msra.mxu0 %v5357
    %7177 = vmatpush.msra.mxu0 %v5349
    %7178 = vmatpush.msra.mxu0 %v5341
    %7179 = vmatpush.msra.mxu0 %v5333
    %7180 = vmatpush.msra.mxu0 %v5325
    %7181 = vmatpush.msra.mxu0 %v5317
    %7182 = vmatpush.msra.mxu0 %v5309
    %7183 = vmatpush.msra.mxu0 %v5301
    %7184 = vmatpush.msra.mxu0 %v5293
    %7185 = vmatpush.msra.mxu0 %v5285
    %7186 = vmatpush.msra.mxu0 %v5277
    %7187 = vmatpush.msra.mxu0 %v5269
    %7188 = vmatpush.msra.mxu0 %v5261
    %7189 = vmatpush.msra.mxu0 %v5253
    %7190 = vmatmul.f32.gmra.mxu0 %v4472
    %v7191 = vpop.f32.mrf.mxu0
    %v7192 = vadd.f32 %v7172, %v7191
    %7193 = vdwg.mxu0
    %7194 = vmatpush.msra.mxu0 %v5501
    %7195 = vmatpush.msra.mxu0 %v5493
    %7196 = vmatpush.msra.mxu0 %v5485
    %7197 = vmatpush.msra.mxu0 %v5477
    %7198 = vmatpush.msra.mxu0 %v5469
    %7199 = vmatpush.msra.mxu0 %v5461
    %7200 = vmatpush.msra.mxu0 %v5453
    %7201 = vmatpush.msra.mxu0 %v5445
    %7202 = vmatpush.msra.mxu0 %v5437
    %7203 = vmatpush.msra.mxu0 %v5429
    %7204 = vmatpush.msra.mxu0 %v5421
    %7205 = vmatpush.msra.mxu0 %v5413
    %7206 = vmatpush.msra.mxu0 %v5405
    %7207 = vmatpush.msra.mxu0 %v5397
    %7208 = vmatpush.msra.mxu0 %v5389
    %7209 = vmatpush.msra.mxu0 %v5381
    %7210 = vmatmul.f32.gmra.mxu0 %v4473
    %v7211 = vpop.f32.mrf.mxu0
    %v7212 = vadd.f32 %v7192, %v7211
    %7213 = vdwg.mxu0
    %7214 = vmatpush.msra.mxu0 %v5629
    %7215 = vmatpush.msra.mxu0 %v5621
    %7216 = vmatpush.msra.mxu0 %v5613
    %7217 = vmatpush.msra.mxu0 %v5605
    %7218 = vmatpush.msra.mxu0 %v5597
    %7219 = vmatpush.msra.mxu0 %v5589
    %7220 = vmatpush.msra.mxu0 %v5581
    %7221 = vmatpush.msra.mxu0 %v5573
    %7222 = vmatpush.msra.mxu0 %v5565
    %7223 = vmatpush.msra.mxu0 %v5557
    %7224 = vmatpush.msra.mxu0 %v5549
    %7225 = vmatpush.msra.mxu0 %v5541
    %7226 = vmatpush.msra.mxu0 %v5533
    %7227 = vmatpush.msra.mxu0 %v5525
    %7228 = vmatpush.msra.mxu0 %v5517
    %7229 = vmatpush.msra.mxu0 %v5509
    %7230 = vmatmul.f32.gmra.mxu0 %v4474
    %v7231 = vpop.f32.mrf.mxu0
    %v7232 = vadd.f32 %v7212, %v7231
    %7233 = vdwg.mxu0
    %7234 = vmatpush.msra.mxu0 %v5757
    %7235 = vmatpush.msra.mxu0 %v5749
    %7236 = vmatpush.msra.mxu0 %v5741
    %7237 = vmatpush.msra.mxu0 %v5733
    %7238 = vmatpush.msra.mxu0 %v5725
    %7239 = vmatpush.msra.mxu0 %v5717
    %7240 = vmatpush.msra.mxu0 %v5709
    %7241 = vmatpush.msra.mxu0 %v5701
    %7242 = vmatpush.msra.mxu0 %v5693
    %7243 = vmatpush.msra.mxu0 %v5685
    %7244 = vmatpush.msra.mxu0 %v5677
    %7245 = vmatpush.msra.mxu0 %v5669
    %7246 = vmatpush.msra.mxu0 %v5661
    %7247 = vmatpush.msra.mxu0 %v5653
    %7248 = vmatpush.msra.mxu0 %v5645
    %7249 = vmatpush.msra.mxu0 %v5637
    %7250 = vmatmul.f32.gmra.mxu0 %v4475
    %v7251 = vpop.f32.mrf.mxu0
    %v7252 = vadd.f32 %v7232, %v7251
    %7253 = vdwg.mxu0
    %7254 = vmatpush.msra.mxu0 %v5885
    %7255 = vmatpush.msra.mxu0 %v5877
    %7256 = vmatpush.msra.mxu0 %v5869
    %7257 = vmatpush.msra.mxu0 %v5861
    %7258 = vmatpush.msra.mxu0 %v5853
    %7259 = vmatpush.msra.mxu0 %v5845
    %7260 = vmatpush.msra.mxu0 %v5837
    %7261 = vmatpush.msra.mxu0 %v5829
    %7262 = vmatpush.msra.mxu0 %v5821
    %7263 = vmatpush.msra.mxu0 %v5813
    %7264 = vmatpush.msra.mxu0 %v5805
    %7265 = vmatpush.msra.mxu0 %v5797
    %7266 = vmatpush.msra.mxu0 %v5789
    %7267 = vmatpush.msra.mxu0 %v5781
    %7268 = vmatpush.msra.mxu0 %v5773
    %7269 = vmatpush.msra.mxu0 %v5765
    %7270 = vmatmul.f32.gmra.mxu0 %v4476
    %v7271 = vpop.f32.mrf.mxu0
    %v7272 = vadd.f32 %v7252, %v7271
    %7273 = vdwg.mxu0
    %7274 = vmatpush.msra.mxu0 %v6013
    %7275 = vmatpush.msra.mxu0 %v6005
    %7276 = vmatpush.msra.mxu0 %v5997
    %7277 = vmatpush.msra.mxu0 %v5989
    %7278 = vmatpush.msra.mxu0 %v5981
    %7279 = vmatpush.msra.mxu0 %v5973
    %7280 = vmatpush.msra.mxu0 %v5965
    %7281 = vmatpush.msra.mxu0 %v5957
    %7282 = vmatpush.msra.mxu0 %v5949
    %7283 = vmatpush.msra.mxu0 %v5941
    %7284 = vmatpush.msra.mxu0 %v5933
    %7285 = vmatpush.msra.mxu0 %v5925
    %7286 = vmatpush.msra.mxu0 %v5917
    %7287 = vmatpush.msra.mxu0 %v5909
    %7288 = vmatpush.msra.mxu0 %v5901
    %7289 = vmatpush.msra.mxu0 %v5893
    %7290 = vmatmul.f32.gmra.mxu0 %v4477
    %v7291 = vpop.f32.mrf.mxu0
    %v7292 = vadd.f32 %v7272, %v7291
    %7293 = vdwg.mxu0
    %v7294 = vrot.slane %v6172, 4
    %v7295 = vadd.f32 %v6172, %v7294
    %v7296 = vrot.slane %v7295, 2
    %v7297 = vadd.f32 %v7295, %v7296
    %v7298 = vrot.slane %v7297, 1
    %v7299 = vadd.f32 %v7297, %v7298
    %v7300 = vrot.slane %v6332, 4
    %v7301 = vadd.f32 %v6332, %v7300
    %v7302 = vrot.slane %v7301, 2
    %v7303 = vadd.f32 %v7301, %v7302
    %v7304 = vrot.slane %v7303, 1
    %v7305 = vadd.f32 %v7303, %v7304
    %v7306 = vrot.slane %v6492, 4
    %v7307 = vadd.f32 %v6492, %v7306
    %v7308 = vrot.slane %v7307, 2
    %v7309 = vadd.f32 %v7307, %v7308
    %v7310 = vrot.slane %v7309, 1
    %v7311 = vadd.f32 %v7309, %v7310
    %v7312 = vrot.slane %v6652, 4
    %v7313 = vadd.f32 %v6652, %v7312
    %v7314 = vrot.slane %v7313, 2
    %v7315 = vadd.f32 %v7313, %v7314
    %v7316 = vrot.slane %v7315, 1
    %v7317 = vadd.f32 %v7315, %v7316
    %v7318 = vrot.slane %v6812, 4
    %v7319 = vadd.f32 %v6812, %v7318
    %v7320 = vrot.slane %v7319, 2
    %v7321 = vadd.f32 %v7319, %v7320
    %v7322 = vrot.slane %v7321, 1
    %v7323 = vadd.f32 %v7321, %v7322
    %v7324 = vrot.slane %v6972, 4
    %v7325 = vadd.f32 %v6972, %v7324
    %v7326 = vrot.slane %v7325, 2
    %v7327 = vadd.f32 %v7325, %v7326
    %v7328 = vrot.slane %v7327, 1
    %v7329 = vadd.f32 %v7327, %v7328
    %v7330 = vrot.slane %v7132, 4
    %v7331 = vadd.f32 %v7132, %v7330
    %v7332 = vrot.slane %v7331, 2
    %v7333 = vadd.f32 %v7331, %v7332
    %v7334 = vrot.slane %v7333, 1
    %v7335 = vadd.f32 %v7333, %v7334
    %v7336 = vrot.slane %v7292, 4
    %v7337 = vadd.f32 %v7292, %v7336
    %v7338 = vrot.slane %v7337, 2
    %v7339 = vadd.f32 %v7337, %v7338
    %v7340 = vrot.slane %v7339, 1
    %v7341 = vadd.f32 %v7339, %v7340
    %v7342 = vmul.f32 %v7299, %v1245
    %v7343 = vmul.f32 %v7305, %v1245
    %v7344 = vmul.f32 %v7311, %v1245
    %v7345 = vmul.f32 %v7317, %v1245
    %v7346 = vmul.f32 %v7323, %v1245
    %v7347 = vmul.f32 %v7329, %v1245
    %v7348 = vmul.f32 %v7335, %v1245
    %v7349 = vmul.f32 %v7341, %v1245
    %v7350 = vsub.f32 %v6172, %v7342
    %v7351 = vsub.f32 %v6332, %v7343
    %v7352 = vsub.f32 %v6492, %v7344
    %v7353 = vsub.f32 %v6652, %v7345
    %v7354 = vsub.f32 %v6812, %v7346
    %v7355 = vsub.f32 %v6972, %v7347
    %v7356 = vsub.f32 %v7132, %v7348
    %v7357 = vsub.f32 %v7292, %v7349
    %v7358 = vmul.f32 %v7350, %v7350
    %v7359 = vmul.f32 %v7351, %v7351
    %v7360 = vmul.f32 %v7352, %v7352
    %v7361 = vmul.f32 %v7353, %v7353
    %v7362 = vmul.f32 %v7354, %v7354
    %v7363 = vmul.f32 %v7355, %v7355
    %v7364 = vmul.f32 %v7356, %v7356
    %v7365 = vmul.f32 %v7357, %v7357
    %v7366 = vrot.slane %v7358, 4
    %v7367 = vadd.f32 %v7358, %v7366
    %v7368 = vrot.slane %v7367, 2
    %v7369 = vadd.f32 %v7367, %v7368
    %v7370 = vrot.slane %v7369, 1
    %v7371 = vadd.f32 %v7369, %v7370
    %v7372 = vrot.slane %v7359, 4
    %v7373 = vadd.f32 %v7359, %v7372
    %v7374 = vrot.slane %v7373, 2
    %v7375 = vadd.f32 %v7373, %v7374
    %v7376 = vrot.slane %v7375, 1
    %v7377 = vadd.f32 %v7375, %v7376
    %v7378 = vrot.slane %v7360, 4
    %v7379 = vadd.f32 %v7360, %v7378
    %v7380 = vrot.slane %v7379, 2
    %v7381 = vadd.f32 %v7379, %v7380
    %v7382 = vrot.slane %v7381, 1
    %v7383 = vadd.f32 %v7381, %v7382
    %v7384 = vrot.slane %v7361, 4
    %v7385 = vadd.f32 %v7361, %v7384
    %v7386 = vrot.slane %v7385, 2
    %v7387 = vadd.f32 %v7385, %v7386
    %v7388 = vrot.slane %v7387, 1
    %v7389 = vadd.f32 %v7387, %v7388
    %v7390 = vrot.slane %v7362, 4
    %v7391 = vadd.f32 %v7362, %v7390
    %v7392 = vrot.slane %v7391, 2
    %v7393 = vadd.f32 %v7391, %v7392
    %v7394 = vrot.slane %v7393, 1
    %v7395 = vadd.f32 %v7393, %v7394
    %v7396 = vrot.slane %v7363, 4
    %v7397 = vadd.f32 %v7363, %v7396
    %v7398 = vrot.slane %v7397, 2
    %v7399 = vadd.f32 %v7397, %v7398
    %v7400 = vrot.slane %v7399, 1
    %v7401 = vadd.f32 %v7399, %v7400
    %v7402 = vrot.slane %v7364, 4
    %v7403 = vadd.f32 %v7364, %v7402
    %v7404 = vrot.slane %v7403, 2
    %v7405 = vadd.f32 %v7403, %v7404
    %v7406 = vrot.slane %v7405, 1
    %v7407 = vadd.f32 %v7405, %v7406
    %v7408 = vrot.slane %v7365, 4
    %v7409 = vadd.f32 %v7365, %v7408
    %v7410 = vrot.slane %v7409, 2
    %v7411 = vadd.f32 %v7409, %v7410
    %v7412 = vrot.slane %v7411, 1
    %v7413 = vadd.f32 %v7411, %v7412
    %v7414 = vmul.f32 %v7371, %v1245
    %v7415 = vmul.f32 %v7377, %v1245
    %v7416 = vmul.f32 %v7383, %v1245
    %v7417 = vmul.f32 %v7389, %v1245
    %v7418 = vmul.f32 %v7395, %v1245
    %v7419 = vmul.f32 %v7401, %v1245
    %v7420 = vmul.f32 %v7407, %v1245
    %v7421 = vmul.f32 %v7413, %v1245
    %v7422 = vadd.f32 %v7414, 1e-05
    %v7423 = vadd.f32 %v7415, 1e-05
    %v7424 = vadd.f32 %v7416, 1e-05
    %v7425 = vadd.f32 %v7417, 1e-05
    %v7426 = vadd.f32 %v7418, 1e-05
    %v7427 = vadd.f32 %v7419, 1e-05
    %v7428 = vadd.f32 %v7420, 1e-05
    %v7429 = vadd.f32 %v7421, 1e-05
    %v7430 = vrsqrt.pop %v7422
    %v7431 = vmul.f32 %v7430, %v7422
    %v7432 = vmul.f32 %v7431, %v7430
    %v7433 = vmul.f32 0.5, %v7432
    %v7434 = vsub.f32 1.5, %v7433
    %v7435 = vmul.f32 %v7430, %v7434
    %vm7436 = vweird.f32 %v7422
    %vm7437 = vweird.f32 %v7430
    %vm7438 = vmor %vm7436, %vm7437
    %v7439 = vsel %vm7438, %v7430, %v7435
    %v7440 = vrsqrt.pop %v7423
    %v7441 = vmul.f32 %v7440, %v7423
    %v7442 = vmul.f32 %v7441, %v7440
    %v7443 = vmul.f32 0.5, %v7442
    %v7444 = vsub.f32 1.5, %v7443
    %v7445 = vmul.f32 %v7440, %v7444
    %vm7446 = vweird.f32 %v7423
    %vm7447 = vweird.f32 %v7440
    %vm7448 = vmor %vm7446, %vm7447
    %v7449 = vsel %vm7448, %v7440, %v7445
    %v7450 = vrsqrt.pop %v7424
    %v7451 = vmul.f32 %v7450, %v7424
    %v7452 = vmul.f32 %v7451, %v7450
    %v7453 = vmul.f32 0.5, %v7452
    %v7454 = vsub.f32 1.5, %v7453
    %v7455 = vmul.f32 %v7450, %v7454
    %vm7456 = vweird.f32 %v7424
    %vm7457 = vweird.f32 %v7450
    %vm7458 = vmor %vm7456, %vm7457
    %v7459 = vsel %vm7458, %v7450, %v7455
    %v7460 = vrsqrt.pop %v7425
    %v7461 = vmul.f32 %v7460, %v7425
    %v7462 = vmul.f32 %v7461, %v7460
    %v7463 = vmul.f32 0.5, %v7462
    %v7464 = vsub.f32 1.5, %v7463
    %v7465 = vmul.f32 %v7460, %v7464
    %vm7466 = vweird.f32 %v7425
    %vm7467 = vweird.f32 %v7460
    %vm7468 = vmor %vm7466, %vm7467
    %v7469 = vsel %vm7468, %v7460, %v7465
    %v7470 = vrsqrt.pop %v7426
    %v7471 = vmul.f32 %v7470, %v7426
    %v7472 = vmul.f32 %v7471, %v7470
    %v7473 = vmul.f32 0.5, %v7472
    %v7474 = vsub.f32 1.5, %v7473
    %v7475 = vmul.f32 %v7470, %v7474
    %vm7476 = vweird.f32 %v7426
    %vm7477 = vweird.f32 %v7470
    %vm7478 = vmor %vm7476, %vm7477
    %v7479 = vsel %vm7478, %v7470, %v7475
    %v7480 = vrsqrt.pop %v7427
    %v7481 = vmul.f32 %v7480, %v7427
    %v7482 = vmul.f32 %v7481, %v7480
    %v7483 = vmul.f32 0.5, %v7482
    %v7484 = vsub.f32 1.5, %v7483
    %v7485 = vmul.f32 %v7480, %v7484
    %vm7486 = vweird.f32 %v7427
    %vm7487 = vweird.f32 %v7480
    %vm7488 = vmor %vm7486, %vm7487
    %v7489 = vsel %vm7488, %v7480, %v7485
    %v7490 = vrsqrt.pop %v7428
    %v7491 = vmul.f32 %v7490, %v7428
    %v7492 = vmul.f32 %v7491, %v7490
    %v7493 = vmul.f32 0.5, %v7492
    %v7494 = vsub.f32 1.5, %v7493
    %v7495 = vmul.f32 %v7490, %v7494
    %vm7496 = vweird.f32 %v7428
    %vm7497 = vweird.f32 %v7490
    %vm7498 = vmor %vm7496, %vm7497
    %v7499 = vsel %vm7498, %v7490, %v7495
    %v7500 = vrsqrt.pop %v7429
    %v7501 = vmul.f32 %v7500, %v7429
    %v7502 = vmul.f32 %v7501, %v7500
    %v7503 = vmul.f32 0.5, %v7502
    %v7504 = vsub.f32 1.5, %v7503
    %v7505 = vmul.f32 %v7500, %v7504
    %vm7506 = vweird.f32 %v7429
    %vm7507 = vweird.f32 %v7500
    %vm7508 = vmor %vm7506, %vm7507
    %v7509 = vsel %vm7508, %v7500, %v7505
    %v7510 = vmul.f32 %v7350, %v7439
    %v7511 = vmul.f32 %v7351, %v7449
    %v7512 = vmul.f32 %v7352, %v7459
    %v7513 = vmul.f32 %v7353, %v7469
    %v7514 = vmul.f32 %v7354, %v7479
    %v7515 = vmul.f32 %v7355, %v7489
    %v7516 = vmul.f32 %v7356, %v7499
    %v7517 = vmul.f32 %v7357, %v7509
    %v7518 = vmax.f32 %v7510, 0.0
    %v7519 = vmax.f32 %v7511, 0.0
    %v7520 = vmax.f32 %v7512, 0.0
    %v7521 = vmax.f32 %v7513, 0.0
    %v7522 = vmax.f32 %v7514, 0.0
    %v7523 = vmax.f32 %v7515, 0.0
    %v7524 = vmax.f32 %v7516, 0.0
    %v7525 = vmax.f32 %v7517, 0.0
    %v7526 = vld [vmem:[#allocation10] sm:$0xff]
    %v7527 = vld [vmem:[#allocation10 + $0x8] sm:$0xff]
    %v7528 = vld [vmem:[#allocation10 + $0x10] sm:$0xff]
    %v7529 = vld [vmem:[#allocation10 + $0x18] sm:$0xff]
    %v7530 = vld [vmem:[#allocation10 + $0x20] sm:$0xff]
    %v7531 = vld [vmem:[#allocation10 + $0x28] sm:$0xff]
    %v7532 = vld [vmem:[#allocation10 + $0x30] sm:$0xff]
    %v7533 = vld [vmem:[#allocation10 + $0x38] sm:$0xff]
    %v7534 = vld [vmem:[#allocation10 + $0x40] sm:$0xff]
    %v7535 = vld [vmem:[#allocation10 + $0x48] sm:$0xff]
    %v7536 = vld [vmem:[#allocation10 + $0x50] sm:$0xff]
    %v7537 = vld [vmem:[#allocation10 + $0x58] sm:$0xff]
    %v7538 = vld [vmem:[#allocation10 + $0x60] sm:$0xff]
    %v7539 = vld [vmem:[#allocation10 + $0x68] sm:$0xff]
    %v7540 = vld [vmem:[#allocation10 + $0x70] sm:$0xff]
    %v7541 = vld [vmem:[#allocation10 + $0x78] sm:$0xff]
    %v7542 = vld [vmem:[#allocation10 + $0x80] sm:$0xff]
    %v7543 = vld [vmem:[#allocation10 + $0x88] sm:$0xff]
    %v7544 = vld [vmem:[#allocation10 + $0x90] sm:$0xff]
    %v7545 = vld [vmem:[#allocation10 + $0x98] sm:$0xff]
    %v7546 = vld [vmem:[#allocation10 + $0xa0] sm:$0xff]
    %v7547 = vld [vmem:[#allocation10 + $0xa8] sm:$0xff]
    %v7548 = vld [vmem:[#allocation10 + $0xb0] sm:$0xff]
    %v7549 = vld [vmem:[#allocation10 + $0xb8] sm:$0xff]
    %v7550 = vld [vmem:[#allocation10 + $0xc0] sm:$0xff]
    %v7551 = vld [vmem:[#allocation10 + $0xc8] sm:$0xff]
    %v7552 = vld [vmem:[#allocation10 + $0xd0] sm:$0xff]
    %v7553 = vld [vmem:[#allocation10 + $0xd8] sm:$0xff]
    %v7554 = vld [vmem:[#allocation10 + $0xe0] sm:$0xff]
    %v7555 = vld [vmem:[#allocation10 + $0xe8] sm:$0xff]
    %v7556 = vld [vmem:[#allocation10 + $0xf0] sm:$0xff]
    %v7557 = vld [vmem:[#allocation10 + $0xf8] sm:$0xff]
    %v7558 = vld [vmem:[#allocation10 + $0x100] sm:$0xff]
    %v7559 = vld [vmem:[#allocation10 + $0x108] sm:$0xff]
    %v7560 = vld [vmem:[#allocation10 + $0x110] sm:$0xff]
    %v7561 = vld [vmem:[#allocation10 + $0x118] sm:$0xff]
    %v7562 = vld [vmem:[#allocation10 + $0x120] sm:$0xff]
    %v7563 = vld [vmem:[#allocation10 + $0x128] sm:$0xff]
    %v7564 = vld [vmem:[#allocation10 + $0x130] sm:$0xff]
    %v7565 = vld [vmem:[#allocation10 + $0x138] sm:$0xff]
    %v7566 = vld [vmem:[#allocation10 + $0x140] sm:$0xff]
    %v7567 = vld [vmem:[#allocation10 + $0x148] sm:$0xff]
    %v7568 = vld [vmem:[#allocation10 + $0x150] sm:$0xff]
    %v7569 = vld [vmem:[#allocation10 + $0x158] sm:$0xff]
    %v7570 = vld [vmem:[#allocation10 + $0x160] sm:$0xff]
    %v7571 = vld [vmem:[#allocation10 + $0x168] sm:$0xff]
    %v7572 = vld [vmem:[#allocation10 + $0x170] sm:$0xff]
    %v7573 = vld [vmem:[#allocation10 + $0x178] sm:$0xff]
    %v7574 = vld [vmem:[#allocation10 + $0x180] sm:$0xff]
    %v7575 = vld [vmem:[#allocation10 + $0x188] sm:$0xff]
    %v7576 = vld [vmem:[#allocation10 + $0x190] sm:$0xff]
    %v7577 = vld [vmem:[#allocation10 + $0x198] sm:$0xff]
    %v7578 = vld [vmem:[#allocation10 + $0x1a0] sm:$0xff]
    %v7579 = vld [vmem:[#allocation10 + $0x1a8] sm:$0xff]
    %v7580 = vld [vmem:[#allocation10 + $0x1b0] sm:$0xff]
    %v7581 = vld [vmem:[#allocation10 + $0x1b8] sm:$0xff]
    %v7582 = vld [vmem:[#allocation10 + $0x1c0] sm:$0xff]
    %v7583 = vld [vmem:[#allocation10 + $0x1c8] sm:$0xff]
    %v7584 = vld [vmem:[#allocation10 + $0x1d0] sm:$0xff]
    %v7585 = vld [vmem:[#allocation10 + $0x1d8] sm:$0xff]
    %v7586 = vld [vmem:[#allocation10 + $0x1e0] sm:$0xff]
    %v7587 = vld [vmem:[#allocation10 + $0x1e8] sm:$0xff]
    %v7588 = vld [vmem:[#allocation10 + $0x1f0] sm:$0xff]
    %v7589 = vld [vmem:[#allocation10 + $0x1f8] sm:$0xff]
    %v7590 = vld [vmem:[#allocation10 + $0x200] sm:$0xff]
    %v7591 = vld [vmem:[#allocation10 + $0x208] sm:$0xff]
    %v7592 = vld [vmem:[#allocation10 + $0x210] sm:$0xff]
    %v7593 = vld [vmem:[#allocation10 + $0x218] sm:$0xff]
    %v7594 = vld [vmem:[#allocation10 + $0x220] sm:$0xff]
    %v7595 = vld [vmem:[#allocation10 + $0x228] sm:$0xff]
    %v7596 = vld [vmem:[#allocation10 + $0x230] sm:$0xff]
    %v7597 = vld [vmem:[#allocation10 + $0x238] sm:$0xff]
    %v7598 = vld [vmem:[#allocation10 + $0x240] sm:$0xff]
    %v7599 = vld [vmem:[#allocation10 + $0x248] sm:$0xff]
    %v7600 = vld [vmem:[#allocation10 + $0x250] sm:$0xff]
    %v7601 = vld [vmem:[#allocation10 + $0x258] sm:$0xff]
    %v7602 = vld [vmem:[#allocation10 + $0x260] sm:$0xff]
    %v7603 = vld [vmem:[#allocation10 + $0x268] sm:$0xff]
    %v7604 = vld [vmem:[#allocation10 + $0x270] sm:$0xff]
    %v7605 = vld [vmem:[#allocation10 + $0x278] sm:$0xff]
    %v7606 = vld [vmem:[#allocation10 + $0x280] sm:$0xff]
    %v7607 = vld [vmem:[#allocation10 + $0x288] sm:$0xff]
    %v7608 = vld [vmem:[#allocation10 + $0x290] sm:$0xff]
    %v7609 = vld [vmem:[#allocation10 + $0x298] sm:$0xff]
    %v7610 = vld [vmem:[#allocation10 + $0x2a0] sm:$0xff]
    %v7611 = vld [vmem:[#allocation10 + $0x2a8] sm:$0xff]
    %v7612 = vld [vmem:[#allocation10 + $0x2b0] sm:$0xff]
    %v7613 = vld [vmem:[#allocation10 + $0x2b8] sm:$0xff]
    %v7614 = vld [vmem:[#allocation10 + $0x2c0] sm:$0xff]
    %v7615 = vld [vmem:[#allocation10 + $0x2c8] sm:$0xff]
    %v7616 = vld [vmem:[#allocation10 + $0x2d0] sm:$0xff]
    %v7617 = vld [vmem:[#allocation10 + $0x2d8] sm:$0xff]
    %v7618 = vld [vmem:[#allocation10 + $0x2e0] sm:$0xff]
    %v7619 = vld [vmem:[#allocation10 + $0x2e8] sm:$0xff]
    %v7620 = vld [vmem:[#allocation10 + $0x2f0] sm:$0xff]
    %v7621 = vld [vmem:[#allocation10 + $0x2f8] sm:$0xff]
    %v7622 = vld [vmem:[#allocation10 + $0x300] sm:$0xff]
    %v7623 = vld [vmem:[#allocation10 + $0x308] sm:$0xff]
    %v7624 = vld [vmem:[#allocation10 + $0x310] sm:$0xff]
    %v7625 = vld [vmem:[#allocation10 + $0x318] sm:$0xff]
    %v7626 = vld [vmem:[#allocation10 + $0x320] sm:$0xff]
    %v7627 = vld [vmem:[#allocation10 + $0x328] sm:$0xff]
    %v7628 = vld [vmem:[#allocation10 + $0x330] sm:$0xff]
    %v7629 = vld [vmem:[#allocation10 + $0x338] sm:$0xff]
    %v7630 = vld [vmem:[#allocation10 + $0x340] sm:$0xff]
    %v7631 = vld [vmem:[#allocation10 + $0x348] sm:$0xff]
    %v7632 = vld [vmem:[#allocation10 + $0x350] sm:$0xff]
    %v7633 = vld [vmem:[#allocation10 + $0x358] sm:$0xff]
    %v7634 = vld [vmem:[#allocation10 + $0x360] sm:$0xff]
    %v7635 = vld [vmem:[#allocation10 + $0x368] sm:$0xff]
    %v7636 = vld [vmem:[#allocation10 + $0x370] sm:$0xff]
    %v7637 = vld [vmem:[#allocation10 + $0x378] sm:$0xff]
    %v7638 = vld [vmem:[#allocation10 + $0x380] sm:$0xff]
    %v7639 = vld [vmem:[#allocation10 + $0x388] sm:$0xff]
    %v7640 = vld [vmem:[#allocation10 + $0x390] sm:$0xff]
    %v7641 = vld [vmem:[#allocation10 + $0x398] sm:$0xff]
    %v7642 = vld [vmem:[#allocation10 + $0x3a0] sm:$0xff]
    %v7643 = vld [vmem:[#allocation10 + $0x3a8] sm:$0xff]
    %v7644 = vld [vmem:[#allocation10 + $0x3b0] sm:$0xff]
    %v7645 = vld [vmem:[#allocation10 + $0x3b8] sm:$0xff]
    %v7646 = vld [vmem:[#allocation10 + $0x3c0] sm:$0xff]
    %v7647 = vld [vmem:[#allocation10 + $0x3c8] sm:$0xff]
    %v7648 = vld [vmem:[#allocation10 + $0x3d0] sm:$0xff]
    %v7649 = vld [vmem:[#allocation10 + $0x3d8] sm:$0xff]
    %v7650 = vld [vmem:[#allocation10 + $0x3e0] sm:$0xff]
    %v7651 = vld [vmem:[#allocation10 + $0x3e8] sm:$0xff]
    %v7652 = vld [vmem:[#allocation10 + $0x3f0] sm:$0xff]
    %v7653 = vld [vmem:[#allocation10 + $0x3f8] sm:$0xff]
    %v7654 = vld [vmem:[#allocation10 + $0x400] sm:$0xff]
    %v7655 = vld [vmem:[#allocation10 + $0x408] sm:$0xff]
    %v7656 = vld [vmem:[#allocation10 + $0x410] sm:$0xff]
    %v7657 = vld [vmem:[#allocation10 + $0x418] sm:$0xff]
    %v7658 = vld [vmem:[#allocation10 + $0x420] sm:$0xff]
    %v7659 = vld [vmem:[#allocation10 + $0x428] sm:$0xff]
    %v7660 = vld [vmem:[#allocation10 + $0x430] sm:$0xff]
    %v7661 = vld [vmem:[#allocation10 + $0x438] sm:$0xff]
    %v7662 = vld [vmem:[#allocation10 + $0x440] sm:$0xff]
    %v7663 = vld [vmem:[#allocation10 + $0x448] sm:$0xff]
    %v7664 = vld [vmem:[#allocation10 + $0x450] sm:$0xff]
    %v7665 = vld [vmem:[#allocation10 + $0x458] sm:$0xff]
    %v7666 = vld [vmem:[#allocation10 + $0x460] sm:$0xff]
    %v7667 = vld [vmem:[#allocation10 + $0x468] sm:$0xff]
    %v7668 = vld [vmem:[#allocation10 + $0x470] sm:$0xff]
    %v7669 = vld [vmem:[#allocation10 + $0x478] sm:$0xff]
    %v7670 = vld [vmem:[#allocation10 + $0x480] sm:$0xff]
    %v7671 = vld [vmem:[#allocation10 + $0x488] sm:$0xff]
    %v7672 = vld [vmem:[#allocation10 + $0x490] sm:$0xff]
    %v7673 = vld [vmem:[#allocation10 + $0x498] sm:$0xff]
    %v7674 = vld [vmem:[#allocation10 + $0x4a0] sm:$0xff]
    %v7675 = vld [vmem:[#allocation10 + $0x4a8] sm:$0xff]
    %v7676 = vld [vmem:[#allocation10 + $0x4b0] sm:$0xff]
    %v7677 = vld [vmem:[#allocation10 + $0x4b8] sm:$0xff]
    %v7678 = vld [vmem:[#allocation10 + $0x4c0] sm:$0xff]
    %v7679 = vld [vmem:[#allocation10 + $0x4c8] sm:$0xff]
    %v7680 = vld [vmem:[#allocation10 + $0x4d0] sm:$0xff]
    %v7681 = vld [vmem:[#allocation10 + $0x4d8] sm:$0xff]
    %v7682 = vld [vmem:[#allocation10 + $0x4e0] sm:$0xff]
    %v7683 = vld [vmem:[#allocation10 + $0x4e8] sm:$0xff]
    %v7684 = vld [vmem:[#allocation10 + $0x4f0] sm:$0xff]
    %v7685 = vld [vmem:[#allocation10 + $0x4f8] sm:$0xff]
    %v7686 = vld [vmem:[#allocation10 + $0x500] sm:$0xff]
    %v7687 = vld [vmem:[#allocation10 + $0x508] sm:$0xff]
    %v7688 = vld [vmem:[#allocation10 + $0x510] sm:$0xff]
    %v7689 = vld [vmem:[#allocation10 + $0x518] sm:$0xff]
    %v7690 = vld [vmem:[#allocation10 + $0x520] sm:$0xff]
    %v7691 = vld [vmem:[#allocation10 + $0x528] sm:$0xff]
    %v7692 = vld [vmem:[#allocation10 + $0x530] sm:$0xff]
    %v7693 = vld [vmem:[#allocation10 + $0x538] sm:$0xff]
    %v7694 = vld [vmem:[#allocation10 + $0x540] sm:$0xff]
    %v7695 = vld [vmem:[#allocation10 + $0x548] sm:$0xff]
    %v7696 = vld [vmem:[#allocation10 + $0x550] sm:$0xff]
    %v7697 = vld [vmem:[#allocation10 + $0x558] sm:$0xff]
    %v7698 = vld [vmem:[#allocation10 + $0x560] sm:$0xff]
    %v7699 = vld [vmem:[#allocation10 + $0x568] sm:$0xff]
    %v7700 = vld [vmem:[#allocation10 + $0x570] sm:$0xff]
    %v7701 = vld [vmem:[#allocation10 + $0x578] sm:$0xff]
    %v7702 = vld [vmem:[#allocation10 + $0x580] sm:$0xff]
    %v7703 = vld [vmem:[#allocation10 + $0x588] sm:$0xff]
    %v7704 = vld [vmem:[#allocation10 + $0x590] sm:$0xff]
    %v7705 = vld [vmem:[#allocation10 + $0x598] sm:$0xff]
    %v7706 = vld [vmem:[#allocation10 + $0x5a0] sm:$0xff]
    %v7707 = vld [vmem:[#allocation10 + $0x5a8] sm:$0xff]
    %v7708 = vld [vmem:[#allocation10 + $0x5b0] sm:$0xff]
    %v7709 = vld [vmem:[#allocation10 + $0x5b8] sm:$0xff]
    %v7710 = vld [vmem:[#allocation10 + $0x5c0] sm:$0xff]
    %v7711 = vld [vmem:[#allocation10 + $0x5c8] sm:$0xff]
    %v7712 = vld [vmem:[#allocation10 + $0x5d0] sm:$0xff]
    %v7713 = vld [vmem:[#allocation10 + $0x5d8] sm:$0xff]
    %v7714 = vld [vmem:[#allocation10 + $0x5e0] sm:$0xff]
    %v7715 = vld [vmem:[#allocation10 + $0x5e8] sm:$0xff]
    %v7716 = vld [vmem:[#allocation10 + $0x5f0] sm:$0xff]
    %v7717 = vld [vmem:[#allocation10 + $0x5f8] sm:$0xff]
    %v7718 = vld [vmem:[#allocation10 + $0x600] sm:$0xff]
    %v7719 = vld [vmem:[#allocation10 + $0x608] sm:$0xff]
    %v7720 = vld [vmem:[#allocation10 + $0x610] sm:$0xff]
    %v7721 = vld [vmem:[#allocation10 + $0x618] sm:$0xff]
    %v7722 = vld [vmem:[#allocation10 + $0x620] sm:$0xff]
    %v7723 = vld [vmem:[#allocation10 + $0x628] sm:$0xff]
    %v7724 = vld [vmem:[#allocation10 + $0x630] sm:$0xff]
    %v7725 = vld [vmem:[#allocation10 + $0x638] sm:$0xff]
    %v7726 = vld [vmem:[#allocation10 + $0x640] sm:$0xff]
    %v7727 = vld [vmem:[#allocation10 + $0x648] sm:$0xff]
    %v7728 = vld [vmem:[#allocation10 + $0x650] sm:$0xff]
    %v7729 = vld [vmem:[#allocation10 + $0x658] sm:$0xff]
    %v7730 = vld [vmem:[#allocation10 + $0x660] sm:$0xff]
    %v7731 = vld [vmem:[#allocation10 + $0x668] sm:$0xff]
    %v7732 = vld [vmem:[#allocation10 + $0x670] sm:$0xff]
    %v7733 = vld [vmem:[#allocation10 + $0x678] sm:$0xff]
    %v7734 = vld [vmem:[#allocation10 + $0x680] sm:$0xff]
    %v7735 = vld [vmem:[#allocation10 + $0x688] sm:$0xff]
    %v7736 = vld [vmem:[#allocation10 + $0x690] sm:$0xff]
    %v7737 = vld [vmem:[#allocation10 + $0x698] sm:$0xff]
    %v7738 = vld [vmem:[#allocation10 + $0x6a0] sm:$0xff]
    %v7739 = vld [vmem:[#allocation10 + $0x6a8] sm:$0xff]
    %v7740 = vld [vmem:[#allocation10 + $0x6b0] sm:$0xff]
    %v7741 = vld [vmem:[#allocation10 + $0x6b8] sm:$0xff]
    %v7742 = vld [vmem:[#allocation10 + $0x6c0] sm:$0xff]
    %v7743 = vld [vmem:[#allocation10 + $0x6c8] sm:$0xff]
    %v7744 = vld [vmem:[#allocation10 + $0x6d0] sm:$0xff]
    %v7745 = vld [vmem:[#allocation10 + $0x6d8] sm:$0xff]
    %v7746 = vld [vmem:[#allocation10 + $0x6e0] sm:$0xff]
    %v7747 = vld [vmem:[#allocation10 + $0x6e8] sm:$0xff]
    %v7748 = vld [vmem:[#allocation10 + $0x6f0] sm:$0xff]
    %v7749 = vld [vmem:[#allocation10 + $0x6f8] sm:$0xff]
    %v7750 = vld [vmem:[#allocation10 + $0x700] sm:$0xff]
    %v7751 = vld [vmem:[#allocation10 + $0x708] sm:$0xff]
    %v7752 = vld [vmem:[#allocation10 + $0x710] sm:$0xff]
    %v7753 = vld [vmem:[#allocation10 + $0x718] sm:$0xff]
    %v7754 = vld [vmem:[#allocation10 + $0x720] sm:$0xff]
    %v7755 = vld [vmem:[#allocation10 + $0x728] sm:$0xff]
    %v7756 = vld [vmem:[#allocation10 + $0x730] sm:$0xff]
    %v7757 = vld [vmem:[#allocation10 + $0x738] sm:$0xff]
    %v7758 = vld [vmem:[#allocation10 + $0x740] sm:$0xff]
    %v7759 = vld [vmem:[#allocation10 + $0x748] sm:$0xff]
    %v7760 = vld [vmem:[#allocation10 + $0x750] sm:$0xff]
    %v7761 = vld [vmem:[#allocation10 + $0x758] sm:$0xff]
    %v7762 = vld [vmem:[#allocation10 + $0x760] sm:$0xff]
    %v7763 = vld [vmem:[#allocation10 + $0x768] sm:$0xff]
    %v7764 = vld [vmem:[#allocation10 + $0x770] sm:$0xff]
    %v7765 = vld [vmem:[#allocation10 + $0x778] sm:$0xff]
    %v7766 = vld [vmem:[#allocation10 + $0x780] sm:$0xff]
    %v7767 = vld [vmem:[#allocation10 + $0x788] sm:$0xff]
    %v7768 = vld [vmem:[#allocation10 + $0x790] sm:$0xff]
    %v7769 = vld [vmem:[#allocation10 + $0x798] sm:$0xff]
    %v7770 = vld [vmem:[#allocation10 + $0x7a0] sm:$0xff]
    %v7771 = vld [vmem:[#allocation10 + $0x7a8] sm:$0xff]
    %v7772 = vld [vmem:[#allocation10 + $0x7b0] sm:$0xff]
    %v7773 = vld [vmem:[#allocation10 + $0x7b8] sm:$0xff]
    %v7774 = vld [vmem:[#allocation10 + $0x7c0] sm:$0xff]
    %v7775 = vld [vmem:[#allocation10 + $0x7c8] sm:$0xff]
    %v7776 = vld [vmem:[#allocation10 + $0x7d0] sm:$0xff]
    %v7777 = vld [vmem:[#allocation10 + $0x7d8] sm:$0xff]
    %v7778 = vld [vmem:[#allocation10 + $0x7e0] sm:$0xff]
    %v7779 = vld [vmem:[#allocation10 + $0x7e8] sm:$0xff]
    %v7780 = vld [vmem:[#allocation10 + $0x7f0] sm:$0xff]
    %v7781 = vld [vmem:[#allocation10 + $0x7f8] sm:$0xff]
    %v7782 = vld [vmem:[#allocation10 + $0x800] sm:$0xff]
    %v7783 = vld [vmem:[#allocation10 + $0x808] sm:$0xff]
    %v7784 = vld [vmem:[#allocation10 + $0x810] sm:$0xff]
    %v7785 = vld [vmem:[#allocation10 + $0x818] sm:$0xff]
    %v7786 = vld [vmem:[#allocation10 + $0x820] sm:$0xff]
    %v7787 = vld [vmem:[#allocation10 + $0x828] sm:$0xff]
    %v7788 = vld [vmem:[#allocation10 + $0x830] sm:$0xff]
    %v7789 = vld [vmem:[#allocation10 + $0x838] sm:$0xff]
    %v7790 = vld [vmem:[#allocation10 + $0x840] sm:$0xff]
    %v7791 = vld [vmem:[#allocation10 + $0x848] sm:$0xff]
    %v7792 = vld [vmem:[#allocation10 + $0x850] sm:$0xff]
    %v7793 = vld [vmem:[#allocation10 + $0x858] sm:$0xff]
    %v7794 = vld [vmem:[#allocation10 + $0x860] sm:$0xff]
    %v7795 = vld [vmem:[#allocation10 + $0x868] sm:$0xff]
    %v7796 = vld [vmem:[#allocation10 + $0x870] sm:$0xff]
    %v7797 = vld [vmem:[#allocation10 + $0x878] sm:$0xff]
    %v7798 = vld [vmem:[#allocation10 + $0x880] sm:$0xff]
    %v7799 = vld [vmem:[#allocation10 + $0x888] sm:$0xff]
    %v7800 = vld [vmem:[#allocation10 + $0x890] sm:$0xff]
    %v7801 = vld [vmem:[#allocation10 + $0x898] sm:$0xff]
    %v7802 = vld [vmem:[#allocation10 + $0x8a0] sm:$0xff]
    %v7803 = vld [vmem:[#allocation10 + $0x8a8] sm:$0xff]
    %v7804 = vld [vmem:[#allocation10 + $0x8b0] sm:$0xff]
    %v7805 = vld [vmem:[#allocation10 + $0x8b8] sm:$0xff]
    %v7806 = vld [vmem:[#allocation10 + $0x8c0] sm:$0xff]
    %v7807 = vld [vmem:[#allocation10 + $0x8c8] sm:$0xff]
    %v7808 = vld [vmem:[#allocation10 + $0x8d0] sm:$0xff]
    %v7809 = vld [vmem:[#allocation10 + $0x8d8] sm:$0xff]
    %v7810 = vld [vmem:[#allocation10 + $0x8e0] sm:$0xff]
    %v7811 = vld [vmem:[#allocation10 + $0x8e8] sm:$0xff]
    %v7812 = vld [vmem:[#allocation10 + $0x8f0] sm:$0xff]
    %v7813 = vld [vmem:[#allocation10 + $0x8f8] sm:$0xff]
    %v7814 = vld [vmem:[#allocation10 + $0x900] sm:$0xff]
    %v7815 = vld [vmem:[#allocation10 + $0x908] sm:$0xff]
    %v7816 = vld [vmem:[#allocation10 + $0x910] sm:$0xff]
    %v7817 = vld [vmem:[#allocation10 + $0x918] sm:$0xff]
    %v7818 = vld [vmem:[#allocation10 + $0x920] sm:$0xff]
    %v7819 = vld [vmem:[#allocation10 + $0x928] sm:$0xff]
    %v7820 = vld [vmem:[#allocation10 + $0x930] sm:$0xff]
    %v7821 = vld [vmem:[#allocation10 + $0x938] sm:$0xff]
    %v7822 = vld [vmem:[#allocation10 + $0x940] sm:$0xff]
    %v7823 = vld [vmem:[#allocation10 + $0x948] sm:$0xff]
    %v7824 = vld [vmem:[#allocation10 + $0x950] sm:$0xff]
    %v7825 = vld [vmem:[#allocation10 + $0x958] sm:$0xff]
    %v7826 = vld [vmem:[#allocation10 + $0x960] sm:$0xff]
    %v7827 = vld [vmem:[#allocation10 + $0x968] sm:$0xff]
    %v7828 = vld [vmem:[#allocation10 + $0x970] sm:$0xff]
    %v7829 = vld [vmem:[#allocation10 + $0x978] sm:$0xff]
    %v7830 = vld [vmem:[#allocation10 + $0x980] sm:$0xff]
    %v7831 = vld [vmem:[#allocation10 + $0x988] sm:$0xff]
    %v7832 = vld [vmem:[#allocation10 + $0x990] sm:$0xff]
    %v7833 = vld [vmem:[#allocation10 + $0x998] sm:$0xff]
    %v7834 = vld [vmem:[#allocation10 + $0x9a0] sm:$0xff]
    %v7835 = vld [vmem:[#allocation10 + $0x9a8] sm:$0xff]
    %v7836 = vld [vmem:[#allocation10 + $0x9b0] sm:$0xff]
    %v7837 = vld [vmem:[#allocation10 + $0x9b8] sm:$0xff]
    %v7838 = vld [vmem:[#allocation10 + $0x9c0] sm:$0xff]
    %v7839 = vld [vmem:[#allocation10 + $0x9c8] sm:$0xff]
    %v7840 = vld [vmem:[#allocation10 + $0x9d0] sm:$0xff]
    %v7841 = vld [vmem:[#allocation10 + $0x9d8] sm:$0xff]
    %v7842 = vld [vmem:[#allocation10 + $0x9e0] sm:$0xff]
    %v7843 = vld [vmem:[#allocation10 + $0x9e8] sm:$0xff]
    %v7844 = vld [vmem:[#allocation10 + $0x9f0] sm:$0xff]
    %v7845 = vld [vmem:[#allocation10 + $0x9f8] sm:$0xff]
    %v7846 = vld [vmem:[#allocation10 + $0xa00] sm:$0xff]
    %v7847 = vld [vmem:[#allocation10 + $0xa08] sm:$0xff]
    %v7848 = vld [vmem:[#allocation10 + $0xa10] sm:$0xff]
    %v7849 = vld [vmem:[#allocation10 + $0xa18] sm:$0xff]
    %v7850 = vld [vmem:[#allocation10 + $0xa20] sm:$0xff]
    %v7851 = vld [vmem:[#allocation10 + $0xa28] sm:$0xff]
    %v7852 = vld [vmem:[#allocation10 + $0xa30] sm:$0xff]
    %v7853 = vld [vmem:[#allocation10 + $0xa38] sm:$0xff]
    %v7854 = vld [vmem:[#allocation10 + $0xa40] sm:$0xff]
    %v7855 = vld [vmem:[#allocation10 + $0xa48] sm:$0xff]
    %v7856 = vld [vmem:[#allocation10 + $0xa50] sm:$0xff]
    %v7857 = vld [vmem:[#allocation10 + $0xa58] sm:$0xff]
    %v7858 = vld [vmem:[#allocation10 + $0xa60] sm:$0xff]
    %v7859 = vld [vmem:[#allocation10 + $0xa68] sm:$0xff]
    %v7860 = vld [vmem:[#allocation10 + $0xa70] sm:$0xff]
    %v7861 = vld [vmem:[#allocation10 + $0xa78] sm:$0xff]
    %v7862 = vld [vmem:[#allocation10 + $0xa80] sm:$0xff]
    %v7863 = vld [vmem:[#allocation10 + $0xa88] sm:$0xff]
    %v7864 = vld [vmem:[#allocation10 + $0xa90] sm:$0xff]
    %v7865 = vld [vmem:[#allocation10 + $0xa98] sm:$0xff]
    %v7866 = vld [vmem:[#allocation10 + $0xaa0] sm:$0xff]
    %v7867 = vld [vmem:[#allocation10 + $0xaa8] sm:$0xff]
    %v7868 = vld [vmem:[#allocation10 + $0xab0] sm:$0xff]
    %v7869 = vld [vmem:[#allocation10 + $0xab8] sm:$0xff]
    %v7870 = vld [vmem:[#allocation10 + $0xac0] sm:$0xff]
    %v7871 = vld [vmem:[#allocation10 + $0xac8] sm:$0xff]
    %v7872 = vld [vmem:[#allocation10 + $0xad0] sm:$0xff]
    %v7873 = vld [vmem:[#allocation10 + $0xad8] sm:$0xff]
    %v7874 = vld [vmem:[#allocation10 + $0xae0] sm:$0xff]
    %v7875 = vld [vmem:[#allocation10 + $0xae8] sm:$0xff]
    %v7876 = vld [vmem:[#allocation10 + $0xaf0] sm:$0xff]
    %v7877 = vld [vmem:[#allocation10 + $0xaf8] sm:$0xff]
    %v7878 = vld [vmem:[#allocation10 + $0xb00] sm:$0xff]
    %v7879 = vld [vmem:[#allocation10 + $0xb08] sm:$0xff]
    %v7880 = vld [vmem:[#allocation10 + $0xb10] sm:$0xff]
    %v7881 = vld [vmem:[#allocation10 + $0xb18] sm:$0xff]
    %v7882 = vld [vmem:[#allocation10 + $0xb20] sm:$0xff]
    %v7883 = vld [vmem:[#allocation10 + $0xb28] sm:$0xff]
    %v7884 = vld [vmem:[#allocation10 + $0xb30] sm:$0xff]
    %v7885 = vld [vmem:[#allocation10 + $0xb38] sm:$0xff]
    %v7886 = vld [vmem:[#allocation10 + $0xb40] sm:$0xff]
    %v7887 = vld [vmem:[#allocation10 + $0xb48] sm:$0xff]
    %v7888 = vld [vmem:[#allocation10 + $0xb50] sm:$0xff]
    %v7889 = vld [vmem:[#allocation10 + $0xb58] sm:$0xff]
    %v7890 = vld [vmem:[#allocation10 + $0xb60] sm:$0xff]
    %v7891 = vld [vmem:[#allocation10 + $0xb68] sm:$0xff]
    %v7892 = vld [vmem:[#allocation10 + $0xb70] sm:$0xff]
    %v7893 = vld [vmem:[#allocation10 + $0xb78] sm:$0xff]
    %v7894 = vld [vmem:[#allocation10 + $0xb80] sm:$0xff]
    %v7895 = vld [vmem:[#allocation10 + $0xb88] sm:$0xff]
    %v7896 = vld [vmem:[#allocation10 + $0xb90] sm:$0xff]
    %v7897 = vld [vmem:[#allocation10 + $0xb98] sm:$0xff]
    %v7898 = vld [vmem:[#allocation10 + $0xba0] sm:$0xff]
    %v7899 = vld [vmem:[#allocation10 + $0xba8] sm:$0xff]
    %v7900 = vld [vmem:[#allocation10 + $0xbb0] sm:$0xff]
    %v7901 = vld [vmem:[#allocation10 + $0xbb8] sm:$0xff]
    %v7902 = vld [vmem:[#allocation10 + $0xbc0] sm:$0xff]
    %v7903 = vld [vmem:[#allocation10 + $0xbc8] sm:$0xff]
    %v7904 = vld [vmem:[#allocation10 + $0xbd0] sm:$0xff]
    %v7905 = vld [vmem:[#allocation10 + $0xbd8] sm:$0xff]
    %v7906 = vld [vmem:[#allocation10 + $0xbe0] sm:$0xff]
    %v7907 = vld [vmem:[#allocation10 + $0xbe8] sm:$0xff]
    %v7908 = vld [vmem:[#allocation10 + $0xbf0] sm:$0xff]
    %v7909 = vld [vmem:[#allocation10 + $0xbf8] sm:$0xff]
    %v7910 = vld [vmem:[#allocation10 + $0xc00] sm:$0xff]
    %v7911 = vld [vmem:[#allocation10 + $0xc08] sm:$0xff]
    %v7912 = vld [vmem:[#allocation10 + $0xc10] sm:$0xff]
    %v7913 = vld [vmem:[#allocation10 + $0xc18] sm:$0xff]
    %v7914 = vld [vmem:[#allocation10 + $0xc20] sm:$0xff]
    %v7915 = vld [vmem:[#allocation10 + $0xc28] sm:$0xff]
    %v7916 = vld [vmem:[#allocation10 + $0xc30] sm:$0xff]
    %v7917 = vld [vmem:[#allocation10 + $0xc38] sm:$0xff]
    %v7918 = vld [vmem:[#allocation10 + $0xc40] sm:$0xff]
    %v7919 = vld [vmem:[#allocation10 + $0xc48] sm:$0xff]
    %v7920 = vld [vmem:[#allocation10 + $0xc50] sm:$0xff]
    %v7921 = vld [vmem:[#allocation10 + $0xc58] sm:$0xff]
    %v7922 = vld [vmem:[#allocation10 + $0xc60] sm:$0xff]
    %v7923 = vld [vmem:[#allocation10 + $0xc68] sm:$0xff]
    %v7924 = vld [vmem:[#allocation10 + $0xc70] sm:$0xff]
    %v7925 = vld [vmem:[#allocation10 + $0xc78] sm:$0xff]
    %v7926 = vld [vmem:[#allocation10 + $0xc80] sm:$0xff]
    %v7927 = vld [vmem:[#allocation10 + $0xc88] sm:$0xff]
    %v7928 = vld [vmem:[#allocation10 + $0xc90] sm:$0xff]
    %v7929 = vld [vmem:[#allocation10 + $0xc98] sm:$0xff]
    %v7930 = vld [vmem:[#allocation10 + $0xca0] sm:$0xff]
    %v7931 = vld [vmem:[#allocation10 + $0xca8] sm:$0xff]
    %v7932 = vld [vmem:[#allocation10 + $0xcb0] sm:$0xff]
    %v7933 = vld [vmem:[#allocation10 + $0xcb8] sm:$0xff]
    %v7934 = vld [vmem:[#allocation10 + $0xcc0] sm:$0xff]
    %v7935 = vld [vmem:[#allocation10 + $0xcc8] sm:$0xff]
    %v7936 = vld [vmem:[#allocation10 + $0xcd0] sm:$0xff]
    %v7937 = vld [vmem:[#allocation10 + $0xcd8] sm:$0xff]
    %v7938 = vld [vmem:[#allocation10 + $0xce0] sm:$0xff]
    %v7939 = vld [vmem:[#allocation10 + $0xce8] sm:$0xff]
    %v7940 = vld [vmem:[#allocation10 + $0xcf0] sm:$0xff]
    %v7941 = vld [vmem:[#allocation10 + $0xcf8] sm:$0xff]
    %v7942 = vld [vmem:[#allocation10 + $0xd00] sm:$0xff]
    %v7943 = vld [vmem:[#allocation10 + $0xd08] sm:$0xff]
    %v7944 = vld [vmem:[#allocation10 + $0xd10] sm:$0xff]
    %v7945 = vld [vmem:[#allocation10 + $0xd18] sm:$0xff]
    %v7946 = vld [vmem:[#allocation10 + $0xd20] sm:$0xff]
    %v7947 = vld [vmem:[#allocation10 + $0xd28] sm:$0xff]
    %v7948 = vld [vmem:[#allocation10 + $0xd30] sm:$0xff]
    %v7949 = vld [vmem:[#allocation10 + $0xd38] sm:$0xff]
    %v7950 = vld [vmem:[#allocation10 + $0xd40] sm:$0xff]
    %v7951 = vld [vmem:[#allocation10 + $0xd48] sm:$0xff]
    %v7952 = vld [vmem:[#allocation10 + $0xd50] sm:$0xff]
    %v7953 = vld [vmem:[#allocation10 + $0xd58] sm:$0xff]
    %v7954 = vld [vmem:[#allocation10 + $0xd60] sm:$0xff]
    %v7955 = vld [vmem:[#allocation10 + $0xd68] sm:$0xff]
    %v7956 = vld [vmem:[#allocation10 + $0xd70] sm:$0xff]
    %v7957 = vld [vmem:[#allocation10 + $0xd78] sm:$0xff]
    %v7958 = vld [vmem:[#allocation10 + $0xd80] sm:$0xff]
    %v7959 = vld [vmem:[#allocation10 + $0xd88] sm:$0xff]
    %v7960 = vld [vmem:[#allocation10 + $0xd90] sm:$0xff]
    %v7961 = vld [vmem:[#allocation10 + $0xd98] sm:$0xff]
    %v7962 = vld [vmem:[#allocation10 + $0xda0] sm:$0xff]
    %v7963 = vld [vmem:[#allocation10 + $0xda8] sm:$0xff]
    %v7964 = vld [vmem:[#allocation10 + $0xdb0] sm:$0xff]
    %v7965 = vld [vmem:[#allocation10 + $0xdb8] sm:$0xff]
    %v7966 = vld [vmem:[#allocation10 + $0xdc0] sm:$0xff]
    %v7967 = vld [vmem:[#allocation10 + $0xdc8] sm:$0xff]
    %v7968 = vld [vmem:[#allocation10 + $0xdd0] sm:$0xff]
    %v7969 = vld [vmem:[#allocation10 + $0xdd8] sm:$0xff]
    %v7970 = vld [vmem:[#allocation10 + $0xde0] sm:$0xff]
    %v7971 = vld [vmem:[#allocation10 + $0xde8] sm:$0xff]
    %v7972 = vld [vmem:[#allocation10 + $0xdf0] sm:$0xff]
    %v7973 = vld [vmem:[#allocation10 + $0xdf8] sm:$0xff]
    %v7974 = vld [vmem:[#allocation10 + $0xe00] sm:$0xff]
    %v7975 = vld [vmem:[#allocation10 + $0xe08] sm:$0xff]
    %v7976 = vld [vmem:[#allocation10 + $0xe10] sm:$0xff]
    %v7977 = vld [vmem:[#allocation10 + $0xe18] sm:$0xff]
    %v7978 = vld [vmem:[#allocation10 + $0xe20] sm:$0xff]
    %v7979 = vld [vmem:[#allocation10 + $0xe28] sm:$0xff]
    %v7980 = vld [vmem:[#allocation10 + $0xe30] sm:$0xff]
    %v7981 = vld [vmem:[#allocation10 + $0xe38] sm:$0xff]
    %v7982 = vld [vmem:[#allocation10 + $0xe40] sm:$0xff]
    %v7983 = vld [vmem:[#allocation10 + $0xe48] sm:$0xff]
    %v7984 = vld [vmem:[#allocation10 + $0xe50] sm:$0xff]
    %v7985 = vld [vmem:[#allocation10 + $0xe58] sm:$0xff]
    %v7986 = vld [vmem:[#allocation10 + $0xe60] sm:$0xff]
    %v7987 = vld [vmem:[#allocation10 + $0xe68] sm:$0xff]
    %v7988 = vld [vmem:[#allocation10 + $0xe70] sm:$0xff]
    %v7989 = vld [vmem:[#allocation10 + $0xe78] sm:$0xff]
    %v7990 = vld [vmem:[#allocation10 + $0xe80] sm:$0xff]
    %v7991 = vld [vmem:[#allocation10 + $0xe88] sm:$0xff]
    %v7992 = vld [vmem:[#allocation10 + $0xe90] sm:$0xff]
    %v7993 = vld [vmem:[#allocation10 + $0xe98] sm:$0xff]
    %v7994 = vld [vmem:[#allocation10 + $0xea0] sm:$0xff]
    %v7995 = vld [vmem:[#allocation10 + $0xea8] sm:$0xff]
    %v7996 = vld [vmem:[#allocation10 + $0xeb0] sm:$0xff]
    %v7997 = vld [vmem:[#allocation10 + $0xeb8] sm:$0xff]
    %v7998 = vld [vmem:[#allocation10 + $0xec0] sm:$0xff]
    %v7999 = vld [vmem:[#allocation10 + $0xec8] sm:$0xff]
    %v8000 = vld [vmem:[#allocation10 + $0xed0] sm:$0xff]
    %v8001 = vld [vmem:[#allocation10 + $0xed8] sm:$0xff]
    %v8002 = vld [vmem:[#allocation10 + $0xee0] sm:$0xff]
    %v8003 = vld [vmem:[#allocation10 + $0xee8] sm:$0xff]
    %v8004 = vld [vmem:[#allocation10 + $0xef0] sm:$0xff]
    %v8005 = vld [vmem:[#allocation10 + $0xef8] sm:$0xff]
    %v8006 = vld [vmem:[#allocation10 + $0xf00] sm:$0xff]
    %v8007 = vld [vmem:[#allocation10 + $0xf08] sm:$0xff]
    %v8008 = vld [vmem:[#allocation10 + $0xf10] sm:$0xff]
    %v8009 = vld [vmem:[#allocation10 + $0xf18] sm:$0xff]
    %v8010 = vld [vmem:[#allocation10 + $0xf20] sm:$0xff]
    %v8011 = vld [vmem:[#allocation10 + $0xf28] sm:$0xff]
    %v8012 = vld [vmem:[#allocation10 + $0xf30] sm:$0xff]
    %v8013 = vld [vmem:[#allocation10 + $0xf38] sm:$0xff]
    %v8014 = vld [vmem:[#allocation10 + $0xf40] sm:$0xff]
    %v8015 = vld [vmem:[#allocation10 + $0xf48] sm:$0xff]
    %v8016 = vld [vmem:[#allocation10 + $0xf50] sm:$0xff]
    %v8017 = vld [vmem:[#allocation10 + $0xf58] sm:$0xff]
    %v8018 = vld [vmem:[#allocation10 + $0xf60] sm:$0xff]
    %v8019 = vld [vmem:[#allocation10 + $0xf68] sm:$0xff]
    %v8020 = vld [vmem:[#allocation10 + $0xf70] sm:$0xff]
    %v8021 = vld [vmem:[#allocation10 + $0xf78] sm:$0xff]
    %v8022 = vld [vmem:[#allocation10 + $0xf80] sm:$0xff]
    %v8023 = vld [vmem:[#allocation10 + $0xf88] sm:$0xff]
    %v8024 = vld [vmem:[#allocation10 + $0xf90] sm:$0xff]
    %v8025 = vld [vmem:[#allocation10 + $0xf98] sm:$0xff]
    %v8026 = vld [vmem:[#allocation10 + $0xfa0] sm:$0xff]
    %v8027 = vld [vmem:[#allocation10 + $0xfa8] sm:$0xff]
    %v8028 = vld [vmem:[#allocation10 + $0xfb0] sm:$0xff]
    %v8029 = vld [vmem:[#allocation10 + $0xfb8] sm:$0xff]
    %v8030 = vld [vmem:[#allocation10 + $0xfc0] sm:$0xff]
    %v8031 = vld [vmem:[#allocation10 + $0xfc8] sm:$0xff]
    %v8032 = vld [vmem:[#allocation10 + $0xfd0] sm:$0xff]
    %v8033 = vld [vmem:[#allocation10 + $0xfd8] sm:$0xff]
    %v8034 = vld [vmem:[#allocation10 + $0xfe0] sm:$0xff]
    %v8035 = vld [vmem:[#allocation10 + $0xfe8] sm:$0xff]
    %v8036 = vld [vmem:[#allocation10 + $0xff0] sm:$0xff]
    %v8037 = vld [vmem:[#allocation10 + $0xff8] sm:$0xff]
    %v8038 = vunpack.c.l.bf16 %v7526
    %v8039 = vunpack.c.h.bf16 %v7526
    %v8040 = vunpack.c.l.bf16 %v7527
    %v8041 = vunpack.c.h.bf16 %v7527
    %v8042 = vunpack.c.l.bf16 %v7528
    %v8043 = vunpack.c.h.bf16 %v7528
    %v8044 = vunpack.c.l.bf16 %v7529
    %v8045 = vunpack.c.h.bf16 %v7529
    %v8046 = vunpack.c.l.bf16 %v7530
    %v8047 = vunpack.c.h.bf16 %v7530
    %v8048 = vunpack.c.l.bf16 %v7531
    %v8049 = vunpack.c.h.bf16 %v7531
    %v8050 = vunpack.c.l.bf16 %v7532
    %v8051 = vunpack.c.h.bf16 %v7532
    %v8052 = vunpack.c.l.bf16 %v7533
    %v8053 = vunpack.c.h.bf16 %v7533
    %v8054 = vunpack.c.l.bf16 %v7534
    %v8055 = vunpack.c.h.bf16 %v7534
    %v8056 = vunpack.c.l.bf16 %v7535
    %v8057 = vunpack.c.h.bf16 %v7535
    %v8058 = vunpack.c.l.bf16 %v7536
    %v8059 = vunpack.c.h.bf16 %v7536
    %v8060 = vunpack.c.l.bf16 %v7537
    %v8061 = vunpack.c.h.bf16 %v7537
    %v8062 = vunpack.c.l.bf16 %v7538
    %v8063 = vunpack.c.h.bf16 %v7538
    %v8064 = vunpack.c.l.bf16 %v7539
    %v8065 = vunpack.c.h.bf16 %v7539
    %v8066 = vunpack.c.l.bf16 %v7540
    %v8067 = vunpack.c.h.bf16 %v7540
    %v8068 = vunpack.c.l.bf16 %v7541
    %v8069 = vunpack.c.h.bf16 %v7541
    %v8070 = vunpack.c.l.bf16 %v7542
    %v8071 = vunpack.c.h.bf16 %v7542
    %v8072 = vunpack.c.l.bf16 %v7543
    %v8073 = vunpack.c.h.bf16 %v7543
    %v8074 = vunpack.c.l.bf16 %v7544
    %v8075 = vunpack.c.h.bf16 %v7544
    %v8076 = vunpack.c.l.bf16 %v7545
    %v8077 = vunpack.c.h.bf16 %v7545
    %v8078 = vunpack.c.l.bf16 %v7546
    %v8079 = vunpack.c.h.bf16 %v7546
    %v8080 = vunpack.c.l.bf16 %v7547
    %v8081 = vunpack.c.h.bf16 %v7547
    %v8082 = vunpack.c.l.bf16 %v7548
    %v8083 = vunpack.c.h.bf16 %v7548
    %v8084 = vunpack.c.l.bf16 %v7549
    %v8085 = vunpack.c.h.bf16 %v7549
    %v8086 = vunpack.c.l.bf16 %v7550
    %v8087 = vunpack.c.h.bf16 %v7550
    %v8088 = vunpack.c.l.bf16 %v7551
    %v8089 = vunpack.c.h.bf16 %v7551
    %v8090 = vunpack.c.l.bf16 %v7552
    %v8091 = vunpack.c.h.bf16 %v7552
    %v8092 = vunpack.c.l.bf16 %v7553
    %v8093 = vunpack.c.h.bf16 %v7553
    %v8094 = vunpack.c.l.bf16 %v7554
    %v8095 = vunpack.c.h.bf16 %v7554
    %v8096 = vunpack.c.l.bf16 %v7555
    %v8097 = vunpack.c.h.bf16 %v7555
    %v8098 = vunpack.c.l.bf16 %v7556
    %v8099 = vunpack.c.h.bf16 %v7556
    %v8100 = vunpack.c.l.bf16 %v7557
    %v8101 = vunpack.c.h.bf16 %v7557
    %v8102 = vunpack.c.l.bf16 %v7558
    %v8103 = vunpack.c.h.bf16 %v7558
    %v8104 = vunpack.c.l.bf16 %v7559
    %v8105 = vunpack.c.h.bf16 %v7559
    %v8106 = vunpack.c.l.bf16 %v7560
    %v8107 = vunpack.c.h.bf16 %v7560
    %v8108 = vunpack.c.l.bf16 %v7561
    %v8109 = vunpack.c.h.bf16 %v7561
    %v8110 = vunpack.c.l.bf16 %v7562
    %v8111 = vunpack.c.h.bf16 %v7562
    %v8112 = vunpack.c.l.bf16 %v7563
    %v8113 = vunpack.c.h.bf16 %v7563
    %v8114 = vunpack.c.l.bf16 %v7564
    %v8115 = vunpack.c.h.bf16 %v7564
    %v8116 = vunpack.c.l.bf16 %v7565
    %v8117 = vunpack.c.h.bf16 %v7565
    %v8118 = vunpack.c.l.bf16 %v7566
    %v8119 = vunpack.c.h.bf16 %v7566
    %v8120 = vunpack.c.l.bf16 %v7567
    %v8121 = vunpack.c.h.bf16 %v7567
    %v8122 = vunpack.c.l.bf16 %v7568
    %v8123 = vunpack.c.h.bf16 %v7568
    %v8124 = vunpack.c.l.bf16 %v7569
    %v8125 = vunpack.c.h.bf16 %v7569
    %v8126 = vunpack.c.l.bf16 %v7570
    %v8127 = vunpack.c.h.bf16 %v7570
    %v8128 = vunpack.c.l.bf16 %v7571
    %v8129 = vunpack.c.h.bf16 %v7571
    %v8130 = vunpack.c.l.bf16 %v7572
    %v8131 = vunpack.c.h.bf16 %v7572
    %v8132 = vunpack.c.l.bf16 %v7573
    %v8133 = vunpack.c.h.bf16 %v7573
    %v8134 = vunpack.c.l.bf16 %v7574
    %v8135 = vunpack.c.h.bf16 %v7574
    %v8136 = vunpack.c.l.bf16 %v7575
    %v8137 = vunpack.c.h.bf16 %v7575
    %v8138 = vunpack.c.l.bf16 %v7576
    %v8139 = vunpack.c.h.bf16 %v7576
    %v8140 = vunpack.c.l.bf16 %v7577
    %v8141 = vunpack.c.h.bf16 %v7577
    %v8142 = vunpack.c.l.bf16 %v7578
    %v8143 = vunpack.c.h.bf16 %v7578
    %v8144 = vunpack.c.l.bf16 %v7579
    %v8145 = vunpack.c.h.bf16 %v7579
    %v8146 = vunpack.c.l.bf16 %v7580
    %v8147 = vunpack.c.h.bf16 %v7580
    %v8148 = vunpack.c.l.bf16 %v7581
    %v8149 = vunpack.c.h.bf16 %v7581
    %v8150 = vunpack.c.l.bf16 %v7582
    %v8151 = vunpack.c.h.bf16 %v7582
    %v8152 = vunpack.c.l.bf16 %v7583
    %v8153 = vunpack.c.h.bf16 %v7583
    %v8154 = vunpack.c.l.bf16 %v7584
    %v8155 = vunpack.c.h.bf16 %v7584
    %v8156 = vunpack.c.l.bf16 %v7585
    %v8157 = vunpack.c.h.bf16 %v7585
    %v8158 = vunpack.c.l.bf16 %v7586
    %v8159 = vunpack.c.h.bf16 %v7586
    %v8160 = vunpack.c.l.bf16 %v7587
    %v8161 = vunpack.c.h.bf16 %v7587
    %v8162 = vunpack.c.l.bf16 %v7588
    %v8163 = vunpack.c.h.bf16 %v7588
    %v8164 = vunpack.c.l.bf16 %v7589
    %v8165 = vunpack.c.h.bf16 %v7589
    %v8166 = vunpack.c.l.bf16 %v7590
    %v8167 = vunpack.c.h.bf16 %v7590
    %v8168 = vunpack.c.l.bf16 %v7591
    %v8169 = vunpack.c.h.bf16 %v7591
    %v8170 = vunpack.c.l.bf16 %v7592
    %v8171 = vunpack.c.h.bf16 %v7592
    %v8172 = vunpack.c.l.bf16 %v7593
    %v8173 = vunpack.c.h.bf16 %v7593
    %v8174 = vunpack.c.l.bf16 %v7594
    %v8175 = vunpack.c.h.bf16 %v7594
    %v8176 = vunpack.c.l.bf16 %v7595
    %v8177 = vunpack.c.h.bf16 %v7595
    %v8178 = vunpack.c.l.bf16 %v7596
    %v8179 = vunpack.c.h.bf16 %v7596
    %v8180 = vunpack.c.l.bf16 %v7597
    %v8181 = vunpack.c.h.bf16 %v7597
    %v8182 = vunpack.c.l.bf16 %v7598
    %v8183 = vunpack.c.h.bf16 %v7598
    %v8184 = vunpack.c.l.bf16 %v7599
    %v8185 = vunpack.c.h.bf16 %v7599
    %v8186 = vunpack.c.l.bf16 %v7600
    %v8187 = vunpack.c.h.bf16 %v7600
    %v8188 = vunpack.c.l.bf16 %v7601
    %v8189 = vunpack.c.h.bf16 %v7601
    %v8190 = vunpack.c.l.bf16 %v7602
    %v8191 = vunpack.c.h.bf16 %v7602
    %v8192 = vunpack.c.l.bf16 %v7603
    %v8193 = vunpack.c.h.bf16 %v7603
    %v8194 = vunpack.c.l.bf16 %v7604
    %v8195 = vunpack.c.h.bf16 %v7604
    %v8196 = vunpack.c.l.bf16 %v7605
    %v8197 = vunpack.c.h.bf16 %v7605
    %v8198 = vunpack.c.l.bf16 %v7606
    %v8199 = vunpack.c.h.bf16 %v7606
    %v8200 = vunpack.c.l.bf16 %v7607
    %v8201 = vunpack.c.h.bf16 %v7607
    %v8202 = vunpack.c.l.bf16 %v7608
    %v8203 = vunpack.c.h.bf16 %v7608
    %v8204 = vunpack.c.l.bf16 %v7609
    %v8205 = vunpack.c.h.bf16 %v7609
    %v8206 = vunpack.c.l.bf16 %v7610
    %v8207 = vunpack.c.h.bf16 %v7610
    %v8208 = vunpack.c.l.bf16 %v7611
    %v8209 = vunpack.c.h.bf16 %v7611
    %v8210 = vunpack.c.l.bf16 %v7612
    %v8211 = vunpack.c.h.bf16 %v7612
    %v8212 = vunpack.c.l.bf16 %v7613
    %v8213 = vunpack.c.h.bf16 %v7613
    %v8214 = vunpack.c.l.bf16 %v7614
    %v8215 = vunpack.c.h.bf16 %v7614
    %v8216 = vunpack.c.l.bf16 %v7615
    %v8217 = vunpack.c.h.bf16 %v7615
    %v8218 = vunpack.c.l.bf16 %v7616
    %v8219 = vunpack.c.h.bf16 %v7616
    %v8220 = vunpack.c.l.bf16 %v7617
    %v8221 = vunpack.c.h.bf16 %v7617
    %v8222 = vunpack.c.l.bf16 %v7618
    %v8223 = vunpack.c.h.bf16 %v7618
    %v8224 = vunpack.c.l.bf16 %v7619
    %v8225 = vunpack.c.h.bf16 %v7619
    %v8226 = vunpack.c.l.bf16 %v7620
    %v8227 = vunpack.c.h.bf16 %v7620
    %v8228 = vunpack.c.l.bf16 %v7621
    %v8229 = vunpack.c.h.bf16 %v7621
    %v8230 = vunpack.c.l.bf16 %v7622
    %v8231 = vunpack.c.h.bf16 %v7622
    %v8232 = vunpack.c.l.bf16 %v7623
    %v8233 = vunpack.c.h.bf16 %v7623
    %v8234 = vunpack.c.l.bf16 %v7624
    %v8235 = vunpack.c.h.bf16 %v7624
    %v8236 = vunpack.c.l.bf16 %v7625
    %v8237 = vunpack.c.h.bf16 %v7625
    %v8238 = vunpack.c.l.bf16 %v7626
    %v8239 = vunpack.c.h.bf16 %v7626
    %v8240 = vunpack.c.l.bf16 %v7627
    %v8241 = vunpack.c.h.bf16 %v7627
    %v8242 = vunpack.c.l.bf16 %v7628
    %v8243 = vunpack.c.h.bf16 %v7628
    %v8244 = vunpack.c.l.bf16 %v7629
    %v8245 = vunpack.c.h.bf16 %v7629
    %v8246 = vunpack.c.l.bf16 %v7630
    %v8247 = vunpack.c.h.bf16 %v7630
    %v8248 = vunpack.c.l.bf16 %v7631
    %v8249 = vunpack.c.h.bf16 %v7631
    %v8250 = vunpack.c.l.bf16 %v7632
    %v8251 = vunpack.c.h.bf16 %v7632
    %v8252 = vunpack.c.l.bf16 %v7633
    %v8253 = vunpack.c.h.bf16 %v7633
    %v8254 = vunpack.c.l.bf16 %v7634
    %v8255 = vunpack.c.h.bf16 %v7634
    %v8256 = vunpack.c.l.bf16 %v7635
    %v8257 = vunpack.c.h.bf16 %v7635
    %v8258 = vunpack.c.l.bf16 %v7636
    %v8259 = vunpack.c.h.bf16 %v7636
    %v8260 = vunpack.c.l.bf16 %v7637
    %v8261 = vunpack.c.h.bf16 %v7637
    %v8262 = vunpack.c.l.bf16 %v7638
    %v8263 = vunpack.c.h.bf16 %v7638
    %v8264 = vunpack.c.l.bf16 %v7639
    %v8265 = vunpack.c.h.bf16 %v7639
    %v8266 = vunpack.c.l.bf16 %v7640
    %v8267 = vunpack.c.h.bf16 %v7640
    %v8268 = vunpack.c.l.bf16 %v7641
    %v8269 = vunpack.c.h.bf16 %v7641
    %v8270 = vunpack.c.l.bf16 %v7642
    %v8271 = vunpack.c.h.bf16 %v7642
    %v8272 = vunpack.c.l.bf16 %v7643
    %v8273 = vunpack.c.h.bf16 %v7643
    %v8274 = vunpack.c.l.bf16 %v7644
    %v8275 = vunpack.c.h.bf16 %v7644
    %v8276 = vunpack.c.l.bf16 %v7645
    %v8277 = vunpack.c.h.bf16 %v7645
    %v8278 = vunpack.c.l.bf16 %v7646
    %v8279 = vunpack.c.h.bf16 %v7646
    %v8280 = vunpack.c.l.bf16 %v7647
    %v8281 = vunpack.c.h.bf16 %v7647
    %v8282 = vunpack.c.l.bf16 %v7648
    %v8283 = vunpack.c.h.bf16 %v7648
    %v8284 = vunpack.c.l.bf16 %v7649
    %v8285 = vunpack.c.h.bf16 %v7649
    %v8286 = vunpack.c.l.bf16 %v7650
    %v8287 = vunpack.c.h.bf16 %v7650
    %v8288 = vunpack.c.l.bf16 %v7651
    %v8289 = vunpack.c.h.bf16 %v7651
    %v8290 = vunpack.c.l.bf16 %v7652
    %v8291 = vunpack.c.h.bf16 %v7652
    %v8292 = vunpack.c.l.bf16 %v7653
    %v8293 = vunpack.c.h.bf16 %v7653
    %v8294 = vunpack.c.l.bf16 %v7654
    %v8295 = vunpack.c.h.bf16 %v7654
    %v8296 = vunpack.c.l.bf16 %v7655
    %v8297 = vunpack.c.h.bf16 %v7655
    %v8298 = vunpack.c.l.bf16 %v7656
    %v8299 = vunpack.c.h.bf16 %v7656
    %v8300 = vunpack.c.l.bf16 %v7657
    %v8301 = vunpack.c.h.bf16 %v7657
    %v8302 = vunpack.c.l.bf16 %v7658
    %v8303 = vunpack.c.h.bf16 %v7658
    %v8304 = vunpack.c.l.bf16 %v7659
    %v8305 = vunpack.c.h.bf16 %v7659
    %v8306 = vunpack.c.l.bf16 %v7660
    %v8307 = vunpack.c.h.bf16 %v7660
    %v8308 = vunpack.c.l.bf16 %v7661
    %v8309 = vunpack.c.h.bf16 %v7661
    %v8310 = vunpack.c.l.bf16 %v7662
    %v8311 = vunpack.c.h.bf16 %v7662
    %v8312 = vunpack.c.l.bf16 %v7663
    %v8313 = vunpack.c.h.bf16 %v7663
    %v8314 = vunpack.c.l.bf16 %v7664
    %v8315 = vunpack.c.h.bf16 %v7664
    %v8316 = vunpack.c.l.bf16 %v7665
    %v8317 = vunpack.c.h.bf16 %v7665
    %v8318 = vunpack.c.l.bf16 %v7666
    %v8319 = vunpack.c.h.bf16 %v7666
    %v8320 = vunpack.c.l.bf16 %v7667
    %v8321 = vunpack.c.h.bf16 %v7667
    %v8322 = vunpack.c.l.bf16 %v7668
    %v8323 = vunpack.c.h.bf16 %v7668
    %v8324 = vunpack.c.l.bf16 %v7669
    %v8325 = vunpack.c.h.bf16 %v7669
    %v8326 = vunpack.c.l.bf16 %v7670
    %v8327 = vunpack.c.h.bf16 %v7670
    %v8328 = vunpack.c.l.bf16 %v7671
    %v8329 = vunpack.c.h.bf16 %v7671
    %v8330 = vunpack.c.l.bf16 %v7672
    %v8331 = vunpack.c.h.bf16 %v7672
    %v8332 = vunpack.c.l.bf16 %v7673
    %v8333 = vunpack.c.h.bf16 %v7673
    %v8334 = vunpack.c.l.bf16 %v7674
    %v8335 = vunpack.c.h.bf16 %v7674
    %v8336 = vunpack.c.l.bf16 %v7675
    %v8337 = vunpack.c.h.bf16 %v7675
    %v8338 = vunpack.c.l.bf16 %v7676
    %v8339 = vunpack.c.h.bf16 %v7676
    %v8340 = vunpack.c.l.bf16 %v7677
    %v8341 = vunpack.c.h.bf16 %v7677
    %v8342 = vunpack.c.l.bf16 %v7678
    %v8343 = vunpack.c.h.bf16 %v7678
    %v8344 = vunpack.c.l.bf16 %v7679
    %v8345 = vunpack.c.h.bf16 %v7679
    %v8346 = vunpack.c.l.bf16 %v7680
    %v8347 = vunpack.c.h.bf16 %v7680
    %v8348 = vunpack.c.l.bf16 %v7681
    %v8349 = vunpack.c.h.bf16 %v7681
    %v8350 = vunpack.c.l.bf16 %v7682
    %v8351 = vunpack.c.h.bf16 %v7682
    %v8352 = vunpack.c.l.bf16 %v7683
    %v8353 = vunpack.c.h.bf16 %v7683
    %v8354 = vunpack.c.l.bf16 %v7684
    %v8355 = vunpack.c.h.bf16 %v7684
    %v8356 = vunpack.c.l.bf16 %v7685
    %v8357 = vunpack.c.h.bf16 %v7685
    %v8358 = vunpack.c.l.bf16 %v7686
    %v8359 = vunpack.c.h.bf16 %v7686
    %v8360 = vunpack.c.l.bf16 %v7687
    %v8361 = vunpack.c.h.bf16 %v7687
    %v8362 = vunpack.c.l.bf16 %v7688
    %v8363 = vunpack.c.h.bf16 %v7688
    %v8364 = vunpack.c.l.bf16 %v7689
    %v8365 = vunpack.c.h.bf16 %v7689
    %v8366 = vunpack.c.l.bf16 %v7690
    %v8367 = vunpack.c.h.bf16 %v7690
    %v8368 = vunpack.c.l.bf16 %v7691
    %v8369 = vunpack.c.h.bf16 %v7691
    %v8370 = vunpack.c.l.bf16 %v7692
    %v8371 = vunpack.c.h.bf16 %v7692
    %v8372 = vunpack.c.l.bf16 %v7693
    %v8373 = vunpack.c.h.bf16 %v7693
    %v8374 = vunpack.c.l.bf16 %v7694
    %v8375 = vunpack.c.h.bf16 %v7694
    %v8376 = vunpack.c.l.bf16 %v7695
    %v8377 = vunpack.c.h.bf16 %v7695
    %v8378 = vunpack.c.l.bf16 %v7696
    %v8379 = vunpack.c.h.bf16 %v7696
    %v8380 = vunpack.c.l.bf16 %v7697
    %v8381 = vunpack.c.h.bf16 %v7697
    %v8382 = vunpack.c.l.bf16 %v7698
    %v8383 = vunpack.c.h.bf16 %v7698
    %v8384 = vunpack.c.l.bf16 %v7699
    %v8385 = vunpack.c.h.bf16 %v7699
    %v8386 = vunpack.c.l.bf16 %v7700
    %v8387 = vunpack.c.h.bf16 %v7700
    %v8388 = vunpack.c.l.bf16 %v7701
    %v8389 = vunpack.c.h.bf16 %v7701
    %v8390 = vunpack.c.l.bf16 %v7702
    %v8391 = vunpack.c.h.bf16 %v7702
    %v8392 = vunpack.c.l.bf16 %v7703
    %v8393 = vunpack.c.h.bf16 %v7703
    %v8394 = vunpack.c.l.bf16 %v7704
    %v8395 = vunpack.c.h.bf16 %v7704
    %v8396 = vunpack.c.l.bf16 %v7705
    %v8397 = vunpack.c.h.bf16 %v7705
    %v8398 = vunpack.c.l.bf16 %v7706
    %v8399 = vunpack.c.h.bf16 %v7706
    %v8400 = vunpack.c.l.bf16 %v7707
    %v8401 = vunpack.c.h.bf16 %v7707
    %v8402 = vunpack.c.l.bf16 %v7708
    %v8403 = vunpack.c.h.bf16 %v7708
    %v8404 = vunpack.c.l.bf16 %v7709
    %v8405 = vunpack.c.h.bf16 %v7709
    %v8406 = vunpack.c.l.bf16 %v7710
    %v8407 = vunpack.c.h.bf16 %v7710
    %v8408 = vunpack.c.l.bf16 %v7711
    %v8409 = vunpack.c.h.bf16 %v7711
    %v8410 = vunpack.c.l.bf16 %v7712
    %v8411 = vunpack.c.h.bf16 %v7712
    %v8412 = vunpack.c.l.bf16 %v7713
    %v8413 = vunpack.c.h.bf16 %v7713
    %v8414 = vunpack.c.l.bf16 %v7714
    %v8415 = vunpack.c.h.bf16 %v7714
    %v8416 = vunpack.c.l.bf16 %v7715
    %v8417 = vunpack.c.h.bf16 %v7715
    %v8418 = vunpack.c.l.bf16 %v7716
    %v8419 = vunpack.c.h.bf16 %v7716
    %v8420 = vunpack.c.l.bf16 %v7717
    %v8421 = vunpack.c.h.bf16 %v7717
    %v8422 = vunpack.c.l.bf16 %v7718
    %v8423 = vunpack.c.h.bf16 %v7718
    %v8424 = vunpack.c.l.bf16 %v7719
    %v8425 = vunpack.c.h.bf16 %v7719
    %v8426 = vunpack.c.l.bf16 %v7720
    %v8427 = vunpack.c.h.bf16 %v7720
    %v8428 = vunpack.c.l.bf16 %v7721
    %v8429 = vunpack.c.h.bf16 %v7721
    %v8430 = vunpack.c.l.bf16 %v7722
    %v8431 = vunpack.c.h.bf16 %v7722
    %v8432 = vunpack.c.l.bf16 %v7723
    %v8433 = vunpack.c.h.bf16 %v7723
    %v8434 = vunpack.c.l.bf16 %v7724
    %v8435 = vunpack.c.h.bf16 %v7724
    %v8436 = vunpack.c.l.bf16 %v7725
    %v8437 = vunpack.c.h.bf16 %v7725
    %v8438 = vunpack.c.l.bf16 %v7726
    %v8439 = vunpack.c.h.bf16 %v7726
    %v8440 = vunpack.c.l.bf16 %v7727
    %v8441 = vunpack.c.h.bf16 %v7727
    %v8442 = vunpack.c.l.bf16 %v7728
    %v8443 = vunpack.c.h.bf16 %v7728
    %v8444 = vunpack.c.l.bf16 %v7729
    %v8445 = vunpack.c.h.bf16 %v7729
    %v8446 = vunpack.c.l.bf16 %v7730
    %v8447 = vunpack.c.h.bf16 %v7730
    %v8448 = vunpack.c.l.bf16 %v7731
    %v8449 = vunpack.c.h.bf16 %v7731
    %v8450 = vunpack.c.l.bf16 %v7732
    %v8451 = vunpack.c.h.bf16 %v7732
    %v8452 = vunpack.c.l.bf16 %v7733
    %v8453 = vunpack.c.h.bf16 %v7733
    %v8454 = vunpack.c.l.bf16 %v7734
    %v8455 = vunpack.c.h.bf16 %v7734
    %v8456 = vunpack.c.l.bf16 %v7735
    %v8457 = vunpack.c.h.bf16 %v7735
    %v8458 = vunpack.c.l.bf16 %v7736
    %v8459 = vunpack.c.h.bf16 %v7736
    %v8460 = vunpack.c.l.bf16 %v7737
    %v8461 = vunpack.c.h.bf16 %v7737
    %v8462 = vunpack.c.l.bf16 %v7738
    %v8463 = vunpack.c.h.bf16 %v7738
    %v8464 = vunpack.c.l.bf16 %v7739
    %v8465 = vunpack.c.h.bf16 %v7739
    %v8466 = vunpack.c.l.bf16 %v7740
    %v8467 = vunpack.c.h.bf16 %v7740
    %v8468 = vunpack.c.l.bf16 %v7741
    %v8469 = vunpack.c.h.bf16 %v7741
    %v8470 = vunpack.c.l.bf16 %v7742
    %v8471 = vunpack.c.h.bf16 %v7742
    %v8472 = vunpack.c.l.bf16 %v7743
    %v8473 = vunpack.c.h.bf16 %v7743
    %v8474 = vunpack.c.l.bf16 %v7744
    %v8475 = vunpack.c.h.bf16 %v7744
    %v8476 = vunpack.c.l.bf16 %v7745
    %v8477 = vunpack.c.h.bf16 %v7745
    %v8478 = vunpack.c.l.bf16 %v7746
    %v8479 = vunpack.c.h.bf16 %v7746
    %v8480 = vunpack.c.l.bf16 %v7747
    %v8481 = vunpack.c.h.bf16 %v7747
    %v8482 = vunpack.c.l.bf16 %v7748
    %v8483 = vunpack.c.h.bf16 %v7748
    %v8484 = vunpack.c.l.bf16 %v7749
    %v8485 = vunpack.c.h.bf16 %v7749
    %v8486 = vunpack.c.l.bf16 %v7750
    %v8487 = vunpack.c.h.bf16 %v7750
    %v8488 = vunpack.c.l.bf16 %v7751
    %v8489 = vunpack.c.h.bf16 %v7751
    %v8490 = vunpack.c.l.bf16 %v7752
    %v8491 = vunpack.c.h.bf16 %v7752
    %v8492 = vunpack.c.l.bf16 %v7753
    %v8493 = vunpack.c.h.bf16 %v7753
    %v8494 = vunpack.c.l.bf16 %v7754
    %v8495 = vunpack.c.h.bf16 %v7754
    %v8496 = vunpack.c.l.bf16 %v7755
    %v8497 = vunpack.c.h.bf16 %v7755
    %v8498 = vunpack.c.l.bf16 %v7756
    %v8499 = vunpack.c.h.bf16 %v7756
    %v8500 = vunpack.c.l.bf16 %v7757
    %v8501 = vunpack.c.h.bf16 %v7757
    %v8502 = vunpack.c.l.bf16 %v7758
    %v8503 = vunpack.c.h.bf16 %v7758
    %v8504 = vunpack.c.l.bf16 %v7759
    %v8505 = vunpack.c.h.bf16 %v7759
    %v8506 = vunpack.c.l.bf16 %v7760
    %v8507 = vunpack.c.h.bf16 %v7760
    %v8508 = vunpack.c.l.bf16 %v7761
    %v8509 = vunpack.c.h.bf16 %v7761
    %v8510 = vunpack.c.l.bf16 %v7762
    %v8511 = vunpack.c.h.bf16 %v7762
    %v8512 = vunpack.c.l.bf16 %v7763
    %v8513 = vunpack.c.h.bf16 %v7763
    %v8514 = vunpack.c.l.bf16 %v7764
    %v8515 = vunpack.c.h.bf16 %v7764
    %v8516 = vunpack.c.l.bf16 %v7765
    %v8517 = vunpack.c.h.bf16 %v7765
    %v8518 = vunpack.c.l.bf16 %v7766
    %v8519 = vunpack.c.h.bf16 %v7766
    %v8520 = vunpack.c.l.bf16 %v7767
    %v8521 = vunpack.c.h.bf16 %v7767
    %v8522 = vunpack.c.l.bf16 %v7768
    %v8523 = vunpack.c.h.bf16 %v7768
    %v8524 = vunpack.c.l.bf16 %v7769
    %v8525 = vunpack.c.h.bf16 %v7769
    %v8526 = vunpack.c.l.bf16 %v7770
    %v8527 = vunpack.c.h.bf16 %v7770
    %v8528 = vunpack.c.l.bf16 %v7771
    %v8529 = vunpack.c.h.bf16 %v7771
    %v8530 = vunpack.c.l.bf16 %v7772
    %v8531 = vunpack.c.h.bf16 %v7772
    %v8532 = vunpack.c.l.bf16 %v7773
    %v8533 = vunpack.c.h.bf16 %v7773
    %v8534 = vunpack.c.l.bf16 %v7774
    %v8535 = vunpack.c.h.bf16 %v7774
    %v8536 = vunpack.c.l.bf16 %v7775
    %v8537 = vunpack.c.h.bf16 %v7775
    %v8538 = vunpack.c.l.bf16 %v7776
    %v8539 = vunpack.c.h.bf16 %v7776
    %v8540 = vunpack.c.l.bf16 %v7777
    %v8541 = vunpack.c.h.bf16 %v7777
    %v8542 = vunpack.c.l.bf16 %v7778
    %v8543 = vunpack.c.h.bf16 %v7778
    %v8544 = vunpack.c.l.bf16 %v7779
    %v8545 = vunpack.c.h.bf16 %v7779
    %v8546 = vunpack.c.l.bf16 %v7780
    %v8547 = vunpack.c.h.bf16 %v7780
    %v8548 = vunpack.c.l.bf16 %v7781
    %v8549 = vunpack.c.h.bf16 %v7781
    %v8550 = vunpack.c.l.bf16 %v7782
    %v8551 = vunpack.c.h.bf16 %v7782
    %v8552 = vunpack.c.l.bf16 %v7783
    %v8553 = vunpack.c.h.bf16 %v7783
    %v8554 = vunpack.c.l.bf16 %v7784
    %v8555 = vunpack.c.h.bf16 %v7784
    %v8556 = vunpack.c.l.bf16 %v7785
    %v8557 = vunpack.c.h.bf16 %v7785
    %v8558 = vunpack.c.l.bf16 %v7786
    %v8559 = vunpack.c.h.bf16 %v7786
    %v8560 = vunpack.c.l.bf16 %v7787
    %v8561 = vunpack.c.h.bf16 %v7787
    %v8562 = vunpack.c.l.bf16 %v7788
    %v8563 = vunpack.c.h.bf16 %v7788
    %v8564 = vunpack.c.l.bf16 %v7789
    %v8565 = vunpack.c.h.bf16 %v7789
    %v8566 = vunpack.c.l.bf16 %v7790
    %v8567 = vunpack.c.h.bf16 %v7790
    %v8568 = vunpack.c.l.bf16 %v7791
    %v8569 = vunpack.c.h.bf16 %v7791
    %v8570 = vunpack.c.l.bf16 %v7792
    %v8571 = vunpack.c.h.bf16 %v7792
    %v8572 = vunpack.c.l.bf16 %v7793
    %v8573 = vunpack.c.h.bf16 %v7793
    %v8574 = vunpack.c.l.bf16 %v7794
    %v8575 = vunpack.c.h.bf16 %v7794
    %v8576 = vunpack.c.l.bf16 %v7795
    %v8577 = vunpack.c.h.bf16 %v7795
    %v8578 = vunpack.c.l.bf16 %v7796
    %v8579 = vunpack.c.h.bf16 %v7796
    %v8580 = vunpack.c.l.bf16 %v7797
    %v8581 = vunpack.c.h.bf16 %v7797
    %v8582 = vunpack.c.l.bf16 %v7798
    %v8583 = vunpack.c.h.bf16 %v7798
    %v8584 = vunpack.c.l.bf16 %v7799
    %v8585 = vunpack.c.h.bf16 %v7799
    %v8586 = vunpack.c.l.bf16 %v7800
    %v8587 = vunpack.c.h.bf16 %v7800
    %v8588 = vunpack.c.l.bf16 %v7801
    %v8589 = vunpack.c.h.bf16 %v7801
    %v8590 = vunpack.c.l.bf16 %v7802
    %v8591 = vunpack.c.h.bf16 %v7802
    %v8592 = vunpack.c.l.bf16 %v7803
    %v8593 = vunpack.c.h.bf16 %v7803
    %v8594 = vunpack.c.l.bf16 %v7804
    %v8595 = vunpack.c.h.bf16 %v7804
    %v8596 = vunpack.c.l.bf16 %v7805
    %v8597 = vunpack.c.h.bf16 %v7805
    %v8598 = vunpack.c.l.bf16 %v7806
    %v8599 = vunpack.c.h.bf16 %v7806
    %v8600 = vunpack.c.l.bf16 %v7807
    %v8601 = vunpack.c.h.bf16 %v7807
    %v8602 = vunpack.c.l.bf16 %v7808
    %v8603 = vunpack.c.h.bf16 %v7808
    %v8604 = vunpack.c.l.bf16 %v7809
    %v8605 = vunpack.c.h.bf16 %v7809
    %v8606 = vunpack.c.l.bf16 %v7810
    %v8607 = vunpack.c.h.bf16 %v7810
    %v8608 = vunpack.c.l.bf16 %v7811
    %v8609 = vunpack.c.h.bf16 %v7811
    %v8610 = vunpack.c.l.bf16 %v7812
    %v8611 = vunpack.c.h.bf16 %v7812
    %v8612 = vunpack.c.l.bf16 %v7813
    %v8613 = vunpack.c.h.bf16 %v7813
    %v8614 = vunpack.c.l.bf16 %v7814
    %v8615 = vunpack.c.h.bf16 %v7814
    %v8616 = vunpack.c.l.bf16 %v7815
    %v8617 = vunpack.c.h.bf16 %v7815
    %v8618 = vunpack.c.l.bf16 %v7816
    %v8619 = vunpack.c.h.bf16 %v7816
    %v8620 = vunpack.c.l.bf16 %v7817
    %v8621 = vunpack.c.h.bf16 %v7817
    %v8622 = vunpack.c.l.bf16 %v7818
    %v8623 = vunpack.c.h.bf16 %v7818
    %v8624 = vunpack.c.l.bf16 %v7819
    %v8625 = vunpack.c.h.bf16 %v7819
    %v8626 = vunpack.c.l.bf16 %v7820
    %v8627 = vunpack.c.h.bf16 %v7820
    %v8628 = vunpack.c.l.bf16 %v7821
    %v8629 = vunpack.c.h.bf16 %v7821
    %v8630 = vunpack.c.l.bf16 %v7822
    %v8631 = vunpack.c.h.bf16 %v7822
    %v8632 = vunpack.c.l.bf16 %v7823
    %v8633 = vunpack.c.h.bf16 %v7823
    %v8634 = vunpack.c.l.bf16 %v7824
    %v8635 = vunpack.c.h.bf16 %v7824
    %v8636 = vunpack.c.l.bf16 %v7825
    %v8637 = vunpack.c.h.bf16 %v7825
    %v8638 = vunpack.c.l.bf16 %v7826
    %v8639 = vunpack.c.h.bf16 %v7826
    %v8640 = vunpack.c.l.bf16 %v7827
    %v8641 = vunpack.c.h.bf16 %v7827
    %v8642 = vunpack.c.l.bf16 %v7828
    %v8643 = vunpack.c.h.bf16 %v7828
    %v8644 = vunpack.c.l.bf16 %v7829
    %v8645 = vunpack.c.h.bf16 %v7829
    %v8646 = vunpack.c.l.bf16 %v7830
    %v8647 = vunpack.c.h.bf16 %v7830
    %v8648 = vunpack.c.l.bf16 %v7831
    %v8649 = vunpack.c.h.bf16 %v7831
    %v8650 = vunpack.c.l.bf16 %v7832
    %v8651 = vunpack.c.h.bf16 %v7832
    %v8652 = vunpack.c.l.bf16 %v7833
    %v8653 = vunpack.c.h.bf16 %v7833
    %v8654 = vunpack.c.l.bf16 %v7834
    %v8655 = vunpack.c.h.bf16 %v7834
    %v8656 = vunpack.c.l.bf16 %v7835
    %v8657 = vunpack.c.h.bf16 %v7835
    %v8658 = vunpack.c.l.bf16 %v7836
    %v8659 = vunpack.c.h.bf16 %v7836
    %v8660 = vunpack.c.l.bf16 %v7837
    %v8661 = vunpack.c.h.bf16 %v7837
    %v8662 = vunpack.c.l.bf16 %v7838
    %v8663 = vunpack.c.h.bf16 %v7838
    %v8664 = vunpack.c.l.bf16 %v7839
    %v8665 = vunpack.c.h.bf16 %v7839
    %v8666 = vunpack.c.l.bf16 %v7840
    %v8667 = vunpack.c.h.bf16 %v7840
    %v8668 = vunpack.c.l.bf16 %v7841
    %v8669 = vunpack.c.h.bf16 %v7841
    %v8670 = vunpack.c.l.bf16 %v7842
    %v8671 = vunpack.c.h.bf16 %v7842
    %v8672 = vunpack.c.l.bf16 %v7843
    %v8673 = vunpack.c.h.bf16 %v7843
    %v8674 = vunpack.c.l.bf16 %v7844
    %v8675 = vunpack.c.h.bf16 %v7844
    %v8676 = vunpack.c.l.bf16 %v7845
    %v8677 = vunpack.c.h.bf16 %v7845
    %v8678 = vunpack.c.l.bf16 %v7846
    %v8679 = vunpack.c.h.bf16 %v7846
    %v8680 = vunpack.c.l.bf16 %v7847
    %v8681 = vunpack.c.h.bf16 %v7847
    %v8682 = vunpack.c.l.bf16 %v7848
    %v8683 = vunpack.c.h.bf16 %v7848
    %v8684 = vunpack.c.l.bf16 %v7849
    %v8685 = vunpack.c.h.bf16 %v7849
    %v8686 = vunpack.c.l.bf16 %v7850
    %v8687 = vunpack.c.h.bf16 %v7850
    %v8688 = vunpack.c.l.bf16 %v7851
    %v8689 = vunpack.c.h.bf16 %v7851
    %v8690 = vunpack.c.l.bf16 %v7852
    %v8691 = vunpack.c.h.bf16 %v7852
    %v8692 = vunpack.c.l.bf16 %v7853
    %v8693 = vunpack.c.h.bf16 %v7853
    %v8694 = vunpack.c.l.bf16 %v7854
    %v8695 = vunpack.c.h.bf16 %v7854
    %v8696 = vunpack.c.l.bf16 %v7855
    %v8697 = vunpack.c.h.bf16 %v7855
    %v8698 = vunpack.c.l.bf16 %v7856
    %v8699 = vunpack.c.h.bf16 %v7856
    %v8700 = vunpack.c.l.bf16 %v7857
    %v8701 = vunpack.c.h.bf16 %v7857
    %v8702 = vunpack.c.l.bf16 %v7858
    %v8703 = vunpack.c.h.bf16 %v7858
    %v8704 = vunpack.c.l.bf16 %v7859
    %v8705 = vunpack.c.h.bf16 %v7859
    %v8706 = vunpack.c.l.bf16 %v7860
    %v8707 = vunpack.c.h.bf16 %v7860
    %v8708 = vunpack.c.l.bf16 %v7861
    %v8709 = vunpack.c.h.bf16 %v7861
    %v8710 = vunpack.c.l.bf16 %v7862
    %v8711 = vunpack.c.h.bf16 %v7862
    %v8712 = vunpack.c.l.bf16 %v7863
    %v8713 = vunpack.c.h.bf16 %v7863
    %v8714 = vunpack.c.l.bf16 %v7864
    %v8715 = vunpack.c.h.bf16 %v7864
    %v8716 = vunpack.c.l.bf16 %v7865
    %v8717 = vunpack.c.h.bf16 %v7865
    %v8718 = vunpack.c.l.bf16 %v7866
    %v8719 = vunpack.c.h.bf16 %v7866
    %v8720 = vunpack.c.l.bf16 %v7867
    %v8721 = vunpack.c.h.bf16 %v7867
    %v8722 = vunpack.c.l.bf16 %v7868
    %v8723 = vunpack.c.h.bf16 %v7868
    %v8724 = vunpack.c.l.bf16 %v7869
    %v8725 = vunpack.c.h.bf16 %v7869
    %v8726 = vunpack.c.l.bf16 %v7870
    %v8727 = vunpack.c.h.bf16 %v7870
    %v8728 = vunpack.c.l.bf16 %v7871
    %v8729 = vunpack.c.h.bf16 %v7871
    %v8730 = vunpack.c.l.bf16 %v7872
    %v8731 = vunpack.c.h.bf16 %v7872
    %v8732 = vunpack.c.l.bf16 %v7873
    %v8733 = vunpack.c.h.bf16 %v7873
    %v8734 = vunpack.c.l.bf16 %v7874
    %v8735 = vunpack.c.h.bf16 %v7874
    %v8736 = vunpack.c.l.bf16 %v7875
    %v8737 = vunpack.c.h.bf16 %v7875
    %v8738 = vunpack.c.l.bf16 %v7876
    %v8739 = vunpack.c.h.bf16 %v7876
    %v8740 = vunpack.c.l.bf16 %v7877
    %v8741 = vunpack.c.h.bf16 %v7877
    %v8742 = vunpack.c.l.bf16 %v7878
    %v8743 = vunpack.c.h.bf16 %v7878
    %v8744 = vunpack.c.l.bf16 %v7879
    %v8745 = vunpack.c.h.bf16 %v7879
    %v8746 = vunpack.c.l.bf16 %v7880
    %v8747 = vunpack.c.h.bf16 %v7880
    %v8748 = vunpack.c.l.bf16 %v7881
    %v8749 = vunpack.c.h.bf16 %v7881
    %v8750 = vunpack.c.l.bf16 %v7882
    %v8751 = vunpack.c.h.bf16 %v7882
    %v8752 = vunpack.c.l.bf16 %v7883
    %v8753 = vunpack.c.h.bf16 %v7883
    %v8754 = vunpack.c.l.bf16 %v7884
    %v8755 = vunpack.c.h.bf16 %v7884
    %v8756 = vunpack.c.l.bf16 %v7885
    %v8757 = vunpack.c.h.bf16 %v7885
    %v8758 = vunpack.c.l.bf16 %v7886
    %v8759 = vunpack.c.h.bf16 %v7886
    %v8760 = vunpack.c.l.bf16 %v7887
    %v8761 = vunpack.c.h.bf16 %v7887
    %v8762 = vunpack.c.l.bf16 %v7888
    %v8763 = vunpack.c.h.bf16 %v7888
    %v8764 = vunpack.c.l.bf16 %v7889
    %v8765 = vunpack.c.h.bf16 %v7889
    %v8766 = vunpack.c.l.bf16 %v7890
    %v8767 = vunpack.c.h.bf16 %v7890
    %v8768 = vunpack.c.l.bf16 %v7891
    %v8769 = vunpack.c.h.bf16 %v7891
    %v8770 = vunpack.c.l.bf16 %v7892
    %v8771 = vunpack.c.h.bf16 %v7892
    %v8772 = vunpack.c.l.bf16 %v7893
    %v8773 = vunpack.c.h.bf16 %v7893
    %v8774 = vunpack.c.l.bf16 %v7894
    %v8775 = vunpack.c.h.bf16 %v7894
    %v8776 = vunpack.c.l.bf16 %v7895
    %v8777 = vunpack.c.h.bf16 %v7895
    %v8778 = vunpack.c.l.bf16 %v7896
    %v8779 = vunpack.c.h.bf16 %v7896
    %v8780 = vunpack.c.l.bf16 %v7897
    %v8781 = vunpack.c.h.bf16 %v7897
    %v8782 = vunpack.c.l.bf16 %v7898
    %v8783 = vunpack.c.h.bf16 %v7898
    %v8784 = vunpack.c.l.bf16 %v7899
    %v8785 = vunpack.c.h.bf16 %v7899
    %v8786 = vunpack.c.l.bf16 %v7900
    %v8787 = vunpack.c.h.bf16 %v7900
    %v8788 = vunpack.c.l.bf16 %v7901
    %v8789 = vunpack.c.h.bf16 %v7901
    %v8790 = vunpack.c.l.bf16 %v7902
    %v8791 = vunpack.c.h.bf16 %v7902
    %v8792 = vunpack.c.l.bf16 %v7903
    %v8793 = vunpack.c.h.bf16 %v7903
    %v8794 = vunpack.c.l.bf16 %v7904
    %v8795 = vunpack.c.h.bf16 %v7904
    %v8796 = vunpack.c.l.bf16 %v7905
    %v8797 = vunpack.c.h.bf16 %v7905
    %v8798 = vunpack.c.l.bf16 %v7906
    %v8799 = vunpack.c.h.bf16 %v7906
    %v8800 = vunpack.c.l.bf16 %v7907
    %v8801 = vunpack.c.h.bf16 %v7907
    %v8802 = vunpack.c.l.bf16 %v7908
    %v8803 = vunpack.c.h.bf16 %v7908
    %v8804 = vunpack.c.l.bf16 %v7909
    %v8805 = vunpack.c.h.bf16 %v7909
    %v8806 = vunpack.c.l.bf16 %v7910
    %v8807 = vunpack.c.h.bf16 %v7910
    %v8808 = vunpack.c.l.bf16 %v7911
    %v8809 = vunpack.c.h.bf16 %v7911
    %v8810 = vunpack.c.l.bf16 %v7912
    %v8811 = vunpack.c.h.bf16 %v7912
    %v8812 = vunpack.c.l.bf16 %v7913
    %v8813 = vunpack.c.h.bf16 %v7913
    %v8814 = vunpack.c.l.bf16 %v7914
    %v8815 = vunpack.c.h.bf16 %v7914
    %v8816 = vunpack.c.l.bf16 %v7915
    %v8817 = vunpack.c.h.bf16 %v7915
    %v8818 = vunpack.c.l.bf16 %v7916
    %v8819 = vunpack.c.h.bf16 %v7916
    %v8820 = vunpack.c.l.bf16 %v7917
    %v8821 = vunpack.c.h.bf16 %v7917
    %v8822 = vunpack.c.l.bf16 %v7918
    %v8823 = vunpack.c.h.bf16 %v7918
    %v8824 = vunpack.c.l.bf16 %v7919
    %v8825 = vunpack.c.h.bf16 %v7919
    %v8826 = vunpack.c.l.bf16 %v7920
    %v8827 = vunpack.c.h.bf16 %v7920
    %v8828 = vunpack.c.l.bf16 %v7921
    %v8829 = vunpack.c.h.bf16 %v7921
    %v8830 = vunpack.c.l.bf16 %v7922
    %v8831 = vunpack.c.h.bf16 %v7922
    %v8832 = vunpack.c.l.bf16 %v7923
    %v8833 = vunpack.c.h.bf16 %v7923
    %v8834 = vunpack.c.l.bf16 %v7924
    %v8835 = vunpack.c.h.bf16 %v7924
    %v8836 = vunpack.c.l.bf16 %v7925
    %v8837 = vunpack.c.h.bf16 %v7925
    %v8838 = vunpack.c.l.bf16 %v7926
    %v8839 = vunpack.c.h.bf16 %v7926
    %v8840 = vunpack.c.l.bf16 %v7927
    %v8841 = vunpack.c.h.bf16 %v7927
    %v8842 = vunpack.c.l.bf16 %v7928
    %v8843 = vunpack.c.h.bf16 %v7928
    %v8844 = vunpack.c.l.bf16 %v7929
    %v8845 = vunpack.c.h.bf16 %v7929
    %v8846 = vunpack.c.l.bf16 %v7930
    %v8847 = vunpack.c.h.bf16 %v7930
    %v8848 = vunpack.c.l.bf16 %v7931
    %v8849 = vunpack.c.h.bf16 %v7931
    %v8850 = vunpack.c.l.bf16 %v7932
    %v8851 = vunpack.c.h.bf16 %v7932
    %v8852 = vunpack.c.l.bf16 %v7933
    %v8853 = vunpack.c.h.bf16 %v7933
    %v8854 = vunpack.c.l.bf16 %v7934
    %v8855 = vunpack.c.h.bf16 %v7934
    %v8856 = vunpack.c.l.bf16 %v7935
    %v8857 = vunpack.c.h.bf16 %v7935
    %v8858 = vunpack.c.l.bf16 %v7936
    %v8859 = vunpack.c.h.bf16 %v7936
    %v8860 = vunpack.c.l.bf16 %v7937
    %v8861 = vunpack.c.h.bf16 %v7937
    %v8862 = vunpack.c.l.bf16 %v7938
    %v8863 = vunpack.c.h.bf16 %v7938
    %v8864 = vunpack.c.l.bf16 %v7939
    %v8865 = vunpack.c.h.bf16 %v7939
    %v8866 = vunpack.c.l.bf16 %v7940
    %v8867 = vunpack.c.h.bf16 %v7940
    %v8868 = vunpack.c.l.bf16 %v7941
    %v8869 = vunpack.c.h.bf16 %v7941
    %v8870 = vunpack.c.l.bf16 %v7942
    %v8871 = vunpack.c.h.bf16 %v7942
    %v8872 = vunpack.c.l.bf16 %v7943
    %v8873 = vunpack.c.h.bf16 %v7943
    %v8874 = vunpack.c.l.bf16 %v7944
    %v8875 = vunpack.c.h.bf16 %v7944
    %v8876 = vunpack.c.l.bf16 %v7945
    %v8877 = vunpack.c.h.bf16 %v7945
    %v8878 = vunpack.c.l.bf16 %v7946
    %v8879 = vunpack.c.h.bf16 %v7946
    %v8880 = vunpack.c.l.bf16 %v7947
    %v8881 = vunpack.c.h.bf16 %v7947
    %v8882 = vunpack.c.l.bf16 %v7948
    %v8883 = vunpack.c.h.bf16 %v7948
    %v8884 = vunpack.c.l.bf16 %v7949
    %v8885 = vunpack.c.h.bf16 %v7949
    %v8886 = vunpack.c.l.bf16 %v7950
    %v8887 = vunpack.c.h.bf16 %v7950
    %v8888 = vunpack.c.l.bf16 %v7951
    %v8889 = vunpack.c.h.bf16 %v7951
    %v8890 = vunpack.c.l.bf16 %v7952
    %v8891 = vunpack.c.h.bf16 %v7952
    %v8892 = vunpack.c.l.bf16 %v7953
    %v8893 = vunpack.c.h.bf16 %v7953
    %v8894 = vunpack.c.l.bf16 %v7954
    %v8895 = vunpack.c.h.bf16 %v7954
    %v8896 = vunpack.c.l.bf16 %v7955
    %v8897 = vunpack.c.h.bf16 %v7955
    %v8898 = vunpack.c.l.bf16 %v7956
    %v8899 = vunpack.c.h.bf16 %v7956
    %v8900 = vunpack.c.l.bf16 %v7957
    %v8901 = vunpack.c.h.bf16 %v7957
    %v8902 = vunpack.c.l.bf16 %v7958
    %v8903 = vunpack.c.h.bf16 %v7958
    %v8904 = vunpack.c.l.bf16 %v7959
    %v8905 = vunpack.c.h.bf16 %v7959
    %v8906 = vunpack.c.l.bf16 %v7960
    %v8907 = vunpack.c.h.bf16 %v7960
    %v8908 = vunpack.c.l.bf16 %v7961
    %v8909 = vunpack.c.h.bf16 %v7961
    %v8910 = vunpack.c.l.bf16 %v7962
    %v8911 = vunpack.c.h.bf16 %v7962
    %v8912 = vunpack.c.l.bf16 %v7963
    %v8913 = vunpack.c.h.bf16 %v7963
    %v8914 = vunpack.c.l.bf16 %v7964
    %v8915 = vunpack.c.h.bf16 %v7964
    %v8916 = vunpack.c.l.bf16 %v7965
    %v8917 = vunpack.c.h.bf16 %v7965
    %v8918 = vunpack.c.l.bf16 %v7966
    %v8919 = vunpack.c.h.bf16 %v7966
    %v8920 = vunpack.c.l.bf16 %v7967
    %v8921 = vunpack.c.h.bf16 %v7967
    %v8922 = vunpack.c.l.bf16 %v7968
    %v8923 = vunpack.c.h.bf16 %v7968
    %v8924 = vunpack.c.l.bf16 %v7969
    %v8925 = vunpack.c.h.bf16 %v7969
    %v8926 = vunpack.c.l.bf16 %v7970
    %v8927 = vunpack.c.h.bf16 %v7970
    %v8928 = vunpack.c.l.bf16 %v7971
    %v8929 = vunpack.c.h.bf16 %v7971
    %v8930 = vunpack.c.l.bf16 %v7972
    %v8931 = vunpack.c.h.bf16 %v7972
    %v8932 = vunpack.c.l.bf16 %v7973
    %v8933 = vunpack.c.h.bf16 %v7973
    %v8934 = vunpack.c.l.bf16 %v7974
    %v8935 = vunpack.c.h.bf16 %v7974
    %v8936 = vunpack.c.l.bf16 %v7975
    %v8937 = vunpack.c.h.bf16 %v7975
    %v8938 = vunpack.c.l.bf16 %v7976
    %v8939 = vunpack.c.h.bf16 %v7976
    %v8940 = vunpack.c.l.bf16 %v7977
    %v8941 = vunpack.c.h.bf16 %v7977
    %v8942 = vunpack.c.l.bf16 %v7978
    %v8943 = vunpack.c.h.bf16 %v7978
    %v8944 = vunpack.c.l.bf16 %v7979
    %v8945 = vunpack.c.h.bf16 %v7979
    %v8946 = vunpack.c.l.bf16 %v7980
    %v8947 = vunpack.c.h.bf16 %v7980
    %v8948 = vunpack.c.l.bf16 %v7981
    %v8949 = vunpack.c.h.bf16 %v7981
    %v8950 = vunpack.c.l.bf16 %v7982
    %v8951 = vunpack.c.h.bf16 %v7982
    %v8952 = vunpack.c.l.bf16 %v7983
    %v8953 = vunpack.c.h.bf16 %v7983
    %v8954 = vunpack.c.l.bf16 %v7984
    %v8955 = vunpack.c.h.bf16 %v7984
    %v8956 = vunpack.c.l.bf16 %v7985
    %v8957 = vunpack.c.h.bf16 %v7985
    %v8958 = vunpack.c.l.bf16 %v7986
    %v8959 = vunpack.c.h.bf16 %v7986
    %v8960 = vunpack.c.l.bf16 %v7987
    %v8961 = vunpack.c.h.bf16 %v7987
    %v8962 = vunpack.c.l.bf16 %v7988
    %v8963 = vunpack.c.h.bf16 %v7988
    %v8964 = vunpack.c.l.bf16 %v7989
    %v8965 = vunpack.c.h.bf16 %v7989
    %v8966 = vunpack.c.l.bf16 %v7990
    %v8967 = vunpack.c.h.bf16 %v7990
    %v8968 = vunpack.c.l.bf16 %v7991
    %v8969 = vunpack.c.h.bf16 %v7991
    %v8970 = vunpack.c.l.bf16 %v7992
    %v8971 = vunpack.c.h.bf16 %v7992
    %v8972 = vunpack.c.l.bf16 %v7993
    %v8973 = vunpack.c.h.bf16 %v7993
    %v8974 = vunpack.c.l.bf16 %v7994
    %v8975 = vunpack.c.h.bf16 %v7994
    %v8976 = vunpack.c.l.bf16 %v7995
    %v8977 = vunpack.c.h.bf16 %v7995
    %v8978 = vunpack.c.l.bf16 %v7996
    %v8979 = vunpack.c.h.bf16 %v7996
    %v8980 = vunpack.c.l.bf16 %v7997
    %v8981 = vunpack.c.h.bf16 %v7997
    %v8982 = vunpack.c.l.bf16 %v7998
    %v8983 = vunpack.c.h.bf16 %v7998
    %v8984 = vunpack.c.l.bf16 %v7999
    %v8985 = vunpack.c.h.bf16 %v7999
    %v8986 = vunpack.c.l.bf16 %v8000
    %v8987 = vunpack.c.h.bf16 %v8000
    %v8988 = vunpack.c.l.bf16 %v8001
    %v8989 = vunpack.c.h.bf16 %v8001
    %v8990 = vunpack.c.l.bf16 %v8002
    %v8991 = vunpack.c.h.bf16 %v8002
    %v8992 = vunpack.c.l.bf16 %v8003
    %v8993 = vunpack.c.h.bf16 %v8003
    %v8994 = vunpack.c.l.bf16 %v8004
    %v8995 = vunpack.c.h.bf16 %v8004
    %v8996 = vunpack.c.l.bf16 %v8005
    %v8997 = vunpack.c.h.bf16 %v8005
    %v8998 = vunpack.c.l.bf16 %v8006
    %v8999 = vunpack.c.h.bf16 %v8006
    %v9000 = vunpack.c.l.bf16 %v8007
    %v9001 = vunpack.c.h.bf16 %v8007
    %v9002 = vunpack.c.l.bf16 %v8008
    %v9003 = vunpack.c.h.bf16 %v8008
    %v9004 = vunpack.c.l.bf16 %v8009
    %v9005 = vunpack.c.h.bf16 %v8009
    %v9006 = vunpack.c.l.bf16 %v8010
    %v9007 = vunpack.c.h.bf16 %v8010
    %v9008 = vunpack.c.l.bf16 %v8011
    %v9009 = vunpack.c.h.bf16 %v8011
    %v9010 = vunpack.c.l.bf16 %v8012
    %v9011 = vunpack.c.h.bf16 %v8012
    %v9012 = vunpack.c.l.bf16 %v8013
    %v9013 = vunpack.c.h.bf16 %v8013
    %v9014 = vunpack.c.l.bf16 %v8014
    %v9015 = vunpack.c.h.bf16 %v8014
    %v9016 = vunpack.c.l.bf16 %v8015
    %v9017 = vunpack.c.h.bf16 %v8015
    %v9018 = vunpack.c.l.bf16 %v8016
    %v9019 = vunpack.c.h.bf16 %v8016
    %v9020 = vunpack.c.l.bf16 %v8017
    %v9021 = vunpack.c.h.bf16 %v8017
    %v9022 = vunpack.c.l.bf16 %v8018
    %v9023 = vunpack.c.h.bf16 %v8018
    %v9024 = vunpack.c.l.bf16 %v8019
    %v9025 = vunpack.c.h.bf16 %v8019
    %v9026 = vunpack.c.l.bf16 %v8020
    %v9027 = vunpack.c.h.bf16 %v8020
    %v9028 = vunpack.c.l.bf16 %v8021
    %v9029 = vunpack.c.h.bf16 %v8021
    %v9030 = vunpack.c.l.bf16 %v8022
    %v9031 = vunpack.c.h.bf16 %v8022
    %v9032 = vunpack.c.l.bf16 %v8023
    %v9033 = vunpack.c.h.bf16 %v8023
    %v9034 = vunpack.c.l.bf16 %v8024
    %v9035 = vunpack.c.h.bf16 %v8024
    %v9036 = vunpack.c.l.bf16 %v8025
    %v9037 = vunpack.c.h.bf16 %v8025
    %v9038 = vunpack.c.l.bf16 %v8026
    %v9039 = vunpack.c.h.bf16 %v8026
    %v9040 = vunpack.c.l.bf16 %v8027
    %v9041 = vunpack.c.h.bf16 %v8027
    %v9042 = vunpack.c.l.bf16 %v8028
    %v9043 = vunpack.c.h.bf16 %v8028
    %v9044 = vunpack.c.l.bf16 %v8029
    %v9045 = vunpack.c.h.bf16 %v8029
    %v9046 = vunpack.c.l.bf16 %v8030
    %v9047 = vunpack.c.h.bf16 %v8030
    %v9048 = vunpack.c.l.bf16 %v8031
    %v9049 = vunpack.c.h.bf16 %v8031
    %v9050 = vunpack.c.l.bf16 %v8032
    %v9051 = vunpack.c.h.bf16 %v8032
    %v9052 = vunpack.c.l.bf16 %v8033
    %v9053 = vunpack.c.h.bf16 %v8033
    %v9054 = vunpack.c.l.bf16 %v8034
    %v9055 = vunpack.c.h.bf16 %v8034
    %v9056 = vunpack.c.l.bf16 %v8035
    %v9057 = vunpack.c.h.bf16 %v8035
    %v9058 = vunpack.c.l.bf16 %v8036
    %v9059 = vunpack.c.h.bf16 %v8036
    %v9060 = vunpack.c.l.bf16 %v8037
    %v9061 = vunpack.c.h.bf16 %v8037
    %9062 = vmatpush.msra.mxu0 %v8158
    %9063 = vmatpush.msra.mxu0 %v8150
    %9064 = vmatpush.msra.mxu0 %v8142
    %9065 = vmatpush.msra.mxu0 %v8134
    %9066 = vmatpush.msra.mxu0 %v8126
    %9067 = vmatpush.msra.mxu0 %v8118
    %9068 = vmatpush.msra.mxu0 %v8110
    %9069 = vmatpush.msra.mxu0 %v8102
    %9070 = vmatpush.msra.mxu0 %v8094
    %9071 = vmatpush.msra.mxu0 %v8086
    %9072 = vmatpush.msra.mxu0 %v8078
    %9073 = vmatpush.msra.mxu0 %v8070
    %9074 = vmatpush.msra.mxu0 %v8062
    %9075 = vmatpush.msra.mxu0 %v8054
    %9076 = vmatpush.msra.mxu0 %v8046
    %9077 = vmatpush.msra.mxu0 %v8038
    %9078 = vmatmul.f32.gmra.mxu0 %v7518
    %v9079 = vpop.f32.mrf.mxu0
    %v9080 = vadd.f32 0.0, %v9079
    %9081 = vdwg.mxu0
    %9082 = vmatpush.msra.mxu0 %v8286
    %9083 = vmatpush.msra.mxu0 %v8278
    %9084 = vmatpush.msra.mxu0 %v8270
    %9085 = vmatpush.msra.mxu0 %v8262
    %9086 = vmatpush.msra.mxu0 %v8254
    %9087 = vmatpush.msra.mxu0 %v8246
    %9088 = vmatpush.msra.mxu0 %v8238
    %9089 = vmatpush.msra.mxu0 %v8230
    %9090 = vmatpush.msra.mxu0 %v8222
    %9091 = vmatpush.msra.mxu0 %v8214
    %9092 = vmatpush.msra.mxu0 %v8206
    %9093 = vmatpush.msra.mxu0 %v8198
    %9094 = vmatpush.msra.mxu0 %v8190
    %9095 = vmatpush.msra.mxu0 %v8182
    %9096 = vmatpush.msra.mxu0 %v8174
    %9097 = vmatpush.msra.mxu0 %v8166
    %9098 = vmatmul.f32.gmra.mxu0 %v7519
    %v9099 = vpop.f32.mrf.mxu0
    %v9100 = vadd.f32 %v9080, %v9099
    %9101 = vdwg.mxu0
    %9102 = vmatpush.msra.mxu0 %v8414
    %9103 = vmatpush.msra.mxu0 %v8406
    %9104 = vmatpush.msra.mxu0 %v8398
    %9105 = vmatpush.msra.mxu0 %v8390
    %9106 = vmatpush.msra.mxu0 %v8382
    %9107 = vmatpush.msra.mxu0 %v8374
    %9108 = vmatpush.msra.mxu0 %v8366
    %9109 = vmatpush.msra.mxu0 %v8358
    %9110 = vmatpush.msra.mxu0 %v8350
    %9111 = vmatpush.msra.mxu0 %v8342
    %9112 = vmatpush.msra.mxu0 %v8334
    %9113 = vmatpush.msra.mxu0 %v8326
    %9114 = vmatpush.msra.mxu0 %v8318
    %9115 = vmatpush.msra.mxu0 %v8310
    %9116 = vmatpush.msra.mxu0 %v8302
    %9117 = vmatpush.msra.mxu0 %v8294
    %9118 = vmatmul.f32.gmra.mxu0 %v7520
    %v9119 = vpop.f32.mrf.mxu0
    %v9120 = vadd.f32 %v9100, %v9119
    %9121 = vdwg.mxu0
    %9122 = vmatpush.msra.mxu0 %v8542
    %9123 = vmatpush.msra.mxu0 %v8534
    %9124 = vmatpush.msra.mxu0 %v8526
    %9125 = vmatpush.msra.mxu0 %v8518
    %9126 = vmatpush.msra.mxu0 %v8510
    %9127 = vmatpush.msra.mxu0 %v8502
    %9128 = vmatpush.msra.mxu0 %v8494
    %9129 = vmatpush.msra.mxu0 %v8486
    %9130 = vmatpush.msra.mxu0 %v8478
    %9131 = vmatpush.msra.mxu0 %v8470
    %9132 = vmatpush.msra.mxu0 %v8462
    %9133 = vmatpush.msra.mxu0 %v8454
    %9134 = vmatpush.msra.mxu0 %v8446
    %9135 = vmatpush.msra.mxu0 %v8438
    %9136 = vmatpush.msra.mxu0 %v8430
    %9137 = vmatpush.msra.mxu0 %v8422
    %9138 = vmatmul.f32.gmra.mxu0 %v7521
    %v9139 = vpop.f32.mrf.mxu0
    %v9140 = vadd.f32 %v9120, %v9139
    %9141 = vdwg.mxu0
    %9142 = vmatpush.msra.mxu0 %v8670
    %9143 = vmatpush.msra.mxu0 %v8662
    %9144 = vmatpush.msra.mxu0 %v8654
    %9145 = vmatpush.msra.mxu0 %v8646
    %9146 = vmatpush.msra.mxu0 %v8638
    %9147 = vmatpush.msra.mxu0 %v8630
    %9148 = vmatpush.msra.mxu0 %v8622
    %9149 = vmatpush.msra.mxu0 %v8614
    %9150 = vmatpush.msra.mxu0 %v8606
    %9151 = vmatpush.msra.mxu0 %v8598
    %9152 = vmatpush.msra.mxu0 %v8590
    %9153 = vmatpush.msra.mxu0 %v8582
    %9154 = vmatpush.msra.mxu0 %v8574
    %9155 = vmatpush.msra.mxu0 %v8566
    %9156 = vmatpush.msra.mxu0 %v8558
    %9157 = vmatpush.msra.mxu0 %v8550
    %9158 = vmatmul.f32.gmra.mxu0 %v7522
    %v9159 = vpop.f32.mrf.mxu0
    %v9160 = vadd.f32 %v9140, %v9159
    %9161 = vdwg.mxu0
    %9162 = vmatpush.msra.mxu0 %v8798
    %9163 = vmatpush.msra.mxu0 %v8790
    %9164 = vmatpush.msra.mxu0 %v8782
    %9165 = vmatpush.msra.mxu0 %v8774
    %9166 = vmatpush.msra.mxu0 %v8766
    %9167 = vmatpush.msra.mxu0 %v8758
    %9168 = vmatpush.msra.mxu0 %v8750
    %9169 = vmatpush.msra.mxu0 %v8742
    %9170 = vmatpush.msra.mxu0 %v8734
    %9171 = vmatpush.msra.mxu0 %v8726
    %9172 = vmatpush.msra.mxu0 %v8718
    %9173 = vmatpush.msra.mxu0 %v8710
    %9174 = vmatpush.msra.mxu0 %v8702
    %9175 = vmatpush.msra.mxu0 %v8694
    %9176 = vmatpush.msra.mxu0 %v8686
    %9177 = vmatpush.msra.mxu0 %v8678
    %9178 = vmatmul.f32.gmra.mxu0 %v7523
    %v9179 = vpop.f32.mrf.mxu0
    %v9180 = vadd.f32 %v9160, %v9179
    %9181 = vdwg.mxu0
    %9182 = vmatpush.msra.mxu0 %v8926
    %9183 = vmatpush.msra.mxu0 %v8918
    %9184 = vmatpush.msra.mxu0 %v8910
    %9185 = vmatpush.msra.mxu0 %v8902
    %9186 = vmatpush.msra.mxu0 %v8894
    %9187 = vmatpush.msra.mxu0 %v8886
    %9188 = vmatpush.msra.mxu0 %v8878
    %9189 = vmatpush.msra.mxu0 %v8870
    %9190 = vmatpush.msra.mxu0 %v8862
    %9191 = vmatpush.msra.mxu0 %v8854
    %9192 = vmatpush.msra.mxu0 %v8846
    %9193 = vmatpush.msra.mxu0 %v8838
    %9194 = vmatpush.msra.mxu0 %v8830
    %9195 = vmatpush.msra.mxu0 %v8822
    %9196 = vmatpush.msra.mxu0 %v8814
    %9197 = vmatpush.msra.mxu0 %v8806
    %9198 = vmatmul.f32.gmra.mxu0 %v7524
    %v9199 = vpop.f32.mrf.mxu0
    %v9200 = vadd.f32 %v9180, %v9199
    %9201 = vdwg.mxu0
    %9202 = vmatpush.msra.mxu0 %v9054
    %9203 = vmatpush.msra.mxu0 %v9046
    %9204 = vmatpush.msra.mxu0 %v9038
    %9205 = vmatpush.msra.mxu0 %v9030
    %9206 = vmatpush.msra.mxu0 %v9022
    %9207 = vmatpush.msra.mxu0 %v9014
    %9208 = vmatpush.msra.mxu0 %v9006
    %9209 = vmatpush.msra.mxu0 %v8998
    %9210 = vmatpush.msra.mxu0 %v8990
    %9211 = vmatpush.msra.mxu0 %v8982
    %9212 = vmatpush.msra.mxu0 %v8974
    %9213 = vmatpush.msra.mxu0 %v8966
    %9214 = vmatpush.msra.mxu0 %v8958
    %9215 = vmatpush.msra.mxu0 %v8950
    %9216 = vmatpush.msra.mxu0 %v8942
    %9217 = vmatpush.msra.mxu0 %v8934
    %9218 = vmatmul.f32.gmra.mxu0 %v7525
    %v9219 = vpop.f32.mrf.mxu0
    %v9220 = vadd.f32 %v9200, %v9219
    %9221 = vdwg.mxu0
    %9222 = vmatpush.msra.mxu0 %v8159
    %9223 = vmatpush.msra.mxu0 %v8151
    %9224 = vmatpush.msra.mxu0 %v8143
    %9225 = vmatpush.msra.mxu0 %v8135
    %9226 = vmatpush.msra.mxu0 %v8127
    %9227 = vmatpush.msra.mxu0 %v8119
    %9228 = vmatpush.msra.mxu0 %v8111
    %9229 = vmatpush.msra.mxu0 %v8103
    %9230 = vmatpush.msra.mxu0 %v8095
    %9231 = vmatpush.msra.mxu0 %v8087
    %9232 = vmatpush.msra.mxu0 %v8079
    %9233 = vmatpush.msra.mxu0 %v8071
    %9234 = vmatpush.msra.mxu0 %v8063
    %9235 = vmatpush.msra.mxu0 %v8055
    %9236 = vmatpush.msra.mxu0 %v8047
    %9237 = vmatpush.msra.mxu0 %v8039
    %9238 = vmatmul.f32.gmra.mxu0 %v7518
    %v9239 = vpop.f32.mrf.mxu0
    %v9240 = vadd.f32 0.0, %v9239
    %9241 = vdwg.mxu0
    %9242 = vmatpush.msra.mxu0 %v8287
    %9243 = vmatpush.msra.mxu0 %v8279
    %9244 = vmatpush.msra.mxu0 %v8271
    %9245 = vmatpush.msra.mxu0 %v8263
    %9246 = vmatpush.msra.mxu0 %v8255
    %9247 = vmatpush.msra.mxu0 %v8247
    %9248 = vmatpush.msra.mxu0 %v8239
    %9249 = vmatpush.msra.mxu0 %v8231
    %9250 = vmatpush.msra.mxu0 %v8223
    %9251 = vmatpush.msra.mxu0 %v8215
    %9252 = vmatpush.msra.mxu0 %v8207
    %9253 = vmatpush.msra.mxu0 %v8199
    %9254 = vmatpush.msra.mxu0 %v8191
    %9255 = vmatpush.msra.mxu0 %v8183
    %9256 = vmatpush.msra.mxu0 %v8175
    %9257 = vmatpush.msra.mxu0 %v8167
    %9258 = vmatmul.f32.gmra.mxu0 %v7519
    %v9259 = vpop.f32.mrf.mxu0
    %v9260 = vadd.f32 %v9240, %v9259
    %9261 = vdwg.mxu0
    %9262 = vmatpush.msra.mxu0 %v8415
    %9263 = vmatpush.msra.mxu0 %v8407
    %9264 = vmatpush.msra.mxu0 %v8399
    %9265 = vmatpush.msra.mxu0 %v8391
    %9266 = vmatpush.msra.mxu0 %v8383
    %9267 = vmatpush.msra.mxu0 %v8375
    %9268 = vmatpush.msra.mxu0 %v8367
    %9269 = vmatpush.msra.mxu0 %v8359
    %9270 = vmatpush.msra.mxu0 %v8351
    %9271 = vmatpush.msra.mxu0 %v8343
    %9272 = vmatpush.msra.mxu0 %v8335
    %9273 = vmatpush.msra.mxu0 %v8327
    %9274 = vmatpush.msra.mxu0 %v8319
    %9275 = vmatpush.msra.mxu0 %v8311
    %9276 = vmatpush.msra.mxu0 %v8303
    %9277 = vmatpush.msra.mxu0 %v8295
    %9278 = vmatmul.f32.gmra.mxu0 %v7520
    %v9279 = vpop.f32.mrf.mxu0
    %v9280 = vadd.f32 %v9260, %v9279
    %9281 = vdwg.mxu0
    %9282 = vmatpush.msra.mxu0 %v8543
    %9283 = vmatpush.msra.mxu0 %v8535
    %9284 = vmatpush.msra.mxu0 %v8527
    %9285 = vmatpush.msra.mxu0 %v8519
    %9286 = vmatpush.msra.mxu0 %v8511
    %9287 = vmatpush.msra.mxu0 %v8503
    %9288 = vmatpush.msra.mxu0 %v8495
    %9289 = vmatpush.msra.mxu0 %v8487
    %9290 = vmatpush.msra.mxu0 %v8479
    %9291 = vmatpush.msra.mxu0 %v8471
    %9292 = vmatpush.msra.mxu0 %v8463
    %9293 = vmatpush.msra.mxu0 %v8455
    %9294 = vmatpush.msra.mxu0 %v8447
    %9295 = vmatpush.msra.mxu0 %v8439
    %9296 = vmatpush.msra.mxu0 %v8431
    %9297 = vmatpush.msra.mxu0 %v8423
    %9298 = vmatmul.f32.gmra.mxu0 %v7521
    %v9299 = vpop.f32.mrf.mxu0
    %v9300 = vadd.f32 %v9280, %v9299
    %9301 = vdwg.mxu0
    %9302 = vmatpush.msra.mxu0 %v8671
    %9303 = vmatpush.msra.mxu0 %v8663
    %9304 = vmatpush.msra.mxu0 %v8655
    %9305 = vmatpush.msra.mxu0 %v8647
    %9306 = vmatpush.msra.mxu0 %v8639
    %9307 = vmatpush.msra.mxu0 %v8631
    %9308 = vmatpush.msra.mxu0 %v8623
    %9309 = vmatpush.msra.mxu0 %v8615
    %9310 = vmatpush.msra.mxu0 %v8607
    %9311 = vmatpush.msra.mxu0 %v8599
    %9312 = vmatpush.msra.mxu0 %v8591
    %9313 = vmatpush.msra.mxu0 %v8583
    %9314 = vmatpush.msra.mxu0 %v8575
    %9315 = vmatpush.msra.mxu0 %v8567
    %9316 = vmatpush.msra.mxu0 %v8559
    %9317 = vmatpush.msra.mxu0 %v8551
    %9318 = vmatmul.f32.gmra.mxu0 %v7522
    %v9319 = vpop.f32.mrf.mxu0
    %v9320 = vadd.f32 %v9300, %v9319
    %9321 = vdwg.mxu0
    %9322 = vmatpush.msra.mxu0 %v8799
    %9323 = vmatpush.msra.mxu0 %v8791
    %9324 = vmatpush.msra.mxu0 %v8783
    %9325 = vmatpush.msra.mxu0 %v8775
    %9326 = vmatpush.msra.mxu0 %v8767
    %9327 = vmatpush.msra.mxu0 %v8759
    %9328 = vmatpush.msra.mxu0 %v8751
    %9329 = vmatpush.msra.mxu0 %v8743
    %9330 = vmatpush.msra.mxu0 %v8735
    %9331 = vmatpush.msra.mxu0 %v8727
    %9332 = vmatpush.msra.mxu0 %v8719
    %9333 = vmatpush.msra.mxu0 %v8711
    %9334 = vmatpush.msra.mxu0 %v8703
    %9335 = vmatpush.msra.mxu0 %v8695
    %9336 = vmatpush.msra.mxu0 %v8687
    %9337 = vmatpush.msra.mxu0 %v8679
    %9338 = vmatmul.f32.gmra.mxu0 %v7523
    %v9339 = vpop.f32.mrf.mxu0
    %v9340 = vadd.f32 %v9320, %v9339
    %9341 = vdwg.mxu0
    %9342 = vmatpush.msra.mxu0 %v8927
    %9343 = vmatpush.msra.mxu0 %v8919
    %9344 = vmatpush.msra.mxu0 %v8911
    %9345 = vmatpush.msra.mxu0 %v8903
    %9346 = vmatpush.msra.mxu0 %v8895
    %9347 = vmatpush.msra.mxu0 %v8887
    %9348 = vmatpush.msra.mxu0 %v8879
    %9349 = vmatpush.msra.mxu0 %v8871
    %9350 = vmatpush.msra.mxu0 %v8863
    %9351 = vmatpush.msra.mxu0 %v8855
    %9352 = vmatpush.msra.mxu0 %v8847
    %9353 = vmatpush.msra.mxu0 %v8839
    %9354 = vmatpush.msra.mxu0 %v8831
    %9355 = vmatpush.msra.mxu0 %v8823
    %9356 = vmatpush.msra.mxu0 %v8815
    %9357 = vmatpush.msra.mxu0 %v8807
    %9358 = vmatmul.f32.gmra.mxu0 %v7524
    %v9359 = vpop.f32.mrf.mxu0
    %v9360 = vadd.f32 %v9340, %v9359
    %9361 = vdwg.mxu0
    %9362 = vmatpush.msra.mxu0 %v9055
    %9363 = vmatpush.msra.mxu0 %v9047
    %9364 = vmatpush.msra.mxu0 %v9039
    %9365 = vmatpush.msra.mxu0 %v9031
    %9366 = vmatpush.msra.mxu0 %v9023
    %9367 = vmatpush.msra.mxu0 %v9015
    %9368 = vmatpush.msra.mxu0 %v9007
    %9369 = vmatpush.msra.mxu0 %v8999
    %9370 = vmatpush.msra.mxu0 %v8991
    %9371 = vmatpush.msra.mxu0 %v8983
    %9372 = vmatpush.msra.mxu0 %v8975
    %9373 = vmatpush.msra.mxu0 %v8967
    %9374 = vmatpush.msra.mxu0 %v8959
    %9375 = vmatpush.msra.mxu0 %v8951
    %9376 = vmatpush.msra.mxu0 %v8943
    %9377 = vmatpush.msra.mxu0 %v8935
    %9378 = vmatmul.f32.gmra.mxu0 %v7525
    %v9379 = vpop.f32.mrf.mxu0
    %v9380 = vadd.f32 %v9360, %v9379
    %9381 = vdwg.mxu0
    %9382 = vmatpush.msra.mxu0 %v8160
    %9383 = vmatpush.msra.mxu0 %v8152
    %9384 = vmatpush.msra.mxu0 %v8144
    %9385 = vmatpush.msra.mxu0 %v8136
    %9386 = vmatpush.msra.mxu0 %v8128
    %9387 = vmatpush.msra.mxu0 %v8120
    %9388 = vmatpush.msra.mxu0 %v8112
    %9389 = vmatpush.msra.mxu0 %v8104
    %9390 = vmatpush.msra.mxu0 %v8096
    %9391 = vmatpush.msra.mxu0 %v8088
    %9392 = vmatpush.msra.mxu0 %v8080
    %9393 = vmatpush.msra.mxu0 %v8072
    %9394 = vmatpush.msra.mxu0 %v8064
    %9395 = vmatpush.msra.mxu0 %v8056
    %9396 = vmatpush.msra.mxu0 %v8048
    %9397 = vmatpush.msra.mxu0 %v8040
    %9398 = vmatmul.f32.gmra.mxu0 %v7518
    %v9399 = vpop.f32.mrf.mxu0
    %v9400 = vadd.f32 0.0, %v9399
    %9401 = vdwg.mxu0
    %9402 = vmatpush.msra.mxu0 %v8288
    %9403 = vmatpush.msra.mxu0 %v8280
    %9404 = vmatpush.msra.mxu0 %v8272
    %9405 = vmatpush.msra.mxu0 %v8264
    %9406 = vmatpush.msra.mxu0 %v8256
    %9407 = vmatpush.msra.mxu0 %v8248
    %9408 = vmatpush.msra.mxu0 %v8240
    %9409 = vmatpush.msra.mxu0 %v8232
    %9410 = vmatpush.msra.mxu0 %v8224
    %9411 = vmatpush.msra.mxu0 %v8216
    %9412 = vmatpush.msra.mxu0 %v8208
    %9413 = vmatpush.msra.mxu0 %v8200
    %9414 = vmatpush.msra.mxu0 %v8192
    %9415 = vmatpush.msra.mxu0 %v8184
    %9416 = vmatpush.msra.mxu0 %v8176
    %9417 = vmatpush.msra.mxu0 %v8168
    %9418 = vmatmul.f32.gmra.mxu0 %v7519
    %v9419 = vpop.f32.mrf.mxu0
    %v9420 = vadd.f32 %v9400, %v9419
    %9421 = vdwg.mxu0
    %9422 = vmatpush.msra.mxu0 %v8416
    %9423 = vmatpush.msra.mxu0 %v8408
    %9424 = vmatpush.msra.mxu0 %v8400
    %9425 = vmatpush.msra.mxu0 %v8392
    %9426 = vmatpush.msra.mxu0 %v8384
    %9427 = vmatpush.msra.mxu0 %v8376
    %9428 = vmatpush.msra.mxu0 %v8368
    %9429 = vmatpush.msra.mxu0 %v8360
    %9430 = vmatpush.msra.mxu0 %v8352
    %9431 = vmatpush.msra.mxu0 %v8344
    %9432 = vmatpush.msra.mxu0 %v8336
    %9433 = vmatpush.msra.mxu0 %v8328
    %9434 = vmatpush.msra.mxu0 %v8320
    %9435 = vmatpush.msra.mxu0 %v8312
    %9436 = vmatpush.msra.mxu0 %v8304
    %9437 = vmatpush.msra.mxu0 %v8296
    %9438 = vmatmul.f32.gmra.mxu0 %v7520
    %v9439 = vpop.f32.mrf.mxu0
    %v9440 = vadd.f32 %v9420, %v9439
    %9441 = vdwg.mxu0
    %9442 = vmatpush.msra.mxu0 %v8544
    %9443 = vmatpush.msra.mxu0 %v8536
    %9444 = vmatpush.msra.mxu0 %v8528
    %9445 = vmatpush.msra.mxu0 %v8520
    %9446 = vmatpush.msra.mxu0 %v8512
    %9447 = vmatpush.msra.mxu0 %v8504
    %9448 = vmatpush.msra.mxu0 %v8496
    %9449 = vmatpush.msra.mxu0 %v8488
    %9450 = vmatpush.msra.mxu0 %v8480
    %9451 = vmatpush.msra.mxu0 %v8472
    %9452 = vmatpush.msra.mxu0 %v8464
    %9453 = vmatpush.msra.mxu0 %v8456
    %9454 = vmatpush.msra.mxu0 %v8448
    %9455 = vmatpush.msra.mxu0 %v8440
    %9456 = vmatpush.msra.mxu0 %v8432
    %9457 = vmatpush.msra.mxu0 %v8424
    %9458 = vmatmul.f32.gmra.mxu0 %v7521
    %v9459 = vpop.f32.mrf.mxu0
    %v9460 = vadd.f32 %v9440, %v9459
    %9461 = vdwg.mxu0
    %9462 = vmatpush.msra.mxu0 %v8672
    %9463 = vmatpush.msra.mxu0 %v8664
    %9464 = vmatpush.msra.mxu0 %v8656
    %9465 = vmatpush.msra.mxu0 %v8648
    %9466 = vmatpush.msra.mxu0 %v8640
    %9467 = vmatpush.msra.mxu0 %v8632
    %9468 = vmatpush.msra.mxu0 %v8624
    %9469 = vmatpush.msra.mxu0 %v8616
    %9470 = vmatpush.msra.mxu0 %v8608
    %9471 = vmatpush.msra.mxu0 %v8600
    %9472 = vmatpush.msra.mxu0 %v8592
    %9473 = vmatpush.msra.mxu0 %v8584
    %9474 = vmatpush.msra.mxu0 %v8576
    %9475 = vmatpush.msra.mxu0 %v8568
    %9476 = vmatpush.msra.mxu0 %v8560
    %9477 = vmatpush.msra.mxu0 %v8552
    %9478 = vmatmul.f32.gmra.mxu0 %v7522
    %v9479 = vpop.f32.mrf.mxu0
    %v9480 = vadd.f32 %v9460, %v9479
    %9481 = vdwg.mxu0
    %9482 = vmatpush.msra.mxu0 %v8800
    %9483 = vmatpush.msra.mxu0 %v8792
    %9484 = vmatpush.msra.mxu0 %v8784
    %9485 = vmatpush.msra.mxu0 %v8776
    %9486 = vmatpush.msra.mxu0 %v8768
    %9487 = vmatpush.msra.mxu0 %v8760
    %9488 = vmatpush.msra.mxu0 %v8752
    %9489 = vmatpush.msra.mxu0 %v8744
    %9490 = vmatpush.msra.mxu0 %v8736
    %9491 = vmatpush.msra.mxu0 %v8728
    %9492 = vmatpush.msra.mxu0 %v8720
    %9493 = vmatpush.msra.mxu0 %v8712
    %9494 = vmatpush.msra.mxu0 %v8704
    %9495 = vmatpush.msra.mxu0 %v8696
    %9496 = vmatpush.msra.mxu0 %v8688
    %9497 = vmatpush.msra.mxu0 %v8680
    %9498 = vmatmul.f32.gmra.mxu0 %v7523
    %v9499 = vpop.f32.mrf.mxu0
    %v9500 = vadd.f32 %v9480, %v9499
    %9501 = vdwg.mxu0
    %9502 = vmatpush.msra.mxu0 %v8928
    %9503 = vmatpush.msra.mxu0 %v8920
    %9504 = vmatpush.msra.mxu0 %v8912
    %9505 = vmatpush.msra.mxu0 %v8904
    %9506 = vmatpush.msra.mxu0 %v8896
    %9507 = vmatpush.msra.mxu0 %v8888
    %9508 = vmatpush.msra.mxu0 %v8880
    %9509 = vmatpush.msra.mxu0 %v8872
    %9510 = vmatpush.msra.mxu0 %v8864
    %9511 = vmatpush.msra.mxu0 %v8856
    %9512 = vmatpush.msra.mxu0 %v8848
    %9513 = vmatpush.msra.mxu0 %v8840
    %9514 = vmatpush.msra.mxu0 %v8832
    %9515 = vmatpush.msra.mxu0 %v8824
    %9516 = vmatpush.msra.mxu0 %v8816
    %9517 = vmatpush.msra.mxu0 %v8808
    %9518 = vmatmul.f32.gmra.mxu0 %v7524
    %v9519 = vpop.f32.mrf.mxu0
    %v9520 = vadd.f32 %v9500, %v9519
    %9521 = vdwg.mxu0
    %9522 = vmatpush.msra.mxu0 %v9056
    %9523 = vmatpush.msra.mxu0 %v9048
    %9524 = vmatpush.msra.mxu0 %v9040
    %9525 = vmatpush.msra.mxu0 %v9032
    %9526 = vmatpush.msra.mxu0 %v9024
    %9527 = vmatpush.msra.mxu0 %v9016
    %9528 = vmatpush.msra.mxu0 %v9008
    %9529 = vmatpush.msra.mxu0 %v9000
    %9530 = vmatpush.msra.mxu0 %v8992
    %9531 = vmatpush.msra.mxu0 %v8984
    %9532 = vmatpush.msra.mxu0 %v8976
    %9533 = vmatpush.msra.mxu0 %v8968
    %9534 = vmatpush.msra.mxu0 %v8960
    %9535 = vmatpush.msra.mxu0 %v8952
    %9536 = vmatpush.msra.mxu0 %v8944
    %9537 = vmatpush.msra.mxu0 %v8936
    %9538 = vmatmul.f32.gmra.mxu0 %v7525
    %v9539 = vpop.f32.mrf.mxu0
    %v9540 = vadd.f32 %v9520, %v9539
    %9541 = vdwg.mxu0
    %9542 = vmatpush.msra.mxu0 %v8161
    %9543 = vmatpush.msra.mxu0 %v8153
    %9544 = vmatpush.msra.mxu0 %v8145
    %9545 = vmatpush.msra.mxu0 %v8137
    %9546 = vmatpush.msra.mxu0 %v8129
    %9547 = vmatpush.msra.mxu0 %v8121
    %9548 = vmatpush.msra.mxu0 %v8113
    %9549 = vmatpush.msra.mxu0 %v8105
    %9550 = vmatpush.msra.mxu0 %v8097
    %9551 = vmatpush.msra.mxu0 %v8089
    %9552 = vmatpush.msra.mxu0 %v8081
    %9553 = vmatpush.msra.mxu0 %v8073
    %9554 = vmatpush.msra.mxu0 %v8065
    %9555 = vmatpush.msra.mxu0 %v8057
    %9556 = vmatpush.msra.mxu0 %v8049
    %9557 = vmatpush.msra.mxu0 %v8041
    %9558 = vmatmul.f32.gmra.mxu0 %v7518
    %v9559 = vpop.f32.mrf.mxu0
    %v9560 = vadd.f32 0.0, %v9559
    %9561 = vdwg.mxu0
    %9562 = vmatpush.msra.mxu0 %v8289
    %9563 = vmatpush.msra.mxu0 %v8281
    %9564 = vmatpush.msra.mxu0 %v8273
    %9565 = vmatpush.msra.mxu0 %v8265
    %9566 = vmatpush.msra.mxu0 %v8257
    %9567 = vmatpush.msra.mxu0 %v8249
    %9568 = vmatpush.msra.mxu0 %v8241
    %9569 = vmatpush.msra.mxu0 %v8233
    %9570 = vmatpush.msra.mxu0 %v8225
    %9571 = vmatpush.msra.mxu0 %v8217
    %9572 = vmatpush.msra.mxu0 %v8209
    %9573 = vmatpush.msra.mxu0 %v8201
    %9574 = vmatpush.msra.mxu0 %v8193
    %9575 = vmatpush.msra.mxu0 %v8185
    %9576 = vmatpush.msra.mxu0 %v8177
    %9577 = vmatpush.msra.mxu0 %v8169
    %9578 = vmatmul.f32.gmra.mxu0 %v7519
    %v9579 = vpop.f32.mrf.mxu0
    %v9580 = vadd.f32 %v9560, %v9579
    %9581 = vdwg.mxu0
    %9582 = vmatpush.msra.mxu0 %v8417
    %9583 = vmatpush.msra.mxu0 %v8409
    %9584 = vmatpush.msra.mxu0 %v8401
    %9585 = vmatpush.msra.mxu0 %v8393
    %9586 = vmatpush.msra.mxu0 %v8385
    %9587 = vmatpush.msra.mxu0 %v8377
    %9588 = vmatpush.msra.mxu0 %v8369
    %9589 = vmatpush.msra.mxu0 %v8361
    %9590 = vmatpush.msra.mxu0 %v8353
    %9591 = vmatpush.msra.mxu0 %v8345
    %9592 = vmatpush.msra.mxu0 %v8337
    %9593 = vmatpush.msra.mxu0 %v8329
    %9594 = vmatpush.msra.mxu0 %v8321
    %9595 = vmatpush.msra.mxu0 %v8313
    %9596 = vmatpush.msra.mxu0 %v8305
    %9597 = vmatpush.msra.mxu0 %v8297
    %9598 = vmatmul.f32.gmra.mxu0 %v7520
    %v9599 = vpop.f32.mrf.mxu0
    %v9600 = vadd.f32 %v9580, %v9599
    %9601 = vdwg.mxu0
    %9602 = vmatpush.msra.mxu0 %v8545
    %9603 = vmatpush.msra.mxu0 %v8537
    %9604 = vmatpush.msra.mxu0 %v8529
    %9605 = vmatpush.msra.mxu0 %v8521
    %9606 = vmatpush.msra.mxu0 %v8513
    %9607 = vmatpush.msra.mxu0 %v8505
    %9608 = vmatpush.msra.mxu0 %v8497
    %9609 = vmatpush.msra.mxu0 %v8489
    %9610 = vmatpush.msra.mxu0 %v8481
    %9611 = vmatpush.msra.mxu0 %v8473
    %9612 = vmatpush.msra.mxu0 %v8465
    %9613 = vmatpush.msra.mxu0 %v8457
    %9614 = vmatpush.msra.mxu0 %v8449
    %9615 = vmatpush.msra.mxu0 %v8441
    %9616 = vmatpush.msra.mxu0 %v8433
    %9617 = vmatpush.msra.mxu0 %v8425
    %9618 = vmatmul.f32.gmra.mxu0 %v7521
    %v9619 = vpop.f32.mrf.mxu0
    %v9620 = vadd.f32 %v9600, %v9619
    %9621 = vdwg.mxu0
    %9622 = vmatpush.msra.mxu0 %v8673
    %9623 = vmatpush.msra.mxu0 %v8665
    %9624 = vmatpush.msra.mxu0 %v8657
    %9625 = vmatpush.msra.mxu0 %v8649
    %9626 = vmatpush.msra.mxu0 %v8641
    %9627 = vmatpush.msra.mxu0 %v8633
    %9628 = vmatpush.msra.mxu0 %v8625
    %9629 = vmatpush.msra.mxu0 %v8617
    %9630 = vmatpush.msra.mxu0 %v8609
    %9631 = vmatpush.msra.mxu0 %v8601
    %9632 = vmatpush.msra.mxu0 %v8593
    %9633 = vmatpush.msra.mxu0 %v8585
    %9634 = vmatpush.msra.mxu0 %v8577
    %9635 = vmatpush.msra.mxu0 %v8569
    %9636 = vmatpush.msra.mxu0 %v8561
    %9637 = vmatpush.msra.mxu0 %v8553
    %9638 = vmatmul.f32.gmra.mxu0 %v7522
    %v9639 = vpop.f32.mrf.mxu0
    %v9640 = vadd.f32 %v9620, %v9639
    %9641 = vdwg.mxu0
    %9642 = vmatpush.msra.mxu0 %v8801
    %9643 = vmatpush.msra.mxu0 %v8793
    %9644 = vmatpush.msra.mxu0 %v8785
    %9645 = vmatpush.msra.mxu0 %v8777
    %9646 = vmatpush.msra.mxu0 %v8769
    %9647 = vmatpush.msra.mxu0 %v8761
    %9648 = vmatpush.msra.mxu0 %v8753
    %9649 = vmatpush.msra.mxu0 %v8745
    %9650 = vmatpush.msra.mxu0 %v8737
    %9651 = vmatpush.msra.mxu0 %v8729
    %9652 = vmatpush.msra.mxu0 %v8721
    %9653 = vmatpush.msra.mxu0 %v8713
    %9654 = vmatpush.msra.mxu0 %v8705
    %9655 = vmatpush.msra.mxu0 %v8697
    %9656 = vmatpush.msra.mxu0 %v8689
    %9657 = vmatpush.msra.mxu0 %v8681
    %9658 = vmatmul.f32.gmra.mxu0 %v7523
    %v9659 = vpop.f32.mrf.mxu0
    %v9660 = vadd.f32 %v9640, %v9659
    %9661 = vdwg.mxu0
    %9662 = vmatpush.msra.mxu0 %v8929
    %9663 = vmatpush.msra.mxu0 %v8921
    %9664 = vmatpush.msra.mxu0 %v8913
    %9665 = vmatpush.msra.mxu0 %v8905
    %9666 = vmatpush.msra.mxu0 %v8897
    %9667 = vmatpush.msra.mxu0 %v8889
    %9668 = vmatpush.msra.mxu0 %v8881
    %9669 = vmatpush.msra.mxu0 %v8873
    %9670 = vmatpush.msra.mxu0 %v8865
    %9671 = vmatpush.msra.mxu0 %v8857
    %9672 = vmatpush.msra.mxu0 %v8849
    %9673 = vmatpush.msra.mxu0 %v8841
    %9674 = vmatpush.msra.mxu0 %v8833
    %9675 = vmatpush.msra.mxu0 %v8825
    %9676 = vmatpush.msra.mxu0 %v8817
    %9677 = vmatpush.msra.mxu0 %v8809
    %9678 = vmatmul.f32.gmra.mxu0 %v7524
    %v9679 = vpop.f32.mrf.mxu0
    %v9680 = vadd.f32 %v9660, %v9679
    %9681 = vdwg.mxu0
    %9682 = vmatpush.msra.mxu0 %v9057
    %9683 = vmatpush.msra.mxu0 %v9049
    %9684 = vmatpush.msra.mxu0 %v9041
    %9685 = vmatpush.msra.mxu0 %v9033
    %9686 = vmatpush.msra.mxu0 %v9025
    %9687 = vmatpush.msra.mxu0 %v9017
    %9688 = vmatpush.msra.mxu0 %v9009
    %9689 = vmatpush.msra.mxu0 %v9001
    %9690 = vmatpush.msra.mxu0 %v8993
    %9691 = vmatpush.msra.mxu0 %v8985
    %9692 = vmatpush.msra.mxu0 %v8977
    %9693 = vmatpush.msra.mxu0 %v8969
    %9694 = vmatpush.msra.mxu0 %v8961
    %9695 = vmatpush.msra.mxu0 %v8953
    %9696 = vmatpush.msra.mxu0 %v8945
    %9697 = vmatpush.msra.mxu0 %v8937
    %9698 = vmatmul.f32.gmra.mxu0 %v7525
    %v9699 = vpop.f32.mrf.mxu0
    %v9700 = vadd.f32 %v9680, %v9699
    %9701 = vdwg.mxu0
    %9702 = vmatpush.msra.mxu0 %v8162
    %9703 = vmatpush.msra.mxu0 %v8154
    %9704 = vmatpush.msra.mxu0 %v8146
    %9705 = vmatpush.msra.mxu0 %v8138
    %9706 = vmatpush.msra.mxu0 %v8130
    %9707 = vmatpush.msra.mxu0 %v8122
    %9708 = vmatpush.msra.mxu0 %v8114
    %9709 = vmatpush.msra.mxu0 %v8106
    %9710 = vmatpush.msra.mxu0 %v8098
    %9711 = vmatpush.msra.mxu0 %v8090
    %9712 = vmatpush.msra.mxu0 %v8082
    %9713 = vmatpush.msra.mxu0 %v8074
    %9714 = vmatpush.msra.mxu0 %v8066
    %9715 = vmatpush.msra.mxu0 %v8058
    %9716 = vmatpush.msra.mxu0 %v8050
    %9717 = vmatpush.msra.mxu0 %v8042
    %9718 = vmatmul.f32.gmra.mxu0 %v7518
    %v9719 = vpop.f32.mrf.mxu0
    %v9720 = vadd.f32 0.0, %v9719
    %9721 = vdwg.mxu0
    %9722 = vmatpush.msra.mxu0 %v8290
    %9723 = vmatpush.msra.mxu0 %v8282
    %9724 = vmatpush.msra.mxu0 %v8274
    %9725 = vmatpush.msra.mxu0 %v8266
    %9726 = vmatpush.msra.mxu0 %v8258
    %9727 = vmatpush.msra.mxu0 %v8250
    %9728 = vmatpush.msra.mxu0 %v8242
    %9729 = vmatpush.msra.mxu0 %v8234
    %9730 = vmatpush.msra.mxu0 %v8226
    %9731 = vmatpush.msra.mxu0 %v8218
    %9732 = vmatpush.msra.mxu0 %v8210
    %9733 = vmatpush.msra.mxu0 %v8202
    %9734 = vmatpush.msra.mxu0 %v8194
    %9735 = vmatpush.msra.mxu0 %v8186
    %9736 = vmatpush.msra.mxu0 %v8178
    %9737 = vmatpush.msra.mxu0 %v8170
    %9738 = vmatmul.f32.gmra.mxu0 %v7519
    %v9739 = vpop.f32.mrf.mxu0
    %v9740 = vadd.f32 %v9720, %v9739
    %9741 = vdwg.mxu0
    %9742 = vmatpush.msra.mxu0 %v8418
    %9743 = vmatpush.msra.mxu0 %v8410
    %9744 = vmatpush.msra.mxu0 %v8402
    %9745 = vmatpush.msra.mxu0 %v8394
    %9746 = vmatpush.msra.mxu0 %v8386
    %9747 = vmatpush.msra.mxu0 %v8378
    %9748 = vmatpush.msra.mxu0 %v8370
    %9749 = vmatpush.msra.mxu0 %v8362
    %9750 = vmatpush.msra.mxu0 %v8354
    %9751 = vmatpush.msra.mxu0 %v8346
    %9752 = vmatpush.msra.mxu0 %v8338
    %9753 = vmatpush.msra.mxu0 %v8330
    %9754 = vmatpush.msra.mxu0 %v8322
    %9755 = vmatpush.msra.mxu0 %v8314
    %9756 = vmatpush.msra.mxu0 %v8306
    %9757 = vmatpush.msra.mxu0 %v8298
    %9758 = vmatmul.f32.gmra.mxu0 %v7520
    %v9759 = vpop.f32.mrf.mxu0
    %v9760 = vadd.f32 %v9740, %v9759
    %9761 = vdwg.mxu0
    %9762 = vmatpush.msra.mxu0 %v8546
    %9763 = vmatpush.msra.mxu0 %v8538
    %9764 = vmatpush.msra.mxu0 %v8530
    %9765 = vmatpush.msra.mxu0 %v8522
    %9766 = vmatpush.msra.mxu0 %v8514
    %9767 = vmatpush.msra.mxu0 %v8506
    %9768 = vmatpush.msra.mxu0 %v8498
    %9769 = vmatpush.msra.mxu0 %v8490
    %9770 = vmatpush.msra.mxu0 %v8482
    %9771 = vmatpush.msra.mxu0 %v8474
    %9772 = vmatpush.msra.mxu0 %v8466
    %9773 = vmatpush.msra.mxu0 %v8458
    %9774 = vmatpush.msra.mxu0 %v8450
    %9775 = vmatpush.msra.mxu0 %v8442
    %9776 = vmatpush.msra.mxu0 %v8434
    %9777 = vmatpush.msra.mxu0 %v8426
    %9778 = vmatmul.f32.gmra.mxu0 %v7521
    %v9779 = vpop.f32.mrf.mxu0
    %v9780 = vadd.f32 %v9760, %v9779
    %9781 = vdwg.mxu0
    %9782 = vmatpush.msra.mxu0 %v8674
    %9783 = vmatpush.msra.mxu0 %v8666
    %9784 = vmatpush.msra.mxu0 %v8658
    %9785 = vmatpush.msra.mxu0 %v8650
    %9786 = vmatpush.msra.mxu0 %v8642
    %9787 = vmatpush.msra.mxu0 %v8634
    %9788 = vmatpush.msra.mxu0 %v8626
    %9789 = vmatpush.msra.mxu0 %v8618
    %9790 = vmatpush.msra.mxu0 %v8610
    %9791 = vmatpush.msra.mxu0 %v8602
    %9792 = vmatpush.msra.mxu0 %v8594
    %9793 = vmatpush.msra.mxu0 %v8586
    %9794 = vmatpush.msra.mxu0 %v8578
    %9795 = vmatpush.msra.mxu0 %v8570
    %9796 = vmatpush.msra.mxu0 %v8562
    %9797 = vmatpush.msra.mxu0 %v8554
    %9798 = vmatmul.f32.gmra.mxu0 %v7522
    %v9799 = vpop.f32.mrf.mxu0
    %v9800 = vadd.f32 %v9780, %v9799
    %9801 = vdwg.mxu0
    %9802 = vmatpush.msra.mxu0 %v8802
    %9803 = vmatpush.msra.mxu0 %v8794
    %9804 = vmatpush.msra.mxu0 %v8786
    %9805 = vmatpush.msra.mxu0 %v8778
    %9806 = vmatpush.msra.mxu0 %v8770
    %9807 = vmatpush.msra.mxu0 %v8762
    %9808 = vmatpush.msra.mxu0 %v8754
    %9809 = vmatpush.msra.mxu0 %v8746
    %9810 = vmatpush.msra.mxu0 %v8738
    %9811 = vmatpush.msra.mxu0 %v8730
    %9812 = vmatpush.msra.mxu0 %v8722
    %9813 = vmatpush.msra.mxu0 %v8714
    %9814 = vmatpush.msra.mxu0 %v8706
    %9815 = vmatpush.msra.mxu0 %v8698
    %9816 = vmatpush.msra.mxu0 %v8690
    %9817 = vmatpush.msra.mxu0 %v8682
    %9818 = vmatmul.f32.gmra.mxu0 %v7523
    %v9819 = vpop.f32.mrf.mxu0
    %v9820 = vadd.f32 %v9800, %v9819
    %9821 = vdwg.mxu0
    %9822 = vmatpush.msra.mxu0 %v8930
    %9823 = vmatpush.msra.mxu0 %v8922
    %9824 = vmatpush.msra.mxu0 %v8914
    %9825 = vmatpush.msra.mxu0 %v8906
    %9826 = vmatpush.msra.mxu0 %v8898
    %9827 = vmatpush.msra.mxu0 %v8890
    %9828 = vmatpush.msra.mxu0 %v8882
    %9829 = vmatpush.msra.mxu0 %v8874
    %9830 = vmatpush.msra.mxu0 %v8866
    %9831 = vmatpush.msra.mxu0 %v8858
    %9832 = vmatpush.msra.mxu0 %v8850
    %9833 = vmatpush.msra.mxu0 %v8842
    %9834 = vmatpush.msra.mxu0 %v8834
    %9835 = vmatpush.msra.mxu0 %v8826
    %9836 = vmatpush.msra.mxu0 %v8818
    %9837 = vmatpush.msra.mxu0 %v8810
    %9838 = vmatmul.f32.gmra.mxu0 %v7524
    %v9839 = vpop.f32.mrf.mxu0
    %v9840 = vadd.f32 %v9820, %v9839
    %9841 = vdwg.mxu0
    %9842 = vmatpush.msra.mxu0 %v9058
    %9843 = vmatpush.msra.mxu0 %v9050
    %9844 = vmatpush.msra.mxu0 %v9042
    %9845 = vmatpush.msra.mxu0 %v9034
    %9846 = vmatpush.msra.mxu0 %v9026
    %9847 = vmatpush.msra.mxu0 %v9018
    %9848 = vmatpush.msra.mxu0 %v9010
    %9849 = vmatpush.msra.mxu0 %v9002
    %9850 = vmatpush.msra.mxu0 %v8994
    %9851 = vmatpush.msra.mxu0 %v8986
    %9852 = vmatpush.msra.mxu0 %v8978
    %9853 = vmatpush.msra.mxu0 %v8970
    %9854 = vmatpush.msra.mxu0 %v8962
    %9855 = vmatpush.msra.mxu0 %v8954
    %9856 = vmatpush.msra.mxu0 %v8946
    %9857 = vmatpush.msra.mxu0 %v8938
    %9858 = vmatmul.f32.gmra.mxu0 %v7525
    %v9859 = vpop.f32.mrf.mxu0
    %v9860 = vadd.f32 %v9840, %v9859
    %9861 = vdwg.mxu0
    %9862 = vmatpush.msra.mxu0 %v8163
    %9863 = vmatpush.msra.mxu0 %v8155
    %9864 = vmatpush.msra.mxu0 %v8147
    %9865 = vmatpush.msra.mxu0 %v8139
    %9866 = vmatpush.msra.mxu0 %v8131
    %9867 = vmatpush.msra.mxu0 %v8123
    %9868 = vmatpush.msra.mxu0 %v8115
    %9869 = vmatpush.msra.mxu0 %v8107
    %9870 = vmatpush.msra.mxu0 %v8099
    %9871 = vmatpush.msra.mxu0 %v8091
    %9872 = vmatpush.msra.mxu0 %v8083
    %9873 = vmatpush.msra.mxu0 %v8075
    %9874 = vmatpush.msra.mxu0 %v8067
    %9875 = vmatpush.msra.mxu0 %v8059
    %9876 = vmatpush.msra.mxu0 %v8051
    %9877 = vmatpush.msra.mxu0 %v8043
    %9878 = vmatmul.f32.gmra.mxu0 %v7518
    %v9879 = vpop.f32.mrf.mxu0
    %v9880 = vadd.f32 0.0, %v9879
    %9881 = vdwg.mxu0
    %9882 = vmatpush.msra.mxu0 %v8291
    %9883 = vmatpush.msra.mxu0 %v8283
    %9884 = vmatpush.msra.mxu0 %v8275
    %9885 = vmatpush.msra.mxu0 %v8267
    %9886 = vmatpush.msra.mxu0 %v8259
    %9887 = vmatpush.msra.mxu0 %v8251
    %9888 = vmatpush.msra.mxu0 %v8243
    %9889 = vmatpush.msra.mxu0 %v8235
    %9890 = vmatpush.msra.mxu0 %v8227
    %9891 = vmatpush.msra.mxu0 %v8219
    %9892 = vmatpush.msra.mxu0 %v8211
    %9893 = vmatpush.msra.mxu0 %v8203
    %9894 = vmatpush.msra.mxu0 %v8195
    %9895 = vmatpush.msra.mxu0 %v8187
    %9896 = vmatpush.msra.mxu0 %v8179
    %9897 = vmatpush.msra.mxu0 %v8171
    %9898 = vmatmul.f32.gmra.mxu0 %v7519
    %v9899 = vpop.f32.mrf.mxu0
    %v9900 = vadd.f32 %v9880, %v9899
    %9901 = vdwg.mxu0
    %9902 = vmatpush.msra.mxu0 %v8419
    %9903 = vmatpush.msra.mxu0 %v8411
    %9904 = vmatpush.msra.mxu0 %v8403
    %9905 = vmatpush.msra.mxu0 %v8395
    %9906 = vmatpush.msra.mxu0 %v8387
    %9907 = vmatpush.msra.mxu0 %v8379
    %9908 = vmatpush.msra.mxu0 %v8371
    %9909 = vmatpush.msra.mxu0 %v8363
    %9910 = vmatpush.msra.mxu0 %v8355
    %9911 = vmatpush.msra.mxu0 %v8347
    %9912 = vmatpush.msra.mxu0 %v8339
    %9913 = vmatpush.msra.mxu0 %v8331
    %9914 = vmatpush.msra.mxu0 %v8323
    %9915 = vmatpush.msra.mxu0 %v8315
    %9916 = vmatpush.msra.mxu0 %v8307
    %9917 = vmatpush.msra.mxu0 %v8299
    %9918 = vmatmul.f32.gmra.mxu0 %v7520
    %v9919 = vpop.f32.mrf.mxu0
    %v9920 = vadd.f32 %v9900, %v9919
    %9921 = vdwg.mxu0
    %9922 = vmatpush.msra.mxu0 %v8547
    %9923 = vmatpush.msra.mxu0 %v8539
    %9924 = vmatpush.msra.mxu0 %v8531
    %9925 = vmatpush.msra.mxu0 %v8523
    %9926 = vmatpush.msra.mxu0 %v8515
    %9927 = vmatpush.msra.mxu0 %v8507
    %9928 = vmatpush.msra.mxu0 %v8499
    %9929 = vmatpush.msra.mxu0 %v8491
    %9930 = vmatpush.msra.mxu0 %v8483
    %9931 = vmatpush.msra.mxu0 %v8475
    %9932 = vmatpush.msra.mxu0 %v8467
    %9933 = vmatpush.msra.mxu0 %v8459
    %9934 = vmatpush.msra.mxu0 %v8451
    %9935 = vmatpush.msra.mxu0 %v8443
    %9936 = vmatpush.msra.mxu0 %v8435
    %9937 = vmatpush.msra.mxu0 %v8427
    %9938 = vmatmul.f32.gmra.mxu0 %v7521
    %v9939 = vpop.f32.mrf.mxu0
    %v9940 = vadd.f32 %v9920, %v9939
    %9941 = vdwg.mxu0
    %9942 = vmatpush.msra.mxu0 %v8675
    %9943 = vmatpush.msra.mxu0 %v8667
    %9944 = vmatpush.msra.mxu0 %v8659
    %9945 = vmatpush.msra.mxu0 %v8651
    %9946 = vmatpush.msra.mxu0 %v8643
    %9947 = vmatpush.msra.mxu0 %v8635
    %9948 = vmatpush.msra.mxu0 %v8627
    %9949 = vmatpush.msra.mxu0 %v8619
    %9950 = vmatpush.msra.mxu0 %v8611
    %9951 = vmatpush.msra.mxu0 %v8603
    %9952 = vmatpush.msra.mxu0 %v8595
    %9953 = vmatpush.msra.mxu0 %v8587
    %9954 = vmatpush.msra.mxu0 %v8579
    %9955 = vmatpush.msra.mxu0 %v8571
    %9956 = vmatpush.msra.mxu0 %v8563
    %9957 = vmatpush.msra.mxu0 %v8555
    %9958 = vmatmul.f32.gmra.mxu0 %v7522
    %v9959 = vpop.f32.mrf.mxu0
    %v9960 = vadd.f32 %v9940, %v9959
    %9961 = vdwg.mxu0
    %9962 = vmatpush.msra.mxu0 %v8803
    %9963 = vmatpush.msra.mxu0 %v8795
    %9964 = vmatpush.msra.mxu0 %v8787
    %9965 = vmatpush.msra.mxu0 %v8779
    %9966 = vmatpush.msra.mxu0 %v8771
    %9967 = vmatpush.msra.mxu0 %v8763
    %9968 = vmatpush.msra.mxu0 %v8755
    %9969 = vmatpush.msra.mxu0 %v8747
    %9970 = vmatpush.msra.mxu0 %v8739
    %9971 = vmatpush.msra.mxu0 %v8731
    %9972 = vmatpush.msra.mxu0 %v8723
    %9973 = vmatpush.msra.mxu0 %v8715
    %9974 = vmatpush.msra.mxu0 %v8707
    %9975 = vmatpush.msra.mxu0 %v8699
    %9976 = vmatpush.msra.mxu0 %v8691
    %9977 = vmatpush.msra.mxu0 %v8683
    %9978 = vmatmul.f32.gmra.mxu0 %v7523
    %v9979 = vpop.f32.mrf.mxu0
    %v9980 = vadd.f32 %v9960, %v9979
    %9981 = vdwg.mxu0
    %9982 = vmatpush.msra.mxu0 %v8931
    %9983 = vmatpush.msra.mxu0 %v8923
    %9984 = vmatpush.msra.mxu0 %v8915
    %9985 = vmatpush.msra.mxu0 %v8907
    %9986 = vmatpush.msra.mxu0 %v8899
    %9987 = vmatpush.msra.mxu0 %v8891
    %9988 = vmatpush.msra.mxu0 %v8883
    %9989 = vmatpush.msra.mxu0 %v8875
    %9990 = vmatpush.msra.mxu0 %v8867
    %9991 = vmatpush.msra.mxu0 %v8859
    %9992 = vmatpush.msra.mxu0 %v8851
    %9993 = vmatpush.msra.mxu0 %v8843
    %9994 = vmatpush.msra.mxu0 %v8835
    %9995 = vmatpush.msra.mxu0 %v8827
    %9996 = vmatpush.msra.mxu0 %v8819
    %9997 = vmatpush.msra.mxu0 %v8811
    %9998 = vmatmul.f32.gmra.mxu0 %v7524
    %v9999 = vpop.f32.mrf.mxu0
    %v10000 = vadd.f32 %v9980, %v9999
    %10001 = vdwg.mxu0
    %10002 = vmatpush.msra.mxu0 %v9059
    %10003 = vmatpush.msra.mxu0 %v9051
    %10004 = vmatpush.msra.mxu0 %v9043
    %10005 = vmatpush.msra.mxu0 %v9035
    %10006 = vmatpush.msra.mxu0 %v9027
    %10007 = vmatpush.msra.mxu0 %v9019
    %10008 = vmatpush.msra.mxu0 %v9011
    %10009 = vmatpush.msra.mxu0 %v9003
    %10010 = vmatpush.msra.mxu0 %v8995
    %10011 = vmatpush.msra.mxu0 %v8987
    %10012 = vmatpush.msra.mxu0 %v8979
    %10013 = vmatpush.msra.mxu0 %v8971
    %10014 = vmatpush.msra.mxu0 %v8963
    %10015 = vmatpush.msra.mxu0 %v8955
    %10016 = vmatpush.msra.mxu0 %v8947
    %10017 = vmatpush.msra.mxu0 %v8939
    %10018 = vmatmul.f32.gmra.mxu0 %v7525
    %v10019 = vpop.f32.mrf.mxu0
    %v10020 = vadd.f32 %v10000, %v10019
    %10021 = vdwg.mxu0
    %10022 = vmatpush.msra.mxu0 %v8164
    %10023 = vmatpush.msra.mxu0 %v8156
    %10024 = vmatpush.msra.mxu0 %v8148
    %10025 = vmatpush.msra.mxu0 %v8140
    %10026 = vmatpush.msra.mxu0 %v8132
    %10027 = vmatpush.msra.mxu0 %v8124
    %10028 = vmatpush.msra.mxu0 %v8116
    %10029 = vmatpush.msra.mxu0 %v8108
    %10030 = vmatpush.msra.mxu0 %v8100
    %10031 = vmatpush.msra.mxu0 %v8092
    %10032 = vmatpush.msra.mxu0 %v8084
    %10033 = vmatpush.msra.mxu0 %v8076
    %10034 = vmatpush.msra.mxu0 %v8068
    %10035 = vmatpush.msra.mxu0 %v8060
    %10036 = vmatpush.msra.mxu0 %v8052
    %10037 = vmatpush.msra.mxu0 %v8044
    %10038 = vmatmul.f32.gmra.mxu0 %v7518
    %v10039 = vpop.f32.mrf.mxu0
    %v10040 = vadd.f32 0.0, %v10039
    %10041 = vdwg.mxu0
    %10042 = vmatpush.msra.mxu0 %v8292
    %10043 = vmatpush.msra.mxu0 %v8284
    %10044 = vmatpush.msra.mxu0 %v8276
    %10045 = vmatpush.msra.mxu0 %v8268
    %10046 = vmatpush.msra.mxu0 %v8260
    %10047 = vmatpush.msra.mxu0 %v8252
    %10048 = vmatpush.msra.mxu0 %v8244
    %10049 = vmatpush.msra.mxu0 %v8236
    %10050 = vmatpush.msra.mxu0 %v8228
    %10051 = vmatpush.msra.mxu0 %v8220
    %10052 = vmatpush.msra.mxu0 %v8212
    %10053 = vmatpush.msra.mxu0 %v8204
    %10054 = vmatpush.msra.mxu0 %v8196
    %10055 = vmatpush.msra.mxu0 %v8188
    %10056 = vmatpush.msra.mxu0 %v8180
    %10057 = vmatpush.msra.mxu0 %v8172
    %10058 = vmatmul.f32.gmra.mxu0 %v7519
    %v10059 = vpop.f32.mrf.mxu0
    %v10060 = vadd.f32 %v10040, %v10059
    %10061 = vdwg.mxu0
    %10062 = vmatpush.msra.mxu0 %v8420
    %10063 = vmatpush.msra.mxu0 %v8412
    %10064 = vmatpush.msra.mxu0 %v8404
    %10065 = vmatpush.msra.mxu0 %v8396
    %10066 = vmatpush.msra.mxu0 %v8388
    %10067 = vmatpush.msra.mxu0 %v8380
    %10068 = vmatpush.msra.mxu0 %v8372
    %10069 = vmatpush.msra.mxu0 %v8364
    %10070 = vmatpush.msra.mxu0 %v8356
    %10071 = vmatpush.msra.mxu0 %v8348
    %10072 = vmatpush.msra.mxu0 %v8340
    %10073 = vmatpush.msra.mxu0 %v8332
    %10074 = vmatpush.msra.mxu0 %v8324
    %10075 = vmatpush.msra.mxu0 %v8316
    %10076 = vmatpush.msra.mxu0 %v8308
    %10077 = vmatpush.msra.mxu0 %v8300
    %10078 = vmatmul.f32.gmra.mxu0 %v7520
    %v10079 = vpop.f32.mrf.mxu0
    %v10080 = vadd.f32 %v10060, %v10079
    %10081 = vdwg.mxu0
    %10082 = vmatpush.msra.mxu0 %v8548
    %10083 = vmatpush.msra.mxu0 %v8540
    %10084 = vmatpush.msra.mxu0 %v8532
    %10085 = vmatpush.msra.mxu0 %v8524
    %10086 = vmatpush.msra.mxu0 %v8516
    %10087 = vmatpush.msra.mxu0 %v8508
    %10088 = vmatpush.msra.mxu0 %v8500
    %10089 = vmatpush.msra.mxu0 %v8492
    %10090 = vmatpush.msra.mxu0 %v8484
    %10091 = vmatpush.msra.mxu0 %v8476
    %10092 = vmatpush.msra.mxu0 %v8468
    %10093 = vmatpush.msra.mxu0 %v8460
    %10094 = vmatpush.msra.mxu0 %v8452
    %10095 = vmatpush.msra.mxu0 %v8444
    %10096 = vmatpush.msra.mxu0 %v8436
    %10097 = vmatpush.msra.mxu0 %v8428
    %10098 = vmatmul.f32.gmra.mxu0 %v7521
    %v10099 = vpop.f32.mrf.mxu0
    %v10100 = vadd.f32 %v10080, %v10099
    %10101 = vdwg.mxu0
    %10102 = vmatpush.msra.mxu0 %v8676
    %10103 = vmatpush.msra.mxu0 %v8668
    %10104 = vmatpush.msra.mxu0 %v8660
    %10105 = vmatpush.msra.mxu0 %v8652
    %10106 = vmatpush.msra.mxu0 %v8644
    %10107 = vmatpush.msra.mxu0 %v8636
    %10108 = vmatpush.msra.mxu0 %v8628
    %10109 = vmatpush.msra.mxu0 %v8620
    %10110 = vmatpush.msra.mxu0 %v8612
    %10111 = vmatpush.msra.mxu0 %v8604
    %10112 = vmatpush.msra.mxu0 %v8596
    %10113 = vmatpush.msra.mxu0 %v8588
    %10114 = vmatpush.msra.mxu0 %v8580
    %10115 = vmatpush.msra.mxu0 %v8572
    %10116 = vmatpush.msra.mxu0 %v8564
    %10117 = vmatpush.msra.mxu0 %v8556
    %10118 = vmatmul.f32.gmra.mxu0 %v7522
    %v10119 = vpop.f32.mrf.mxu0
    %v10120 = vadd.f32 %v10100, %v10119
    %10121 = vdwg.mxu0
    %10122 = vmatpush.msra.mxu0 %v8804
    %10123 = vmatpush.msra.mxu0 %v8796
    %10124 = vmatpush.msra.mxu0 %v8788
    %10125 = vmatpush.msra.mxu0 %v8780
    %10126 = vmatpush.msra.mxu0 %v8772
    %10127 = vmatpush.msra.mxu0 %v8764
    %10128 = vmatpush.msra.mxu0 %v8756
    %10129 = vmatpush.msra.mxu0 %v8748
    %10130 = vmatpush.msra.mxu0 %v8740
    %10131 = vmatpush.msra.mxu0 %v8732
    %10132 = vmatpush.msra.mxu0 %v8724
    %10133 = vmatpush.msra.mxu0 %v8716
    %10134 = vmatpush.msra.mxu0 %v8708
    %10135 = vmatpush.msra.mxu0 %v8700
    %10136 = vmatpush.msra.mxu0 %v8692
    %10137 = vmatpush.msra.mxu0 %v8684
    %10138 = vmatmul.f32.gmra.mxu0 %v7523
    %v10139 = vpop.f32.mrf.mxu0
    %v10140 = vadd.f32 %v10120, %v10139
    %10141 = vdwg.mxu0
    %10142 = vmatpush.msra.mxu0 %v8932
    %10143 = vmatpush.msra.mxu0 %v8924
    %10144 = vmatpush.msra.mxu0 %v8916
    %10145 = vmatpush.msra.mxu0 %v8908
    %10146 = vmatpush.msra.mxu0 %v8900
    %10147 = vmatpush.msra.mxu0 %v8892
    %10148 = vmatpush.msra.mxu0 %v8884
    %10149 = vmatpush.msra.mxu0 %v8876
    %10150 = vmatpush.msra.mxu0 %v8868
    %10151 = vmatpush.msra.mxu0 %v8860
    %10152 = vmatpush.msra.mxu0 %v8852
    %10153 = vmatpush.msra.mxu0 %v8844
    %10154 = vmatpush.msra.mxu0 %v8836
    %10155 = vmatpush.msra.mxu0 %v8828
    %10156 = vmatpush.msra.mxu0 %v8820
    %10157 = vmatpush.msra.mxu0 %v8812
    %10158 = vmatmul.f32.gmra.mxu0 %v7524
    %v10159 = vpop.f32.mrf.mxu0
    %v10160 = vadd.f32 %v10140, %v10159
    %10161 = vdwg.mxu0
    %10162 = vmatpush.msra.mxu0 %v9060
    %10163 = vmatpush.msra.mxu0 %v9052
    %10164 = vmatpush.msra.mxu0 %v9044
    %10165 = vmatpush.msra.mxu0 %v9036
    %10166 = vmatpush.msra.mxu0 %v9028
    %10167 = vmatpush.msra.mxu0 %v9020
    %10168 = vmatpush.msra.mxu0 %v9012
    %10169 = vmatpush.msra.mxu0 %v9004
    %10170 = vmatpush.msra.mxu0 %v8996
    %10171 = vmatpush.msra.mxu0 %v8988
    %10172 = vmatpush.msra.mxu0 %v8980
    %10173 = vmatpush.msra.mxu0 %v8972
    %10174 = vmatpush.msra.mxu0 %v8964
    %10175 = vmatpush.msra.mxu0 %v8956
    %10176 = vmatpush.msra.mxu0 %v8948
    %10177 = vmatpush.msra.mxu0 %v8940
    %10178 = vmatmul.f32.gmra.mxu0 %v7525
    %v10179 = vpop.f32.mrf.mxu0
    %v10180 = vadd.f32 %v10160, %v10179
    %10181 = vdwg.mxu0
    %10182 = vmatpush.msra.mxu0 %v8165
    %10183 = vmatpush.msra.mxu0 %v8157
    %10184 = vmatpush.msra.mxu0 %v8149
    %10185 = vmatpush.msra.mxu0 %v8141
    %10186 = vmatpush.msra.mxu0 %v8133
    %10187 = vmatpush.msra.mxu0 %v8125
    %10188 = vmatpush.msra.mxu0 %v8117
    %10189 = vmatpush.msra.mxu0 %v8109
    %10190 = vmatpush.msra.mxu0 %v8101
    %10191 = vmatpush.msra.mxu0 %v8093
    %10192 = vmatpush.msra.mxu0 %v8085
    %10193 = vmatpush.msra.mxu0 %v8077
    %10194 = vmatpush.msra.mxu0 %v8069
    %10195 = vmatpush.msra.mxu0 %v8061
    %10196 = vmatpush.msra.mxu0 %v8053
    %10197 = vmatpush.msra.mxu0 %v8045
    %10198 = vmatmul.f32.gmra.mxu0 %v7518
    %v10199 = vpop.f32.mrf.mxu0
    %v10200 = vadd.f32 0.0, %v10199
    %10201 = vdwg.mxu0
    %10202 = vmatpush.msra.mxu0 %v8293
    %10203 = vmatpush.msra.mxu0 %v8285
    %10204 = vmatpush.msra.mxu0 %v8277
    %10205 = vmatpush.msra.mxu0 %v8269
    %10206 = vmatpush.msra.mxu0 %v8261
    %10207 = vmatpush.msra.mxu0 %v8253
    %10208 = vmatpush.msra.mxu0 %v8245
    %10209 = vmatpush.msra.mxu0 %v8237
    %10210 = vmatpush.msra.mxu0 %v8229
    %10211 = vmatpush.msra.mxu0 %v8221
    %10212 = vmatpush.msra.mxu0 %v8213
    %10213 = vmatpush.msra.mxu0 %v8205
    %10214 = vmatpush.msra.mxu0 %v8197
    %10215 = vmatpush.msra.mxu0 %v8189
    %10216 = vmatpush.msra.mxu0 %v8181
    %10217 = vmatpush.msra.mxu0 %v8173
    %10218 = vmatmul.f32.gmra.mxu0 %v7519
    %v10219 = vpop.f32.mrf.mxu0
    %v10220 = vadd.f32 %v10200, %v10219
    %10221 = vdwg.mxu0
    %10222 = vmatpush.msra.mxu0 %v8421
    %10223 = vmatpush.msra.mxu0 %v8413
    %10224 = vmatpush.msra.mxu0 %v8405
    %10225 = vmatpush.msra.mxu0 %v8397
    %10226 = vmatpush.msra.mxu0 %v8389
    %10227 = vmatpush.msra.mxu0 %v8381
    %10228 = vmatpush.msra.mxu0 %v8373
    %10229 = vmatpush.msra.mxu0 %v8365
    %10230 = vmatpush.msra.mxu0 %v8357
    %10231 = vmatpush.msra.mxu0 %v8349
    %10232 = vmatpush.msra.mxu0 %v8341
    %10233 = vmatpush.msra.mxu0 %v8333
    %10234 = vmatpush.msra.mxu0 %v8325
    %10235 = vmatpush.msra.mxu0 %v8317
    %10236 = vmatpush.msra.mxu0 %v8309
    %10237 = vmatpush.msra.mxu0 %v8301
    %10238 = vmatmul.f32.gmra.mxu0 %v7520
    %v10239 = vpop.f32.mrf.mxu0
    %v10240 = vadd.f32 %v10220, %v10239
    %10241 = vdwg.mxu0
    %10242 = vmatpush.msra.mxu0 %v8549
    %10243 = vmatpush.msra.mxu0 %v8541
    %10244 = vmatpush.msra.mxu0 %v8533
    %10245 = vmatpush.msra.mxu0 %v8525
    %10246 = vmatpush.msra.mxu0 %v8517
    %10247 = vmatpush.msra.mxu0 %v8509
    %10248 = vmatpush.msra.mxu0 %v8501
    %10249 = vmatpush.msra.mxu0 %v8493
    %10250 = vmatpush.msra.mxu0 %v8485
    %10251 = vmatpush.msra.mxu0 %v8477
    %10252 = vmatpush.msra.mxu0 %v8469
    %10253 = vmatpush.msra.mxu0 %v8461
    %10254 = vmatpush.msra.mxu0 %v8453
    %10255 = vmatpush.msra.mxu0 %v8445
    %10256 = vmatpush.msra.mxu0 %v8437
    %10257 = vmatpush.msra.mxu0 %v8429
    %10258 = vmatmul.f32.gmra.mxu0 %v7521
    %v10259 = vpop.f32.mrf.mxu0
    %v10260 = vadd.f32 %v10240, %v10259
    %10261 = vdwg.mxu0
    %10262 = vmatpush.msra.mxu0 %v8677
    %10263 = vmatpush.msra.mxu0 %v8669
    %10264 = vmatpush.msra.mxu0 %v8661
    %10265 = vmatpush.msra.mxu0 %v8653
    %10266 = vmatpush.msra.mxu0 %v8645
    %10267 = vmatpush.msra.mxu0 %v8637
    %10268 = vmatpush.msra.mxu0 %v8629
    %10269 = vmatpush.msra.mxu0 %v8621
    %10270 = vmatpush.msra.mxu0 %v8613
    %10271 = vmatpush.msra.mxu0 %v8605
    %10272 = vmatpush.msra.mxu0 %v8597
    %10273 = vmatpush.msra.mxu0 %v8589
    %10274 = vmatpush.msra.mxu0 %v8581
    %10275 = vmatpush.msra.mxu0 %v8573
    %10276 = vmatpush.msra.mxu0 %v8565
    %10277 = vmatpush.msra.mxu0 %v8557
    %10278 = vmatmul.f32.gmra.mxu0 %v7522
    %v10279 = vpop.f32.mrf.mxu0
    %v10280 = vadd.f32 %v10260, %v10279
    %10281 = vdwg.mxu0
    %10282 = vmatpush.msra.mxu0 %v8805
    %10283 = vmatpush.msra.mxu0 %v8797
    %10284 = vmatpush.msra.mxu0 %v8789
    %10285 = vmatpush.msra.mxu0 %v8781
    %10286 = vmatpush.msra.mxu0 %v8773
    %10287 = vmatpush.msra.mxu0 %v8765
    %10288 = vmatpush.msra.mxu0 %v8757
    %10289 = vmatpush.msra.mxu0 %v8749
    %10290 = vmatpush.msra.mxu0 %v8741
    %10291 = vmatpush.msra.mxu0 %v8733
    %10292 = vmatpush.msra.mxu0 %v8725
    %10293 = vmatpush.msra.mxu0 %v8717
    %10294 = vmatpush.msra.mxu0 %v8709
    %10295 = vmatpush.msra.mxu0 %v8701
    %10296 = vmatpush.msra.mxu0 %v8693
    %10297 = vmatpush.msra.mxu0 %v8685
    %10298 = vmatmul.f32.gmra.mxu0 %v7523
    %v10299 = vpop.f32.mrf.mxu0
    %v10300 = vadd.f32 %v10280, %v10299
    %10301 = vdwg.mxu0
    %10302 = vmatpush.msra.mxu0 %v8933
    %10303 = vmatpush.msra.mxu0 %v8925
    %10304 = vmatpush.msra.mxu0 %v8917
    %10305 = vmatpush.msra.mxu0 %v8909
    %10306 = vmatpush.msra.mxu0 %v8901
    %10307 = vmatpush.msra.mxu0 %v8893
    %10308 = vmatpush.msra.mxu0 %v8885
    %10309 = vmatpush.msra.mxu0 %v8877
    %10310 = vmatpush.msra.mxu0 %v8869
    %10311 = vmatpush.msra.mxu0 %v8861
    %10312 = vmatpush.msra.mxu0 %v8853
    %10313 = vmatpush.msra.mxu0 %v8845
    %10314 = vmatpush.msra.mxu0 %v8837
    %10315 = vmatpush.msra.mxu0 %v8829
    %10316 = vmatpush.msra.mxu0 %v8821
    %10317 = vmatpush.msra.mxu0 %v8813
    %10318 = vmatmul.f32.gmra.mxu0 %v7524
    %v10319 = vpop.f32.mrf.mxu0
    %v10320 = vadd.f32 %v10300, %v10319
    %10321 = vdwg.mxu0
    %10322 = vmatpush.msra.mxu0 %v9061
    %10323 = vmatpush.msra.mxu0 %v9053
    %10324 = vmatpush.msra.mxu0 %v9045
    %10325 = vmatpush.msra.mxu0 %v9037
    %10326 = vmatpush.msra.mxu0 %v9029
    %10327 = vmatpush.msra.mxu0 %v9021
    %10328 = vmatpush.msra.mxu0 %v9013
    %10329 = vmatpush.msra.mxu0 %v9005
    %10330 = vmatpush.msra.mxu0 %v8997
    %10331 = vmatpush.msra.mxu0 %v8989
    %10332 = vmatpush.msra.mxu0 %v8981
    %10333 = vmatpush.msra.mxu0 %v8973
    %10334 = vmatpush.msra.mxu0 %v8965
    %10335 = vmatpush.msra.mxu0 %v8957
    %10336 = vmatpush.msra.mxu0 %v8949
    %10337 = vmatpush.msra.mxu0 %v8941
    %10338 = vmatmul.f32.gmra.mxu0 %v7525
    %v10339 = vpop.f32.mrf.mxu0
    %v10340 = vadd.f32 %v10320, %v10339
    %10341 = vdwg.mxu0
    %v10342 = vrot.slane %v9220, 4
    %v10343 = vadd.f32 %v9220, %v10342
    %v10344 = vrot.slane %v10343, 2
    %v10345 = vadd.f32 %v10343, %v10344
    %v10346 = vrot.slane %v10345, 1
    %v10347 = vadd.f32 %v10345, %v10346
    %v10348 = vrot.slane %v9380, 4
    %v10349 = vadd.f32 %v9380, %v10348
    %v10350 = vrot.slane %v10349, 2
    %v10351 = vadd.f32 %v10349, %v10350
    %v10352 = vrot.slane %v10351, 1
    %v10353 = vadd.f32 %v10351, %v10352
    %v10354 = vrot.slane %v9540, 4
    %v10355 = vadd.f32 %v9540, %v10354
    %v10356 = vrot.slane %v10355, 2
    %v10357 = vadd.f32 %v10355, %v10356
    %v10358 = vrot.slane %v10357, 1
    %v10359 = vadd.f32 %v10357, %v10358
    %v10360 = vrot.slane %v9700, 4
    %v10361 = vadd.f32 %v9700, %v10360
    %v10362 = vrot.slane %v10361, 2
    %v10363 = vadd.f32 %v10361, %v10362
    %v10364 = vrot.slane %v10363, 1
    %v10365 = vadd.f32 %v10363, %v10364
    %v10366 = vrot.slane %v9860, 4
    %v10367 = vadd.f32 %v9860, %v10366
    %v10368 = vrot.slane %v10367, 2
    %v10369 = vadd.f32 %v10367, %v10368
    %v10370 = vrot.slane %v10369, 1
    %v10371 = vadd.f32 %v10369, %v10370
    %v10372 = vrot.slane %v10020, 4
    %v10373 = vadd.f32 %v10020, %v10372
    %v10374 = vrot.slane %v10373, 2
    %v10375 = vadd.f32 %v10373, %v10374
    %v10376 = vrot.slane %v10375, 1
    %v10377 = vadd.f32 %v10375, %v10376
    %v10378 = vrot.slane %v10180, 4
    %v10379 = vadd.f32 %v10180, %v10378
    %v10380 = vrot.slane %v10379, 2
    %v10381 = vadd.f32 %v10379, %v10380
    %v10382 = vrot.slane %v10381, 1
    %v10383 = vadd.f32 %v10381, %v10382
    %v10384 = vrot.slane %v10340, 4
    %v10385 = vadd.f32 %v10340, %v10384
    %v10386 = vrot.slane %v10385, 2
    %v10387 = vadd.f32 %v10385, %v10386
    %v10388 = vrot.slane %v10387, 1
    %v10389 = vadd.f32 %v10387, %v10388
    %v10390 = vmul.f32 %v10347, %v1245
    %v10391 = vmul.f32 %v10353, %v1245
    %v10392 = vmul.f32 %v10359, %v1245
    %v10393 = vmul.f32 %v10365, %v1245
    %v10394 = vmul.f32 %v10371, %v1245
    %v10395 = vmul.f32 %v10377, %v1245
    %v10396 = vmul.f32 %v10383, %v1245
    %v10397 = vmul.f32 %v10389, %v1245
    %v10398 = vsub.f32 %v9220, %v10390
    %v10399 = vsub.f32 %v9380, %v10391
    %v10400 = vsub.f32 %v9540, %v10392
    %v10401 = vsub.f32 %v9700, %v10393
    %v10402 = vsub.f32 %v9860, %v10394
    %v10403 = vsub.f32 %v10020, %v10395
    %v10404 = vsub.f32 %v10180, %v10396
    %v10405 = vsub.f32 %v10340, %v10397
    %v10406 = vmul.f32 %v10398, %v10398
    %v10407 = vmul.f32 %v10399, %v10399
    %v10408 = vmul.f32 %v10400, %v10400
    %v10409 = vmul.f32 %v10401, %v10401
    %v10410 = vmul.f32 %v10402, %v10402
    %v10411 = vmul.f32 %v10403, %v10403
    %v10412 = vmul.f32 %v10404, %v10404
    %v10413 = vmul.f32 %v10405, %v10405
    %v10414 = vrot.slane %v10406, 4
    %v10415 = vadd.f32 %v10406, %v10414
    %v10416 = vrot.slane %v10415, 2
    %v10417 = vadd.f32 %v10415, %v10416
    %v10418 = vrot.slane %v10417, 1
    %v10419 = vadd.f32 %v10417, %v10418
    %v10420 = vrot.slane %v10407, 4
    %v10421 = vadd.f32 %v10407, %v10420
    %v10422 = vrot.slane %v10421, 2
    %v10423 = vadd.f32 %v10421, %v10422
    %v10424 = vrot.slane %v10423, 1
    %v10425 = vadd.f32 %v10423, %v10424
    %v10426 = vrot.slane %v10408, 4
    %v10427 = vadd.f32 %v10408, %v10426
    %v10428 = vrot.slane %v10427, 2
    %v10429 = vadd.f32 %v10427, %v10428
    %v10430 = vrot.slane %v10429, 1
    %v10431 = vadd.f32 %v10429, %v10430
    %v10432 = vrot.slane %v10409, 4
    %v10433 = vadd.f32 %v10409, %v10432
    %v10434 = vrot.slane %v10433, 2
    %v10435 = vadd.f32 %v10433, %v10434
    %v10436 = vrot.slane %v10435, 1
    %v10437 = vadd.f32 %v10435, %v10436
    %v10438 = vrot.slane %v10410, 4
    %v10439 = vadd.f32 %v10410, %v10438
    %v10440 = vrot.slane %v10439, 2
    %v10441 = vadd.f32 %v10439, %v10440
    %v10442 = vrot.slane %v10441, 1
    %v10443 = vadd.f32 %v10441, %v10442
    %v10444 = vrot.slane %v10411, 4
    %v10445 = vadd.f32 %v10411, %v10444
    %v10446 = vrot.slane %v10445, 2
    %v10447 = vadd.f32 %v10445, %v10446
    %v10448 = vrot.slane %v10447, 1
    %v10449 = vadd.f32 %v10447, %v10448
    %v10450 = vrot.slane %v10412, 4
    %v10451 = vadd.f32 %v10412, %v10450
    %v10452 = vrot.slane %v10451, 2
    %v10453 = vadd.f32 %v10451, %v10452
    %v10454 = vrot.slane %v10453, 1
    %v10455 = vadd.f32 %v10453, %v10454
    %v10456 = vrot.slane %v10413, 4
    %v10457 = vadd.f32 %v10413, %v10456
    %v10458 = vrot.slane %v10457, 2
    %v10459 = vadd.f32 %v10457, %v10458
    %v10460 = vrot.slane %v10459, 1
    %v10461 = vadd.f32 %v10459, %v10460
    %v10462 = vmul.f32 %v10419, %v1245
    %v10463 = vmul.f32 %v10425, %v1245
    %v10464 = vmul.f32 %v10431, %v1245
    %v10465 = vmul.f32 %v10437, %v1245
    %v10466 = vmul.f32 %v10443, %v1245
    %v10467 = vmul.f32 %v10449, %v1245
    %v10468 = vmul.f32 %v10455, %v1245
    %v10469 = vmul.f32 %v10461, %v1245
    %v10470 = vadd.f32 %v10462, 1e-05
    %v10471 = vadd.f32 %v10463, 1e-05
    %v10472 = vadd.f32 %v10464, 1e-05
    %v10473 = vadd.f32 %v10465, 1e-05
    %v10474 = vadd.f32 %v10466, 1e-05
    %v10475 = vadd.f32 %v10467, 1e-05
    %v10476 = vadd.f32 %v10468, 1e-05
    %v10477 = vadd.f32 %v10469, 1e-05
    %v10478 = vrsqrt.pop %v10470
    %v10479 = vmul.f32 %v10478, %v10470
    %v10480 = vmul.f32 %v10479, %v10478
    %v10481 = vmul.f32 0.5, %v10480
    %v10482 = vsub.f32 1.5, %v10481
    %v10483 = vmul.f32 %v10478, %v10482
    %vm10484 = vweird.f32 %v10470
    %vm10485 = vweird.f32 %v10478
    %vm10486 = vmor %vm10484, %vm10485
    %v10487 = vsel %vm10486, %v10478, %v10483
    %v10488 = vrsqrt.pop %v10471
    %v10489 = vmul.f32 %v10488, %v10471
    %v10490 = vmul.f32 %v10489, %v10488
    %v10491 = vmul.f32 0.5, %v10490
    %v10492 = vsub.f32 1.5, %v10491
    %v10493 = vmul.f32 %v10488, %v10492
    %vm10494 = vweird.f32 %v10471
    %vm10495 = vweird.f32 %v10488
    %vm10496 = vmor %vm10494, %vm10495
    %v10497 = vsel %vm10496, %v10488, %v10493
    %v10498 = vrsqrt.pop %v10472
    %v10499 = vmul.f32 %v10498, %v10472
    %v10500 = vmul.f32 %v10499, %v10498
    %v10501 = vmul.f32 0.5, %v10500
    %v10502 = vsub.f32 1.5, %v10501
    %v10503 = vmul.f32 %v10498, %v10502
    %vm10504 = vweird.f32 %v10472
    %vm10505 = vweird.f32 %v10498
    %vm10506 = vmor %vm10504, %vm10505
    %v10507 = vsel %vm10506, %v10498, %v10503
    %v10508 = vrsqrt.pop %v10473
    %v10509 = vmul.f32 %v10508, %v10473
    %v10510 = vmul.f32 %v10509, %v10508
    %v10511 = vmul.f32 0.5, %v10510
    %v10512 = vsub.f32 1.5, %v10511
    %v10513 = vmul.f32 %v10508, %v10512
    %vm10514 = vweird.f32 %v10473
    %vm10515 = vweird.f32 %v10508
    %vm10516 = vmor %vm10514, %vm10515
    %v10517 = vsel %vm10516, %v10508, %v10513
    %v10518 = vrsqrt.pop %v10474
    %v10519 = vmul.f32 %v10518, %v10474
    %v10520 = vmul.f32 %v10519, %v10518
    %v10521 = vmul.f32 0.5, %v10520
    %v10522 = vsub.f32 1.5, %v10521
    %v10523 = vmul.f32 %v10518, %v10522
    %vm10524 = vweird.f32 %v10474
    %vm10525 = vweird.f32 %v10518
    %vm10526 = vmor %vm10524, %vm10525
    %v10527 = vsel %vm10526, %v10518, %v10523
    %v10528 = vrsqrt.pop %v10475
    %v10529 = vmul.f32 %v10528, %v10475
    %v10530 = vmul.f32 %v10529, %v10528
    %v10531 = vmul.f32 0.5, %v10530
    %v10532 = vsub.f32 1.5, %v10531
    %v10533 = vmul.f32 %v10528, %v10532
    %vm10534 = vweird.f32 %v10475
    %vm10535 = vweird.f32 %v10528
    %vm10536 = vmor %vm10534, %vm10535
    %v10537 = vsel %vm10536, %v10528, %v10533
    %v10538 = vrsqrt.pop %v10476
    %v10539 = vmul.f32 %v10538, %v10476
    %v10540 = vmul.f32 %v10539, %v10538
    %v10541 = vmul.f32 0.5, %v10540
    %v10542 = vsub.f32 1.5, %v10541
    %v10543 = vmul.f32 %v10538, %v10542
    %vm10544 = vweird.f32 %v10476
    %vm10545 = vweird.f32 %v10538
    %vm10546 = vmor %vm10544, %vm10545
    %v10547 = vsel %vm10546, %v10538, %v10543
    %v10548 = vrsqrt.pop %v10477
    %v10549 = vmul.f32 %v10548, %v10477
    %v10550 = vmul.f32 %v10549, %v10548
    %v10551 = vmul.f32 0.5, %v10550
    %v10552 = vsub.f32 1.5, %v10551
    %v10553 = vmul.f32 %v10548, %v10552
    %vm10554 = vweird.f32 %v10477
    %vm10555 = vweird.f32 %v10548
    %vm10556 = vmor %vm10554, %vm10555
    %v10557 = vsel %vm10556, %v10548, %v10553
    %v10558 = vmul.f32 %v10398, %v10487
    %v10559 = vmul.f32 %v10399, %v10497
    %v10560 = vmul.f32 %v10400, %v10507
    %v10561 = vmul.f32 %v10401, %v10517
    %v10562 = vmul.f32 %v10402, %v10527
    %v10563 = vmul.f32 %v10403, %v10537
    %v10564 = vmul.f32 %v10404, %v10547
    %v10565 = vmul.f32 %v10405, %v10557
    %v10566 = vmax.f32 %v10558, 0.0
    %v10567 = vmax.f32 %v10559, 0.0
    %v10568 = vmax.f32 %v10560, 0.0
    %v10569 = vmax.f32 %v10561, 0.0
    %v10570 = vmax.f32 %v10562, 0.0
    %v10571 = vmax.f32 %v10563, 0.0
    %v10572 = vmax.f32 %v10564, 0.0
    %v10573 = vmax.f32 %v10565, 0.0
    %v10574 = vld [vmem:[#allocation11] sm:$0xff]
    %v10575 = vld [vmem:[#allocation11 + $0x8] sm:$0xff]
    %v10576 = vld [vmem:[#allocation11 + $0x10] sm:$0xff]
    %v10577 = vld [vmem:[#allocation11 + $0x18] sm:$0xff]
    %v10578 = vld [vmem:[#allocation11 + $0x20] sm:$0xff]
    %v10579 = vld [vmem:[#allocation11 + $0x28] sm:$0xff]
    %v10580 = vld [vmem:[#allocation11 + $0x30] sm:$0xff]
    %v10581 = vld [vmem:[#allocation11 + $0x38] sm:$0xff]
    %v10582 = vld [vmem:[#allocation11 + $0x40] sm:$0xff]
    %v10583 = vld [vmem:[#allocation11 + $0x48] sm:$0xff]
    %v10584 = vld [vmem:[#allocation11 + $0x50] sm:$0xff]
    %v10585 = vld [vmem:[#allocation11 + $0x58] sm:$0xff]
    %v10586 = vld [vmem:[#allocation11 + $0x60] sm:$0xff]
    %v10587 = vld [vmem:[#allocation11 + $0x68] sm:$0xff]
    %v10588 = vld [vmem:[#allocation11 + $0x70] sm:$0xff]
    %v10589 = vld [vmem:[#allocation11 + $0x78] sm:$0xff]
    %v10590 = vld [vmem:[#allocation11 + $0x80] sm:$0xff]
    %v10591 = vld [vmem:[#allocation11 + $0x88] sm:$0xff]
    %v10592 = vld [vmem:[#allocation11 + $0x90] sm:$0xff]
    %v10593 = vld [vmem:[#allocation11 + $0x98] sm:$0xff]
    %v10594 = vld [vmem:[#allocation11 + $0xa0] sm:$0xff]
    %v10595 = vld [vmem:[#allocation11 + $0xa8] sm:$0xff]
    %v10596 = vld [vmem:[#allocation11 + $0xb0] sm:$0xff]
    %v10597 = vld [vmem:[#allocation11 + $0xb8] sm:$0xff]
    %v10598 = vld [vmem:[#allocation11 + $0xc0] sm:$0xff]
    %v10599 = vld [vmem:[#allocation11 + $0xc8] sm:$0xff]
    %v10600 = vld [vmem:[#allocation11 + $0xd0] sm:$0xff]
    %v10601 = vld [vmem:[#allocation11 + $0xd8] sm:$0xff]
    %v10602 = vld [vmem:[#allocation11 + $0xe0] sm:$0xff]
    %v10603 = vld [vmem:[#allocation11 + $0xe8] sm:$0xff]
    %v10604 = vld [vmem:[#allocation11 + $0xf0] sm:$0xff]
    %v10605 = vld [vmem:[#allocation11 + $0xf8] sm:$0xff]
    %v10606 = vld [vmem:[#allocation11 + $0x100] sm:$0xff]
    %v10607 = vld [vmem:[#allocation11 + $0x108] sm:$0xff]
    %v10608 = vld [vmem:[#allocation11 + $0x110] sm:$0xff]
    %v10609 = vld [vmem:[#allocation11 + $0x118] sm:$0xff]
    %v10610 = vld [vmem:[#allocation11 + $0x120] sm:$0xff]
    %v10611 = vld [vmem:[#allocation11 + $0x128] sm:$0xff]
    %v10612 = vld [vmem:[#allocation11 + $0x130] sm:$0xff]
    %v10613 = vld [vmem:[#allocation11 + $0x138] sm:$0xff]
    %v10614 = vld [vmem:[#allocation11 + $0x140] sm:$0xff]
    %v10615 = vld [vmem:[#allocation11 + $0x148] sm:$0xff]
    %v10616 = vld [vmem:[#allocation11 + $0x150] sm:$0xff]
    %v10617 = vld [vmem:[#allocation11 + $0x158] sm:$0xff]
    %v10618 = vld [vmem:[#allocation11 + $0x160] sm:$0xff]
    %v10619 = vld [vmem:[#allocation11 + $0x168] sm:$0xff]
    %v10620 = vld [vmem:[#allocation11 + $0x170] sm:$0xff]
    %v10621 = vld [vmem:[#allocation11 + $0x178] sm:$0xff]
    %v10622 = vld [vmem:[#allocation11 + $0x180] sm:$0xff]
    %v10623 = vld [vmem:[#allocation11 + $0x188] sm:$0xff]
    %v10624 = vld [vmem:[#allocation11 + $0x190] sm:$0xff]
    %v10625 = vld [vmem:[#allocation11 + $0x198] sm:$0xff]
    %v10626 = vld [vmem:[#allocation11 + $0x1a0] sm:$0xff]
    %v10627 = vld [vmem:[#allocation11 + $0x1a8] sm:$0xff]
    %v10628 = vld [vmem:[#allocation11 + $0x1b0] sm:$0xff]
    %v10629 = vld [vmem:[#allocation11 + $0x1b8] sm:$0xff]
    %v10630 = vld [vmem:[#allocation11 + $0x1c0] sm:$0xff]
    %v10631 = vld [vmem:[#allocation11 + $0x1c8] sm:$0xff]
    %v10632 = vld [vmem:[#allocation11 + $0x1d0] sm:$0xff]
    %v10633 = vld [vmem:[#allocation11 + $0x1d8] sm:$0xff]
    %v10634 = vld [vmem:[#allocation11 + $0x1e0] sm:$0xff]
    %v10635 = vld [vmem:[#allocation11 + $0x1e8] sm:$0xff]
    %v10636 = vld [vmem:[#allocation11 + $0x1f0] sm:$0xff]
    %v10637 = vld [vmem:[#allocation11 + $0x1f8] sm:$0xff]
    %v10638 = vld [vmem:[#allocation11 + $0x200] sm:$0xff]
    %v10639 = vld [vmem:[#allocation11 + $0x208] sm:$0xff]
    %v10640 = vld [vmem:[#allocation11 + $0x210] sm:$0xff]
    %v10641 = vld [vmem:[#allocation11 + $0x218] sm:$0xff]
    %v10642 = vld [vmem:[#allocation11 + $0x220] sm:$0xff]
    %v10643 = vld [vmem:[#allocation11 + $0x228] sm:$0xff]
    %v10644 = vld [vmem:[#allocation11 + $0x230] sm:$0xff]
    %v10645 = vld [vmem:[#allocation11 + $0x238] sm:$0xff]
    %v10646 = vld [vmem:[#allocation11 + $0x240] sm:$0xff]
    %v10647 = vld [vmem:[#allocation11 + $0x248] sm:$0xff]
    %v10648 = vld [vmem:[#allocation11 + $0x250] sm:$0xff]
    %v10649 = vld [vmem:[#allocation11 + $0x258] sm:$0xff]
    %v10650 = vld [vmem:[#allocation11 + $0x260] sm:$0xff]
    %v10651 = vld [vmem:[#allocation11 + $0x268] sm:$0xff]
    %v10652 = vld [vmem:[#allocation11 + $0x270] sm:$0xff]
    %v10653 = vld [vmem:[#allocation11 + $0x278] sm:$0xff]
    %v10654 = vld [vmem:[#allocation11 + $0x280] sm:$0xff]
    %v10655 = vld [vmem:[#allocation11 + $0x288] sm:$0xff]
    %v10656 = vld [vmem:[#allocation11 + $0x290] sm:$0xff]
    %v10657 = vld [vmem:[#allocation11 + $0x298] sm:$0xff]
    %v10658 = vld [vmem:[#allocation11 + $0x2a0] sm:$0xff]
    %v10659 = vld [vmem:[#allocation11 + $0x2a8] sm:$0xff]
    %v10660 = vld [vmem:[#allocation11 + $0x2b0] sm:$0xff]
    %v10661 = vld [vmem:[#allocation11 + $0x2b8] sm:$0xff]
    %v10662 = vld [vmem:[#allocation11 + $0x2c0] sm:$0xff]
    %v10663 = vld [vmem:[#allocation11 + $0x2c8] sm:$0xff]
    %v10664 = vld [vmem:[#allocation11 + $0x2d0] sm:$0xff]
    %v10665 = vld [vmem:[#allocation11 + $0x2d8] sm:$0xff]
    %v10666 = vld [vmem:[#allocation11 + $0x2e0] sm:$0xff]
    %v10667 = vld [vmem:[#allocation11 + $0x2e8] sm:$0xff]
    %v10668 = vld [vmem:[#allocation11 + $0x2f0] sm:$0xff]
    %v10669 = vld [vmem:[#allocation11 + $0x2f8] sm:$0xff]
    %v10670 = vld [vmem:[#allocation11 + $0x300] sm:$0xff]
    %v10671 = vld [vmem:[#allocation11 + $0x308] sm:$0xff]
    %v10672 = vld [vmem:[#allocation11 + $0x310] sm:$0xff]
    %v10673 = vld [vmem:[#allocation11 + $0x318] sm:$0xff]
    %v10674 = vld [vmem:[#allocation11 + $0x320] sm:$0xff]
    %v10675 = vld [vmem:[#allocation11 + $0x328] sm:$0xff]
    %v10676 = vld [vmem:[#allocation11 + $0x330] sm:$0xff]
    %v10677 = vld [vmem:[#allocation11 + $0x338] sm:$0xff]
    %v10678 = vld [vmem:[#allocation11 + $0x340] sm:$0xff]
    %v10679 = vld [vmem:[#allocation11 + $0x348] sm:$0xff]
    %v10680 = vld [vmem:[#allocation11 + $0x350] sm:$0xff]
    %v10681 = vld [vmem:[#allocation11 + $0x358] sm:$0xff]
    %v10682 = vld [vmem:[#allocation11 + $0x360] sm:$0xff]
    %v10683 = vld [vmem:[#allocation11 + $0x368] sm:$0xff]
    %v10684 = vld [vmem:[#allocation11 + $0x370] sm:$0xff]
    %v10685 = vld [vmem:[#allocation11 + $0x378] sm:$0xff]
    %v10686 = vld [vmem:[#allocation11 + $0x380] sm:$0xff]
    %v10687 = vld [vmem:[#allocation11 + $0x388] sm:$0xff]
    %v10688 = vld [vmem:[#allocation11 + $0x390] sm:$0xff]
    %v10689 = vld [vmem:[#allocation11 + $0x398] sm:$0xff]
    %v10690 = vld [vmem:[#allocation11 + $0x3a0] sm:$0xff]
    %v10691 = vld [vmem:[#allocation11 + $0x3a8] sm:$0xff]
    %v10692 = vld [vmem:[#allocation11 + $0x3b0] sm:$0xff]
    %v10693 = vld [vmem:[#allocation11 + $0x3b8] sm:$0xff]
    %v10694 = vld [vmem:[#allocation11 + $0x3c0] sm:$0xff]
    %v10695 = vld [vmem:[#allocation11 + $0x3c8] sm:$0xff]
    %v10696 = vld [vmem:[#allocation11 + $0x3d0] sm:$0xff]
    %v10697 = vld [vmem:[#allocation11 + $0x3d8] sm:$0xff]
    %v10698 = vld [vmem:[#allocation11 + $0x3e0] sm:$0xff]
    %v10699 = vld [vmem:[#allocation11 + $0x3e8] sm:$0xff]
    %v10700 = vld [vmem:[#allocation11 + $0x3f0] sm:$0xff]
    %v10701 = vld [vmem:[#allocation11 + $0x3f8] sm:$0xff]
    %v10702 = vunpack.c.l.bf16 %v10574
    %v10703 = vunpack.c.h.bf16 %v10574
    %v10704 = vunpack.c.l.bf16 %v10575
    %v10705 = vunpack.c.h.bf16 %v10575
    %v10706 = vunpack.c.l.bf16 %v10576
    %v10707 = vunpack.c.h.bf16 %v10576
    %v10708 = vunpack.c.l.bf16 %v10577
    %v10709 = vunpack.c.h.bf16 %v10577
    %v10710 = vunpack.c.l.bf16 %v10578
    %v10711 = vunpack.c.h.bf16 %v10578
    %v10712 = vunpack.c.l.bf16 %v10579
    %v10713 = vunpack.c.h.bf16 %v10579
    %v10714 = vunpack.c.l.bf16 %v10580
    %v10715 = vunpack.c.h.bf16 %v10580
    %v10716 = vunpack.c.l.bf16 %v10581
    %v10717 = vunpack.c.h.bf16 %v10581
    %v10718 = vunpack.c.l.bf16 %v10582
    %v10719 = vunpack.c.h.bf16 %v10582
    %v10720 = vunpack.c.l.bf16 %v10583
    %v10721 = vunpack.c.h.bf16 %v10583
    %v10722 = vunpack.c.l.bf16 %v10584
    %v10723 = vunpack.c.h.bf16 %v10584
    %v10724 = vunpack.c.l.bf16 %v10585
    %v10725 = vunpack.c.h.bf16 %v10585
    %v10726 = vunpack.c.l.bf16 %v10586
    %v10727 = vunpack.c.h.bf16 %v10586
    %v10728 = vunpack.c.l.bf16 %v10587
    %v10729 = vunpack.c.h.bf16 %v10587
    %v10730 = vunpack.c.l.bf16 %v10588
    %v10731 = vunpack.c.h.bf16 %v10588
    %v10732 = vunpack.c.l.bf16 %v10589
    %v10733 = vunpack.c.h.bf16 %v10589
    %v10734 = vunpack.c.l.bf16 %v10590
    %v10735 = vunpack.c.h.bf16 %v10590
    %v10736 = vunpack.c.l.bf16 %v10591
    %v10737 = vunpack.c.h.bf16 %v10591
    %v10738 = vunpack.c.l.bf16 %v10592
    %v10739 = vunpack.c.h.bf16 %v10592
    %v10740 = vunpack.c.l.bf16 %v10593
    %v10741 = vunpack.c.h.bf16 %v10593
    %v10742 = vunpack.c.l.bf16 %v10594
    %v10743 = vunpack.c.h.bf16 %v10594
    %v10744 = vunpack.c.l.bf16 %v10595
    %v10745 = vunpack.c.h.bf16 %v10595
    %v10746 = vunpack.c.l.bf16 %v10596
    %v10747 = vunpack.c.h.bf16 %v10596
    %v10748 = vunpack.c.l.bf16 %v10597
    %v10749 = vunpack.c.h.bf16 %v10597
    %v10750 = vunpack.c.l.bf16 %v10598
    %v10751 = vunpack.c.h.bf16 %v10598
    %v10752 = vunpack.c.l.bf16 %v10599
    %v10753 = vunpack.c.h.bf16 %v10599
    %v10754 = vunpack.c.l.bf16 %v10600
    %v10755 = vunpack.c.h.bf16 %v10600
    %v10756 = vunpack.c.l.bf16 %v10601
    %v10757 = vunpack.c.h.bf16 %v10601
    %v10758 = vunpack.c.l.bf16 %v10602
    %v10759 = vunpack.c.h.bf16 %v10602
    %v10760 = vunpack.c.l.bf16 %v10603
    %v10761 = vunpack.c.h.bf16 %v10603
    %v10762 = vunpack.c.l.bf16 %v10604
    %v10763 = vunpack.c.h.bf16 %v10604
    %v10764 = vunpack.c.l.bf16 %v10605
    %v10765 = vunpack.c.h.bf16 %v10605
    %v10766 = vunpack.c.l.bf16 %v10606
    %v10767 = vunpack.c.h.bf16 %v10606
    %v10768 = vunpack.c.l.bf16 %v10607
    %v10769 = vunpack.c.h.bf16 %v10607
    %v10770 = vunpack.c.l.bf16 %v10608
    %v10771 = vunpack.c.h.bf16 %v10608
    %v10772 = vunpack.c.l.bf16 %v10609
    %v10773 = vunpack.c.h.bf16 %v10609
    %v10774 = vunpack.c.l.bf16 %v10610
    %v10775 = vunpack.c.h.bf16 %v10610
    %v10776 = vunpack.c.l.bf16 %v10611
    %v10777 = vunpack.c.h.bf16 %v10611
    %v10778 = vunpack.c.l.bf16 %v10612
    %v10779 = vunpack.c.h.bf16 %v10612
    %v10780 = vunpack.c.l.bf16 %v10613
    %v10781 = vunpack.c.h.bf16 %v10613
    %v10782 = vunpack.c.l.bf16 %v10614
    %v10783 = vunpack.c.h.bf16 %v10614
    %v10784 = vunpack.c.l.bf16 %v10615
    %v10785 = vunpack.c.h.bf16 %v10615
    %v10786 = vunpack.c.l.bf16 %v10616
    %v10787 = vunpack.c.h.bf16 %v10616
    %v10788 = vunpack.c.l.bf16 %v10617
    %v10789 = vunpack.c.h.bf16 %v10617
    %v10790 = vunpack.c.l.bf16 %v10618
    %v10791 = vunpack.c.h.bf16 %v10618
    %v10792 = vunpack.c.l.bf16 %v10619
    %v10793 = vunpack.c.h.bf16 %v10619
    %v10794 = vunpack.c.l.bf16 %v10620
    %v10795 = vunpack.c.h.bf16 %v10620
    %v10796 = vunpack.c.l.bf16 %v10621
    %v10797 = vunpack.c.h.bf16 %v10621
    %v10798 = vunpack.c.l.bf16 %v10622
    %v10799 = vunpack.c.h.bf16 %v10622
    %v10800 = vunpack.c.l.bf16 %v10623
    %v10801 = vunpack.c.h.bf16 %v10623
    %v10802 = vunpack.c.l.bf16 %v10624
    %v10803 = vunpack.c.h.bf16 %v10624
    %v10804 = vunpack.c.l.bf16 %v10625
    %v10805 = vunpack.c.h.bf16 %v10625
    %v10806 = vunpack.c.l.bf16 %v10626
    %v10807 = vunpack.c.h.bf16 %v10626
    %v10808 = vunpack.c.l.bf16 %v10627
    %v10809 = vunpack.c.h.bf16 %v10627
    %v10810 = vunpack.c.l.bf16 %v10628
    %v10811 = vunpack.c.h.bf16 %v10628
    %v10812 = vunpack.c.l.bf16 %v10629
    %v10813 = vunpack.c.h.bf16 %v10629
    %v10814 = vunpack.c.l.bf16 %v10630
    %v10815 = vunpack.c.h.bf16 %v10630
    %v10816 = vunpack.c.l.bf16 %v10631
    %v10817 = vunpack.c.h.bf16 %v10631
    %v10818 = vunpack.c.l.bf16 %v10632
    %v10819 = vunpack.c.h.bf16 %v10632
    %v10820 = vunpack.c.l.bf16 %v10633
    %v10821 = vunpack.c.h.bf16 %v10633
    %v10822 = vunpack.c.l.bf16 %v10634
    %v10823 = vunpack.c.h.bf16 %v10634
    %v10824 = vunpack.c.l.bf16 %v10635
    %v10825 = vunpack.c.h.bf16 %v10635
    %v10826 = vunpack.c.l.bf16 %v10636
    %v10827 = vunpack.c.h.bf16 %v10636
    %v10828 = vunpack.c.l.bf16 %v10637
    %v10829 = vunpack.c.h.bf16 %v10637
    %v10830 = vunpack.c.l.bf16 %v10638
    %v10831 = vunpack.c.h.bf16 %v10638
    %v10832 = vunpack.c.l.bf16 %v10639
    %v10833 = vunpack.c.h.bf16 %v10639
    %v10834 = vunpack.c.l.bf16 %v10640
    %v10835 = vunpack.c.h.bf16 %v10640
    %v10836 = vunpack.c.l.bf16 %v10641
    %v10837 = vunpack.c.h.bf16 %v10641
    %v10838 = vunpack.c.l.bf16 %v10642
    %v10839 = vunpack.c.h.bf16 %v10642
    %v10840 = vunpack.c.l.bf16 %v10643
    %v10841 = vunpack.c.h.bf16 %v10643
    %v10842 = vunpack.c.l.bf16 %v10644
    %v10843 = vunpack.c.h.bf16 %v10644
    %v10844 = vunpack.c.l.bf16 %v10645
    %v10845 = vunpack.c.h.bf16 %v10645
    %v10846 = vunpack.c.l.bf16 %v10646
    %v10847 = vunpack.c.h.bf16 %v10646
    %v10848 = vunpack.c.l.bf16 %v10647
    %v10849 = vunpack.c.h.bf16 %v10647
    %v10850 = vunpack.c.l.bf16 %v10648
    %v10851 = vunpack.c.h.bf16 %v10648
    %v10852 = vunpack.c.l.bf16 %v10649
    %v10853 = vunpack.c.h.bf16 %v10649
    %v10854 = vunpack.c.l.bf16 %v10650
    %v10855 = vunpack.c.h.bf16 %v10650
    %v10856 = vunpack.c.l.bf16 %v10651
    %v10857 = vunpack.c.h.bf16 %v10651
    %v10858 = vunpack.c.l.bf16 %v10652
    %v10859 = vunpack.c.h.bf16 %v10652
    %v10860 = vunpack.c.l.bf16 %v10653
    %v10861 = vunpack.c.h.bf16 %v10653
    %v10862 = vunpack.c.l.bf16 %v10654
    %v10863 = vunpack.c.h.bf16 %v10654
    %v10864 = vunpack.c.l.bf16 %v10655
    %v10865 = vunpack.c.h.bf16 %v10655
    %v10866 = vunpack.c.l.bf16 %v10656
    %v10867 = vunpack.c.h.bf16 %v10656
    %v10868 = vunpack.c.l.bf16 %v10657
    %v10869 = vunpack.c.h.bf16 %v10657
    %v10870 = vunpack.c.l.bf16 %v10658
    %v10871 = vunpack.c.h.bf16 %v10658
    %v10872 = vunpack.c.l.bf16 %v10659
    %v10873 = vunpack.c.h.bf16 %v10659
    %v10874 = vunpack.c.l.bf16 %v10660
    %v10875 = vunpack.c.h.bf16 %v10660
    %v10876 = vunpack.c.l.bf16 %v10661
    %v10877 = vunpack.c.h.bf16 %v10661
    %v10878 = vunpack.c.l.bf16 %v10662
    %v10879 = vunpack.c.h.bf16 %v10662
    %v10880 = vunpack.c.l.bf16 %v10663
    %v10881 = vunpack.c.h.bf16 %v10663
    %v10882 = vunpack.c.l.bf16 %v10664
    %v10883 = vunpack.c.h.bf16 %v10664
    %v10884 = vunpack.c.l.bf16 %v10665
    %v10885 = vunpack.c.h.bf16 %v10665
    %v10886 = vunpack.c.l.bf16 %v10666
    %v10887 = vunpack.c.h.bf16 %v10666
    %v10888 = vunpack.c.l.bf16 %v10667
    %v10889 = vunpack.c.h.bf16 %v10667
    %v10890 = vunpack.c.l.bf16 %v10668
    %v10891 = vunpack.c.h.bf16 %v10668
    %v10892 = vunpack.c.l.bf16 %v10669
    %v10893 = vunpack.c.h.bf16 %v10669
    %v10894 = vunpack.c.l.bf16 %v10670
    %v10895 = vunpack.c.h.bf16 %v10670
    %v10896 = vunpack.c.l.bf16 %v10671
    %v10897 = vunpack.c.h.bf16 %v10671
    %v10898 = vunpack.c.l.bf16 %v10672
    %v10899 = vunpack.c.h.bf16 %v10672
    %v10900 = vunpack.c.l.bf16 %v10673
    %v10901 = vunpack.c.h.bf16 %v10673
    %v10902 = vunpack.c.l.bf16 %v10674
    %v10903 = vunpack.c.h.bf16 %v10674
    %v10904 = vunpack.c.l.bf16 %v10675
    %v10905 = vunpack.c.h.bf16 %v10675
    %v10906 = vunpack.c.l.bf16 %v10676
    %v10907 = vunpack.c.h.bf16 %v10676
    %v10908 = vunpack.c.l.bf16 %v10677
    %v10909 = vunpack.c.h.bf16 %v10677
    %v10910 = vunpack.c.l.bf16 %v10678
    %v10911 = vunpack.c.h.bf16 %v10678
    %v10912 = vunpack.c.l.bf16 %v10679
    %v10913 = vunpack.c.h.bf16 %v10679
    %v10914 = vunpack.c.l.bf16 %v10680
    %v10915 = vunpack.c.h.bf16 %v10680
    %v10916 = vunpack.c.l.bf16 %v10681
    %v10917 = vunpack.c.h.bf16 %v10681
    %v10918 = vunpack.c.l.bf16 %v10682
    %v10919 = vunpack.c.h.bf16 %v10682
    %v10920 = vunpack.c.l.bf16 %v10683
    %v10921 = vunpack.c.h.bf16 %v10683
    %v10922 = vunpack.c.l.bf16 %v10684
    %v10923 = vunpack.c.h.bf16 %v10684
    %v10924 = vunpack.c.l.bf16 %v10685
    %v10925 = vunpack.c.h.bf16 %v10685
    %v10926 = vunpack.c.l.bf16 %v10686
    %v10927 = vunpack.c.h.bf16 %v10686
    %v10928 = vunpack.c.l.bf16 %v10687
    %v10929 = vunpack.c.h.bf16 %v10687
    %v10930 = vunpack.c.l.bf16 %v10688
    %v10931 = vunpack.c.h.bf16 %v10688
    %v10932 = vunpack.c.l.bf16 %v10689
    %v10933 = vunpack.c.h.bf16 %v10689
    %v10934 = vunpack.c.l.bf16 %v10690
    %v10935 = vunpack.c.h.bf16 %v10690
    %v10936 = vunpack.c.l.bf16 %v10691
    %v10937 = vunpack.c.h.bf16 %v10691
    %v10938 = vunpack.c.l.bf16 %v10692
    %v10939 = vunpack.c.h.bf16 %v10692
    %v10940 = vunpack.c.l.bf16 %v10693
    %v10941 = vunpack.c.h.bf16 %v10693
    %v10942 = vunpack.c.l.bf16 %v10694
    %v10943 = vunpack.c.h.bf16 %v10694
    %v10944 = vunpack.c.l.bf16 %v10695
    %v10945 = vunpack.c.h.bf16 %v10695
    %v10946 = vunpack.c.l.bf16 %v10696
    %v10947 = vunpack.c.h.bf16 %v10696
    %v10948 = vunpack.c.l.bf16 %v10697
    %v10949 = vunpack.c.h.bf16 %v10697
    %v10950 = vunpack.c.l.bf16 %v10698
    %v10951 = vunpack.c.h.bf16 %v10698
    %v10952 = vunpack.c.l.bf16 %v10699
    %v10953 = vunpack.c.h.bf16 %v10699
    %v10954 = vunpack.c.l.bf16 %v10700
    %v10955 = vunpack.c.h.bf16 %v10700
    %v10956 = vunpack.c.l.bf16 %v10701
    %v10957 = vunpack.c.h.bf16 %v10701
    %v10958 = vld [vmem:[#allocation13] sm:$0x3]
    %v10960 = vperm.slane %v10958, 0
    %v10961 = vperm.slane %v10958, 1
    %10964 = vmatpush.msra.mxu0 %v10732
    %10965 = vmatpush.msra.mxu0 %v10730
    %10966 = vmatpush.msra.mxu0 %v10728
    %10967 = vmatpush.msra.mxu0 %v10726
    %10968 = vmatpush.msra.mxu0 %v10724
    %10969 = vmatpush.msra.mxu0 %v10722
    %10970 = vmatpush.msra.mxu0 %v10720
    %10971 = vmatpush.msra.mxu0 %v10718
    %10972 = vmatpush.msra.mxu0 %v10716
    %10973 = vmatpush.msra.mxu0 %v10714
    %10974 = vmatpush.msra.mxu0 %v10712
    %10975 = vmatpush.msra.mxu0 %v10710
    %10976 = vmatpush.msra.mxu0 %v10708
    %10977 = vmatpush.msra.mxu0 %v10706
    %10978 = vmatpush.msra.mxu0 %v10704
    %10979 = vmatpush.msra.mxu0 %v10702
    %10980 = vmatmul.f32.gmra.mxu0 %v10566
    %v10981 = vpop.f32.mrf.mxu0
    %v10982 = vadd.f32 %v10960, %v10981
    %10983 = vdwg.mxu0
    %10984 = vmatpush.msra.mxu0 %v10764
    %10985 = vmatpush.msra.mxu0 %v10762
    %10986 = vmatpush.msra.mxu0 %v10760
    %10987 = vmatpush.msra.mxu0 %v10758
    %10988 = vmatpush.msra.mxu0 %v10756
    %10989 = vmatpush.msra.mxu0 %v10754
    %10990 = vmatpush.msra.mxu0 %v10752
    %10991 = vmatpush.msra.mxu0 %v10750
    %10992 = vmatpush.msra.mxu0 %v10748
    %10993 = vmatpush.msra.mxu0 %v10746
    %10994 = vmatpush.msra.mxu0 %v10744
    %10995 = vmatpush.msra.mxu0 %v10742
    %10996 = vmatpush.msra.mxu0 %v10740
    %10997 = vmatpush.msra.mxu0 %v10738
    %10998 = vmatpush.msra.mxu0 %v10736
    %10999 = vmatpush.msra.mxu0 %v10734
    %11000 = vmatmul.f32.gmra.mxu0 %v10567
    %v11001 = vpop.f32.mrf.mxu0
    %v11002 = vadd.f32 %v10982, %v11001
    %11003 = vdwg.mxu0
    %11004 = vmatpush.msra.mxu0 %v10796
    %11005 = vmatpush.msra.mxu0 %v10794
    %11006 = vmatpush.msra.mxu0 %v10792
    %11007 = vmatpush.msra.mxu0 %v10790
    %11008 = vmatpush.msra.mxu0 %v10788
    %11009 = vmatpush.msra.mxu0 %v10786
    %11010 = vmatpush.msra.mxu0 %v10784
    %11011 = vmatpush.msra.mxu0 %v10782
    %11012 = vmatpush.msra.mxu0 %v10780
    %11013 = vmatpush.msra.mxu0 %v10778
    %11014 = vmatpush.msra.mxu0 %v10776
    %11015 = vmatpush.msra.mxu0 %v10774
    %11016 = vmatpush.msra.mxu0 %v10772
    %11017 = vmatpush.msra.mxu0 %v10770
    %11018 = vmatpush.msra.mxu0 %v10768
    %11019 = vmatpush.msra.mxu0 %v10766
    %11020 = vmatmul.f32.gmra.mxu0 %v10568
    %v11021 = vpop.f32.mrf.mxu0
    %v11022 = vadd.f32 %v11002, %v11021
    %11023 = vdwg.mxu0
    %11024 = vmatpush.msra.mxu0 %v10828
    %11025 = vmatpush.msra.mxu0 %v10826
    %11026 = vmatpush.msra.mxu0 %v10824
    %11027 = vmatpush.msra.mxu0 %v10822
    %11028 = vmatpush.msra.mxu0 %v10820
    %11029 = vmatpush.msra.mxu0 %v10818
    %11030 = vmatpush.msra.mxu0 %v10816
    %11031 = vmatpush.msra.mxu0 %v10814
    %11032 = vmatpush.msra.mxu0 %v10812
    %11033 = vmatpush.msra.mxu0 %v10810
    %11034 = vmatpush.msra.mxu0 %v10808
    %11035 = vmatpush.msra.mxu0 %v10806
    %11036 = vmatpush.msra.mxu0 %v10804
    %11037 = vmatpush.msra.mxu0 %v10802
    %11038 = vmatpush.msra.mxu0 %v10800
    %11039 = vmatpush.msra.mxu0 %v10798
    %11040 = vmatmul.f32.gmra.mxu0 %v10569
    %v11041 = vpop.f32.mrf.mxu0
    %v11042 = vadd.f32 %v11022, %v11041
    %11043 = vdwg.mxu0
    %11044 = vmatpush.msra.mxu0 %v10860
    %11045 = vmatpush.msra.mxu0 %v10858
    %11046 = vmatpush.msra.mxu0 %v10856
    %11047 = vmatpush.msra.mxu0 %v10854
    %11048 = vmatpush.msra.mxu0 %v10852
    %11049 = vmatpush.msra.mxu0 %v10850
    %11050 = vmatpush.msra.mxu0 %v10848
    %11051 = vmatpush.msra.mxu0 %v10846
    %11052 = vmatpush.msra.mxu0 %v10844
    %11053 = vmatpush.msra.mxu0 %v10842
    %11054 = vmatpush.msra.mxu0 %v10840
    %11055 = vmatpush.msra.mxu0 %v10838
    %11056 = vmatpush.msra.mxu0 %v10836
    %11057 = vmatpush.msra.mxu0 %v10834
    %11058 = vmatpush.msra.mxu0 %v10832
    %11059 = vmatpush.msra.mxu0 %v10830
    %11060 = vmatmul.f32.gmra.mxu0 %v10570
    %v11061 = vpop.f32.mrf.mxu0
    %v11062 = vadd.f32 %v11042, %v11061
    %11063 = vdwg.mxu0
    %11064 = vmatpush.msra.mxu0 %v10892
    %11065 = vmatpush.msra.mxu0 %v10890
    %11066 = vmatpush.msra.mxu0 %v10888
    %11067 = vmatpush.msra.mxu0 %v10886
    %11068 = vmatpush.msra.mxu0 %v10884
    %11069 = vmatpush.msra.mxu0 %v10882
    %11070 = vmatpush.msra.mxu0 %v10880
    %11071 = vmatpush.msra.mxu0 %v10878
    %11072 = vmatpush.msra.mxu0 %v10876
    %11073 = vmatpush.msra.mxu0 %v10874
    %11074 = vmatpush.msra.mxu0 %v10872
    %11075 = vmatpush.msra.mxu0 %v10870
    %11076 = vmatpush.msra.mxu0 %v10868
    %11077 = vmatpush.msra.mxu0 %v10866
    %11078 = vmatpush.msra.mxu0 %v10864
    %11079 = vmatpush.msra.mxu0 %v10862
    %11080 = vmatmul.f32.gmra.mxu0 %v10571
    %v11081 = vpop.f32.mrf.mxu0
    %v11082 = vadd.f32 %v11062, %v11081
    %11083 = vdwg.mxu0
    %11084 = vmatpush.msra.mxu0 %v10924
    %11085 = vmatpush.msra.mxu0 %v10922
    %11086 = vmatpush.msra.mxu0 %v10920
    %11087 = vmatpush.msra.mxu0 %v10918
    %11088 = vmatpush.msra.mxu0 %v10916
    %11089 = vmatpush.msra.mxu0 %v10914
    %11090 = vmatpush.msra.mxu0 %v10912
    %11091 = vmatpush.msra.mxu0 %v10910
    %11092 = vmatpush.msra.mxu0 %v10908
    %11093 = vmatpush.msra.mxu0 %v10906
    %11094 = vmatpush.msra.mxu0 %v10904
    %11095 = vmatpush.msra.mxu0 %v10902
    %11096 = vmatpush.msra.mxu0 %v10900
    %11097 = vmatpush.msra.mxu0 %v10898
    %11098 = vmatpush.msra.mxu0 %v10896
    %11099 = vmatpush.msra.mxu0 %v10894
    %11100 = vmatmul.f32.gmra.mxu0 %v10572
    %v11101 = vpop.f32.mrf.mxu0
    %v11102 = vadd.f32 %v11082, %v11101
    %11103 = vdwg.mxu0
    %11104 = vmatpush.msra.mxu0 %v10956
    %11105 = vmatpush.msra.mxu0 %v10954
    %11106 = vmatpush.msra.mxu0 %v10952
    %11107 = vmatpush.msra.mxu0 %v10950
    %11108 = vmatpush.msra.mxu0 %v10948
    %11109 = vmatpush.msra.mxu0 %v10946
    %11110 = vmatpush.msra.mxu0 %v10944
    %11111 = vmatpush.msra.mxu0 %v10942
    %11112 = vmatpush.msra.mxu0 %v10940
    %11113 = vmatpush.msra.mxu0 %v10938
    %11114 = vmatpush.msra.mxu0 %v10936
    %11115 = vmatpush.msra.mxu0 %v10934
    %11116 = vmatpush.msra.mxu0 %v10932
    %11117 = vmatpush.msra.mxu0 %v10930
    %11118 = vmatpush.msra.mxu0 %v10928
    %11119 = vmatpush.msra.mxu0 %v10926
    %11120 = vmatmul.f32.gmra.mxu0 %v10573
    %v11121 = vpop.f32.mrf.mxu0
    %v11122 = vadd.f32 %v11102, %v11121
    %11123 = vdwg.mxu0
    %11124 = vmatpush.msra.mxu0 %v10733
    %11125 = vmatpush.msra.mxu0 %v10731
    %11126 = vmatpush.msra.mxu0 %v10729
    %11127 = vmatpush.msra.mxu0 %v10727
    %11128 = vmatpush.msra.mxu0 %v10725
    %11129 = vmatpush.msra.mxu0 %v10723
    %11130 = vmatpush.msra.mxu0 %v10721
    %11131 = vmatpush.msra.mxu0 %v10719
    %11132 = vmatpush.msra.mxu0 %v10717
    %11133 = vmatpush.msra.mxu0 %v10715
    %11134 = vmatpush.msra.mxu0 %v10713
    %11135 = vmatpush.msra.mxu0 %v10711
    %11136 = vmatpush.msra.mxu0 %v10709
    %11137 = vmatpush.msra.mxu0 %v10707
    %11138 = vmatpush.msra.mxu0 %v10705
    %11139 = vmatpush.msra.mxu0 %v10703
    %11140 = vmatmul.f32.gmra.mxu0 %v10566
    %v11141 = vpop.f32.mrf.mxu0
    %v11142 = vadd.f32 %v10961, %v11141
    %11143 = vdwg.mxu0
    %11144 = vmatpush.msra.mxu0 %v10765
    %11145 = vmatpush.msra.mxu0 %v10763
    %11146 = vmatpush.msra.mxu0 %v10761
    %11147 = vmatpush.msra.mxu0 %v10759
    %11148 = vmatpush.msra.mxu0 %v10757
    %11149 = vmatpush.msra.mxu0 %v10755
    %11150 = vmatpush.msra.mxu0 %v10753
    %11151 = vmatpush.msra.mxu0 %v10751
    %11152 = vmatpush.msra.mxu0 %v10749
    %11153 = vmatpush.msra.mxu0 %v10747
    %11154 = vmatpush.msra.mxu0 %v10745
    %11155 = vmatpush.msra.mxu0 %v10743
    %11156 = vmatpush.msra.mxu0 %v10741
    %11157 = vmatpush.msra.mxu0 %v10739
    %11158 = vmatpush.msra.mxu0 %v10737
    %11159 = vmatpush.msra.mxu0 %v10735
    %11160 = vmatmul.f32.gmra.mxu0 %v10567
    %v11161 = vpop.f32.mrf.mxu0
    %v11162 = vadd.f32 %v11142, %v11161
    %11163 = vdwg.mxu0
    %11164 = vmatpush.msra.mxu0 %v10797
    %11165 = vmatpush.msra.mxu0 %v10795
    %11166 = vmatpush.msra.mxu0 %v10793
    %11167 = vmatpush.msra.mxu0 %v10791
    %11168 = vmatpush.msra.mxu0 %v10789
    %11169 = vmatpush.msra.mxu0 %v10787
    %11170 = vmatpush.msra.mxu0 %v10785
    %11171 = vmatpush.msra.mxu0 %v10783
    %11172 = vmatpush.msra.mxu0 %v10781
    %11173 = vmatpush.msra.mxu0 %v10779
    %11174 = vmatpush.msra.mxu0 %v10777
    %11175 = vmatpush.msra.mxu0 %v10775
    %11176 = vmatpush.msra.mxu0 %v10773
    %11177 = vmatpush.msra.mxu0 %v10771
    %11178 = vmatpush.msra.mxu0 %v10769
    %11179 = vmatpush.msra.mxu0 %v10767
    %11180 = vmatmul.f32.gmra.mxu0 %v10568
    %v11181 = vpop.f32.mrf.mxu0
    %v11182 = vadd.f32 %v11162, %v11181
    %11183 = vdwg.mxu0
    %11184 = vmatpush.msra.mxu0 %v10829
    %11185 = vmatpush.msra.mxu0 %v10827
    %11186 = vmatpush.msra.mxu0 %v10825
    %11187 = vmatpush.msra.mxu0 %v10823
    %11188 = vmatpush.msra.mxu0 %v10821
    %11189 = vmatpush.msra.mxu0 %v10819
    %11190 = vmatpush.msra.mxu0 %v10817
    %11191 = vmatpush.msra.mxu0 %v10815
    %11192 = vmatpush.msra.mxu0 %v10813
    %11193 = vmatpush.msra.mxu0 %v10811
    %11194 = vmatpush.msra.mxu0 %v10809
    %11195 = vmatpush.msra.mxu0 %v10807
    %11196 = vmatpush.msra.mxu0 %v10805
    %11197 = vmatpush.msra.mxu0 %v10803
    %11198 = vmatpush.msra.mxu0 %v10801
    %11199 = vmatpush.msra.mxu0 %v10799
    %11200 = vmatmul.f32.gmra.mxu0 %v10569
    %v11201 = vpop.f32.mrf.mxu0
    %v11202 = vadd.f32 %v11182, %v11201
    %11203 = vdwg.mxu0
    %11204 = vmatpush.msra.mxu0 %v10861
    %11205 = vmatpush.msra.mxu0 %v10859
    %11206 = vmatpush.msra.mxu0 %v10857
    %11207 = vmatpush.msra.mxu0 %v10855
    %11208 = vmatpush.msra.mxu0 %v10853
    %11209 = vmatpush.msra.mxu0 %v10851
    %11210 = vmatpush.msra.mxu0 %v10849
    %11211 = vmatpush.msra.mxu0 %v10847
    %11212 = vmatpush.msra.mxu0 %v10845
    %11213 = vmatpush.msra.mxu0 %v10843
    %11214 = vmatpush.msra.mxu0 %v10841
    %11215 = vmatpush.msra.mxu0 %v10839
    %11216 = vmatpush.msra.mxu0 %v10837
    %11217 = vmatpush.msra.mxu0 %v10835
    %11218 = vmatpush.msra.mxu0 %v10833
    %11219 = vmatpush.msra.mxu0 %v10831
    %11220 = vmatmul.f32.gmra.mxu0 %v10570
    %v11221 = vpop.f32.mrf.mxu0
    %v11222 = vadd.f32 %v11202, %v11221
    %11223 = vdwg.mxu0
    %11224 = vmatpush.msra.mxu0 %v10893
    %11225 = vmatpush.msra.mxu0 %v10891
    %11226 = vmatpush.msra.mxu0 %v10889
    %11227 = vmatpush.msra.mxu0 %v10887
    %11228 = vmatpush.msra.mxu0 %v10885
    %11229 = vmatpush.msra.mxu0 %v10883
    %11230 = vmatpush.msra.mxu0 %v10881
    %11231 = vmatpush.msra.mxu0 %v10879
    %11232 = vmatpush.msra.mxu0 %v10877
    %11233 = vmatpush.msra.mxu0 %v10875
    %11234 = vmatpush.msra.mxu0 %v10873
    %11235 = vmatpush.msra.mxu0 %v10871
    %11236 = vmatpush.msra.mxu0 %v10869
    %11237 = vmatpush.msra.mxu0 %v10867
    %11238 = vmatpush.msra.mxu0 %v10865
    %11239 = vmatpush.msra.mxu0 %v10863
    %11240 = vmatmul.f32.gmra.mxu0 %v10571
    %v11241 = vpop.f32.mrf.mxu0
    %v11242 = vadd.f32 %v11222, %v11241
    %11243 = vdwg.mxu0
    %11244 = vmatpush.msra.mxu0 %v10925
    %11245 = vmatpush.msra.mxu0 %v10923
    %11246 = vmatpush.msra.mxu0 %v10921
    %11247 = vmatpush.msra.mxu0 %v10919
    %11248 = vmatpush.msra.mxu0 %v10917
    %11249 = vmatpush.msra.mxu0 %v10915
    %11250 = vmatpush.msra.mxu0 %v10913
    %11251 = vmatpush.msra.mxu0 %v10911
    %11252 = vmatpush.msra.mxu0 %v10909
    %11253 = vmatpush.msra.mxu0 %v10907
    %11254 = vmatpush.msra.mxu0 %v10905
    %11255 = vmatpush.msra.mxu0 %v10903
    %11256 = vmatpush.msra.mxu0 %v10901
    %11257 = vmatpush.msra.mxu0 %v10899
    %11258 = vmatpush.msra.mxu0 %v10897
    %11259 = vmatpush.msra.mxu0 %v10895
    %11260 = vmatmul.f32.gmra.mxu0 %v10572
    %v11261 = vpop.f32.mrf.mxu0
    %v11262 = vadd.f32 %v11242, %v11261
    %11263 = vdwg.mxu0
    %11264 = vmatpush.msra.mxu0 %v10957
    %11265 = vmatpush.msra.mxu0 %v10955
    %11266 = vmatpush.msra.mxu0 %v10953
    %11267 = vmatpush.msra.mxu0 %v10951
    %11268 = vmatpush.msra.mxu0 %v10949
    %11269 = vmatpush.msra.mxu0 %v10947
    %11270 = vmatpush.msra.mxu0 %v10945
    %11271 = vmatpush.msra.mxu0 %v10943
    %11272 = vmatpush.msra.mxu0 %v10941
    %11273 = vmatpush.msra.mxu0 %v10939
    %11274 = vmatpush.msra.mxu0 %v10937
    %11275 = vmatpush.msra.mxu0 %v10935
    %11276 = vmatpush.msra.mxu0 %v10933
    %11277 = vmatpush.msra.mxu0 %v10931
    %11278 = vmatpush.msra.mxu0 %v10929
    %11279 = vmatpush.msra.mxu0 %v10927
    %11280 = vmatmul.f32.gmra.mxu0 %v10573
    %v11281 = vpop.f32.mrf.mxu0
    %v11282 = vadd.f32 %v11262, %v11281
    %11283 = vdwg.mxu0
    %v11284 = vlaneseq
    %v11285 = vand.u32 %v11284, 127
    %v11286 = vadd.s32 %v11285, 128
    %v11287 = vand.u32 %v11285, 7
    %v11288 = vand.u32 %v11286, 7
    %11289 = vrot.lane.b32.xlu0 %v11122, 1
    %v11290 = vpop.permute.xlu0 %11289
    %11291 = vrot.lane.b32.xlu0 %v11282, 1
    %v11292 = vpop.permute.xlu0 %11291
    %vm11293 = vcmp.lt.s32.totalorder %v11285, 1
    %v11294 = vsel %vm11293, %v11290, %v11292
    %v11295 = vsel %vm11293, %v11292, %v11290
    %11296 = vrot.lane.b32.xlu0 %v11122, 121
    %v11297 = vpop.permute.xlu0 %11296
    %11298 = vrot.lane.b32.xlu0 %v11282, 121
    %v11299 = vpop.permute.xlu0 %11298
    %vm11300 = vcmp.lt.s32.totalorder %v11285, 121
    %v11301 = vsel %vm11300, %v11297, %v11299
    %v11302 = vsel %vm11300, %v11299, %v11297
    %vm11303 = vcmp.ge.s32.totalorder %v11287, 1
    %vm11304 = vcmp.ge.s32.totalorder %v11288, 1
    %v11305 = vsel %vm11303, %v11295, %v11301
    %v11306 = vsel %vm11304, %v11294, %v11302
    %v11307 = vmax.f32 %v11122, %v11305
    %v11308 = vmax.f32 %v11282, %v11306
    %11309 = vrot.lane.b32.xlu0 %v11307, 2
    %v11310 = vpop.permute.xlu0 %11309
    %11311 = vrot.lane.b32.xlu0 %v11308, 2
    %v11312 = vpop.permute.xlu0 %11311
    %vm11313 = vcmp.lt.s32.totalorder %v11285, 2
    %v11314 = vsel %vm11313, %v11310, %v11312
    %v11315 = vsel %vm11313, %v11312, %v11310
    %11316 = vrot.lane.b32.xlu0 %v11307, 122
    %v11317 = vpop.permute.xlu0 %11316
    %11318 = vrot.lane.b32.xlu0 %v11308, 122
    %v11319 = vpop.permute.xlu0 %11318
    %vm11320 = vcmp.lt.s32.totalorder %v11285, 122
    %v11321 = vsel %vm11320, %v11317, %v11319
    %v11322 = vsel %vm11320, %v11319, %v11317
    %vm11323 = vcmp.ge.s32.totalorder %v11287, 2
    %vm11324 = vcmp.ge.s32.totalorder %v11288, 2
    %v11325 = vsel %vm11323, %v11315, %v11321
    %v11326 = vsel %vm11324, %v11314, %v11322
    %v11327 = vmax.f32 %v11307, %v11325
    %v11328 = vmax.f32 %v11308, %v11326
    %11329 = vrot.lane.b32.xlu0 %v11327, 4
    %v11330 = vpop.permute.xlu0 %11329
    %11331 = vrot.lane.b32.xlu0 %v11328, 4
    %v11332 = vpop.permute.xlu0 %11331
    %vm11333 = vcmp.lt.s32.totalorder %v11285, 4
    %v11334 = vsel %vm11333, %v11330, %v11332
    %v11335 = vsel %vm11333, %v11332, %v11330
    %11336 = vrot.lane.b32.xlu0 %v11327, 124
    %v11337 = vpop.permute.xlu0 %11336
    %11338 = vrot.lane.b32.xlu0 %v11328, 124
    %v11339 = vpop.permute.xlu0 %11338
    %vm11340 = vcmp.lt.s32.totalorder %v11285, 124
    %v11341 = vsel %vm11340, %v11337, %v11339
    %v11342 = vsel %vm11340, %v11339, %v11337
    %vm11343 = vcmp.ge.s32.totalorder %v11287, 4
    %vm11344 = vcmp.ge.s32.totalorder %v11288, 4
    %v11345 = vsel %vm11343, %v11335, %v11341
    %v11346 = vsel %vm11344, %v11334, %v11342
    %v11347 = vmax.f32 %v11327, %v11345
    %v11348 = vmax.f32 %v11328, %v11346
    %v11349 = vsub.f32 %v11122, %v11347
    %v11350 = vsub.f32 %v11282, %v11348
    %v11351 = vmul.f32 %v11349, 1.442695
    %v11352 = vpow.pop %v11351
    %v11353 = vmul.f32 %v11350, 1.442695
    %v11354 = vpow.pop %v11353
    %11355 = vrot.lane.b32.xlu0 %v11352, 1
    %v11356 = vpop.permute.xlu0 %11355
    %11357 = vrot.lane.b32.xlu0 %v11354, 1
    %v11358 = vpop.permute.xlu0 %11357
    %v11359 = vsel %vm11293, %v11356, %v11358
    %v11360 = vsel %vm11293, %v11358, %v11356
    %11361 = vrot.lane.b32.xlu0 %v11352, 121
    %v11362 = vpop.permute.xlu0 %11361
    %11363 = vrot.lane.b32.xlu0 %v11354, 121
    %v11364 = vpop.permute.xlu0 %11363
    %v11365 = vsel %vm11300, %v11362, %v11364
    %v11366 = vsel %vm11300, %v11364, %v11362
    %v11367 = vsel %vm11303, %v11360, %v11365
    %v11368 = vsel %vm11304, %v11359, %v11366
    %v11369 = vadd.f32 %v11352, %v11367
    %v11370 = vadd.f32 %v11354, %v11368
    %11371 = vrot.lane.b32.xlu0 %v11369, 2
    %v11372 = vpop.permute.xlu0 %11371
    %11373 = vrot.lane.b32.xlu0 %v11370, 2
    %v11374 = vpop.permute.xlu0 %11373
    %v11375 = vsel %vm11313, %v11372, %v11374
    %v11376 = vsel %vm11313, %v11374, %v11372
    %11377 = vrot.lane.b32.xlu0 %v11369, 122
    %v11378 = vpop.permute.xlu0 %11377
    %11379 = vrot.lane.b32.xlu0 %v11370, 122
    %v11380 = vpop.permute.xlu0 %11379
    %v11381 = vsel %vm11320, %v11378, %v11380
    %v11382 = vsel %vm11320, %v11380, %v11378
    %v11383 = vsel %vm11323, %v11376, %v11381
    %v11384 = vsel %vm11324, %v11375, %v11382
    %v11385 = vadd.f32 %v11369, %v11383
    %v11386 = vadd.f32 %v11370, %v11384
    %11387 = vrot.lane.b32.xlu0 %v11385, 4
    %v11388 = vpop.permute.xlu0 %11387
    %11389 = vrot.lane.b32.xlu0 %v11386, 4
    %v11390 = vpop.permute.xlu0 %11389
    %v11391 = vsel %vm11333, %v11388, %v11390
    %v11392 = vsel %vm11333, %v11390, %v11388
    %11393 = vrot.lane.b32.xlu0 %v11385, 124
    %v11394 = vpop.permute.xlu0 %11393
    %11395 = vrot.lane.b32.xlu0 %v11386, 124
    %v11396 = vpop.permute.xlu0 %11395
    %v11397 = vsel %vm11340, %v11394, %v11396
    %v11398 = vsel %vm11340, %v11396, %v11394
    %v11399 = vsel %vm11343, %v11392, %v11397
    %v11400 = vsel %vm11344, %v11391, %v11398
    %v11401 = vadd.f32 %v11385, %v11399
    %v11402 = vadd.f32 %v11386, %v11400
    %v11403 = vrcp.pop %v11401
    %v11404 = vmul.f32 %v11401, %v11403
    %v11405 = vsub.f32 1.0, %v11404
    %v11406 = vmul.f32 %v11403, %v11405
    %v11407 = vadd.f32 %v11403, %v11406
    %vm11408 = vweird.f32 %v11401
    %vm11409 = vweird.f32 %v11403
    %vm11410 = vmor %vm11408, %vm11409
    %v11411 = vsel %vm11410, %v11403, %v11407
    %v11412 = vand.u32 2147483647, %v11401
    %vm11413 = vcmp.eq.f32.partialorder %v11412, 8.507059e+37
    %v11414 = vand.u32 %v11401, 2147483648
    %v11415 = vor.u32 1.1754944e-38, %v11414
    %v11416 = vsel %vm11413, %v11415, %v11411
    %v11417 = vmul.f32 %v11352, %v11416
    %v11418 = vrcp.pop %v11402
    %v11419 = vmul.f32 %v11402, %v11418
    %v11420 = vsub.f32 1.0, %v11419
    %v11421 = vmul.f32 %v11418, %v11420
    %v11422 = vadd.f32 %v11418, %v11421
    %vm11423 = vweird.f32 %v11402
    %vm11424 = vweird.f32 %v11418
    %vm11425 = vmor %vm11423, %vm11424
    %v11426 = vsel %vm11425, %v11418, %v11422
    %v11427 = vand.u32 2147483647, %v11402
    %vm11428 = vcmp.eq.f32.partialorder %v11427, 8.507059e+37
    %v11429 = vand.u32 %v11402, 2147483648
    %v11430 = vor.u32 1.1754944e-38, %v11429
    %v11431 = vsel %vm11428, %v11430, %v11426
    %v11432 = vmul.f32 %v11354, %v11431
    %11433 = vst [vmem:[#allocation14] sm:$0xff] %v11417
    %11434 = vst [vmem:[#allocation14 + $0x8] sm:$0xff] %v11432
    // Predicated region
    $region58: #{tpu_custom_call.1} parent=1 // pred_check
      _
    $region59: #{tpu_custom_call.1} parent=1 // pred_check_branch
      %11436 = sbr.rel (0) target = $region61
    $region60: #{tpu_custom_call.1} parent=1 // pred_region
      %11438 = vsyncadd [#allocation4], 0
      %s11440 = sshll.u32 [#allocation14], 4
      %s11441 = int_to_ptr.vmem [resolvable:$true] %s11440
      %s11442 = sshll.u32 %s7, 4
      %s11443 = int_to_ptr.hbm [resolvable:$true] %s11442
      %11445 = dma.vmem_to_hbm [thread:$0]  %s11441, 256, %s11443, [#allocation4]
    $region61: #{tpu_custom_call.1} parent=1 // pred_fallthru
      _
    // Predicated region
    $region62: #{tpu_custom_call.1} parent=1 // pred_check
      _
    $region63: #{tpu_custom_call.1} parent=1 // pred_check_branch
      %11447 = sbr.rel (0) target = $region65
    $region64: #{tpu_custom_call.1} parent=1 // pred_region
      %11449 = dma.done [#allocation4], 256
    $region65: #{tpu_custom_call.1} parent=1 // pred_fallthru
      _
    %11450 = vsyncpa [#allocation3], 1
    %11451 = vsyncpa [#allocation6], 1
    %11452 = vsyncpa [#allocation9], 1
    %11453 = vsyncpa [#allocation12], 1
    %11454 = vsyncpa [#allocation4], 1

</llo_original>
